<compile_context>
chip_gen: v7x
topology: tpu7x:2x2x1
jax: 0.10.0
libtpu: 0.0.40
codegen_flags: <defaults>
</compile_context>

<pallas_src>
import functools

import jax
import jax.numpy as jnp
from jax.experimental import pallas as pl
from jax.experimental.pallas import tpu as pltpu


# ---------------------------------------------------------------------------
# Kernel
# ---------------------------------------------------------------------------
def _encoder_kernel(*refs, n_layers, T, B, H, mxu_dtype):
    """Fused bidirectional multi-layer LSTM forward.

    ref order: [x_in, (w_ih, w_hh, b) * n_layers, y, h_n, c_n, x_a, x_b, gx]
      x_in : (T*B, D0)                time-major flattened embeddings
      w_ih : (Din, 8H)                packed cols [i_f i_b|f_f f_b|o_f o_b|g_f g_b]
      w_hh : (2H, 8H)                 block-diagonal (rows 0:H -> fwd, H:2H -> bwd)
      b    : (1, 8H)
      y    : (T*B, 2H)                [fwd | bwd] per timestep
      h_n/c_n : (2*n_layers, B, H)
      x_a/x_b : (T*B, 2H) VMEM        ping-pong inter-layer activations
      gx      : (T*B, 8H) VMEM        hoisted input-projection gate pre-activations
    """
    n_w = 3 * n_layers
    x_in_ref = refs[0]
    w_refs = refs[1:1 + n_w]
    y_ref, h_n_ref, c_n_ref = refs[1 + n_w:4 + n_w]
    x_a, x_b, gx_sc = refs[4 + n_w:7 + n_w]

    H2 = 2 * H
    # Lane mask: inside each 2H-wide gate block, first H lanes = forward dir,
    # last H lanes = backward dir.  Constant, hoisted out of all loops.
    col = jax.lax.broadcasted_iota(jnp.int32, (1, 8 * H), 1)
    fwd_mask = (col % H2) < H

    bufs = (x_a, x_b)
    for layer in range(n_layers):
        wih_ref = w_refs[3 * layer]
        whh_ref = w_refs[3 * layer + 1]
        b_ref = w_refs[3 * layer + 2]

        in_ref = x_in_ref if layer == 0 else bufs[(layer - 1) % 2]
        out_ref = y_ref if layer == n_layers - 1 else bufs[layer % 2]

        # ---- Phase 1: input projection for all T steps / both directions ----
        x_all = in_ref[...]                                   # (T*B, Din)
        gx_sc[...] = (
            jnp.dot(x_all.astype(mxu_dtype), wih_ref[...].astype(mxu_dtype),
                    preferred_element_type=jnp.float32)
            + b_ref[...])                                     # (T*B, 8H)

        # ---- Phase 2: serial recurrence, fwd + bwd fused ----
        whh = whh_ref[...].astype(mxu_dtype)                  # (2H, 8H)
        h = jnp.zeros((B, H2), jnp.float32)                   # [h_fwd | h_bwd]
        c = jnp.zeros((B, H2), jnp.float32)
        for s in range(T):
            r = T - 1 - s
            gx_f = gx_sc[s * B:(s + 1) * B, :]                # fwd consumes x[s]
            gx_b = gx_sc[r * B:(r + 1) * B, :]                # bwd consumes x[T-1-s]
            gates = (jnp.where(fwd_mask, gx_f, gx_b)
                     + jnp.dot(h.astype(mxu_dtype), whh,
                               preferred_element_type=jnp.float32))  # (B, 8H)

            sig = jax.nn.sigmoid(gates[:, 0:3 * H2])          # i, f, o in one slab
            i_g = sig[:, 0:H2]
            f_g = sig[:, H2:2 * H2]
            o_g = sig[:, 2 * H2:3 * H2]
            g_g = jnp.tanh(gates[:, 3 * H2:4 * H2])

            c = f_g * c + i_g * g_g
            h = o_g * jnp.tanh(c)

            # forward half belongs to time s, backward half to time T-1-s
            out_ref[s * B:(s + 1) * B, 0:H] = h[:, 0:H]
            out_ref[r * B:(r + 1) * B, H:H2] = h[:, H:H2]

        # ---- Final states, PyTorch layout: index = 2*layer + direction ----
        h_n_ref[2 * layer] = h[:, 0:H]
        h_n_ref[2 * layer + 1] = h[:, H:H2]
        c_n_ref[2 * layer] = c[:, 0:H]
        c_n_ref[2 * layer + 1] = c[:, H:H2]


# ---------------------------------------------------------------------------
# pallas_call wrapper
# ---------------------------------------------------------------------------
def encoder_pallas(x_tb, packed_weights, *, T, B, H, n_layers,
                   mxu_dtype=jnp.float32):
    """x_tb: (T*B, D0) time-major flattened input.  Returns (y2d, h_n, c_n)."""
    H2 = 2 * H
    kernel = functools.partial(_encoder_kernel, n_layers=n_layers, T=T, B=B,
                               H=H, mxu_dtype=mxu_dtype)

    def full_spec(shape):
        nd = len(shape)
        return pl.BlockSpec(shape, lambda i, nd=nd: (0,) * nd)

    in_specs = [full_spec(x_tb.shape)] + [full_spec(w.shape)
                                          for w in packed_weights]
    out_shape = (jax.ShapeDtypeStruct((T * B, H2), jnp.float32),
                 jax.ShapeDtypeStruct((2 * n_layers, B, H), jnp.float32),
                 jax.ShapeDtypeStruct((2 * n_layers, B, H), jnp.float32))
    out_specs = [full_spec(s.shape) for s in out_shape]

    return pl.pallas_call(
        kernel,
        out_shape=out_shape,
        grid_spec=pltpu.PrefetchScalarGridSpec(
            num_scalar_prefetch=0,
            grid=(1,),
            in_specs=in_specs,
            out_specs=out_specs,
            scratch_shapes=[pltpu.VMEM((T * B, H2), jnp.float32),
                            pltpu.VMEM((T * B, H2), jnp.float32),
                            pltpu.VMEM((T * B, 8 * H), jnp.float32)],
        ),
        compiler_params=pltpu.CompilerParams(
            dimension_semantics=("arbitrary",)),
    )(x_tb, *packed_weights)


# ---------------------------------------------------------------------------
# Parameter generation / packing
# ---------------------------------------------------------------------------
def init_encoder_params(key, word_vec_dim, hidden_size, n_layers):
    """Synthetic params matching nn.LSTM shapes (kept transposed for matmul)."""
    H = hidden_size // 2
    params = {}
    for layer in range(n_layers):
        d_in = word_vec_dim if layer == 0 else 2 * H
        for direction in range(2):
            key, k1, k2, k3, k4 = jax.random.split(key, 5)
            scale = 1.0 / jnp.sqrt(H)
            w_ih = jax.random.normal(k1, (d_in, 4 * H), jnp.float32) * scale
            w_hh = jax.random.normal(k2, (H, 4 * H), jnp.float32) * scale
            b_ih = jax.random.normal(k3, (4 * H,), jnp.float32) * scale
            b_hh = jax.random.normal(k4, (4 * H,), jnp.float32) * scale
            b = (b_ih + b_hh).reshape(1, 4 * H)
            params[(layer, direction)] = (w_ih, w_hh, b)
    return params


def _pack_gate_cols(w_f, w_b, H):
    """Pack per-direction (rows, 4H) [i|f|g|o] matrices into (rows, 8H) with
    column order [i_f i_b | f_f f_b | o_f o_b | g_f g_b] (sigmoid gates first)."""
    order = (0, 1, 3, 2)   # i, f, o, g
    cols = []
    for k in order:
        cols.append(w_f[:, k * H:(k + 1) * H])
        cols.append(w_b[:, k * H:(k + 1) * H])
    return jnp.concatenate(cols, axis=1)


def pack_encoder_params(params, n_layers, H):
    packed = []
    for layer in range(n_layers):
        w_ih_f, w_hh_f, b_f = params[(layer, 0)]
        w_ih_b, w_hh_b, b_b = params[(layer, 1)]
        wih_c = _pack_gate_cols(w_ih_f, w_ih_b, H)                    # (Din, 8H)
        # Block-diagonal recurrence: rows 0:H act on h_fwd, rows H:2H on h_bwd.
        whh_f_ext = jnp.concatenate([w_hh_f, jnp.zeros_like(w_hh_f)], axis=0)
        whh_b_ext = jnp.concatenate([jnp.zeros_like(w_hh_b), w_hh_b], axis=0)
        whh_c = _pack_gate_cols(whh_f_ext, whh_b_ext, H)              # (2H, 8H)
        b_c = _pack_gate_cols(b_f, b_b, H)                            # (1, 8H)
        packed.extend([wih_c, whh_c, b_c])
    return packed


# ---------------------------------------------------------------------------
# Public forward (matches PyTorch Encoder.forward for plain-tensor input)
# ---------------------------------------------------------------------------
def encoder_forward(emb, params, n_layers, hidden_size):
    """emb: (B, T, word_vec_dim) -> (y, (h_n, c_n))."""
    B, T, _ = emb.shape
    H = hidden_size // 2
    x_tb = jnp.transpose(emb, (1, 0, 2)).reshape(T * B, -1).astype(jnp.float32)
    packed = pack_encoder_params(params, n_layers, H)
    y2d, h_n, c_n = encoder_pallas(x_tb, packed, T=T, B=B, H=H,
                                   n_layers=n_layers)
    y = jnp.transpose(y2d.reshape(T, B, 2 * H), (1, 0, 2))   # batch_first
    return y, (h_n, c_n)


# ---------------------------------------------------------------------------
# Pure-JAX reference (same math as PyTorch nn.LSTM eval) for validation
# ---------------------------------------------------------------------------
def _lstm_ref_single(x_tbd, w_ih, w_hh, b):
    T, B, _ = x_tbd.shape
    H = w_hh.shape[0]
    hi = jax.lax.Precision.HIGHEST
    h = jnp.zeros((B, H), jnp.float32)
    c = jnp.zeros((B, H), jnp.float32)
    ys = []
    for t in range(T):
        gates = (jnp.dot(x_tbd[t], w_ih, precision=hi)
                 + jnp.dot(h, w_hh, precision=hi) + b)
        i = jax.nn.sigmoid(gates[:, 0:H])
        f = jax.nn.sigmoid(gates[:, H:2 * H])
        g = jnp.tanh(gates[:, 2 * H:3 * H])
        o = jax.nn.sigmoid(gates[:, 3 * H:4 * H])
        c = f * c + i * g
        h = o * jnp.tanh(c)
        ys.append(h)
    return jnp.stack(ys, 0), h, c


def encoder_reference(emb, params, n_layers):
    x = jnp.transpose(emb, (1, 0, 2)).astype(jnp.float32)
    hs, cs = [], []
    for layer in range(n_layers):
        wf, whf, bf = params[(layer, 0)]
        wb, whb, bb = params[(layer, 1)]
        yf, hf, cf = _lstm_ref_single(x, wf, whf, bf)
        yb, hb, cb = _lstm_ref_single(x[::-1], wb, whb, bb)
        x = jnp.concatenate([yf, yb[::-1]], axis=-1)
        hs += [hf, hb]
        cs += [cf, cb]
    return jnp.transpose(x, (1, 0, 2)), (jnp.stack(hs, 0), jnp.stack(cs, 0))


if __name__ == "__main__":
    batch, seq, word_vec_dim, hidden_size, n_layers = 2, 8, 32, 32, 4

    key = jax.random.PRNGKey(0)
    key, k_emb = jax.random.split(key)
    emb = jax.random.normal(k_emb, (batch, seq, word_vec_dim), jnp.float32)
    params = init_encoder_params(key, word_vec_dim, hidden_size, n_layers)

    y, (h_n, c_n) = encoder_forward(emb, params, n_layers, hidden_size)
    jax.block_until_ready((y, h_n, c_n))

    assert y.shape == (batch, seq, hidden_size)
    assert h_n.shape == (n_layers * 2, batch, hidden_size // 2)
    assert c_n.shape == (n_layers * 2, batch, hidden_size // 2)
    assert jnp.all(jnp.isfinite(y))
    assert jnp.all(jnp.isfinite(h_n))
    assert jnp.all(jnp.isfinite(c_n))

    # Numerical check against the pure-JAX LSTM reference.
    y_r, (h_r, c_r) = encoder_reference(emb, params, n_layers)
    assert jnp.max(jnp.abs(y - y_r)) < 2e-2
    assert jnp.max(jnp.abs(h_n - h_r)) < 2e-2
    assert jnp.max(jnp.abs(c_n - c_r)) < 2e-2

    print("KERNEL_OK")
</pallas_src>

<mosaic_0001>
module attributes {stable_mosaic.version = 11 : i64} {
  func.func @_encoder_kernel(%arg0: i32, %arg1: memref<16x32xf32, #tpu.memory_space<vmem>>, %arg2: memref<32x128xf32, #tpu.memory_space<vmem>>, %arg3: memref<32x128xf32, #tpu.memory_space<vmem>>, %arg4: memref<1x128xf32, #tpu.memory_space<vmem>>, %arg5: memref<32x128xf32, #tpu.memory_space<vmem>>, %arg6: memref<32x128xf32, #tpu.memory_space<vmem>>, %arg7: memref<1x128xf32, #tpu.memory_space<vmem>>, %arg8: memref<32x128xf32, #tpu.memory_space<vmem>>, %arg9: memref<32x128xf32, #tpu.memory_space<vmem>>, %arg10: memref<1x128xf32, #tpu.memory_space<vmem>>, %arg11: memref<32x128xf32, #tpu.memory_space<vmem>>, %arg12: memref<32x128xf32, #tpu.memory_space<vmem>>, %arg13: memref<1x128xf32, #tpu.memory_space<vmem>>, %arg14: memref<16x32xf32, #tpu.memory_space<vmem>>, %arg15: memref<8x2x16xf32, #tpu.memory_space<vmem>>, %arg16: memref<8x2x16xf32, #tpu.memory_space<vmem>>, %arg17: memref<16x32xf32, #tpu.memory_space<vmem>>, %arg18: memref<16x32xf32, #tpu.memory_space<vmem>>, %arg19: memref<16x128xf32, #tpu.memory_space<vmem>>) attributes {dimension_semantics = [#tpu.dimension_semantics<arbitrary>], iteration_bounds = array<i64: 1>, scalar_prefetch = 0 : i64, scratch_operands = 3 : i64, tpu.core_type = #tpu.core_type<tc>, window_params = [{pipeline_mode = #tpu.pipeline_mode<synchronous>, transform_indices = @transform_0, window_bounds = array<i64: 16, 32>}, {pipeline_mode = #tpu.pipeline_mode<synchronous>, transform_indices = @transform_1, window_bounds = array<i64: 32, 128>}, {pipeline_mode = #tpu.pipeline_mode<synchronous>, transform_indices = @transform_2, window_bounds = array<i64: 32, 128>}, {pipeline_mode = #tpu.pipeline_mode<synchronous>, transform_indices = @transform_3, window_bounds = array<i64: 1, 128>}, {pipeline_mode = #tpu.pipeline_mode<synchronous>, transform_indices = @transform_4, window_bounds = array<i64: 32, 128>}, {pipeline_mode = #tpu.pipeline_mode<synchronous>, transform_indices = @transform_5, window_bounds = array<i64: 32, 128>}, {pipeline_mode = #tpu.pipeline_mode<synchronous>, transform_indices = @transform_6, window_bounds = array<i64: 1, 128>}, {pipeline_mode = #tpu.pipeline_mode<synchronous>, transform_indices = @transform_7, window_bounds = array<i64: 32, 128>}, {pipeline_mode = #tpu.pipeline_mode<synchronous>, transform_indices = @transform_8, window_bounds = array<i64: 32, 128>}, {pipeline_mode = #tpu.pipeline_mode<synchronous>, transform_indices = @transform_9, window_bounds = array<i64: 1, 128>}, {pipeline_mode = #tpu.pipeline_mode<synchronous>, transform_indices = @transform_10, window_bounds = array<i64: 32, 128>}, {pipeline_mode = #tpu.pipeline_mode<synchronous>, transform_indices = @transform_11, window_bounds = array<i64: 32, 128>}, {pipeline_mode = #tpu.pipeline_mode<synchronous>, transform_indices = @transform_12, window_bounds = array<i64: 1, 128>}, {pipeline_mode = #tpu.pipeline_mode<synchronous>, transform_indices = @transform_13, window_bounds = array<i64: 16, 32>}, {pipeline_mode = #tpu.pipeline_mode<synchronous>, transform_indices = @transform_14, window_bounds = array<i64: 8, 2, 16>}, {pipeline_mode = #tpu.pipeline_mode<synchronous>, transform_indices = @transform_15, window_bounds = array<i64: 8, 2, 16>}]} {
    %0 = tpu.iota {dimensions = array<i32: 1>} : vector<1x128xi32>
    %c32_i32 = arith.constant 32 : i32
    %c0_i32 = arith.constant 0 : i32
    %1 = arith.cmpi eq, %c32_i32, %c0_i32 : i32
    %c1_i32 = arith.constant 1 : i32
    %2 = arith.select %1, %c1_i32, %c32_i32 : i32
    %3 = vector.broadcast %2 : i32 to vector<1x128xi32>
    %4 = arith.remsi %0, %3 : vector<1x128xi32>
    %c0_i32_0 = arith.constant 0 : i32
    %5 = vector.broadcast %c0_i32_0 : i32 to vector<1x128xi32>
    %6 = arith.cmpi ne, %4, %5 : vector<1x128xi32>
    %c0_i32_1 = arith.constant 0 : i32
    %7 = vector.broadcast %c0_i32_1 : i32 to vector<1x128xi32>
    %8 = arith.cmpi slt, %4, %7 : vector<1x128xi32>
    %c0_i32_2 = arith.constant 0 : i32
    %9 = arith.cmpi slt, %2, %c0_i32_2 : i32
    %10 = vector.broadcast %9 : i1 to vector<1x128xi1>
    %11 = vector.broadcast %10 : vector<1x128xi1> to vector<1x128xi1>
    %12 = arith.xori %8, %11 : vector<1x128xi1>
    %13 = arith.andi %12, %6 : vector<1x128xi1>
    %14 = vector.broadcast %2 : i32 to vector<1x128xi32>
    %15 = arith.addi %4, %14 : vector<1x128xi32>
    %16 = arith.select %13, %15, %4 : vector<1x128xi1>, vector<1x128xi32>
    %c16_i32 = arith.constant 16 : i32
    %17 = vector.broadcast %c16_i32 : i32 to vector<1x128xi32>
    %18 = arith.cmpi slt, %16, %17 : vector<1x128xi32>
    %c0 = arith.constant 0 : index
    %c0_3 = arith.constant 0 : index
    %19 = vector.load %arg1[%c0, %c0_3] : memref<16x32xf32, #tpu.memory_space<vmem>>, vector<16x32xf32>
    %c0_4 = arith.constant 0 : index
    %c0_5 = arith.constant 0 : index
    %20 = vector.load %arg2[%c0_4, %c0_5] : memref<32x128xf32, #tpu.memory_space<vmem>>, vector<32x128xf32>
    %cst = arith.constant dense<0.000000e+00> : vector<16x128xf32>
    %21 = tpu.matmul %19, %20, %cst {dimension_numbers = #tpu.dot_dimension_numbers<[1], [0], [0], [1], [0, 0, 1, 1], [], []>} : vector<16x32xf32>, vector<32x128xf32>, vector<16x128xf32> -> vector<16x128xf32>
    %c0_6 = arith.constant 0 : index
    %c0_7 = arith.constant 0 : index
    %22 = vector.load %arg4[%c0_6, %c0_7] : memref<1x128xf32, #tpu.memory_space<vmem>>, vector<1x128xf32>
    %23 = vector.broadcast %22 : vector<1x128xf32> to vector<16x128xf32>
    %24 = arith.addf %21, %23 : vector<16x128xf32>
    %c0_8 = arith.constant 0 : index
    %c0_9 = arith.constant 0 : index
    %25 = vector.load %arg19[%c0_8, %c0_9] : memref<16x128xf32, #tpu.memory_space<vmem>>, vector<16x128xf32>
    tpu.vector_store %arg19[%c0_8, %c0_9], %24 {strides = array<i32>} : memref<16x128xf32, #tpu.memory_space<vmem>>, vector<16x128xf32>,
    %c0_10 = arith.constant 0 : index
    %c0_11 = arith.constant 0 : index
    %26 = vector.load %arg3[%c0_10, %c0_11] : memref<32x128xf32, #tpu.memory_space<vmem>>, vector<32x128xf32>
    %cst_12 = arith.constant 0.000000e+00 : f32
    %27 = vector.broadcast %cst_12 : f32 to vector<2x32xf32>
    %cst_13 = arith.constant 0.000000e+00 : f32
    %28 = vector.broadcast %cst_13 : f32 to vector<2x32xf32>
    %c0_14 = arith.constant 0 : index
    %c0_15 = arith.constant 0 : index
    %29 = vector.load %arg19[%c0_14, %c0_15] : memref<16x128xf32, #tpu.memory_space<vmem>>, vector<2x128xf32>
    %c14 = arith.constant 14 : index
    %c0_16 = arith.constant 0 : index
    %30 = vector.load %arg19[%c14, %c0_16] : memref<16x128xf32, #tpu.memory_space<vmem>>, vector<2x128xf32>
    %31 = vector.shape_cast %18 : vector<1x128xi1> to vector<1x128xi1>
    %32 = vector.broadcast %31 : vector<1x128xi1> to vector<2x128xi1>
    %33 = arith.select %32, %29, %30 : vector<2x128xi1>, vector<2x128xf32>
    %cst_17 = arith.constant dense<0.000000e+00> : vector<2x128xf32>
    %34 = tpu.matmul %27, %26, %cst_17 {dimension_numbers = #tpu.dot_dimension_numbers<[1], [0], [0], [1], [0, 0, 1, 1], [], []>} : vector<2x32xf32>, vector<32x128xf32>, vector<2x128xf32> -> vector<2x128xf32>
    %35 = arith.addf %33, %34 : vector<2x128xf32>
    %36 = vector.extract_strided_slice %35 {offsets = [0, 0], sizes = [2, 96], strides = [1, 1]} : vector<2x128xf32> to vector<2x96xf32>
    %37 = arith.negf %36 : vector<2x96xf32>
    %38 = math.exp %37 : vector<2x96xf32>
    %cst_18 = arith.constant 1.000000e+00 : f32
    %39 = vector.broadcast %cst_18 : f32 to vector<2x96xf32>
    %40 = arith.addf %39, %38 : vector<2x96xf32>
    %41 = arith.divf %39, %40 : vector<2x96xf32>
    %42 = vector.extract_strided_slice %41 {offsets = [0, 0], sizes = [2, 32], strides = [1, 1]} : vector<2x96xf32> to vector<2x32xf32>
    %43 = vector.extract_strided_slice %41 {offsets = [0, 32], sizes = [2, 32], strides = [1, 1]} : vector<2x96xf32> to vector<2x32xf32>
    %44 = vector.extract_strided_slice %41 {offsets = [0, 64], sizes = [2, 32], strides = [1, 1]} : vector<2x96xf32> to vector<2x32xf32>
    %45 = vector.extract_strided_slice %35 {offsets = [0, 96], sizes = [2, 32], strides = [1, 1]} : vector<2x128xf32> to vector<2x32xf32>
    %46 = math.tanh %45 : vector<2x32xf32>
    %47 = arith.mulf %43, %28 : vector<2x32xf32>
    %48 = arith.mulf %42, %46 : vector<2x32xf32>
    %49 = arith.addf %47, %48 : vector<2x32xf32>
    %50 = math.tanh %49 : vector<2x32xf32>
    %51 = arith.mulf %44, %50 : vector<2x32xf32>
    %52 = vector.extract_strided_slice %51 {offsets = [0, 0], sizes = [2, 16], strides = [1, 1]} : vector<2x32xf32> to vector<2x16xf32>
    %c0_19 = arith.constant 0 : index
    %c0_20 = arith.constant 0 : index
    %53 = vector.load %arg17[%c0_19, %c0_20] : memref<16x32xf32, #tpu.memory_space<vmem>>, vector<2x16xf32>
    tpu.vector_store %arg17[%c0_19, %c0_20], %52 {strides = array<i32>} : memref<16x32xf32, #tpu.memory_space<vmem>>, vector<2x16xf32>,
    %54 = vector.extract_strided_slice %51 {offsets = [0, 16], sizes = [2, 16], strides = [1, 1]} : vector<2x32xf32> to vector<2x16xf32>
    %c14_21 = arith.constant 14 : index
    %c16 = arith.constant 16 : index
    %55 = vector.load %arg17[%c14_21, %c16] : memref<16x32xf32, #tpu.memory_space<vmem>>, vector<2x16xf32>
    tpu.vector_store %arg17[%c14_21, %c16], %54 {strides = array<i32>} : memref<16x32xf32, #tpu.memory_space<vmem>>, vector<2x16xf32>,
    %c2 = arith.constant 2 : index
    %c0_22 = arith.constant 0 : index
    %56 = vector.load %arg19[%c2, %c0_22] : memref<16x128xf32, #tpu.memory_space<vmem>>, vector<2x128xf32>
    %c12 = arith.constant 12 : index
    %c0_23 = arith.constant 0 : index
    %57 = vector.load %arg19[%c12, %c0_23] : memref<16x128xf32, #tpu.memory_space<vmem>>, vector<2x128xf32>
    %58 = vector.shape_cast %18 : vector<1x128xi1> to vector<1x128xi1>
    %59 = vector.broadcast %58 : vector<1x128xi1> to vector<2x128xi1>
    %60 = arith.select %59, %56, %57 : vector<2x128xi1>, vector<2x128xf32>
    %cst_24 = arith.constant dense<0.000000e+00> : vector<2x128xf32>
    %61 = tpu.matmul %51, %26, %cst_24 {dimension_numbers = #tpu.dot_dimension_numbers<[1], [0], [0], [1], [0, 0, 1, 1], [], []>} : vector<2x32xf32>, vector<32x128xf32>, vector<2x128xf32> -> vector<2x128xf32>
    %62 = arith.addf %60, %61 : vector<2x128xf32>
    %63 = vector.extract_strided_slice %62 {offsets = [0, 0], sizes = [2, 96], strides = [1, 1]} : vector<2x128xf32> to vector<2x96xf32>
    %64 = arith.negf %63 : vector<2x96xf32>
    %65 = math.exp %64 : vector<2x96xf32>
    %cst_25 = arith.constant 1.000000e+00 : f32
    %66 = vector.broadcast %cst_25 : f32 to vector<2x96xf32>
    %67 = arith.addf %66, %65 : vector<2x96xf32>
    %68 = arith.divf %66, %67 : vector<2x96xf32>
    %69 = vector.extract_strided_slice %68 {offsets = [0, 0], sizes = [2, 32], strides = [1, 1]} : vector<2x96xf32> to vector<2x32xf32>
    %70 = vector.extract_strided_slice %68 {offsets = [0, 32], sizes = [2, 32], strides = [1, 1]} : vector<2x96xf32> to vector<2x32xf32>
    %71 = vector.extract_strided_slice %68 {offsets = [0, 64], sizes = [2, 32], strides = [1, 1]} : vector<2x96xf32> to vector<2x32xf32>
    %72 = vector.extract_strided_slice %62 {offsets = [0, 96], sizes = [2, 32], strides = [1, 1]} : vector<2x128xf32> to vector<2x32xf32>
    %73 = math.tanh %72 : vector<2x32xf32>
    %74 = arith.mulf %70, %49 : vector<2x32xf32>
    %75 = arith.mulf %69, %73 : vector<2x32xf32>
    %76 = arith.addf %74, %75 : vector<2x32xf32>
    %77 = math.tanh %76 : vector<2x32xf32>
    %78 = arith.mulf %71, %77 : vector<2x32xf32>
    %79 = vector.extract_strided_slice %78 {offsets = [0, 0], sizes = [2, 16], strides = [1, 1]} : vector<2x32xf32> to vector<2x16xf32>
    %c2_26 = arith.constant 2 : index
    %c0_27 = arith.constant 0 : index
    %80 = vector.load %arg17[%c2_26, %c0_27] : memref<16x32xf32, #tpu.memory_space<vmem>>, vector<2x16xf32>
    tpu.vector_store %arg17[%c2_26, %c0_27], %79 {strides = array<i32>} : memref<16x32xf32, #tpu.memory_space<vmem>>, vector<2x16xf32>,
    %81 = vector.extract_strided_slice %78 {offsets = [0, 16], sizes = [2, 16], strides = [1, 1]} : vector<2x32xf32> to vector<2x16xf32>
    %c12_28 = arith.constant 12 : index
    %c16_29 = arith.constant 16 : index
    %82 = vector.load %arg17[%c12_28, %c16_29] : memref<16x32xf32, #tpu.memory_space<vmem>>, vector<2x16xf32>
    tpu.vector_store %arg17[%c12_28, %c16_29], %81 {strides = array<i32>} : memref<16x32xf32, #tpu.memory_space<vmem>>, vector<2x16xf32>,
    %c4 = arith.constant 4 : index
    %c0_30 = arith.constant 0 : index
    %83 = vector.load %arg19[%c4, %c0_30] : memref<16x128xf32, #tpu.memory_space<vmem>>, vector<2x128xf32>
    %c10 = arith.constant 10 : index
    %c0_31 = arith.constant 0 : index
    %84 = vector.load %arg19[%c10, %c0_31] : memref<16x128xf32, #tpu.memory_space<vmem>>, vector<2x128xf32>
    %85 = vector.shape_cast %18 : vector<1x128xi1> to vector<1x128xi1>
    %86 = vector.broadcast %85 : vector<1x128xi1> to vector<2x128xi1>
    %87 = arith.select %86, %83, %84 : vector<2x128xi1>, vector<2x128xf32>
    %cst_32 = arith.constant dense<0.000000e+00> : vector<2x128xf32>
    %88 = tpu.matmul %78, %26, %cst_32 {dimension_numbers = #tpu.dot_dimension_numbers<[1], [0], [0], [1], [0, 0, 1, 1], [], []>} : vector<2x32xf32>, vector<32x128xf32>, vector<2x128xf32> -> vector<2x128xf32>
    %89 = arith.addf %87, %88 : vector<2x128xf32>
    %90 = vector.extract_strided_slice %89 {offsets = [0, 0], sizes = [2, 96], strides = [1, 1]} : vector<2x128xf32> to vector<2x96xf32>
    %91 = arith.negf %90 : vector<2x96xf32>
    %92 = math.exp %91 : vector<2x96xf32>
    %cst_33 = arith.constant 1.000000e+00 : f32
    %93 = vector.broadcast %cst_33 : f32 to vector<2x96xf32>
    %94 = arith.addf %93, %92 : vector<2x96xf32>
    %95 = arith.divf %93, %94 : vector<2x96xf32>
    %96 = vector.extract_strided_slice %95 {offsets = [0, 0], sizes = [2, 32], strides = [1, 1]} : vector<2x96xf32> to vector<2x32xf32>
    %97 = vector.extract_strided_slice %95 {offsets = [0, 32], sizes = [2, 32], strides = [1, 1]} : vector<2x96xf32> to vector<2x32xf32>
    %98 = vector.extract_strided_slice %95 {offsets = [0, 64], sizes = [2, 32], strides = [1, 1]} : vector<2x96xf32> to vector<2x32xf32>
    %99 = vector.extract_strided_slice %89 {offsets = [0, 96], sizes = [2, 32], strides = [1, 1]} : vector<2x128xf32> to vector<2x32xf32>
    %100 = math.tanh %99 : vector<2x32xf32>
    %101 = arith.mulf %97, %76 : vector<2x32xf32>
    %102 = arith.mulf %96, %100 : vector<2x32xf32>
    %103 = arith.addf %101, %102 : vector<2x32xf32>
    %104 = math.tanh %103 : vector<2x32xf32>
    %105 = arith.mulf %98, %104 : vector<2x32xf32>
    %106 = vector.extract_strided_slice %105 {offsets = [0, 0], sizes = [2, 16], strides = [1, 1]} : vector<2x32xf32> to vector<2x16xf32>
    %c4_34 = arith.constant 4 : index
    %c0_35 = arith.constant 0 : index
    %107 = vector.load %arg17[%c4_34, %c0_35] : memref<16x32xf32, #tpu.memory_space<vmem>>, vector<2x16xf32>
    tpu.vector_store %arg17[%c4_34, %c0_35], %106 {strides = array<i32>} : memref<16x32xf32, #tpu.memory_space<vmem>>, vector<2x16xf32>,
    %108 = vector.extract_strided_slice %105 {offsets = [0, 16], sizes = [2, 16], strides = [1, 1]} : vector<2x32xf32> to vector<2x16xf32>
    %c10_36 = arith.constant 10 : index
    %c16_37 = arith.constant 16 : index
    %109 = vector.load %arg17[%c10_36, %c16_37] : memref<16x32xf32, #tpu.memory_space<vmem>>, vector<2x16xf32>
    tpu.vector_store %arg17[%c10_36, %c16_37], %108 {strides = array<i32>} : memref<16x32xf32, #tpu.memory_space<vmem>>, vector<2x16xf32>,
    %c6 = arith.constant 6 : index
    %c0_38 = arith.constant 0 : index
    %110 = vector.load %arg19[%c6, %c0_38] : memref<16x128xf32, #tpu.memory_space<vmem>>, vector<2x128xf32>
    %c8 = arith.constant 8 : index
    %c0_39 = arith.constant 0 : index
    %111 = vector.load %arg19[%c8, %c0_39] : memref<16x128xf32, #tpu.memory_space<vmem>>, vector<2x128xf32>
    %112 = vector.shape_cast %18 : vector<1x128xi1> to vector<1x128xi1>
    %113 = vector.broadcast %112 : vector<1x128xi1> to vector<2x128xi1>
    %114 = arith.select %113, %110, %111 : vector<2x128xi1>, vector<2x128xf32>
    %cst_40 = arith.constant dense<0.000000e+00> : vector<2x128xf32>
    %115 = tpu.matmul %105, %26, %cst_40 {dimension_numbers = #tpu.dot_dimension_numbers<[1], [0], [0], [1], [0, 0, 1, 1], [], []>} : vector<2x32xf32>, vector<32x128xf32>, vector<2x128xf32> -> vector<2x128xf32>
    %116 = arith.addf %114, %115 : vector<2x128xf32>
    %117 = vector.extract_strided_slice %116 {offsets = [0, 0], sizes = [2, 96], strides = [1, 1]} : vector<2x128xf32> to vector<2x96xf32>
    %118 = arith.negf %117 : vector<2x96xf32>
    %119 = math.exp %118 : vector<2x96xf32>
    %cst_41 = arith.constant 1.000000e+00 : f32
    %120 = vector.broadcast %cst_41 : f32 to vector<2x96xf32>
    %121 = arith.addf %120, %119 : vector<2x96xf32>
    %122 = arith.divf %120, %121 : vector<2x96xf32>
    %123 = vector.extract_strided_slice %122 {offsets = [0, 0], sizes = [2, 32], strides = [1, 1]} : vector<2x96xf32> to vector<2x32xf32>
    %124 = vector.extract_strided_slice %122 {offsets = [0, 32], sizes = [2, 32], strides = [1, 1]} : vector<2x96xf32> to vector<2x32xf32>
    %125 = vector.extract_strided_slice %122 {offsets = [0, 64], sizes = [2, 32], strides = [1, 1]} : vector<2x96xf32> to vector<2x32xf32>
    %126 = vector.extract_strided_slice %116 {offsets = [0, 96], sizes = [2, 32], strides = [1, 1]} : vector<2x128xf32> to vector<2x32xf32>
    %127 = math.tanh %126 : vector<2x32xf32>
    %128 = arith.mulf %124, %103 : vector<2x32xf32>
    %129 = arith.mulf %123, %127 : vector<2x32xf32>
    %130 = arith.addf %128, %129 : vector<2x32xf32>
    %131 = math.tanh %130 : vector<2x32xf32>
    %132 = arith.mulf %125, %131 : vector<2x32xf32>
    %133 = vector.extract_strided_slice %132 {offsets = [0, 0], sizes = [2, 16], strides = [1, 1]} : vector<2x32xf32> to vector<2x16xf32>
    %c6_42 = arith.constant 6 : index
    %c0_43 = arith.constant 0 : index
    %134 = vector.load %arg17[%c6_42, %c0_43] : memref<16x32xf32, #tpu.memory_space<vmem>>, vector<2x16xf32>
    tpu.vector_store %arg17[%c6_42, %c0_43], %133 {strides = array<i32>} : memref<16x32xf32, #tpu.memory_space<vmem>>, vector<2x16xf32>,
    %135 = vector.extract_strided_slice %132 {offsets = [0, 16], sizes = [2, 16], strides = [1, 1]} : vector<2x32xf32> to vector<2x16xf32>
    %c8_44 = arith.constant 8 : index
    %c16_45 = arith.constant 16 : index
    %136 = vector.load %arg17[%c8_44, %c16_45] : memref<16x32xf32, #tpu.memory_space<vmem>>, vector<2x16xf32>
    tpu.vector_store %arg17[%c8_44, %c16_45], %135 {strides = array<i32>} : memref<16x32xf32, #tpu.memory_space<vmem>>, vector<2x16xf32>,
    %c8_46 = arith.constant 8 : index
    %c0_47 = arith.constant 0 : index
    %137 = vector.load %arg19[%c8_46, %c0_47] : memref<16x128xf32, #tpu.memory_space<vmem>>, vector<2x128xf32>
    %c6_48 = arith.constant 6 : index
    %c0_49 = arith.constant 0 : index
    %138 = vector.load %arg19[%c6_48, %c0_49] : memref<16x128xf32, #tpu.memory_space<vmem>>, vector<2x128xf32>
    %139 = vector.shape_cast %18 : vector<1x128xi1> to vector<1x128xi1>
    %140 = vector.broadcast %139 : vector<1x128xi1> to vector<2x128xi1>
    %141 = arith.select %140, %137, %138 : vector<2x128xi1>, vector<2x128xf32>
    %cst_50 = arith.constant dense<0.000000e+00> : vector<2x128xf32>
    %142 = tpu.matmul %132, %26, %cst_50 {dimension_numbers = #tpu.dot_dimension_numbers<[1], [0], [0], [1], [0, 0, 1, 1], [], []>} : vector<2x32xf32>, vector<32x128xf32>, vector<2x128xf32> -> vector<2x128xf32>
    %143 = arith.addf %141, %142 : vector<2x128xf32>
    %144 = vector.extract_strided_slice %143 {offsets = [0, 0], sizes = [2, 96], strides = [1, 1]} : vector<2x128xf32> to vector<2x96xf32>
    %145 = arith.negf %144 : vector<2x96xf32>
    %146 = math.exp %145 : vector<2x96xf32>
    %cst_51 = arith.constant 1.000000e+00 : f32
    %147 = vector.broadcast %cst_51 : f32 to vector<2x96xf32>
    %148 = arith.addf %147, %146 : vector<2x96xf32>
    %149 = arith.divf %147, %148 : vector<2x96xf32>
    %150 = vector.extract_strided_slice %149 {offsets = [0, 0], sizes = [2, 32], strides = [1, 1]} : vector<2x96xf32> to vector<2x32xf32>
    %151 = vector.extract_strided_slice %149 {offsets = [0, 32], sizes = [2, 32], strides = [1, 1]} : vector<2x96xf32> to vector<2x32xf32>
    %152 = vector.extract_strided_slice %149 {offsets = [0, 64], sizes = [2, 32], strides = [1, 1]} : vector<2x96xf32> to vector<2x32xf32>
    %153 = vector.extract_strided_slice %143 {offsets = [0, 96], sizes = [2, 32], strides = [1, 1]} : vector<2x128xf32> to vector<2x32xf32>
    %154 = math.tanh %153 : vector<2x32xf32>
    %155 = arith.mulf %151, %130 : vector<2x32xf32>
    %156 = arith.mulf %150, %154 : vector<2x32xf32>
    %157 = arith.addf %155, %156 : vector<2x32xf32>
    %158 = math.tanh %157 : vector<2x32xf32>
    %159 = arith.mulf %152, %158 : vector<2x32xf32>
    %160 = vector.extract_strided_slice %159 {offsets = [0, 0], sizes = [2, 16], strides = [1, 1]} : vector<2x32xf32> to vector<2x16xf32>
    %c8_52 = arith.constant 8 : index
    %c0_53 = arith.constant 0 : index
    %161 = vector.load %arg17[%c8_52, %c0_53] : memref<16x32xf32, #tpu.memory_space<vmem>>, vector<2x16xf32>
    tpu.vector_store %arg17[%c8_52, %c0_53], %160 {strides = array<i32>} : memref<16x32xf32, #tpu.memory_space<vmem>>, vector<2x16xf32>,
    %162 = vector.extract_strided_slice %159 {offsets = [0, 16], sizes = [2, 16], strides = [1, 1]} : vector<2x32xf32> to vector<2x16xf32>
    %c6_54 = arith.constant 6 : index
    %c16_55 = arith.constant 16 : index
    %163 = vector.load %arg17[%c6_54, %c16_55] : memref<16x32xf32, #tpu.memory_space<vmem>>, vector<2x16xf32>
    tpu.vector_store %arg17[%c6_54, %c16_55], %162 {strides = array<i32>} : memref<16x32xf32, #tpu.memory_space<vmem>>, vector<2x16xf32>,
    %c10_56 = arith.constant 10 : index
    %c0_57 = arith.constant 0 : index
    %164 = vector.load %arg19[%c10_56, %c0_57] : memref<16x128xf32, #tpu.memory_space<vmem>>, vector<2x128xf32>
    %c4_58 = arith.constant 4 : index
    %c0_59 = arith.constant 0 : index
    %165 = vector.load %arg19[%c4_58, %c0_59] : memref<16x128xf32, #tpu.memory_space<vmem>>, vector<2x128xf32>
    %166 = vector.shape_cast %18 : vector<1x128xi1> to vector<1x128xi1>
    %167 = vector.broadcast %166 : vector<1x128xi1> to vector<2x128xi1>
    %168 = arith.select %167, %164, %165 : vector<2x128xi1>, vector<2x128xf32>
    %cst_60 = arith.constant dense<0.000000e+00> : vector<2x128xf32>
    %169 = tpu.matmul %159, %26, %cst_60 {dimension_numbers = #tpu.dot_dimension_numbers<[1], [0], [0], [1], [0, 0, 1, 1], [], []>} : vector<2x32xf32>, vector<32x128xf32>, vector<2x128xf32> -> vector<2x128xf32>
    %170 = arith.addf %168, %169 : vector<2x128xf32>
    %171 = vector.extract_strided_slice %170 {offsets = [0, 0], sizes = [2, 96], strides = [1, 1]} : vector<2x128xf32> to vector<2x96xf32>
    %172 = arith.negf %171 : vector<2x96xf32>
    %173 = math.exp %172 : vector<2x96xf32>
    %cst_61 = arith.constant 1.000000e+00 : f32
    %174 = vector.broadcast %cst_61 : f32 to vector<2x96xf32>
    %175 = arith.addf %174, %173 : vector<2x96xf32>
    %176 = arith.divf %174, %175 : vector<2x96xf32>
    %177 = vector.extract_strided_slice %176 {offsets = [0, 0], sizes = [2, 32], strides = [1, 1]} : vector<2x96xf32> to vector<2x32xf32>
    %178 = vector.extract_strided_slice %176 {offsets = [0, 32], sizes = [2, 32], strides = [1, 1]} : vector<2x96xf32> to vector<2x32xf32>
    %179 = vector.extract_strided_slice %176 {offsets = [0, 64], sizes = [2, 32], strides = [1, 1]} : vector<2x96xf32> to vector<2x32xf32>
    %180 = vector.extract_strided_slice %170 {offsets = [0, 96], sizes = [2, 32], strides = [1, 1]} : vector<2x128xf32> to vector<2x32xf32>
    %181 = math.tanh %180 : vector<2x32xf32>
    %182 = arith.mulf %178, %157 : vector<2x32xf32>
    %183 = arith.mulf %177, %181 : vector<2x32xf32>
    %184 = arith.addf %182, %183 : vector<2x32xf32>
    %185 = math.tanh %184 : vector<2x32xf32>
    %186 = arith.mulf %179, %185 : vector<2x32xf32>
    %187 = vector.extract_strided_slice %186 {offsets = [0, 0], sizes = [2, 16], strides = [1, 1]} : vector<2x32xf32> to vector<2x16xf32>
    %c10_62 = arith.constant 10 : index
    %c0_63 = arith.constant 0 : index
    %188 = vector.load %arg17[%c10_62, %c0_63] : memref<16x32xf32, #tpu.memory_space<vmem>>, vector<2x16xf32>
    tpu.vector_store %arg17[%c10_62, %c0_63], %187 {strides = array<i32>} : memref<16x32xf32, #tpu.memory_space<vmem>>, vector<2x16xf32>,
    %189 = vector.extract_strided_slice %186 {offsets = [0, 16], sizes = [2, 16], strides = [1, 1]} : vector<2x32xf32> to vector<2x16xf32>
    %c4_64 = arith.constant 4 : index
    %c16_65 = arith.constant 16 : index
    %190 = vector.load %arg17[%c4_64, %c16_65] : memref<16x32xf32, #tpu.memory_space<vmem>>, vector<2x16xf32>
    tpu.vector_store %arg17[%c4_64, %c16_65], %189 {strides = array<i32>} : memref<16x32xf32, #tpu.memory_space<vmem>>, vector<2x16xf32>,
    %c12_66 = arith.constant 12 : index
    %c0_67 = arith.constant 0 : index
    %191 = vector.load %arg19[%c12_66, %c0_67] : memref<16x128xf32, #tpu.memory_space<vmem>>, vector<2x128xf32>
    %c2_68 = arith.constant 2 : index
    %c0_69 = arith.constant 0 : index
    %192 = vector.load %arg19[%c2_68, %c0_69] : memref<16x128xf32, #tpu.memory_space<vmem>>, vector<2x128xf32>
    %193 = vector.shape_cast %18 : vector<1x128xi1> to vector<1x128xi1>
    %194 = vector.broadcast %193 : vector<1x128xi1> to vector<2x128xi1>
    %195 = arith.select %194, %191, %192 : vector<2x128xi1>, vector<2x128xf32>
    %cst_70 = arith.constant dense<0.000000e+00> : vector<2x128xf32>
    %196 = tpu.matmul %186, %26, %cst_70 {dimension_numbers = #tpu.dot_dimension_numbers<[1], [0], [0], [1], [0, 0, 1, 1], [], []>} : vector<2x32xf32>, vector<32x128xf32>, vector<2x128xf32> -> vector<2x128xf32>
    %197 = arith.addf %195, %196 : vector<2x128xf32>
    %198 = vector.extract_strided_slice %197 {offsets = [0, 0], sizes = [2, 96], strides = [1, 1]} : vector<2x128xf32> to vector<2x96xf32>
    %199 = arith.negf %198 : vector<2x96xf32>
    %200 = math.exp %199 : vector<2x96xf32>
    %cst_71 = arith.constant 1.000000e+00 : f32
    %201 = vector.broadcast %cst_71 : f32 to vector<2x96xf32>
    %202 = arith.addf %201, %200 : vector<2x96xf32>
    %203 = arith.divf %201, %202 : vector<2x96xf32>
    %204 = vector.extract_strided_slice %203 {offsets = [0, 0], sizes = [2, 32], strides = [1, 1]} : vector<2x96xf32> to vector<2x32xf32>
    %205 = vector.extract_strided_slice %203 {offsets = [0, 32], sizes = [2, 32], strides = [1, 1]} : vector<2x96xf32> to vector<2x32xf32>
    %206 = vector.extract_strided_slice %203 {offsets = [0, 64], sizes = [2, 32], strides = [1, 1]} : vector<2x96xf32> to vector<2x32xf32>
    %207 = vector.extract_strided_slice %197 {offsets = [0, 96], sizes = [2, 32], strides = [1, 1]} : vector<2x128xf32> to vector<2x32xf32>
    %208 = math.tanh %207 : vector<2x32xf32>
    %209 = arith.mulf %205, %184 : vector<2x32xf32>
    %210 = arith.mulf %204, %208 : vector<2x32xf32>
    %211 = arith.addf %209, %210 : vector<2x32xf32>
    %212 = math.tanh %211 : vector<2x32xf32>
    %213 = arith.mulf %206, %212 : vector<2x32xf32>
    %214 = vector.extract_strided_slice %213 {offsets = [0, 0], sizes = [2, 16], strides = [1, 1]} : vector<2x32xf32> to vector<2x16xf32>
    %c12_72 = arith.constant 12 : index
    %c0_73 = arith.constant 0 : index
    %215 = vector.load %arg17[%c12_72, %c0_73] : memref<16x32xf32, #tpu.memory_space<vmem>>, vector<2x16xf32>
    tpu.vector_store %arg17[%c12_72, %c0_73], %214 {strides = array<i32>} : memref<16x32xf32, #tpu.memory_space<vmem>>, vector<2x16xf32>,
    %216 = vector.extract_strided_slice %213 {offsets = [0, 16], sizes = [2, 16], strides = [1, 1]} : vector<2x32xf32> to vector<2x16xf32>
    %c2_74 = arith.constant 2 : index
    %c16_75 = arith.constant 16 : index
    %217 = vector.load %arg17[%c2_74, %c16_75] : memref<16x32xf32, #tpu.memory_space<vmem>>, vector<2x16xf32>
    tpu.vector_store %arg17[%c2_74, %c16_75], %216 {strides = array<i32>} : memref<16x32xf32, #tpu.memory_space<vmem>>, vector<2x16xf32>,
    %c14_76 = arith.constant 14 : index
    %c0_77 = arith.constant 0 : index
    %218 = vector.load %arg19[%c14_76, %c0_77] : memref<16x128xf32, #tpu.memory_space<vmem>>, vector<2x128xf32>
    %c0_78 = arith.constant 0 : index
    %c0_79 = arith.constant 0 : index
    %219 = vector.load %arg19[%c0_78, %c0_79] : memref<16x128xf32, #tpu.memory_space<vmem>>, vector<2x128xf32>
    %220 = vector.shape_cast %18 : vector<1x128xi1> to vector<1x128xi1>
    %221 = vector.broadcast %220 : vector<1x128xi1> to vector<2x128xi1>
    %222 = arith.select %221, %218, %219 : vector<2x128xi1>, vector<2x128xf32>
    %cst_80 = arith.constant dense<0.000000e+00> : vector<2x128xf32>
    %223 = tpu.matmul %213, %26, %cst_80 {dimension_numbers = #tpu.dot_dimension_numbers<[1], [0], [0], [1], [0, 0, 1, 1], [], []>} : vector<2x32xf32>, vector<32x128xf32>, vector<2x128xf32> -> vector<2x128xf32>
    %224 = arith.addf %222, %223 : vector<2x128xf32>
    %225 = vector.extract_strided_slice %224 {offsets = [0, 0], sizes = [2, 96], strides = [1, 1]} : vector<2x128xf32> to vector<2x96xf32>
    %226 = arith.negf %225 : vector<2x96xf32>
    %227 = math.exp %226 : vector<2x96xf32>
    %cst_81 = arith.constant 1.000000e+00 : f32
    %228 = vector.broadcast %cst_81 : f32 to vector<2x96xf32>
    %229 = arith.addf %228, %227 : vector<2x96xf32>
    %230 = arith.divf %228, %229 : vector<2x96xf32>
    %231 = vector.extract_strided_slice %230 {offsets = [0, 0], sizes = [2, 32], strides = [1, 1]} : vector<2x96xf32> to vector<2x32xf32>
    %232 = vector.extract_strided_slice %230 {offsets = [0, 32], sizes = [2, 32], strides = [1, 1]} : vector<2x96xf32> to vector<2x32xf32>
    %233 = vector.extract_strided_slice %230 {offsets = [0, 64], sizes = [2, 32], strides = [1, 1]} : vector<2x96xf32> to vector<2x32xf32>
    %234 = vector.extract_strided_slice %224 {offsets = [0, 96], sizes = [2, 32], strides = [1, 1]} : vector<2x128xf32> to vector<2x32xf32>
    %235 = math.tanh %234 : vector<2x32xf32>
    %236 = arith.mulf %232, %211 : vector<2x32xf32>
    %237 = arith.mulf %231, %235 : vector<2x32xf32>
    %238 = arith.addf %236, %237 : vector<2x32xf32>
    %239 = math.tanh %238 : vector<2x32xf32>
    %240 = arith.mulf %233, %239 : vector<2x32xf32>
    %241 = vector.extract_strided_slice %240 {offsets = [0, 0], sizes = [2, 16], strides = [1, 1]} : vector<2x32xf32> to vector<2x16xf32>
    %c14_82 = arith.constant 14 : index
    %c0_83 = arith.constant 0 : index
    %242 = vector.load %arg17[%c14_82, %c0_83] : memref<16x32xf32, #tpu.memory_space<vmem>>, vector<2x16xf32>
    tpu.vector_store %arg17[%c14_82, %c0_83], %241 {strides = array<i32>} : memref<16x32xf32, #tpu.memory_space<vmem>>, vector<2x16xf32>,
    %243 = vector.extract_strided_slice %240 {offsets = [0, 16], sizes = [2, 16], strides = [1, 1]} : vector<2x32xf32> to vector<2x16xf32>
    %c0_84 = arith.constant 0 : index
    %c16_85 = arith.constant 16 : index
    %244 = vector.load %arg17[%c0_84, %c16_85] : memref<16x32xf32, #tpu.memory_space<vmem>>, vector<2x16xf32>
    tpu.vector_store %arg17[%c0_84, %c16_85], %243 {strides = array<i32>} : memref<16x32xf32, #tpu.memory_space<vmem>>, vector<2x16xf32>,
    %245 = vector.extract_strided_slice %240 {offsets = [0, 0], sizes = [2, 16], strides = [1, 1]} : vector<2x32xf32> to vector<2x16xf32>
    %c0_86 = arith.constant 0 : index
    %c0_87 = arith.constant 0 : index
    %c0_88 = arith.constant 0 : index
    %246 = vector.load %arg15[%c0_86, %c0_87, %c0_88] : memref<8x2x16xf32, #tpu.memory_space<vmem>>, vector<1x2x16xf32>
    %247 = vector.shape_cast %246 : vector<1x2x16xf32> to vector<2x16xf32>
    %248 = vector.shape_cast %245 : vector<2x16xf32> to vector<1x2x16xf32>
    tpu.vector_store %arg15[%c0_86, %c0_87, %c0_88], %248 {strides = array<i32>} : memref<8x2x16xf32, #tpu.memory_space<vmem>>, vector<1x2x16xf32>,
    %249 = vector.extract_strided_slice %240 {offsets = [0, 16], sizes = [2, 16], strides = [1, 1]} : vector<2x32xf32> to vector<2x16xf32>
    %c1 = arith.constant 1 : index
    %c0_89 = arith.constant 0 : index
    %c0_90 = arith.constant 0 : index
    %250 = vector.load %arg15[%c1, %c0_89, %c0_90] : memref<8x2x16xf32, #tpu.memory_space<vmem>>, vector<1x2x16xf32>
    %251 = vector.shape_cast %250 : vector<1x2x16xf32> to vector<2x16xf32>
    %252 = vector.shape_cast %249 : vector<2x16xf32> to vector<1x2x16xf32>
    tpu.vector_store %arg15[%c1, %c0_89, %c0_90], %252 {strides = array<i32>} : memref<8x2x16xf32, #tpu.memory_space<vmem>>, vector<1x2x16xf32>,
    %253 = vector.extract_strided_slice %238 {offsets = [0, 0], sizes = [2, 16], strides = [1, 1]} : vector<2x32xf32> to vector<2x16xf32>
    %c0_91 = arith.constant 0 : index
    %c0_92 = arith.constant 0 : index
    %c0_93 = arith.constant 0 : index
    %254 = vector.load %arg16[%c0_91, %c0_92, %c0_93] : memref<8x2x16xf32, #tpu.memory_space<vmem>>, vector<1x2x16xf32>
    %255 = vector.shape_cast %254 : vector<1x2x16xf32> to vector<2x16xf32>
    %256 = vector.shape_cast %253 : vector<2x16xf32> to vector<1x2x16xf32>
    tpu.vector_store %arg16[%c0_91, %c0_92, %c0_93], %256 {strides = array<i32>} : memref<8x2x16xf32, #tpu.memory_space<vmem>>, vector<1x2x16xf32>,
    %257 = vector.extract_strided_slice %238 {offsets = [0, 16], sizes = [2, 16], strides = [1, 1]} : vector<2x32xf32> to vector<2x16xf32>
    %c1_94 = arith.constant 1 : index
    %c0_95 = arith.constant 0 : index
    %c0_96 = arith.constant 0 : index
    %258 = vector.load %arg16[%c1_94, %c0_95, %c0_96] : memref<8x2x16xf32, #tpu.memory_space<vmem>>, vector<1x2x16xf32>
    %259 = vector.shape_cast %258 : vector<1x2x16xf32> to vector<2x16xf32>
    %260 = vector.shape_cast %257 : vector<2x16xf32> to vector<1x2x16xf32>
    tpu.vector_store %arg16[%c1_94, %c0_95, %c0_96], %260 {strides = array<i32>} : memref<8x2x16xf32, #tpu.memory_space<vmem>>, vector<1x2x16xf32>,
    %c0_97 = arith.constant 0 : index
    %c0_98 = arith.constant 0 : index
    %261 = vector.load %arg17[%c0_97, %c0_98] : memref<16x32xf32, #tpu.memory_space<vmem>>, vector<16x32xf32>
    %c0_99 = arith.constant 0 : index
    %c0_100 = arith.constant 0 : index
    %262 = vector.load %arg5[%c0_99, %c0_100] : memref<32x128xf32, #tpu.memory_space<vmem>>, vector<32x128xf32>
    %cst_101 = arith.constant dense<0.000000e+00> : vector<16x128xf32>
    %263 = tpu.matmul %261, %262, %cst_101 {dimension_numbers = #tpu.dot_dimension_numbers<[1], [0], [0], [1], [0, 0, 1, 1], [], []>} : vector<16x32xf32>, vector<32x128xf32>, vector<16x128xf32> -> vector<16x128xf32>
    %c0_102 = arith.constant 0 : index
    %c0_103 = arith.constant 0 : index
    %264 = vector.load %arg7[%c0_102, %c0_103] : memref<1x128xf32, #tpu.memory_space<vmem>>, vector<1x128xf32>
    %265 = vector.broadcast %264 : vector<1x128xf32> to vector<16x128xf32>
    %266 = arith.addf %263, %265 : vector<16x128xf32>
    %c0_104 = arith.constant 0 : index
    %c0_105 = arith.constant 0 : index
    %267 = vector.load %arg19[%c0_104, %c0_105] : memref<16x128xf32, #tpu.memory_space<vmem>>, vector<16x128xf32>
    tpu.vector_store %arg19[%c0_104, %c0_105], %266 {strides = array<i32>} : memref<16x128xf32, #tpu.memory_space<vmem>>, vector<16x128xf32>,
    %c0_106 = arith.constant 0 : index
    %c0_107 = arith.constant 0 : index
    %268 = vector.load %arg6[%c0_106, %c0_107] : memref<32x128xf32, #tpu.memory_space<vmem>>, vector<32x128xf32>
    %cst_108 = arith.constant 0.000000e+00 : f32
    %269 = vector.broadcast %cst_108 : f32 to vector<2x32xf32>
    %cst_109 = arith.constant 0.000000e+00 : f32
    %270 = vector.broadcast %cst_109 : f32 to vector<2x32xf32>
    %c0_110 = arith.constant 0 : index
    %c0_111 = arith.constant 0 : index
    %271 = vector.load %arg19[%c0_110, %c0_111] : memref<16x128xf32, #tpu.memory_space<vmem>>, vector<2x128xf32>
    %c14_112 = arith.constant 14 : index
    %c0_113 = arith.constant 0 : index
    %272 = vector.load %arg19[%c14_112, %c0_113] : memref<16x128xf32, #tpu.memory_space<vmem>>, vector<2x128xf32>
    %273 = vector.shape_cast %18 : vector<1x128xi1> to vector<1x128xi1>
    %274 = vector.broadcast %273 : vector<1x128xi1> to vector<2x128xi1>
    %275 = arith.select %274, %271, %272 : vector<2x128xi1>, vector<2x128xf32>
    %cst_114 = arith.constant dense<0.000000e+00> : vector<2x128xf32>
    %276 = tpu.matmul %269, %268, %cst_114 {dimension_numbers = #tpu.dot_dimension_numbers<[1], [0], [0], [1], [0, 0, 1, 1], [], []>} : vector<2x32xf32>, vector<32x128xf32>, vector<2x128xf32> -> vector<2x128xf32>
    %277 = arith.addf %275, %276 : vector<2x128xf32>
    %278 = vector.extract_strided_slice %277 {offsets = [0, 0], sizes = [2, 96], strides = [1, 1]} : vector<2x128xf32> to vector<2x96xf32>
    %279 = arith.negf %278 : vector<2x96xf32>
    %280 = math.exp %279 : vector<2x96xf32>
    %cst_115 = arith.constant 1.000000e+00 : f32
    %281 = vector.broadcast %cst_115 : f32 to vector<2x96xf32>
    %282 = arith.addf %281, %280 : vector<2x96xf32>
    %283 = arith.divf %281, %282 : vector<2x96xf32>
    %284 = vector.extract_strided_slice %283 {offsets = [0, 0], sizes = [2, 32], strides = [1, 1]} : vector<2x96xf32> to vector<2x32xf32>
    %285 = vector.extract_strided_slice %283 {offsets = [0, 32], sizes = [2, 32], strides = [1, 1]} : vector<2x96xf32> to vector<2x32xf32>
    %286 = vector.extract_strided_slice %283 {offsets = [0, 64], sizes = [2, 32], strides = [1, 1]} : vector<2x96xf32> to vector<2x32xf32>
    %287 = vector.extract_strided_slice %277 {offsets = [0, 96], sizes = [2, 32], strides = [1, 1]} : vector<2x128xf32> to vector<2x32xf32>
    %288 = math.tanh %287 : vector<2x32xf32>
    %289 = arith.mulf %285, %270 : vector<2x32xf32>
    %290 = arith.mulf %284, %288 : vector<2x32xf32>
    %291 = arith.addf %289, %290 : vector<2x32xf32>
    %292 = math.tanh %291 : vector<2x32xf32>
    %293 = arith.mulf %286, %292 : vector<2x32xf32>
    %294 = vector.extract_strided_slice %293 {offsets = [0, 0], sizes = [2, 16], strides = [1, 1]} : vector<2x32xf32> to vector<2x16xf32>
    %c0_116 = arith.constant 0 : index
    %c0_117 = arith.constant 0 : index
    %295 = vector.load %arg18[%c0_116, %c0_117] : memref<16x32xf32, #tpu.memory_space<vmem>>, vector<2x16xf32>
    tpu.vector_store %arg18[%c0_116, %c0_117], %294 {strides = array<i32>} : memref<16x32xf32, #tpu.memory_space<vmem>>, vector<2x16xf32>,
    %296 = vector.extract_strided_slice %293 {offsets = [0, 16], sizes = [2, 16], strides = [1, 1]} : vector<2x32xf32> to vector<2x16xf32>
    %c14_118 = arith.constant 14 : index
    %c16_119 = arith.constant 16 : index
    %297 = vector.load %arg18[%c14_118, %c16_119] : memref<16x32xf32, #tpu.memory_space<vmem>>, vector<2x16xf32>
    tpu.vector_store %arg18[%c14_118, %c16_119], %296 {strides = array<i32>} : memref<16x32xf32, #tpu.memory_space<vmem>>, vector<2x16xf32>,
    %c2_120 = arith.constant 2 : index
    %c0_121 = arith.constant 0 : index
    %298 = vector.load %arg19[%c2_120, %c0_121] : memref<16x128xf32, #tpu.memory_space<vmem>>, vector<2x128xf32>
    %c12_122 = arith.constant 12 : index
    %c0_123 = arith.constant 0 : index
    %299 = vector.load %arg19[%c12_122, %c0_123] : memref<16x128xf32, #tpu.memory_space<vmem>>, vector<2x128xf32>
    %300 = vector.shape_cast %18 : vector<1x128xi1> to vector<1x128xi1>
    %301 = vector.broadcast %300 : vector<1x128xi1> to vector<2x128xi1>
    %302 = arith.select %301, %298, %299 : vector<2x128xi1>, vector<2x128xf32>
    %cst_124 = arith.constant dense<0.000000e+00> : vector<2x128xf32>
    %303 = tpu.matmul %293, %268, %cst_124 {dimension_numbers = #tpu.dot_dimension_numbers<[1], [0], [0], [1], [0, 0, 1, 1], [], []>} : vector<2x32xf32>, vector<32x128xf32>, vector<2x128xf32> -> vector<2x128xf32>
    %304 = arith.addf %302, %303 : vector<2x128xf32>
    %305 = vector.extract_strided_slice %304 {offsets = [0, 0], sizes = [2, 96], strides = [1, 1]} : vector<2x128xf32> to vector<2x96xf32>
    %306 = arith.negf %305 : vector<2x96xf32>
    %307 = math.exp %306 : vector<2x96xf32>
    %cst_125 = arith.constant 1.000000e+00 : f32
    %308 = vector.broadcast %cst_125 : f32 to vector<2x96xf32>
    %309 = arith.addf %308, %307 : vector<2x96xf32>
    %310 = arith.divf %308, %309 : vector<2x96xf32>
    %311 = vector.extract_strided_slice %310 {offsets = [0, 0], sizes = [2, 32], strides = [1, 1]} : vector<2x96xf32> to vector<2x32xf32>
    %312 = vector.extract_strided_slice %310 {offsets = [0, 32], sizes = [2, 32], strides = [1, 1]} : vector<2x96xf32> to vector<2x32xf32>
    %313 = vector.extract_strided_slice %310 {offsets = [0, 64], sizes = [2, 32], strides = [1, 1]} : vector<2x96xf32> to vector<2x32xf32>
    %314 = vector.extract_strided_slice %304 {offsets = [0, 96], sizes = [2, 32], strides = [1, 1]} : vector<2x128xf32> to vector<2x32xf32>
    %315 = math.tanh %314 : vector<2x32xf32>
    %316 = arith.mulf %312, %291 : vector<2x32xf32>
    %317 = arith.mulf %311, %315 : vector<2x32xf32>
    %318 = arith.addf %316, %317 : vector<2x32xf32>
    %319 = math.tanh %318 : vector<2x32xf32>
    %320 = arith.mulf %313, %319 : vector<2x32xf32>
    %321 = vector.extract_strided_slice %320 {offsets = [0, 0], sizes = [2, 16], strides = [1, 1]} : vector<2x32xf32> to vector<2x16xf32>
    %c2_126 = arith.constant 2 : index
    %c0_127 = arith.constant 0 : index
    %322 = vector.load %arg18[%c2_126, %c0_127] : memref<16x32xf32, #tpu.memory_space<vmem>>, vector<2x16xf32>
    tpu.vector_store %arg18[%c2_126, %c0_127], %321 {strides = array<i32>} : memref<16x32xf32, #tpu.memory_space<vmem>>, vector<2x16xf32>,
    %323 = vector.extract_strided_slice %320 {offsets = [0, 16], sizes = [2, 16], strides = [1, 1]} : vector<2x32xf32> to vector<2x16xf32>
    %c12_128 = arith.constant 12 : index
    %c16_129 = arith.constant 16 : index
    %324 = vector.load %arg18[%c12_128, %c16_129] : memref<16x32xf32, #tpu.memory_space<vmem>>, vector<2x16xf32>
    tpu.vector_store %arg18[%c12_128, %c16_129], %323 {strides = array<i32>} : memref<16x32xf32, #tpu.memory_space<vmem>>, vector<2x16xf32>,
    %c4_130 = arith.constant 4 : index
    %c0_131 = arith.constant 0 : index
    %325 = vector.load %arg19[%c4_130, %c0_131] : memref<16x128xf32, #tpu.memory_space<vmem>>, vector<2x128xf32>
    %c10_132 = arith.constant 10 : index
    %c0_133 = arith.constant 0 : index
    %326 = vector.load %arg19[%c10_132, %c0_133] : memref<16x128xf32, #tpu.memory_space<vmem>>, vector<2x128xf32>
    %327 = vector.shape_cast %18 : vector<1x128xi1> to vector<1x128xi1>
    %328 = vector.broadcast %327 : vector<1x128xi1> to vector<2x128xi1>
    %329 = arith.select %328, %325, %326 : vector<2x128xi1>, vector<2x128xf32>
    %cst_134 = arith.constant dense<0.000000e+00> : vector<2x128xf32>
    %330 = tpu.matmul %320, %268, %cst_134 {dimension_numbers = #tpu.dot_dimension_numbers<[1], [0], [0], [1], [0, 0, 1, 1], [], []>} : vector<2x32xf32>, vector<32x128xf32>, vector<2x128xf32> -> vector<2x128xf32>
    %331 = arith.addf %329, %330 : vector<2x128xf32>
    %332 = vector.extract_strided_slice %331 {offsets = [0, 0], sizes = [2, 96], strides = [1, 1]} : vector<2x128xf32> to vector<2x96xf32>
    %333 = arith.negf %332 : vector<2x96xf32>
    %334 = math.exp %333 : vector<2x96xf32>
    %cst_135 = arith.constant 1.000000e+00 : f32
    %335 = vector.broadcast %cst_135 : f32 to vector<2x96xf32>
    %336 = arith.addf %335, %334 : vector<2x96xf32>
    %337 = arith.divf %335, %336 : vector<2x96xf32>
    %338 = vector.extract_strided_slice %337 {offsets = [0, 0], sizes = [2, 32], strides = [1, 1]} : vector<2x96xf32> to vector<2x32xf32>
    %339 = vector.extract_strided_slice %337 {offsets = [0, 32], sizes = [2, 32], strides = [1, 1]} : vector<2x96xf32> to vector<2x32xf32>
    %340 = vector.extract_strided_slice %337 {offsets = [0, 64], sizes = [2, 32], strides = [1, 1]} : vector<2x96xf32> to vector<2x32xf32>
    %341 = vector.extract_strided_slice %331 {offsets = [0, 96], sizes = [2, 32], strides = [1, 1]} : vector<2x128xf32> to vector<2x32xf32>
    %342 = math.tanh %341 : vector<2x32xf32>
    %343 = arith.mulf %339, %318 : vector<2x32xf32>
    %344 = arith.mulf %338, %342 : vector<2x32xf32>
    %345 = arith.addf %343, %344 : vector<2x32xf32>
    %346 = math.tanh %345 : vector<2x32xf32>
    %347 = arith.mulf %340, %346 : vector<2x32xf32>
    %348 = vector.extract_strided_slice %347 {offsets = [0, 0], sizes = [2, 16], strides = [1, 1]} : vector<2x32xf32> to vector<2x16xf32>
    %c4_136 = arith.constant 4 : index
    %c0_137 = arith.constant 0 : index
    %349 = vector.load %arg18[%c4_136, %c0_137] : memref<16x32xf32, #tpu.memory_space<vmem>>, vector<2x16xf32>
    tpu.vector_store %arg18[%c4_136, %c0_137], %348 {strides = array<i32>} : memref<16x32xf32, #tpu.memory_space<vmem>>, vector<2x16xf32>,
    %350 = vector.extract_strided_slice %347 {offsets = [0, 16], sizes = [2, 16], strides = [1, 1]} : vector<2x32xf32> to vector<2x16xf32>
    %c10_138 = arith.constant 10 : index
    %c16_139 = arith.constant 16 : index
    %351 = vector.load %arg18[%c10_138, %c16_139] : memref<16x32xf32, #tpu.memory_space<vmem>>, vector<2x16xf32>
    tpu.vector_store %arg18[%c10_138, %c16_139], %350 {strides = array<i32>} : memref<16x32xf32, #tpu.memory_space<vmem>>, vector<2x16xf32>,
    %c6_140 = arith.constant 6 : index
    %c0_141 = arith.constant 0 : index
    %352 = vector.load %arg19[%c6_140, %c0_141] : memref<16x128xf32, #tpu.memory_space<vmem>>, vector<2x128xf32>
    %c8_142 = arith.constant 8 : index
    %c0_143 = arith.constant 0 : index
    %353 = vector.load %arg19[%c8_142, %c0_143] : memref<16x128xf32, #tpu.memory_space<vmem>>, vector<2x128xf32>
    %354 = vector.shape_cast %18 : vector<1x128xi1> to vector<1x128xi1>
    %355 = vector.broadcast %354 : vector<1x128xi1> to vector<2x128xi1>
    %356 = arith.select %355, %352, %353 : vector<2x128xi1>, vector<2x128xf32>
    %cst_144 = arith.constant dense<0.000000e+00> : vector<2x128xf32>
    %357 = tpu.matmul %347, %268, %cst_144 {dimension_numbers = #tpu.dot_dimension_numbers<[1], [0], [0], [1], [0, 0, 1, 1], [], []>} : vector<2x32xf32>, vector<32x128xf32>, vector<2x128xf32> -> vector<2x128xf32>
    %358 = arith.addf %356, %357 : vector<2x128xf32>
    %359 = vector.extract_strided_slice %358 {offsets = [0, 0], sizes = [2, 96], strides = [1, 1]} : vector<2x128xf32> to vector<2x96xf32>
    %360 = arith.negf %359 : vector<2x96xf32>
    %361 = math.exp %360 : vector<2x96xf32>
    %cst_145 = arith.constant 1.000000e+00 : f32
    %362 = vector.broadcast %cst_145 : f32 to vector<2x96xf32>
    %363 = arith.addf %362, %361 : vector<2x96xf32>
    %364 = arith.divf %362, %363 : vector<2x96xf32>
    %365 = vector.extract_strided_slice %364 {offsets = [0, 0], sizes = [2, 32], strides = [1, 1]} : vector<2x96xf32> to vector<2x32xf32>
    %366 = vector.extract_strided_slice %364 {offsets = [0, 32], sizes = [2, 32], strides = [1, 1]} : vector<2x96xf32> to vector<2x32xf32>
    %367 = vector.extract_strided_slice %364 {offsets = [0, 64], sizes = [2, 32], strides = [1, 1]} : vector<2x96xf32> to vector<2x32xf32>
    %368 = vector.extract_strided_slice %358 {offsets = [0, 96], sizes = [2, 32], strides = [1, 1]} : vector<2x128xf32> to vector<2x32xf32>
    %369 = math.tanh %368 : vector<2x32xf32>
    %370 = arith.mulf %366, %345 : vector<2x32xf32>
    %371 = arith.mulf %365, %369 : vector<2x32xf32>
    %372 = arith.addf %370, %371 : vector<2x32xf32>
    %373 = math.tanh %372 : vector<2x32xf32>
    %374 = arith.mulf %367, %373 : vector<2x32xf32>
    %375 = vector.extract_strided_slice %374 {offsets = [0, 0], sizes = [2, 16], strides = [1, 1]} : vector<2x32xf32> to vector<2x16xf32>
    %c6_146 = arith.constant 6 : index
    %c0_147 = arith.constant 0 : index
    %376 = vector.load %arg18[%c6_146, %c0_147] : memref<16x32xf32, #tpu.memory_space<vmem>>, vector<2x16xf32>
    tpu.vector_store %arg18[%c6_146, %c0_147], %375 {strides = array<i32>} : memref<16x32xf32, #tpu.memory_space<vmem>>, vector<2x16xf32>,
    %377 = vector.extract_strided_slice %374 {offsets = [0, 16], sizes = [2, 16], strides = [1, 1]} : vector<2x32xf32> to vector<2x16xf32>
    %c8_148 = arith.constant 8 : index
    %c16_149 = arith.constant 16 : index
    %378 = vector.load %arg18[%c8_148, %c16_149] : memref<16x32xf32, #tpu.memory_space<vmem>>, vector<2x16xf32>
    tpu.vector_store %arg18[%c8_148, %c16_149], %377 {strides = array<i32>} : memref<16x32xf32, #tpu.memory_space<vmem>>, vector<2x16xf32>,
    %c8_150 = arith.constant 8 : index
    %c0_151 = arith.constant 0 : index
    %379 = vector.load %arg19[%c8_150, %c0_151] : memref<16x128xf32, #tpu.memory_space<vmem>>, vector<2x128xf32>
    %c6_152 = arith.constant 6 : index
    %c0_153 = arith.constant 0 : index
    %380 = vector.load %arg19[%c6_152, %c0_153] : memref<16x128xf32, #tpu.memory_space<vmem>>, vector<2x128xf32>
    %381 = vector.shape_cast %18 : vector<1x128xi1> to vector<1x128xi1>
    %382 = vector.broadcast %381 : vector<1x128xi1> to vector<2x128xi1>
    %383 = arith.select %382, %379, %380 : vector<2x128xi1>, vector<2x128xf32>
    %cst_154 = arith.constant dense<0.000000e+00> : vector<2x128xf32>
    %384 = tpu.matmul %374, %268, %cst_154 {dimension_numbers = #tpu.dot_dimension_numbers<[1], [0], [0], [1], [0, 0, 1, 1], [], []>} : vector<2x32xf32>, vector<32x128xf32>, vector<2x128xf32> -> vector<2x128xf32>
    %385 = arith.addf %383, %384 : vector<2x128xf32>
    %386 = vector.extract_strided_slice %385 {offsets = [0, 0], sizes = [2, 96], strides = [1, 1]} : vector<2x128xf32> to vector<2x96xf32>
    %387 = arith.negf %386 : vector<2x96xf32>
    %388 = math.exp %387 : vector<2x96xf32>
    %cst_155 = arith.constant 1.000000e+00 : f32
    %389 = vector.broadcast %cst_155 : f32 to vector<2x96xf32>
    %390 = arith.addf %389, %388 : vector<2x96xf32>
    %391 = arith.divf %389, %390 : vector<2x96xf32>
    %392 = vector.extract_strided_slice %391 {offsets = [0, 0], sizes = [2, 32], strides = [1, 1]} : vector<2x96xf32> to vector<2x32xf32>
    %393 = vector.extract_strided_slice %391 {offsets = [0, 32], sizes = [2, 32], strides = [1, 1]} : vector<2x96xf32> to vector<2x32xf32>
    %394 = vector.extract_strided_slice %391 {offsets = [0, 64], sizes = [2, 32], strides = [1, 1]} : vector<2x96xf32> to vector<2x32xf32>
    %395 = vector.extract_strided_slice %385 {offsets = [0, 96], sizes = [2, 32], strides = [1, 1]} : vector<2x128xf32> to vector<2x32xf32>
    %396 = math.tanh %395 : vector<2x32xf32>
    %397 = arith.mulf %393, %372 : vector<2x32xf32>
    %398 = arith.mulf %392, %396 : vector<2x32xf32>
    %399 = arith.addf %397, %398 : vector<2x32xf32>
    %400 = math.tanh %399 : vector<2x32xf32>
    %401 = arith.mulf %394, %400 : vector<2x32xf32>
    %402 = vector.extract_strided_slice %401 {offsets = [0, 0], sizes = [2, 16], strides = [1, 1]} : vector<2x32xf32> to vector<2x16xf32>
    %c8_156 = arith.constant 8 : index
    %c0_157 = arith.constant 0 : index
    %403 = vector.load %arg18[%c8_156, %c0_157] : memref<16x32xf32, #tpu.memory_space<vmem>>, vector<2x16xf32>
    tpu.vector_store %arg18[%c8_156, %c0_157], %402 {strides = array<i32>} : memref<16x32xf32, #tpu.memory_space<vmem>>, vector<2x16xf32>,
    %404 = vector.extract_strided_slice %401 {offsets = [0, 16], sizes = [2, 16], strides = [1, 1]} : vector<2x32xf32> to vector<2x16xf32>
    %c6_158 = arith.constant 6 : index
    %c16_159 = arith.constant 16 : index
    %405 = vector.load %arg18[%c6_158, %c16_159] : memref<16x32xf32, #tpu.memory_space<vmem>>, vector<2x16xf32>
    tpu.vector_store %arg18[%c6_158, %c16_159], %404 {strides = array<i32>} : memref<16x32xf32, #tpu.memory_space<vmem>>, vector<2x16xf32>,
    %c10_160 = arith.constant 10 : index
    %c0_161 = arith.constant 0 : index
    %406 = vector.load %arg19[%c10_160, %c0_161] : memref<16x128xf32, #tpu.memory_space<vmem>>, vector<2x128xf32>
    %c4_162 = arith.constant 4 : index
    %c0_163 = arith.constant 0 : index
    %407 = vector.load %arg19[%c4_162, %c0_163] : memref<16x128xf32, #tpu.memory_space<vmem>>, vector<2x128xf32>
    %408 = vector.shape_cast %18 : vector<1x128xi1> to vector<1x128xi1>
    %409 = vector.broadcast %408 : vector<1x128xi1> to vector<2x128xi1>
    %410 = arith.select %409, %406, %407 : vector<2x128xi1>, vector<2x128xf32>
    %cst_164 = arith.constant dense<0.000000e+00> : vector<2x128xf32>
    %411 = tpu.matmul %401, %268, %cst_164 {dimension_numbers = #tpu.dot_dimension_numbers<[1], [0], [0], [1], [0, 0, 1, 1], [], []>} : vector<2x32xf32>, vector<32x128xf32>, vector<2x128xf32> -> vector<2x128xf32>
    %412 = arith.addf %410, %411 : vector<2x128xf32>
    %413 = vector.extract_strided_slice %412 {offsets = [0, 0], sizes = [2, 96], strides = [1, 1]} : vector<2x128xf32> to vector<2x96xf32>
    %414 = arith.negf %413 : vector<2x96xf32>
    %415 = math.exp %414 : vector<2x96xf32>
    %cst_165 = arith.constant 1.000000e+00 : f32
    %416 = vector.broadcast %cst_165 : f32 to vector<2x96xf32>
    %417 = arith.addf %416, %415 : vector<2x96xf32>
    %418 = arith.divf %416, %417 : vector<2x96xf32>
    %419 = vector.extract_strided_slice %418 {offsets = [0, 0], sizes = [2, 32], strides = [1, 1]} : vector<2x96xf32> to vector<2x32xf32>
    %420 = vector.extract_strided_slice %418 {offsets = [0, 32], sizes = [2, 32], strides = [1, 1]} : vector<2x96xf32> to vector<2x32xf32>
    %421 = vector.extract_strided_slice %418 {offsets = [0, 64], sizes = [2, 32], strides = [1, 1]} : vector<2x96xf32> to vector<2x32xf32>
    %422 = vector.extract_strided_slice %412 {offsets = [0, 96], sizes = [2, 32], strides = [1, 1]} : vector<2x128xf32> to vector<2x32xf32>
    %423 = math.tanh %422 : vector<2x32xf32>
    %424 = arith.mulf %420, %399 : vector<2x32xf32>
    %425 = arith.mulf %419, %423 : vector<2x32xf32>
    %426 = arith.addf %424, %425 : vector<2x32xf32>
    %427 = math.tanh %426 : vector<2x32xf32>
    %428 = arith.mulf %421, %427 : vector<2x32xf32>
    %429 = vector.extract_strided_slice %428 {offsets = [0, 0], sizes = [2, 16], strides = [1, 1]} : vector<2x32xf32> to vector<2x16xf32>
    %c10_166 = arith.constant 10 : index
    %c0_167 = arith.constant 0 : index
    %430 = vector.load %arg18[%c10_166, %c0_167] : memref<16x32xf32, #tpu.memory_space<vmem>>, vector<2x16xf32>
    tpu.vector_store %arg18[%c10_166, %c0_167], %429 {strides = array<i32>} : memref<16x32xf32, #tpu.memory_space<vmem>>, vector<2x16xf32>,
    %431 = vector.extract_strided_slice %428 {offsets = [0, 16], sizes = [2, 16], strides = [1, 1]} : vector<2x32xf32> to vector<2x16xf32>
    %c4_168 = arith.constant 4 : index
    %c16_169 = arith.constant 16 : index
    %432 = vector.load %arg18[%c4_168, %c16_169] : memref<16x32xf32, #tpu.memory_space<vmem>>, vector<2x16xf32>
    tpu.vector_store %arg18[%c4_168, %c16_169], %431 {strides = array<i32>} : memref<16x32xf32, #tpu.memory_space<vmem>>, vector<2x16xf32>,
    %c12_170 = arith.constant 12 : index
    %c0_171 = arith.constant 0 : index
    %433 = vector.load %arg19[%c12_170, %c0_171] : memref<16x128xf32, #tpu.memory_space<vmem>>, vector<2x128xf32>
    %c2_172 = arith.constant 2 : index
    %c0_173 = arith.constant 0 : index
    %434 = vector.load %arg19[%c2_172, %c0_173] : memref<16x128xf32, #tpu.memory_space<vmem>>, vector<2x128xf32>
    %435 = vector.shape_cast %18 : vector<1x128xi1> to vector<1x128xi1>
    %436 = vector.broadcast %435 : vector<1x128xi1> to vector<2x128xi1>
    %437 = arith.select %436, %433, %434 : vector<2x128xi1>, vector<2x128xf32>
    %cst_174 = arith.constant dense<0.000000e+00> : vector<2x128xf32>
    %438 = tpu.matmul %428, %268, %cst_174 {dimension_numbers = #tpu.dot_dimension_numbers<[1], [0], [0], [1], [0, 0, 1, 1], [], []>} : vector<2x32xf32>, vector<32x128xf32>, vector<2x128xf32> -> vector<2x128xf32>
    %439 = arith.addf %437, %438 : vector<2x128xf32>
    %440 = vector.extract_strided_slice %439 {offsets = [0, 0], sizes = [2, 96], strides = [1, 1]} : vector<2x128xf32> to vector<2x96xf32>
    %441 = arith.negf %440 : vector<2x96xf32>
    %442 = math.exp %441 : vector<2x96xf32>
    %cst_175 = arith.constant 1.000000e+00 : f32
    %443 = vector.broadcast %cst_175 : f32 to vector<2x96xf32>
    %444 = arith.addf %443, %442 : vector<2x96xf32>
    %445 = arith.divf %443, %444 : vector<2x96xf32>
    %446 = vector.extract_strided_slice %445 {offsets = [0, 0], sizes = [2, 32], strides = [1, 1]} : vector<2x96xf32> to vector<2x32xf32>
    %447 = vector.extract_strided_slice %445 {offsets = [0, 32], sizes = [2, 32], strides = [1, 1]} : vector<2x96xf32> to vector<2x32xf32>
    %448 = vector.extract_strided_slice %445 {offsets = [0, 64], sizes = [2, 32], strides = [1, 1]} : vector<2x96xf32> to vector<2x32xf32>
    %449 = vector.extract_strided_slice %439 {offsets = [0, 96], sizes = [2, 32], strides = [1, 1]} : vector<2x128xf32> to vector<2x32xf32>
    %450 = math.tanh %449 : vector<2x32xf32>
    %451 = arith.mulf %447, %426 : vector<2x32xf32>
    %452 = arith.mulf %446, %450 : vector<2x32xf32>
    %453 = arith.addf %451, %452 : vector<2x32xf32>
    %454 = math.tanh %453 : vector<2x32xf32>
    %455 = arith.mulf %448, %454 : vector<2x32xf32>
    %456 = vector.extract_strided_slice %455 {offsets = [0, 0], sizes = [2, 16], strides = [1, 1]} : vector<2x32xf32> to vector<2x16xf32>
    %c12_176 = arith.constant 12 : index
    %c0_177 = arith.constant 0 : index
    %457 = vector.load %arg18[%c12_176, %c0_177] : memref<16x32xf32, #tpu.memory_space<vmem>>, vector<2x16xf32>
    tpu.vector_store %arg18[%c12_176, %c0_177], %456 {strides = array<i32>} : memref<16x32xf32, #tpu.memory_space<vmem>>, vector<2x16xf32>,
    %458 = vector.extract_strided_slice %455 {offsets = [0, 16], sizes = [2, 16], strides = [1, 1]} : vector<2x32xf32> to vector<2x16xf32>
    %c2_178 = arith.constant 2 : index
    %c16_179 = arith.constant 16 : index
    %459 = vector.load %arg18[%c2_178, %c16_179] : memref<16x32xf32, #tpu.memory_space<vmem>>, vector<2x16xf32>
    tpu.vector_store %arg18[%c2_178, %c16_179], %458 {strides = array<i32>} : memref<16x32xf32, #tpu.memory_space<vmem>>, vector<2x16xf32>,
    %c14_180 = arith.constant 14 : index
    %c0_181 = arith.constant 0 : index
    %460 = vector.load %arg19[%c14_180, %c0_181] : memref<16x128xf32, #tpu.memory_space<vmem>>, vector<2x128xf32>
    %c0_182 = arith.constant 0 : index
    %c0_183 = arith.constant 0 : index
    %461 = vector.load %arg19[%c0_182, %c0_183] : memref<16x128xf32, #tpu.memory_space<vmem>>, vector<2x128xf32>
    %462 = vector.shape_cast %18 : vector<1x128xi1> to vector<1x128xi1>
    %463 = vector.broadcast %462 : vector<1x128xi1> to vector<2x128xi1>
    %464 = arith.select %463, %460, %461 : vector<2x128xi1>, vector<2x128xf32>
    %cst_184 = arith.constant dense<0.000000e+00> : vector<2x128xf32>
    %465 = tpu.matmul %455, %268, %cst_184 {dimension_numbers = #tpu.dot_dimension_numbers<[1], [0], [0], [1], [0, 0, 1, 1], [], []>} : vector<2x32xf32>, vector<32x128xf32>, vector<2x128xf32> -> vector<2x128xf32>
    %466 = arith.addf %464, %465 : vector<2x128xf32>
    %467 = vector.extract_strided_slice %466 {offsets = [0, 0], sizes = [2, 96], strides = [1, 1]} : vector<2x128xf32> to vector<2x96xf32>
    %468 = arith.negf %467 : vector<2x96xf32>
    %469 = math.exp %468 : vector<2x96xf32>
    %cst_185 = arith.constant 1.000000e+00 : f32
    %470 = vector.broadcast %cst_185 : f32 to vector<2x96xf32>
    %471 = arith.addf %470, %469 : vector<2x96xf32>
    %472 = arith.divf %470, %471 : vector<2x96xf32>
    %473 = vector.extract_strided_slice %472 {offsets = [0, 0], sizes = [2, 32], strides = [1, 1]} : vector<2x96xf32> to vector<2x32xf32>
    %474 = vector.extract_strided_slice %472 {offsets = [0, 32], sizes = [2, 32], strides = [1, 1]} : vector<2x96xf32> to vector<2x32xf32>
    %475 = vector.extract_strided_slice %472 {offsets = [0, 64], sizes = [2, 32], strides = [1, 1]} : vector<2x96xf32> to vector<2x32xf32>
    %476 = vector.extract_strided_slice %466 {offsets = [0, 96], sizes = [2, 32], strides = [1, 1]} : vector<2x128xf32> to vector<2x32xf32>
    %477 = math.tanh %476 : vector<2x32xf32>
    %478 = arith.mulf %474, %453 : vector<2x32xf32>
    %479 = arith.mulf %473, %477 : vector<2x32xf32>
    %480 = arith.addf %478, %479 : vector<2x32xf32>
    %481 = math.tanh %480 : vector<2x32xf32>
    %482 = arith.mulf %475, %481 : vector<2x32xf32>
    %483 = vector.extract_strided_slice %482 {offsets = [0, 0], sizes = [2, 16], strides = [1, 1]} : vector<2x32xf32> to vector<2x16xf32>
    %c14_186 = arith.constant 14 : index
    %c0_187 = arith.constant 0 : index
    %484 = vector.load %arg18[%c14_186, %c0_187] : memref<16x32xf32, #tpu.memory_space<vmem>>, vector<2x16xf32>
    tpu.vector_store %arg18[%c14_186, %c0_187], %483 {strides = array<i32>} : memref<16x32xf32, #tpu.memory_space<vmem>>, vector<2x16xf32>,
    %485 = vector.extract_strided_slice %482 {offsets = [0, 16], sizes = [2, 16], strides = [1, 1]} : vector<2x32xf32> to vector<2x16xf32>
    %c0_188 = arith.constant 0 : index
    %c16_189 = arith.constant 16 : index
    %486 = vector.load %arg18[%c0_188, %c16_189] : memref<16x32xf32, #tpu.memory_space<vmem>>, vector<2x16xf32>
    tpu.vector_store %arg18[%c0_188, %c16_189], %485 {strides = array<i32>} : memref<16x32xf32, #tpu.memory_space<vmem>>, vector<2x16xf32>,
    %487 = vector.extract_strided_slice %482 {offsets = [0, 0], sizes = [2, 16], strides = [1, 1]} : vector<2x32xf32> to vector<2x16xf32>
    %c2_190 = arith.constant 2 : index
    %c0_191 = arith.constant 0 : index
    %c0_192 = arith.constant 0 : index
    %488 = vector.load %arg15[%c2_190, %c0_191, %c0_192] : memref<8x2x16xf32, #tpu.memory_space<vmem>>, vector<1x2x16xf32>
    %489 = vector.shape_cast %488 : vector<1x2x16xf32> to vector<2x16xf32>
    %490 = vector.shape_cast %487 : vector<2x16xf32> to vector<1x2x16xf32>
    tpu.vector_store %arg15[%c2_190, %c0_191, %c0_192], %490 {strides = array<i32>} : memref<8x2x16xf32, #tpu.memory_space<vmem>>, vector<1x2x16xf32>,
    %491 = vector.extract_strided_slice %482 {offsets = [0, 16], sizes = [2, 16], strides = [1, 1]} : vector<2x32xf32> to vector<2x16xf32>
    %c3 = arith.constant 3 : index
    %c0_193 = arith.constant 0 : index
    %c0_194 = arith.constant 0 : index
    %492 = vector.load %arg15[%c3, %c0_193, %c0_194] : memref<8x2x16xf32, #tpu.memory_space<vmem>>, vector<1x2x16xf32>
    %493 = vector.shape_cast %492 : vector<1x2x16xf32> to vector<2x16xf32>
    %494 = vector.shape_cast %491 : vector<2x16xf32> to vector<1x2x16xf32>
    tpu.vector_store %arg15[%c3, %c0_193, %c0_194], %494 {strides = array<i32>} : memref<8x2x16xf32, #tpu.memory_space<vmem>>, vector<1x2x16xf32>,
    %495 = vector.extract_strided_slice %480 {offsets = [0, 0], sizes = [2, 16], strides = [1, 1]} : vector<2x32xf32> to vector<2x16xf32>
    %c2_195 = arith.constant 2 : index
    %c0_196 = arith.constant 0 : index
    %c0_197 = arith.constant 0 : index
    %496 = vector.load %arg16[%c2_195, %c0_196, %c0_197] : memref<8x2x16xf32, #tpu.memory_space<vmem>>, vector<1x2x16xf32>
    %497 = vector.shape_cast %496 : vector<1x2x16xf32> to vector<2x16xf32>
    %498 = vector.shape_cast %495 : vector<2x16xf32> to vector<1x2x16xf32>
    tpu.vector_store %arg16[%c2_195, %c0_196, %c0_197], %498 {strides = array<i32>} : memref<8x2x16xf32, #tpu.memory_space<vmem>>, vector<1x2x16xf32>,
    %499 = vector.extract_strided_slice %480 {offsets = [0, 16], sizes = [2, 16], strides = [1, 1]} : vector<2x32xf32> to vector<2x16xf32>
    %c3_198 = arith.constant 3 : index
    %c0_199 = arith.constant 0 : index
    %c0_200 = arith.constant 0 : index
    %500 = vector.load %arg16[%c3_198, %c0_199, %c0_200] : memref<8x2x16xf32, #tpu.memory_space<vmem>>, vector<1x2x16xf32>
    %501 = vector.shape_cast %500 : vector<1x2x16xf32> to vector<2x16xf32>
    %502 = vector.shape_cast %499 : vector<2x16xf32> to vector<1x2x16xf32>
    tpu.vector_store %arg16[%c3_198, %c0_199, %c0_200], %502 {strides = array<i32>} : memref<8x2x16xf32, #tpu.memory_space<vmem>>, vector<1x2x16xf32>,
    %c0_201 = arith.constant 0 : index
    %c0_202 = arith.constant 0 : index
    %503 = vector.load %arg18[%c0_201, %c0_202] : memref<16x32xf32, #tpu.memory_space<vmem>>, vector<16x32xf32>
    %c0_203 = arith.constant 0 : index
    %c0_204 = arith.constant 0 : index
    %504 = vector.load %arg8[%c0_203, %c0_204] : memref<32x128xf32, #tpu.memory_space<vmem>>, vector<32x128xf32>
    %cst_205 = arith.constant dense<0.000000e+00> : vector<16x128xf32>
    %505 = tpu.matmul %503, %504, %cst_205 {dimension_numbers = #tpu.dot_dimension_numbers<[1], [0], [0], [1], [0, 0, 1, 1], [], []>} : vector<16x32xf32>, vector<32x128xf32>, vector<16x128xf32> -> vector<16x128xf32>
    %c0_206 = arith.constant 0 : index
    %c0_207 = arith.constant 0 : index
    %506 = vector.load %arg10[%c0_206, %c0_207] : memref<1x128xf32, #tpu.memory_space<vmem>>, vector<1x128xf32>
    %507 = vector.broadcast %506 : vector<1x128xf32> to vector<16x128xf32>
    %508 = arith.addf %505, %507 : vector<16x128xf32>
    %c0_208 = arith.constant 0 : index
    %c0_209 = arith.constant 0 : index
    %509 = vector.load %arg19[%c0_208, %c0_209] : memref<16x128xf32, #tpu.memory_space<vmem>>, vector<16x128xf32>
    tpu.vector_store %arg19[%c0_208, %c0_209], %508 {strides = array<i32>} : memref<16x128xf32, #tpu.memory_space<vmem>>, vector<16x128xf32>,
    %c0_210 = arith.constant 0 : index
    %c0_211 = arith.constant 0 : index
    %510 = vector.load %arg9[%c0_210, %c0_211] : memref<32x128xf32, #tpu.memory_space<vmem>>, vector<32x128xf32>
    %cst_212 = arith.constant 0.000000e+00 : f32
    %511 = vector.broadcast %cst_212 : f32 to vector<2x32xf32>
    %cst_213 = arith.constant 0.000000e+00 : f32
    %512 = vector.broadcast %cst_213 : f32 to vector<2x32xf32>
    %c0_214 = arith.constant 0 : index
    %c0_215 = arith.constant 0 : index
    %513 = vector.load %arg19[%c0_214, %c0_215] : memref<16x128xf32, #tpu.memory_space<vmem>>, vector<2x128xf32>
    %c14_216 = arith.constant 14 : index
    %c0_217 = arith.constant 0 : index
    %514 = vector.load %arg19[%c14_216, %c0_217] : memref<16x128xf32, #tpu.memory_space<vmem>>, vector<2x128xf32>
    %515 = vector.shape_cast %18 : vector<1x128xi1> to vector<1x128xi1>
    %516 = vector.broadcast %515 : vector<1x128xi1> to vector<2x128xi1>
    %517 = arith.select %516, %513, %514 : vector<2x128xi1>, vector<2x128xf32>
    %cst_218 = arith.constant dense<0.000000e+00> : vector<2x128xf32>
    %518 = tpu.matmul %511, %510, %cst_218 {dimension_numbers = #tpu.dot_dimension_numbers<[1], [0], [0], [1], [0, 0, 1, 1], [], []>} : vector<2x32xf32>, vector<32x128xf32>, vector<2x128xf32> -> vector<2x128xf32>
    %519 = arith.addf %517, %518 : vector<2x128xf32>
    %520 = vector.extract_strided_slice %519 {offsets = [0, 0], sizes = [2, 96], strides = [1, 1]} : vector<2x128xf32> to vector<2x96xf32>
    %521 = arith.negf %520 : vector<2x96xf32>
    %522 = math.exp %521 : vector<2x96xf32>
    %cst_219 = arith.constant 1.000000e+00 : f32
    %523 = vector.broadcast %cst_219 : f32 to vector<2x96xf32>
    %524 = arith.addf %523, %522 : vector<2x96xf32>
    %525 = arith.divf %523, %524 : vector<2x96xf32>
    %526 = vector.extract_strided_slice %525 {offsets = [0, 0], sizes = [2, 32], strides = [1, 1]} : vector<2x96xf32> to vector<2x32xf32>
    %527 = vector.extract_strided_slice %525 {offsets = [0, 32], sizes = [2, 32], strides = [1, 1]} : vector<2x96xf32> to vector<2x32xf32>
    %528 = vector.extract_strided_slice %525 {offsets = [0, 64], sizes = [2, 32], strides = [1, 1]} : vector<2x96xf32> to vector<2x32xf32>
    %529 = vector.extract_strided_slice %519 {offsets = [0, 96], sizes = [2, 32], strides = [1, 1]} : vector<2x128xf32> to vector<2x32xf32>
    %530 = math.tanh %529 : vector<2x32xf32>
    %531 = arith.mulf %527, %512 : vector<2x32xf32>
    %532 = arith.mulf %526, %530 : vector<2x32xf32>
    %533 = arith.addf %531, %532 : vector<2x32xf32>
    %534 = math.tanh %533 : vector<2x32xf32>
    %535 = arith.mulf %528, %534 : vector<2x32xf32>
    %536 = vector.extract_strided_slice %535 {offsets = [0, 0], sizes = [2, 16], strides = [1, 1]} : vector<2x32xf32> to vector<2x16xf32>
    %c0_220 = arith.constant 0 : index
    %c0_221 = arith.constant 0 : index
    %537 = vector.load %arg17[%c0_220, %c0_221] : memref<16x32xf32, #tpu.memory_space<vmem>>, vector<2x16xf32>
    tpu.vector_store %arg17[%c0_220, %c0_221], %536 {strides = array<i32>} : memref<16x32xf32, #tpu.memory_space<vmem>>, vector<2x16xf32>,
    %538 = vector.extract_strided_slice %535 {offsets = [0, 16], sizes = [2, 16], strides = [1, 1]} : vector<2x32xf32> to vector<2x16xf32>
    %c14_222 = arith.constant 14 : index
    %c16_223 = arith.constant 16 : index
    %539 = vector.load %arg17[%c14_222, %c16_223] : memref<16x32xf32, #tpu.memory_space<vmem>>, vector<2x16xf32>
    tpu.vector_store %arg17[%c14_222, %c16_223], %538 {strides = array<i32>} : memref<16x32xf32, #tpu.memory_space<vmem>>, vector<2x16xf32>,
    %c2_224 = arith.constant 2 : index
    %c0_225 = arith.constant 0 : index
    %540 = vector.load %arg19[%c2_224, %c0_225] : memref<16x128xf32, #tpu.memory_space<vmem>>, vector<2x128xf32>
    %c12_226 = arith.constant 12 : index
    %c0_227 = arith.constant 0 : index
    %541 = vector.load %arg19[%c12_226, %c0_227] : memref<16x128xf32, #tpu.memory_space<vmem>>, vector<2x128xf32>
    %542 = vector.shape_cast %18 : vector<1x128xi1> to vector<1x128xi1>
    %543 = vector.broadcast %542 : vector<1x128xi1> to vector<2x128xi1>
    %544 = arith.select %543, %540, %541 : vector<2x128xi1>, vector<2x128xf32>
    %cst_228 = arith.constant dense<0.000000e+00> : vector<2x128xf32>
    %545 = tpu.matmul %535, %510, %cst_228 {dimension_numbers = #tpu.dot_dimension_numbers<[1], [0], [0], [1], [0, 0, 1, 1], [], []>} : vector<2x32xf32>, vector<32x128xf32>, vector<2x128xf32> -> vector<2x128xf32>
    %546 = arith.addf %544, %545 : vector<2x128xf32>
    %547 = vector.extract_strided_slice %546 {offsets = [0, 0], sizes = [2, 96], strides = [1, 1]} : vector<2x128xf32> to vector<2x96xf32>
    %548 = arith.negf %547 : vector<2x96xf32>
    %549 = math.exp %548 : vector<2x96xf32>
    %cst_229 = arith.constant 1.000000e+00 : f32
    %550 = vector.broadcast %cst_229 : f32 to vector<2x96xf32>
    %551 = arith.addf %550, %549 : vector<2x96xf32>
    %552 = arith.divf %550, %551 : vector<2x96xf32>
    %553 = vector.extract_strided_slice %552 {offsets = [0, 0], sizes = [2, 32], strides = [1, 1]} : vector<2x96xf32> to vector<2x32xf32>
    %554 = vector.extract_strided_slice %552 {offsets = [0, 32], sizes = [2, 32], strides = [1, 1]} : vector<2x96xf32> to vector<2x32xf32>
    %555 = vector.extract_strided_slice %552 {offsets = [0, 64], sizes = [2, 32], strides = [1, 1]} : vector<2x96xf32> to vector<2x32xf32>
    %556 = vector.extract_strided_slice %546 {offsets = [0, 96], sizes = [2, 32], strides = [1, 1]} : vector<2x128xf32> to vector<2x32xf32>
    %557 = math.tanh %556 : vector<2x32xf32>
    %558 = arith.mulf %554, %533 : vector<2x32xf32>
    %559 = arith.mulf %553, %557 : vector<2x32xf32>
    %560 = arith.addf %558, %559 : vector<2x32xf32>
    %561 = math.tanh %560 : vector<2x32xf32>
    %562 = arith.mulf %555, %561 : vector<2x32xf32>
    %563 = vector.extract_strided_slice %562 {offsets = [0, 0], sizes = [2, 16], strides = [1, 1]} : vector<2x32xf32> to vector<2x16xf32>
    %c2_230 = arith.constant 2 : index
    %c0_231 = arith.constant 0 : index
    %564 = vector.load %arg17[%c2_230, %c0_231] : memref<16x32xf32, #tpu.memory_space<vmem>>, vector<2x16xf32>
    tpu.vector_store %arg17[%c2_230, %c0_231], %563 {strides = array<i32>} : memref<16x32xf32, #tpu.memory_space<vmem>>, vector<2x16xf32>,
    %565 = vector.extract_strided_slice %562 {offsets = [0, 16], sizes = [2, 16], strides = [1, 1]} : vector<2x32xf32> to vector<2x16xf32>
    %c12_232 = arith.constant 12 : index
    %c16_233 = arith.constant 16 : index
    %566 = vector.load %arg17[%c12_232, %c16_233] : memref<16x32xf32, #tpu.memory_space<vmem>>, vector<2x16xf32>
    tpu.vector_store %arg17[%c12_232, %c16_233], %565 {strides = array<i32>} : memref<16x32xf32, #tpu.memory_space<vmem>>, vector<2x16xf32>,
    %c4_234 = arith.constant 4 : index
    %c0_235 = arith.constant 0 : index
    %567 = vector.load %arg19[%c4_234, %c0_235] : memref<16x128xf32, #tpu.memory_space<vmem>>, vector<2x128xf32>
    %c10_236 = arith.constant 10 : index
    %c0_237 = arith.constant 0 : index
    %568 = vector.load %arg19[%c10_236, %c0_237] : memref<16x128xf32, #tpu.memory_space<vmem>>, vector<2x128xf32>
    %569 = vector.shape_cast %18 : vector<1x128xi1> to vector<1x128xi1>
    %570 = vector.broadcast %569 : vector<1x128xi1> to vector<2x128xi1>
    %571 = arith.select %570, %567, %568 : vector<2x128xi1>, vector<2x128xf32>
    %cst_238 = arith.constant dense<0.000000e+00> : vector<2x128xf32>
    %572 = tpu.matmul %562, %510, %cst_238 {dimension_numbers = #tpu.dot_dimension_numbers<[1], [0], [0], [1], [0, 0, 1, 1], [], []>} : vector<2x32xf32>, vector<32x128xf32>, vector<2x128xf32> -> vector<2x128xf32>
    %573 = arith.addf %571, %572 : vector<2x128xf32>
    %574 = vector.extract_strided_slice %573 {offsets = [0, 0], sizes = [2, 96], strides = [1, 1]} : vector<2x128xf32> to vector<2x96xf32>
    %575 = arith.negf %574 : vector<2x96xf32>
    %576 = math.exp %575 : vector<2x96xf32>
    %cst_239 = arith.constant 1.000000e+00 : f32
    %577 = vector.broadcast %cst_239 : f32 to vector<2x96xf32>
    %578 = arith.addf %577, %576 : vector<2x96xf32>
    %579 = arith.divf %577, %578 : vector<2x96xf32>
    %580 = vector.extract_strided_slice %579 {offsets = [0, 0], sizes = [2, 32], strides = [1, 1]} : vector<2x96xf32> to vector<2x32xf32>
    %581 = vector.extract_strided_slice %579 {offsets = [0, 32], sizes = [2, 32], strides = [1, 1]} : vector<2x96xf32> to vector<2x32xf32>
    %582 = vector.extract_strided_slice %579 {offsets = [0, 64], sizes = [2, 32], strides = [1, 1]} : vector<2x96xf32> to vector<2x32xf32>
    %583 = vector.extract_strided_slice %573 {offsets = [0, 96], sizes = [2, 32], strides = [1, 1]} : vector<2x128xf32> to vector<2x32xf32>
    %584 = math.tanh %583 : vector<2x32xf32>
    %585 = arith.mulf %581, %560 : vector<2x32xf32>
    %586 = arith.mulf %580, %584 : vector<2x32xf32>
    %587 = arith.addf %585, %586 : vector<2x32xf32>
    %588 = math.tanh %587 : vector<2x32xf32>
    %589 = arith.mulf %582, %588 : vector<2x32xf32>
    %590 = vector.extract_strided_slice %589 {offsets = [0, 0], sizes = [2, 16], strides = [1, 1]} : vector<2x32xf32> to vector<2x16xf32>
    %c4_240 = arith.constant 4 : index
    %c0_241 = arith.constant 0 : index
    %591 = vector.load %arg17[%c4_240, %c0_241] : memref<16x32xf32, #tpu.memory_space<vmem>>, vector<2x16xf32>
    tpu.vector_store %arg17[%c4_240, %c0_241], %590 {strides = array<i32>} : memref<16x32xf32, #tpu.memory_space<vmem>>, vector<2x16xf32>,
    %592 = vector.extract_strided_slice %589 {offsets = [0, 16], sizes = [2, 16], strides = [1, 1]} : vector<2x32xf32> to vector<2x16xf32>
    %c10_242 = arith.constant 10 : index
    %c16_243 = arith.constant 16 : index
    %593 = vector.load %arg17[%c10_242, %c16_243] : memref<16x32xf32, #tpu.memory_space<vmem>>, vector<2x16xf32>
    tpu.vector_store %arg17[%c10_242, %c16_243], %592 {strides = array<i32>} : memref<16x32xf32, #tpu.memory_space<vmem>>, vector<2x16xf32>,
    %c6_244 = arith.constant 6 : index
    %c0_245 = arith.constant 0 : index
    %594 = vector.load %arg19[%c6_244, %c0_245] : memref<16x128xf32, #tpu.memory_space<vmem>>, vector<2x128xf32>
    %c8_246 = arith.constant 8 : index
    %c0_247 = arith.constant 0 : index
    %595 = vector.load %arg19[%c8_246, %c0_247] : memref<16x128xf32, #tpu.memory_space<vmem>>, vector<2x128xf32>
    %596 = vector.shape_cast %18 : vector<1x128xi1> to vector<1x128xi1>
    %597 = vector.broadcast %596 : vector<1x128xi1> to vector<2x128xi1>
    %598 = arith.select %597, %594, %595 : vector<2x128xi1>, vector<2x128xf32>
    %cst_248 = arith.constant dense<0.000000e+00> : vector<2x128xf32>
    %599 = tpu.matmul %589, %510, %cst_248 {dimension_numbers = #tpu.dot_dimension_numbers<[1], [0], [0], [1], [0, 0, 1, 1], [], []>} : vector<2x32xf32>, vector<32x128xf32>, vector<2x128xf32> -> vector<2x128xf32>
    %600 = arith.addf %598, %599 : vector<2x128xf32>
    %601 = vector.extract_strided_slice %600 {offsets = [0, 0], sizes = [2, 96], strides = [1, 1]} : vector<2x128xf32> to vector<2x96xf32>
    %602 = arith.negf %601 : vector<2x96xf32>
    %603 = math.exp %602 : vector<2x96xf32>
    %cst_249 = arith.constant 1.000000e+00 : f32
    %604 = vector.broadcast %cst_249 : f32 to vector<2x96xf32>
    %605 = arith.addf %604, %603 : vector<2x96xf32>
    %606 = arith.divf %604, %605 : vector<2x96xf32>
    %607 = vector.extract_strided_slice %606 {offsets = [0, 0], sizes = [2, 32], strides = [1, 1]} : vector<2x96xf32> to vector<2x32xf32>
    %608 = vector.extract_strided_slice %606 {offsets = [0, 32], sizes = [2, 32], strides = [1, 1]} : vector<2x96xf32> to vector<2x32xf32>
    %609 = vector.extract_strided_slice %606 {offsets = [0, 64], sizes = [2, 32], strides = [1, 1]} : vector<2x96xf32> to vector<2x32xf32>
    %610 = vector.extract_strided_slice %600 {offsets = [0, 96], sizes = [2, 32], strides = [1, 1]} : vector<2x128xf32> to vector<2x32xf32>
    %611 = math.tanh %610 : vector<2x32xf32>
    %612 = arith.mulf %608, %587 : vector<2x32xf32>
    %613 = arith.mulf %607, %611 : vector<2x32xf32>
    %614 = arith.addf %612, %613 : vector<2x32xf32>
    %615 = math.tanh %614 : vector<2x32xf32>
    %616 = arith.mulf %609, %615 : vector<2x32xf32>
    %617 = vector.extract_strided_slice %616 {offsets = [0, 0], sizes = [2, 16], strides = [1, 1]} : vector<2x32xf32> to vector<2x16xf32>
    %c6_250 = arith.constant 6 : index
    %c0_251 = arith.constant 0 : index
    %618 = vector.load %arg17[%c6_250, %c0_251] : memref<16x32xf32, #tpu.memory_space<vmem>>, vector<2x16xf32>
    tpu.vector_store %arg17[%c6_250, %c0_251], %617 {strides = array<i32>} : memref<16x32xf32, #tpu.memory_space<vmem>>, vector<2x16xf32>,
    %619 = vector.extract_strided_slice %616 {offsets = [0, 16], sizes = [2, 16], strides = [1, 1]} : vector<2x32xf32> to vector<2x16xf32>
    %c8_252 = arith.constant 8 : index
    %c16_253 = arith.constant 16 : index
    %620 = vector.load %arg17[%c8_252, %c16_253] : memref<16x32xf32, #tpu.memory_space<vmem>>, vector<2x16xf32>
    tpu.vector_store %arg17[%c8_252, %c16_253], %619 {strides = array<i32>} : memref<16x32xf32, #tpu.memory_space<vmem>>, vector<2x16xf32>,
    %c8_254 = arith.constant 8 : index
    %c0_255 = arith.constant 0 : index
    %621 = vector.load %arg19[%c8_254, %c0_255] : memref<16x128xf32, #tpu.memory_space<vmem>>, vector<2x128xf32>
    %c6_256 = arith.constant 6 : index
    %c0_257 = arith.constant 0 : index
    %622 = vector.load %arg19[%c6_256, %c0_257] : memref<16x128xf32, #tpu.memory_space<vmem>>, vector<2x128xf32>
    %623 = vector.shape_cast %18 : vector<1x128xi1> to vector<1x128xi1>
    %624 = vector.broadcast %623 : vector<1x128xi1> to vector<2x128xi1>
    %625 = arith.select %624, %621, %622 : vector<2x128xi1>, vector<2x128xf32>
    %cst_258 = arith.constant dense<0.000000e+00> : vector<2x128xf32>
    %626 = tpu.matmul %616, %510, %cst_258 {dimension_numbers = #tpu.dot_dimension_numbers<[1], [0], [0], [1], [0, 0, 1, 1], [], []>} : vector<2x32xf32>, vector<32x128xf32>, vector<2x128xf32> -> vector<2x128xf32>
    %627 = arith.addf %625, %626 : vector<2x128xf32>
    %628 = vector.extract_strided_slice %627 {offsets = [0, 0], sizes = [2, 96], strides = [1, 1]} : vector<2x128xf32> to vector<2x96xf32>
    %629 = arith.negf %628 : vector<2x96xf32>
    %630 = math.exp %629 : vector<2x96xf32>
    %cst_259 = arith.constant 1.000000e+00 : f32
    %631 = vector.broadcast %cst_259 : f32 to vector<2x96xf32>
    %632 = arith.addf %631, %630 : vector<2x96xf32>
    %633 = arith.divf %631, %632 : vector<2x96xf32>
    %634 = vector.extract_strided_slice %633 {offsets = [0, 0], sizes = [2, 32], strides = [1, 1]} : vector<2x96xf32> to vector<2x32xf32>
    %635 = vector.extract_strided_slice %633 {offsets = [0, 32], sizes = [2, 32], strides = [1, 1]} : vector<2x96xf32> to vector<2x32xf32>
    %636 = vector.extract_strided_slice %633 {offsets = [0, 64], sizes = [2, 32], strides = [1, 1]} : vector<2x96xf32> to vector<2x32xf32>
    %637 = vector.extract_strided_slice %627 {offsets = [0, 96], sizes = [2, 32], strides = [1, 1]} : vector<2x128xf32> to vector<2x32xf32>
    %638 = math.tanh %637 : vector<2x32xf32>
    %639 = arith.mulf %635, %614 : vector<2x32xf32>
    %640 = arith.mulf %634, %638 : vector<2x32xf32>
    %641 = arith.addf %639, %640 : vector<2x32xf32>
    %642 = math.tanh %641 : vector<2x32xf32>
    %643 = arith.mulf %636, %642 : vector<2x32xf32>
    %644 = vector.extract_strided_slice %643 {offsets = [0, 0], sizes = [2, 16], strides = [1, 1]} : vector<2x32xf32> to vector<2x16xf32>
    %c8_260 = arith.constant 8 : index
    %c0_261 = arith.constant 0 : index
    %645 = vector.load %arg17[%c8_260, %c0_261] : memref<16x32xf32, #tpu.memory_space<vmem>>, vector<2x16xf32>
    tpu.vector_store %arg17[%c8_260, %c0_261], %644 {strides = array<i32>} : memref<16x32xf32, #tpu.memory_space<vmem>>, vector<2x16xf32>,
    %646 = vector.extract_strided_slice %643 {offsets = [0, 16], sizes = [2, 16], strides = [1, 1]} : vector<2x32xf32> to vector<2x16xf32>
    %c6_262 = arith.constant 6 : index
    %c16_263 = arith.constant 16 : index
    %647 = vector.load %arg17[%c6_262, %c16_263] : memref<16x32xf32, #tpu.memory_space<vmem>>, vector<2x16xf32>
    tpu.vector_store %arg17[%c6_262, %c16_263], %646 {strides = array<i32>} : memref<16x32xf32, #tpu.memory_space<vmem>>, vector<2x16xf32>,
    %c10_264 = arith.constant 10 : index
    %c0_265 = arith.constant 0 : index
    %648 = vector.load %arg19[%c10_264, %c0_265] : memref<16x128xf32, #tpu.memory_space<vmem>>, vector<2x128xf32>
    %c4_266 = arith.constant 4 : index
    %c0_267 = arith.constant 0 : index
    %649 = vector.load %arg19[%c4_266, %c0_267] : memref<16x128xf32, #tpu.memory_space<vmem>>, vector<2x128xf32>
    %650 = vector.shape_cast %18 : vector<1x128xi1> to vector<1x128xi1>
    %651 = vector.broadcast %650 : vector<1x128xi1> to vector<2x128xi1>
    %652 = arith.select %651, %648, %649 : vector<2x128xi1>, vector<2x128xf32>
    %cst_268 = arith.constant dense<0.000000e+00> : vector<2x128xf32>
    %653 = tpu.matmul %643, %510, %cst_268 {dimension_numbers = #tpu.dot_dimension_numbers<[1], [0], [0], [1], [0, 0, 1, 1], [], []>} : vector<2x32xf32>, vector<32x128xf32>, vector<2x128xf32> -> vector<2x128xf32>
    %654 = arith.addf %652, %653 : vector<2x128xf32>
    %655 = vector.extract_strided_slice %654 {offsets = [0, 0], sizes = [2, 96], strides = [1, 1]} : vector<2x128xf32> to vector<2x96xf32>
    %656 = arith.negf %655 : vector<2x96xf32>
    %657 = math.exp %656 : vector<2x96xf32>
    %cst_269 = arith.constant 1.000000e+00 : f32
    %658 = vector.broadcast %cst_269 : f32 to vector<2x96xf32>
    %659 = arith.addf %658, %657 : vector<2x96xf32>
    %660 = arith.divf %658, %659 : vector<2x96xf32>
    %661 = vector.extract_strided_slice %660 {offsets = [0, 0], sizes = [2, 32], strides = [1, 1]} : vector<2x96xf32> to vector<2x32xf32>
    %662 = vector.extract_strided_slice %660 {offsets = [0, 32], sizes = [2, 32], strides = [1, 1]} : vector<2x96xf32> to vector<2x32xf32>
    %663 = vector.extract_strided_slice %660 {offsets = [0, 64], sizes = [2, 32], strides = [1, 1]} : vector<2x96xf32> to vector<2x32xf32>
    %664 = vector.extract_strided_slice %654 {offsets = [0, 96], sizes = [2, 32], strides = [1, 1]} : vector<2x128xf32> to vector<2x32xf32>
    %665 = math.tanh %664 : vector<2x32xf32>
    %666 = arith.mulf %662, %641 : vector<2x32xf32>
    %667 = arith.mulf %661, %665 : vector<2x32xf32>
    %668 = arith.addf %666, %667 : vector<2x32xf32>
    %669 = math.tanh %668 : vector<2x32xf32>
    %670 = arith.mulf %663, %669 : vector<2x32xf32>
    %671 = vector.extract_strided_slice %670 {offsets = [0, 0], sizes = [2, 16], strides = [1, 1]} : vector<2x32xf32> to vector<2x16xf32>
    %c10_270 = arith.constant 10 : index
    %c0_271 = arith.constant 0 : index
    %672 = vector.load %arg17[%c10_270, %c0_271] : memref<16x32xf32, #tpu.memory_space<vmem>>, vector<2x16xf32>
    tpu.vector_store %arg17[%c10_270, %c0_271], %671 {strides = array<i32>} : memref<16x32xf32, #tpu.memory_space<vmem>>, vector<2x16xf32>,
    %673 = vector.extract_strided_slice %670 {offsets = [0, 16], sizes = [2, 16], strides = [1, 1]} : vector<2x32xf32> to vector<2x16xf32>
    %c4_272 = arith.constant 4 : index
    %c16_273 = arith.constant 16 : index
    %674 = vector.load %arg17[%c4_272, %c16_273] : memref<16x32xf32, #tpu.memory_space<vmem>>, vector<2x16xf32>
    tpu.vector_store %arg17[%c4_272, %c16_273], %673 {strides = array<i32>} : memref<16x32xf32, #tpu.memory_space<vmem>>, vector<2x16xf32>,
    %c12_274 = arith.constant 12 : index
    %c0_275 = arith.constant 0 : index
    %675 = vector.load %arg19[%c12_274, %c0_275] : memref<16x128xf32, #tpu.memory_space<vmem>>, vector<2x128xf32>
    %c2_276 = arith.constant 2 : index
    %c0_277 = arith.constant 0 : index
    %676 = vector.load %arg19[%c2_276, %c0_277] : memref<16x128xf32, #tpu.memory_space<vmem>>, vector<2x128xf32>
    %677 = vector.shape_cast %18 : vector<1x128xi1> to vector<1x128xi1>
    %678 = vector.broadcast %677 : vector<1x128xi1> to vector<2x128xi1>
    %679 = arith.select %678, %675, %676 : vector<2x128xi1>, vector<2x128xf32>
    %cst_278 = arith.constant dense<0.000000e+00> : vector<2x128xf32>
    %680 = tpu.matmul %670, %510, %cst_278 {dimension_numbers = #tpu.dot_dimension_numbers<[1], [0], [0], [1], [0, 0, 1, 1], [], []>} : vector<2x32xf32>, vector<32x128xf32>, vector<2x128xf32> -> vector<2x128xf32>
    %681 = arith.addf %679, %680 : vector<2x128xf32>
    %682 = vector.extract_strided_slice %681 {offsets = [0, 0], sizes = [2, 96], strides = [1, 1]} : vector<2x128xf32> to vector<2x96xf32>
    %683 = arith.negf %682 : vector<2x96xf32>
    %684 = math.exp %683 : vector<2x96xf32>
    %cst_279 = arith.constant 1.000000e+00 : f32
    %685 = vector.broadcast %cst_279 : f32 to vector<2x96xf32>
    %686 = arith.addf %685, %684 : vector<2x96xf32>
    %687 = arith.divf %685, %686 : vector<2x96xf32>
    %688 = vector.extract_strided_slice %687 {offsets = [0, 0], sizes = [2, 32], strides = [1, 1]} : vector<2x96xf32> to vector<2x32xf32>
    %689 = vector.extract_strided_slice %687 {offsets = [0, 32], sizes = [2, 32], strides = [1, 1]} : vector<2x96xf32> to vector<2x32xf32>
    %690 = vector.extract_strided_slice %687 {offsets = [0, 64], sizes = [2, 32], strides = [1, 1]} : vector<2x96xf32> to vector<2x32xf32>
    %691 = vector.extract_strided_slice %681 {offsets = [0, 96], sizes = [2, 32], strides = [1, 1]} : vector<2x128xf32> to vector<2x32xf32>
    %692 = math.tanh %691 : vector<2x32xf32>
    %693 = arith.mulf %689, %668 : vector<2x32xf32>
    %694 = arith.mulf %688, %692 : vector<2x32xf32>
    %695 = arith.addf %693, %694 : vector<2x32xf32>
    %696 = math.tanh %695 : vector<2x32xf32>
    %697 = arith.mulf %690, %696 : vector<2x32xf32>
    %698 = vector.extract_strided_slice %697 {offsets = [0, 0], sizes = [2, 16], strides = [1, 1]} : vector<2x32xf32> to vector<2x16xf32>
    %c12_280 = arith.constant 12 : index
    %c0_281 = arith.constant 0 : index
    %699 = vector.load %arg17[%c12_280, %c0_281] : memref<16x32xf32, #tpu.memory_space<vmem>>, vector<2x16xf32>
    tpu.vector_store %arg17[%c12_280, %c0_281], %698 {strides = array<i32>} : memref<16x32xf32, #tpu.memory_space<vmem>>, vector<2x16xf32>,
    %700 = vector.extract_strided_slice %697 {offsets = [0, 16], sizes = [2, 16], strides = [1, 1]} : vector<2x32xf32> to vector<2x16xf32>
    %c2_282 = arith.constant 2 : index
    %c16_283 = arith.constant 16 : index
    %701 = vector.load %arg17[%c2_282, %c16_283] : memref<16x32xf32, #tpu.memory_space<vmem>>, vector<2x16xf32>
    tpu.vector_store %arg17[%c2_282, %c16_283], %700 {strides = array<i32>} : memref<16x32xf32, #tpu.memory_space<vmem>>, vector<2x16xf32>,
    %c14_284 = arith.constant 14 : index
    %c0_285 = arith.constant 0 : index
    %702 = vector.load %arg19[%c14_284, %c0_285] : memref<16x128xf32, #tpu.memory_space<vmem>>, vector<2x128xf32>
    %c0_286 = arith.constant 0 : index
    %c0_287 = arith.constant 0 : index
    %703 = vector.load %arg19[%c0_286, %c0_287] : memref<16x128xf32, #tpu.memory_space<vmem>>, vector<2x128xf32>
    %704 = vector.shape_cast %18 : vector<1x128xi1> to vector<1x128xi1>
    %705 = vector.broadcast %704 : vector<1x128xi1> to vector<2x128xi1>
    %706 = arith.select %705, %702, %703 : vector<2x128xi1>, vector<2x128xf32>
    %cst_288 = arith.constant dense<0.000000e+00> : vector<2x128xf32>
    %707 = tpu.matmul %697, %510, %cst_288 {dimension_numbers = #tpu.dot_dimension_numbers<[1], [0], [0], [1], [0, 0, 1, 1], [], []>} : vector<2x32xf32>, vector<32x128xf32>, vector<2x128xf32> -> vector<2x128xf32>
    %708 = arith.addf %706, %707 : vector<2x128xf32>
    %709 = vector.extract_strided_slice %708 {offsets = [0, 0], sizes = [2, 96], strides = [1, 1]} : vector<2x128xf32> to vector<2x96xf32>
    %710 = arith.negf %709 : vector<2x96xf32>
    %711 = math.exp %710 : vector<2x96xf32>
    %cst_289 = arith.constant 1.000000e+00 : f32
    %712 = vector.broadcast %cst_289 : f32 to vector<2x96xf32>
    %713 = arith.addf %712, %711 : vector<2x96xf32>
    %714 = arith.divf %712, %713 : vector<2x96xf32>
    %715 = vector.extract_strided_slice %714 {offsets = [0, 0], sizes = [2, 32], strides = [1, 1]} : vector<2x96xf32> to vector<2x32xf32>
    %716 = vector.extract_strided_slice %714 {offsets = [0, 32], sizes = [2, 32], strides = [1, 1]} : vector<2x96xf32> to vector<2x32xf32>
    %717 = vector.extract_strided_slice %714 {offsets = [0, 64], sizes = [2, 32], strides = [1, 1]} : vector<2x96xf32> to vector<2x32xf32>
    %718 = vector.extract_strided_slice %708 {offsets = [0, 96], sizes = [2, 32], strides = [1, 1]} : vector<2x128xf32> to vector<2x32xf32>
    %719 = math.tanh %718 : vector<2x32xf32>
    %720 = arith.mulf %716, %695 : vector<2x32xf32>
    %721 = arith.mulf %715, %719 : vector<2x32xf32>
    %722 = arith.addf %720, %721 : vector<2x32xf32>
    %723 = math.tanh %722 : vector<2x32xf32>
    %724 = arith.mulf %717, %723 : vector<2x32xf32>
    %725 = vector.extract_strided_slice %724 {offsets = [0, 0], sizes = [2, 16], strides = [1, 1]} : vector<2x32xf32> to vector<2x16xf32>
    %c14_290 = arith.constant 14 : index
    %c0_291 = arith.constant 0 : index
    %726 = vector.load %arg17[%c14_290, %c0_291] : memref<16x32xf32, #tpu.memory_space<vmem>>, vector<2x16xf32>
    tpu.vector_store %arg17[%c14_290, %c0_291], %725 {strides = array<i32>} : memref<16x32xf32, #tpu.memory_space<vmem>>, vector<2x16xf32>,
    %727 = vector.extract_strided_slice %724 {offsets = [0, 16], sizes = [2, 16], strides = [1, 1]} : vector<2x32xf32> to vector<2x16xf32>
    %c0_292 = arith.constant 0 : index
    %c16_293 = arith.constant 16 : index
    %728 = vector.load %arg17[%c0_292, %c16_293] : memref<16x32xf32, #tpu.memory_space<vmem>>, vector<2x16xf32>
    tpu.vector_store %arg17[%c0_292, %c16_293], %727 {strides = array<i32>} : memref<16x32xf32, #tpu.memory_space<vmem>>, vector<2x16xf32>,
    %729 = vector.extract_strided_slice %724 {offsets = [0, 0], sizes = [2, 16], strides = [1, 1]} : vector<2x32xf32> to vector<2x16xf32>
    %c4_294 = arith.constant 4 : index
    %c0_295 = arith.constant 0 : index
    %c0_296 = arith.constant 0 : index
    %730 = vector.load %arg15[%c4_294, %c0_295, %c0_296] : memref<8x2x16xf32, #tpu.memory_space<vmem>>, vector<1x2x16xf32>
    %731 = vector.shape_cast %730 : vector<1x2x16xf32> to vector<2x16xf32>
    %732 = vector.shape_cast %729 : vector<2x16xf32> to vector<1x2x16xf32>
    tpu.vector_store %arg15[%c4_294, %c0_295, %c0_296], %732 {strides = array<i32>} : memref<8x2x16xf32, #tpu.memory_space<vmem>>, vector<1x2x16xf32>,
    %733 = vector.extract_strided_slice %724 {offsets = [0, 16], sizes = [2, 16], strides = [1, 1]} : vector<2x32xf32> to vector<2x16xf32>
    %c5 = arith.constant 5 : index
    %c0_297 = arith.constant 0 : index
    %c0_298 = arith.constant 0 : index
    %734 = vector.load %arg15[%c5, %c0_297, %c0_298] : memref<8x2x16xf32, #tpu.memory_space<vmem>>, vector<1x2x16xf32>
    %735 = vector.shape_cast %734 : vector<1x2x16xf32> to vector<2x16xf32>
    %736 = vector.shape_cast %733 : vector<2x16xf32> to vector<1x2x16xf32>
    tpu.vector_store %arg15[%c5, %c0_297, %c0_298], %736 {strides = array<i32>} : memref<8x2x16xf32, #tpu.memory_space<vmem>>, vector<1x2x16xf32>,
    %737 = vector.extract_strided_slice %722 {offsets = [0, 0], sizes = [2, 16], strides = [1, 1]} : vector<2x32xf32> to vector<2x16xf32>
    %c4_299 = arith.constant 4 : index
    %c0_300 = arith.constant 0 : index
    %c0_301 = arith.constant 0 : index
    %738 = vector.load %arg16[%c4_299, %c0_300, %c0_301] : memref<8x2x16xf32, #tpu.memory_space<vmem>>, vector<1x2x16xf32>
    %739 = vector.shape_cast %738 : vector<1x2x16xf32> to vector<2x16xf32>
    %740 = vector.shape_cast %737 : vector<2x16xf32> to vector<1x2x16xf32>
    tpu.vector_store %arg16[%c4_299, %c0_300, %c0_301], %740 {strides = array<i32>} : memref<8x2x16xf32, #tpu.memory_space<vmem>>, vector<1x2x16xf32>,
    %741 = vector.extract_strided_slice %722 {offsets = [0, 16], sizes = [2, 16], strides = [1, 1]} : vector<2x32xf32> to vector<2x16xf32>
    %c5_302 = arith.constant 5 : index
    %c0_303 = arith.constant 0 : index
    %c0_304 = arith.constant 0 : index
    %742 = vector.load %arg16[%c5_302, %c0_303, %c0_304] : memref<8x2x16xf32, #tpu.memory_space<vmem>>, vector<1x2x16xf32>
    %743 = vector.shape_cast %742 : vector<1x2x16xf32> to vector<2x16xf32>
    %744 = vector.shape_cast %741 : vector<2x16xf32> to vector<1x2x16xf32>
    tpu.vector_store %arg16[%c5_302, %c0_303, %c0_304], %744 {strides = array<i32>} : memref<8x2x16xf32, #tpu.memory_space<vmem>>, vector<1x2x16xf32>,
    %c0_305 = arith.constant 0 : index
    %c0_306 = arith.constant 0 : index
    %745 = vector.load %arg17[%c0_305, %c0_306] : memref<16x32xf32, #tpu.memory_space<vmem>>, vector<16x32xf32>
    %c0_307 = arith.constant 0 : index
    %c0_308 = arith.constant 0 : index
    %746 = vector.load %arg11[%c0_307, %c0_308] : memref<32x128xf32, #tpu.memory_space<vmem>>, vector<32x128xf32>
    %cst_309 = arith.constant dense<0.000000e+00> : vector<16x128xf32>
    %747 = tpu.matmul %745, %746, %cst_309 {dimension_numbers = #tpu.dot_dimension_numbers<[1], [0], [0], [1], [0, 0, 1, 1], [], []>} : vector<16x32xf32>, vector<32x128xf32>, vector<16x128xf32> -> vector<16x128xf32>
    %c0_310 = arith.constant 0 : index
    %c0_311 = arith.constant 0 : index
    %748 = vector.load %arg13[%c0_310, %c0_311] : memref<1x128xf32, #tpu.memory_space<vmem>>, vector<1x128xf32>
    %749 = vector.broadcast %748 : vector<1x128xf32> to vector<16x128xf32>
    %750 = arith.addf %747, %749 : vector<16x128xf32>
    %c0_312 = arith.constant 0 : index
    %c0_313 = arith.constant 0 : index
    %751 = vector.load %arg19[%c0_312, %c0_313] : memref<16x128xf32, #tpu.memory_space<vmem>>, vector<16x128xf32>
    tpu.vector_store %arg19[%c0_312, %c0_313], %750 {strides = array<i32>} : memref<16x128xf32, #tpu.memory_space<vmem>>, vector<16x128xf32>,
    %c0_314 = arith.constant 0 : index
    %c0_315 = arith.constant 0 : index
    %752 = vector.load %arg12[%c0_314, %c0_315] : memref<32x128xf32, #tpu.memory_space<vmem>>, vector<32x128xf32>
    %cst_316 = arith.constant 0.000000e+00 : f32
    %753 = vector.broadcast %cst_316 : f32 to vector<2x32xf32>
    %cst_317 = arith.constant 0.000000e+00 : f32
    %754 = vector.broadcast %cst_317 : f32 to vector<2x32xf32>
    %c0_318 = arith.constant 0 : index
    %c0_319 = arith.constant 0 : index
    %755 = vector.load %arg19[%c0_318, %c0_319] : memref<16x128xf32, #tpu.memory_space<vmem>>, vector<2x128xf32>
    %c14_320 = arith.constant 14 : index
    %c0_321 = arith.constant 0 : index
    %756 = vector.load %arg19[%c14_320, %c0_321] : memref<16x128xf32, #tpu.memory_space<vmem>>, vector<2x128xf32>
    %757 = vector.shape_cast %18 : vector<1x128xi1> to vector<1x128xi1>
    %758 = vector.broadcast %757 : vector<1x128xi1> to vector<2x128xi1>
    %759 = arith.select %758, %755, %756 : vector<2x128xi1>, vector<2x128xf32>
    %cst_322 = arith.constant dense<0.000000e+00> : vector<2x128xf32>
    %760 = tpu.matmul %753, %752, %cst_322 {dimension_numbers = #tpu.dot_dimension_numbers<[1], [0], [0], [1], [0, 0, 1, 1], [], []>} : vector<2x32xf32>, vector<32x128xf32>, vector<2x128xf32> -> vector<2x128xf32>
    %761 = arith.addf %759, %760 : vector<2x128xf32>
    %762 = vector.extract_strided_slice %761 {offsets = [0, 0], sizes = [2, 96], strides = [1, 1]} : vector<2x128xf32> to vector<2x96xf32>
    %763 = arith.negf %762 : vector<2x96xf32>
    %764 = math.exp %763 : vector<2x96xf32>
    %cst_323 = arith.constant 1.000000e+00 : f32
    %765 = vector.broadcast %cst_323 : f32 to vector<2x96xf32>
    %766 = arith.addf %765, %764 : vector<2x96xf32>
    %767 = arith.divf %765, %766 : vector<2x96xf32>
    %768 = vector.extract_strided_slice %767 {offsets = [0, 0], sizes = [2, 32], strides = [1, 1]} : vector<2x96xf32> to vector<2x32xf32>
    %769 = vector.extract_strided_slice %767 {offsets = [0, 32], sizes = [2, 32], strides = [1, 1]} : vector<2x96xf32> to vector<2x32xf32>
    %770 = vector.extract_strided_slice %767 {offsets = [0, 64], sizes = [2, 32], strides = [1, 1]} : vector<2x96xf32> to vector<2x32xf32>
    %771 = vector.extract_strided_slice %761 {offsets = [0, 96], sizes = [2, 32], strides = [1, 1]} : vector<2x128xf32> to vector<2x32xf32>
    %772 = math.tanh %771 : vector<2x32xf32>
    %773 = arith.mulf %769, %754 : vector<2x32xf32>
    %774 = arith.mulf %768, %772 : vector<2x32xf32>
    %775 = arith.addf %773, %774 : vector<2x32xf32>
    %776 = math.tanh %775 : vector<2x32xf32>
    %777 = arith.mulf %770, %776 : vector<2x32xf32>
    %778 = vector.extract_strided_slice %777 {offsets = [0, 0], sizes = [2, 16], strides = [1, 1]} : vector<2x32xf32> to vector<2x16xf32>
    %c0_324 = arith.constant 0 : index
    %c0_325 = arith.constant 0 : index
    %779 = vector.load %arg14[%c0_324, %c0_325] : memref<16x32xf32, #tpu.memory_space<vmem>>, vector<2x16xf32>
    tpu.vector_store %arg14[%c0_324, %c0_325], %778 {strides = array<i32>} : memref<16x32xf32, #tpu.memory_space<vmem>>, vector<2x16xf32>,
    %780 = vector.extract_strided_slice %777 {offsets = [0, 16], sizes = [2, 16], strides = [1, 1]} : vector<2x32xf32> to vector<2x16xf32>
    %c14_326 = arith.constant 14 : index
    %c16_327 = arith.constant 16 : index
    %781 = vector.load %arg14[%c14_326, %c16_327] : memref<16x32xf32, #tpu.memory_space<vmem>>, vector<2x16xf32>
    tpu.vector_store %arg14[%c14_326, %c16_327], %780 {strides = array<i32>} : memref<16x32xf32, #tpu.memory_space<vmem>>, vector<2x16xf32>,
    %c2_328 = arith.constant 2 : index
    %c0_329 = arith.constant 0 : index
    %782 = vector.load %arg19[%c2_328, %c0_329] : memref<16x128xf32, #tpu.memory_space<vmem>>, vector<2x128xf32>
    %c12_330 = arith.constant 12 : index
    %c0_331 = arith.constant 0 : index
    %783 = vector.load %arg19[%c12_330, %c0_331] : memref<16x128xf32, #tpu.memory_space<vmem>>, vector<2x128xf32>
    %784 = vector.shape_cast %18 : vector<1x128xi1> to vector<1x128xi1>
    %785 = vector.broadcast %784 : vector<1x128xi1> to vector<2x128xi1>
    %786 = arith.select %785, %782, %783 : vector<2x128xi1>, vector<2x128xf32>
    %cst_332 = arith.constant dense<0.000000e+00> : vector<2x128xf32>
    %787 = tpu.matmul %777, %752, %cst_332 {dimension_numbers = #tpu.dot_dimension_numbers<[1], [0], [0], [1], [0, 0, 1, 1], [], []>} : vector<2x32xf32>, vector<32x128xf32>, vector<2x128xf32> -> vector<2x128xf32>
    %788 = arith.addf %786, %787 : vector<2x128xf32>
    %789 = vector.extract_strided_slice %788 {offsets = [0, 0], sizes = [2, 96], strides = [1, 1]} : vector<2x128xf32> to vector<2x96xf32>
    %790 = arith.negf %789 : vector<2x96xf32>
    %791 = math.exp %790 : vector<2x96xf32>
    %cst_333 = arith.constant 1.000000e+00 : f32
    %792 = vector.broadcast %cst_333 : f32 to vector<2x96xf32>
    %793 = arith.addf %792, %791 : vector<2x96xf32>
    %794 = arith.divf %792, %793 : vector<2x96xf32>
    %795 = vector.extract_strided_slice %794 {offsets = [0, 0], sizes = [2, 32], strides = [1, 1]} : vector<2x96xf32> to vector<2x32xf32>
    %796 = vector.extract_strided_slice %794 {offsets = [0, 32], sizes = [2, 32], strides = [1, 1]} : vector<2x96xf32> to vector<2x32xf32>
    %797 = vector.extract_strided_slice %794 {offsets = [0, 64], sizes = [2, 32], strides = [1, 1]} : vector<2x96xf32> to vector<2x32xf32>
    %798 = vector.extract_strided_slice %788 {offsets = [0, 96], sizes = [2, 32], strides = [1, 1]} : vector<2x128xf32> to vector<2x32xf32>
    %799 = math.tanh %798 : vector<2x32xf32>
    %800 = arith.mulf %796, %775 : vector<2x32xf32>
    %801 = arith.mulf %795, %799 : vector<2x32xf32>
    %802 = arith.addf %800, %801 : vector<2x32xf32>
    %803 = math.tanh %802 : vector<2x32xf32>
    %804 = arith.mulf %797, %803 : vector<2x32xf32>
    %805 = vector.extract_strided_slice %804 {offsets = [0, 0], sizes = [2, 16], strides = [1, 1]} : vector<2x32xf32> to vector<2x16xf32>
    %c2_334 = arith.constant 2 : index
    %c0_335 = arith.constant 0 : index
    %806 = vector.load %arg14[%c2_334, %c0_335] : memref<16x32xf32, #tpu.memory_space<vmem>>, vector<2x16xf32>
    tpu.vector_store %arg14[%c2_334, %c0_335], %805 {strides = array<i32>} : memref<16x32xf32, #tpu.memory_space<vmem>>, vector<2x16xf32>,
    %807 = vector.extract_strided_slice %804 {offsets = [0, 16], sizes = [2, 16], strides = [1, 1]} : vector<2x32xf32> to vector<2x16xf32>
    %c12_336 = arith.constant 12 : index
    %c16_337 = arith.constant 16 : index
    %808 = vector.load %arg14[%c12_336, %c16_337] : memref<16x32xf32, #tpu.memory_space<vmem>>, vector<2x16xf32>
    tpu.vector_store %arg14[%c12_336, %c16_337], %807 {strides = array<i32>} : memref<16x32xf32, #tpu.memory_space<vmem>>, vector<2x16xf32>,
    %c4_338 = arith.constant 4 : index
    %c0_339 = arith.constant 0 : index
    %809 = vector.load %arg19[%c4_338, %c0_339] : memref<16x128xf32, #tpu.memory_space<vmem>>, vector<2x128xf32>
    %c10_340 = arith.constant 10 : index
    %c0_341 = arith.constant 0 : index
    %810 = vector.load %arg19[%c10_340, %c0_341] : memref<16x128xf32, #tpu.memory_space<vmem>>, vector<2x128xf32>
    %811 = vector.shape_cast %18 : vector<1x128xi1> to vector<1x128xi1>
    %812 = vector.broadcast %811 : vector<1x128xi1> to vector<2x128xi1>
    %813 = arith.select %812, %809, %810 : vector<2x128xi1>, vector<2x128xf32>
    %cst_342 = arith.constant dense<0.000000e+00> : vector<2x128xf32>
    %814 = tpu.matmul %804, %752, %cst_342 {dimension_numbers = #tpu.dot_dimension_numbers<[1], [0], [0], [1], [0, 0, 1, 1], [], []>} : vector<2x32xf32>, vector<32x128xf32>, vector<2x128xf32> -> vector<2x128xf32>
    %815 = arith.addf %813, %814 : vector<2x128xf32>
    %816 = vector.extract_strided_slice %815 {offsets = [0, 0], sizes = [2, 96], strides = [1, 1]} : vector<2x128xf32> to vector<2x96xf32>
    %817 = arith.negf %816 : vector<2x96xf32>
    %818 = math.exp %817 : vector<2x96xf32>
    %cst_343 = arith.constant 1.000000e+00 : f32
    %819 = vector.broadcast %cst_343 : f32 to vector<2x96xf32>
    %820 = arith.addf %819, %818 : vector<2x96xf32>
    %821 = arith.divf %819, %820 : vector<2x96xf32>
    %822 = vector.extract_strided_slice %821 {offsets = [0, 0], sizes = [2, 32], strides = [1, 1]} : vector<2x96xf32> to vector<2x32xf32>
    %823 = vector.extract_strided_slice %821 {offsets = [0, 32], sizes = [2, 32], strides = [1, 1]} : vector<2x96xf32> to vector<2x32xf32>
    %824 = vector.extract_strided_slice %821 {offsets = [0, 64], sizes = [2, 32], strides = [1, 1]} : vector<2x96xf32> to vector<2x32xf32>
    %825 = vector.extract_strided_slice %815 {offsets = [0, 96], sizes = [2, 32], strides = [1, 1]} : vector<2x128xf32> to vector<2x32xf32>
    %826 = math.tanh %825 : vector<2x32xf32>
    %827 = arith.mulf %823, %802 : vector<2x32xf32>
    %828 = arith.mulf %822, %826 : vector<2x32xf32>
    %829 = arith.addf %827, %828 : vector<2x32xf32>
    %830 = math.tanh %829 : vector<2x32xf32>
    %831 = arith.mulf %824, %830 : vector<2x32xf32>
    %832 = vector.extract_strided_slice %831 {offsets = [0, 0], sizes = [2, 16], strides = [1, 1]} : vector<2x32xf32> to vector<2x16xf32>
    %c4_344 = arith.constant 4 : index
    %c0_345 = arith.constant 0 : index
    %833 = vector.load %arg14[%c4_344, %c0_345] : memref<16x32xf32, #tpu.memory_space<vmem>>, vector<2x16xf32>
    tpu.vector_store %arg14[%c4_344, %c0_345], %832 {strides = array<i32>} : memref<16x32xf32, #tpu.memory_space<vmem>>, vector<2x16xf32>,
    %834 = vector.extract_strided_slice %831 {offsets = [0, 16], sizes = [2, 16], strides = [1, 1]} : vector<2x32xf32> to vector<2x16xf32>
    %c10_346 = arith.constant 10 : index
    %c16_347 = arith.constant 16 : index
    %835 = vector.load %arg14[%c10_346, %c16_347] : memref<16x32xf32, #tpu.memory_space<vmem>>, vector<2x16xf32>
    tpu.vector_store %arg14[%c10_346, %c16_347], %834 {strides = array<i32>} : memref<16x32xf32, #tpu.memory_space<vmem>>, vector<2x16xf32>,
    %c6_348 = arith.constant 6 : index
    %c0_349 = arith.constant 0 : index
    %836 = vector.load %arg19[%c6_348, %c0_349] : memref<16x128xf32, #tpu.memory_space<vmem>>, vector<2x128xf32>
    %c8_350 = arith.constant 8 : index
    %c0_351 = arith.constant 0 : index
    %837 = vector.load %arg19[%c8_350, %c0_351] : memref<16x128xf32, #tpu.memory_space<vmem>>, vector<2x128xf32>
    %838 = vector.shape_cast %18 : vector<1x128xi1> to vector<1x128xi1>
    %839 = vector.broadcast %838 : vector<1x128xi1> to vector<2x128xi1>
    %840 = arith.select %839, %836, %837 : vector<2x128xi1>, vector<2x128xf32>
    %cst_352 = arith.constant dense<0.000000e+00> : vector<2x128xf32>
    %841 = tpu.matmul %831, %752, %cst_352 {dimension_numbers = #tpu.dot_dimension_numbers<[1], [0], [0], [1], [0, 0, 1, 1], [], []>} : vector<2x32xf32>, vector<32x128xf32>, vector<2x128xf32> -> vector<2x128xf32>
    %842 = arith.addf %840, %841 : vector<2x128xf32>
    %843 = vector.extract_strided_slice %842 {offsets = [0, 0], sizes = [2, 96], strides = [1, 1]} : vector<2x128xf32> to vector<2x96xf32>
    %844 = arith.negf %843 : vector<2x96xf32>
    %845 = math.exp %844 : vector<2x96xf32>
    %cst_353 = arith.constant 1.000000e+00 : f32
    %846 = vector.broadcast %cst_353 : f32 to vector<2x96xf32>
    %847 = arith.addf %846, %845 : vector<2x96xf32>
    %848 = arith.divf %846, %847 : vector<2x96xf32>
    %849 = vector.extract_strided_slice %848 {offsets = [0, 0], sizes = [2, 32], strides = [1, 1]} : vector<2x96xf32> to vector<2x32xf32>
    %850 = vector.extract_strided_slice %848 {offsets = [0, 32], sizes = [2, 32], strides = [1, 1]} : vector<2x96xf32> to vector<2x32xf32>
    %851 = vector.extract_strided_slice %848 {offsets = [0, 64], sizes = [2, 32], strides = [1, 1]} : vector<2x96xf32> to vector<2x32xf32>
    %852 = vector.extract_strided_slice %842 {offsets = [0, 96], sizes = [2, 32], strides = [1, 1]} : vector<2x128xf32> to vector<2x32xf32>
    %853 = math.tanh %852 : vector<2x32xf32>
    %854 = arith.mulf %850, %829 : vector<2x32xf32>
    %855 = arith.mulf %849, %853 : vector<2x32xf32>
    %856 = arith.addf %854, %855 : vector<2x32xf32>
    %857 = math.tanh %856 : vector<2x32xf32>
    %858 = arith.mulf %851, %857 : vector<2x32xf32>
    %859 = vector.extract_strided_slice %858 {offsets = [0, 0], sizes = [2, 16], strides = [1, 1]} : vector<2x32xf32> to vector<2x16xf32>
    %c6_354 = arith.constant 6 : index
    %c0_355 = arith.constant 0 : index
    %860 = vector.load %arg14[%c6_354, %c0_355] : memref<16x32xf32, #tpu.memory_space<vmem>>, vector<2x16xf32>
    tpu.vector_store %arg14[%c6_354, %c0_355], %859 {strides = array<i32>} : memref<16x32xf32, #tpu.memory_space<vmem>>, vector<2x16xf32>,
    %861 = vector.extract_strided_slice %858 {offsets = [0, 16], sizes = [2, 16], strides = [1, 1]} : vector<2x32xf32> to vector<2x16xf32>
    %c8_356 = arith.constant 8 : index
    %c16_357 = arith.constant 16 : index
    %862 = vector.load %arg14[%c8_356, %c16_357] : memref<16x32xf32, #tpu.memory_space<vmem>>, vector<2x16xf32>
    tpu.vector_store %arg14[%c8_356, %c16_357], %861 {strides = array<i32>} : memref<16x32xf32, #tpu.memory_space<vmem>>, vector<2x16xf32>,
    %c8_358 = arith.constant 8 : index
    %c0_359 = arith.constant 0 : index
    %863 = vector.load %arg19[%c8_358, %c0_359] : memref<16x128xf32, #tpu.memory_space<vmem>>, vector<2x128xf32>
    %c6_360 = arith.constant 6 : index
    %c0_361 = arith.constant 0 : index
    %864 = vector.load %arg19[%c6_360, %c0_361] : memref<16x128xf32, #tpu.memory_space<vmem>>, vector<2x128xf32>
    %865 = vector.shape_cast %18 : vector<1x128xi1> to vector<1x128xi1>
    %866 = vector.broadcast %865 : vector<1x128xi1> to vector<2x128xi1>
    %867 = arith.select %866, %863, %864 : vector<2x128xi1>, vector<2x128xf32>
    %cst_362 = arith.constant dense<0.000000e+00> : vector<2x128xf32>
    %868 = tpu.matmul %858, %752, %cst_362 {dimension_numbers = #tpu.dot_dimension_numbers<[1], [0], [0], [1], [0, 0, 1, 1], [], []>} : vector<2x32xf32>, vector<32x128xf32>, vector<2x128xf32> -> vector<2x128xf32>
    %869 = arith.addf %867, %868 : vector<2x128xf32>
    %870 = vector.extract_strided_slice %869 {offsets = [0, 0], sizes = [2, 96], strides = [1, 1]} : vector<2x128xf32> to vector<2x96xf32>
    %871 = arith.negf %870 : vector<2x96xf32>
    %872 = math.exp %871 : vector<2x96xf32>
    %cst_363 = arith.constant 1.000000e+00 : f32
    %873 = vector.broadcast %cst_363 : f32 to vector<2x96xf32>
    %874 = arith.addf %873, %872 : vector<2x96xf32>
    %875 = arith.divf %873, %874 : vector<2x96xf32>
    %876 = vector.extract_strided_slice %875 {offsets = [0, 0], sizes = [2, 32], strides = [1, 1]} : vector<2x96xf32> to vector<2x32xf32>
    %877 = vector.extract_strided_slice %875 {offsets = [0, 32], sizes = [2, 32], strides = [1, 1]} : vector<2x96xf32> to vector<2x32xf32>
    %878 = vector.extract_strided_slice %875 {offsets = [0, 64], sizes = [2, 32], strides = [1, 1]} : vector<2x96xf32> to vector<2x32xf32>
    %879 = vector.extract_strided_slice %869 {offsets = [0, 96], sizes = [2, 32], strides = [1, 1]} : vector<2x128xf32> to vector<2x32xf32>
    %880 = math.tanh %879 : vector<2x32xf32>
    %881 = arith.mulf %877, %856 : vector<2x32xf32>
    %882 = arith.mulf %876, %880 : vector<2x32xf32>
    %883 = arith.addf %881, %882 : vector<2x32xf32>
    %884 = math.tanh %883 : vector<2x32xf32>
    %885 = arith.mulf %878, %884 : vector<2x32xf32>
    %886 = vector.extract_strided_slice %885 {offsets = [0, 0], sizes = [2, 16], strides = [1, 1]} : vector<2x32xf32> to vector<2x16xf32>
    %c8_364 = arith.constant 8 : index
    %c0_365 = arith.constant 0 : index
    %887 = vector.load %arg14[%c8_364, %c0_365] : memref<16x32xf32, #tpu.memory_space<vmem>>, vector<2x16xf32>
    tpu.vector_store %arg14[%c8_364, %c0_365], %886 {strides = array<i32>} : memref<16x32xf32, #tpu.memory_space<vmem>>, vector<2x16xf32>,
    %888 = vector.extract_strided_slice %885 {offsets = [0, 16], sizes = [2, 16], strides = [1, 1]} : vector<2x32xf32> to vector<2x16xf32>
    %c6_366 = arith.constant 6 : index
    %c16_367 = arith.constant 16 : index
    %889 = vector.load %arg14[%c6_366, %c16_367] : memref<16x32xf32, #tpu.memory_space<vmem>>, vector<2x16xf32>
    tpu.vector_store %arg14[%c6_366, %c16_367], %888 {strides = array<i32>} : memref<16x32xf32, #tpu.memory_space<vmem>>, vector<2x16xf32>,
    %c10_368 = arith.constant 10 : index
    %c0_369 = arith.constant 0 : index
    %890 = vector.load %arg19[%c10_368, %c0_369] : memref<16x128xf32, #tpu.memory_space<vmem>>, vector<2x128xf32>
    %c4_370 = arith.constant 4 : index
    %c0_371 = arith.constant 0 : index
    %891 = vector.load %arg19[%c4_370, %c0_371] : memref<16x128xf32, #tpu.memory_space<vmem>>, vector<2x128xf32>
    %892 = vector.shape_cast %18 : vector<1x128xi1> to vector<1x128xi1>
    %893 = vector.broadcast %892 : vector<1x128xi1> to vector<2x128xi1>
    %894 = arith.select %893, %890, %891 : vector<2x128xi1>, vector<2x128xf32>
    %cst_372 = arith.constant dense<0.000000e+00> : vector<2x128xf32>
    %895 = tpu.matmul %885, %752, %cst_372 {dimension_numbers = #tpu.dot_dimension_numbers<[1], [0], [0], [1], [0, 0, 1, 1], [], []>} : vector<2x32xf32>, vector<32x128xf32>, vector<2x128xf32> -> vector<2x128xf32>
    %896 = arith.addf %894, %895 : vector<2x128xf32>
    %897 = vector.extract_strided_slice %896 {offsets = [0, 0], sizes = [2, 96], strides = [1, 1]} : vector<2x128xf32> to vector<2x96xf32>
    %898 = arith.negf %897 : vector<2x96xf32>
    %899 = math.exp %898 : vector<2x96xf32>
    %cst_373 = arith.constant 1.000000e+00 : f32
    %900 = vector.broadcast %cst_373 : f32 to vector<2x96xf32>
    %901 = arith.addf %900, %899 : vector<2x96xf32>
    %902 = arith.divf %900, %901 : vector<2x96xf32>
    %903 = vector.extract_strided_slice %902 {offsets = [0, 0], sizes = [2, 32], strides = [1, 1]} : vector<2x96xf32> to vector<2x32xf32>
    %904 = vector.extract_strided_slice %902 {offsets = [0, 32], sizes = [2, 32], strides = [1, 1]} : vector<2x96xf32> to vector<2x32xf32>
    %905 = vector.extract_strided_slice %902 {offsets = [0, 64], sizes = [2, 32], strides = [1, 1]} : vector<2x96xf32> to vector<2x32xf32>
    %906 = vector.extract_strided_slice %896 {offsets = [0, 96], sizes = [2, 32], strides = [1, 1]} : vector<2x128xf32> to vector<2x32xf32>
    %907 = math.tanh %906 : vector<2x32xf32>
    %908 = arith.mulf %904, %883 : vector<2x32xf32>
    %909 = arith.mulf %903, %907 : vector<2x32xf32>
    %910 = arith.addf %908, %909 : vector<2x32xf32>
    %911 = math.tanh %910 : vector<2x32xf32>
    %912 = arith.mulf %905, %911 : vector<2x32xf32>
    %913 = vector.extract_strided_slice %912 {offsets = [0, 0], sizes = [2, 16], strides = [1, 1]} : vector<2x32xf32> to vector<2x16xf32>
    %c10_374 = arith.constant 10 : index
    %c0_375 = arith.constant 0 : index
    %914 = vector.load %arg14[%c10_374, %c0_375] : memref<16x32xf32, #tpu.memory_space<vmem>>, vector<2x16xf32>
    tpu.vector_store %arg14[%c10_374, %c0_375], %913 {strides = array<i32>} : memref<16x32xf32, #tpu.memory_space<vmem>>, vector<2x16xf32>,
    %915 = vector.extract_strided_slice %912 {offsets = [0, 16], sizes = [2, 16], strides = [1, 1]} : vector<2x32xf32> to vector<2x16xf32>
    %c4_376 = arith.constant 4 : index
    %c16_377 = arith.constant 16 : index
    %916 = vector.load %arg14[%c4_376, %c16_377] : memref<16x32xf32, #tpu.memory_space<vmem>>, vector<2x16xf32>
    tpu.vector_store %arg14[%c4_376, %c16_377], %915 {strides = array<i32>} : memref<16x32xf32, #tpu.memory_space<vmem>>, vector<2x16xf32>,
    %c12_378 = arith.constant 12 : index
    %c0_379 = arith.constant 0 : index
    %917 = vector.load %arg19[%c12_378, %c0_379] : memref<16x128xf32, #tpu.memory_space<vmem>>, vector<2x128xf32>
    %c2_380 = arith.constant 2 : index
    %c0_381 = arith.constant 0 : index
    %918 = vector.load %arg19[%c2_380, %c0_381] : memref<16x128xf32, #tpu.memory_space<vmem>>, vector<2x128xf32>
    %919 = vector.shape_cast %18 : vector<1x128xi1> to vector<1x128xi1>
    %920 = vector.broadcast %919 : vector<1x128xi1> to vector<2x128xi1>
    %921 = arith.select %920, %917, %918 : vector<2x128xi1>, vector<2x128xf32>
    %cst_382 = arith.constant dense<0.000000e+00> : vector<2x128xf32>
    %922 = tpu.matmul %912, %752, %cst_382 {dimension_numbers = #tpu.dot_dimension_numbers<[1], [0], [0], [1], [0, 0, 1, 1], [], []>} : vector<2x32xf32>, vector<32x128xf32>, vector<2x128xf32> -> vector<2x128xf32>
    %923 = arith.addf %921, %922 : vector<2x128xf32>
    %924 = vector.extract_strided_slice %923 {offsets = [0, 0], sizes = [2, 96], strides = [1, 1]} : vector<2x128xf32> to vector<2x96xf32>
    %925 = arith.negf %924 : vector<2x96xf32>
    %926 = math.exp %925 : vector<2x96xf32>
    %cst_383 = arith.constant 1.000000e+00 : f32
    %927 = vector.broadcast %cst_383 : f32 to vector<2x96xf32>
    %928 = arith.addf %927, %926 : vector<2x96xf32>
    %929 = arith.divf %927, %928 : vector<2x96xf32>
    %930 = vector.extract_strided_slice %929 {offsets = [0, 0], sizes = [2, 32], strides = [1, 1]} : vector<2x96xf32> to vector<2x32xf32>
    %931 = vector.extract_strided_slice %929 {offsets = [0, 32], sizes = [2, 32], strides = [1, 1]} : vector<2x96xf32> to vector<2x32xf32>
    %932 = vector.extract_strided_slice %929 {offsets = [0, 64], sizes = [2, 32], strides = [1, 1]} : vector<2x96xf32> to vector<2x32xf32>
    %933 = vector.extract_strided_slice %923 {offsets = [0, 96], sizes = [2, 32], strides = [1, 1]} : vector<2x128xf32> to vector<2x32xf32>
    %934 = math.tanh %933 : vector<2x32xf32>
    %935 = arith.mulf %931, %910 : vector<2x32xf32>
    %936 = arith.mulf %930, %934 : vector<2x32xf32>
    %937 = arith.addf %935, %936 : vector<2x32xf32>
    %938 = math.tanh %937 : vector<2x32xf32>
    %939 = arith.mulf %932, %938 : vector<2x32xf32>
    %940 = vector.extract_strided_slice %939 {offsets = [0, 0], sizes = [2, 16], strides = [1, 1]} : vector<2x32xf32> to vector<2x16xf32>
    %c12_384 = arith.constant 12 : index
    %c0_385 = arith.constant 0 : index
    %941 = vector.load %arg14[%c12_384, %c0_385] : memref<16x32xf32, #tpu.memory_space<vmem>>, vector<2x16xf32>
    tpu.vector_store %arg14[%c12_384, %c0_385], %940 {strides = array<i32>} : memref<16x32xf32, #tpu.memory_space<vmem>>, vector<2x16xf32>,
    %942 = vector.extract_strided_slice %939 {offsets = [0, 16], sizes = [2, 16], strides = [1, 1]} : vector<2x32xf32> to vector<2x16xf32>
    %c2_386 = arith.constant 2 : index
    %c16_387 = arith.constant 16 : index
    %943 = vector.load %arg14[%c2_386, %c16_387] : memref<16x32xf32, #tpu.memory_space<vmem>>, vector<2x16xf32>
    tpu.vector_store %arg14[%c2_386, %c16_387], %942 {strides = array<i32>} : memref<16x32xf32, #tpu.memory_space<vmem>>, vector<2x16xf32>,
    %c14_388 = arith.constant 14 : index
    %c0_389 = arith.constant 0 : index
    %944 = vector.load %arg19[%c14_388, %c0_389] : memref<16x128xf32, #tpu.memory_space<vmem>>, vector<2x128xf32>
    %c0_390 = arith.constant 0 : index
    %c0_391 = arith.constant 0 : index
    %945 = vector.load %arg19[%c0_390, %c0_391] : memref<16x128xf32, #tpu.memory_space<vmem>>, vector<2x128xf32>
    %946 = vector.shape_cast %18 : vector<1x128xi1> to vector<1x128xi1>
    %947 = vector.broadcast %946 : vector<1x128xi1> to vector<2x128xi1>
    %948 = arith.select %947, %944, %945 : vector<2x128xi1>, vector<2x128xf32>
    %cst_392 = arith.constant dense<0.000000e+00> : vector<2x128xf32>
    %949 = tpu.matmul %939, %752, %cst_392 {dimension_numbers = #tpu.dot_dimension_numbers<[1], [0], [0], [1], [0, 0, 1, 1], [], []>} : vector<2x32xf32>, vector<32x128xf32>, vector<2x128xf32> -> vector<2x128xf32>
    %950 = arith.addf %948, %949 : vector<2x128xf32>
    %951 = vector.extract_strided_slice %950 {offsets = [0, 0], sizes = [2, 96], strides = [1, 1]} : vector<2x128xf32> to vector<2x96xf32>
    %952 = arith.negf %951 : vector<2x96xf32>
    %953 = math.exp %952 : vector<2x96xf32>
    %cst_393 = arith.constant 1.000000e+00 : f32
    %954 = vector.broadcast %cst_393 : f32 to vector<2x96xf32>
    %955 = arith.addf %954, %953 : vector<2x96xf32>
    %956 = arith.divf %954, %955 : vector<2x96xf32>
    %957 = vector.extract_strided_slice %956 {offsets = [0, 0], sizes = [2, 32], strides = [1, 1]} : vector<2x96xf32> to vector<2x32xf32>
    %958 = vector.extract_strided_slice %956 {offsets = [0, 32], sizes = [2, 32], strides = [1, 1]} : vector<2x96xf32> to vector<2x32xf32>
    %959 = vector.extract_strided_slice %956 {offsets = [0, 64], sizes = [2, 32], strides = [1, 1]} : vector<2x96xf32> to vector<2x32xf32>
    %960 = vector.extract_strided_slice %950 {offsets = [0, 96], sizes = [2, 32], strides = [1, 1]} : vector<2x128xf32> to vector<2x32xf32>
    %961 = math.tanh %960 : vector<2x32xf32>
    %962 = arith.mulf %958, %937 : vector<2x32xf32>
    %963 = arith.mulf %957, %961 : vector<2x32xf32>
    %964 = arith.addf %962, %963 : vector<2x32xf32>
    %965 = math.tanh %964 : vector<2x32xf32>
    %966 = arith.mulf %959, %965 : vector<2x32xf32>
    %967 = vector.extract_strided_slice %966 {offsets = [0, 0], sizes = [2, 16], strides = [1, 1]} : vector<2x32xf32> to vector<2x16xf32>
    %c14_394 = arith.constant 14 : index
    %c0_395 = arith.constant 0 : index
    %968 = vector.load %arg14[%c14_394, %c0_395] : memref<16x32xf32, #tpu.memory_space<vmem>>, vector<2x16xf32>
    tpu.vector_store %arg14[%c14_394, %c0_395], %967 {strides = array<i32>} : memref<16x32xf32, #tpu.memory_space<vmem>>, vector<2x16xf32>,
    %969 = vector.extract_strided_slice %966 {offsets = [0, 16], sizes = [2, 16], strides = [1, 1]} : vector<2x32xf32> to vector<2x16xf32>
    %c0_396 = arith.constant 0 : index
    %c16_397 = arith.constant 16 : index
    %970 = vector.load %arg14[%c0_396, %c16_397] : memref<16x32xf32, #tpu.memory_space<vmem>>, vector<2x16xf32>
    tpu.vector_store %arg14[%c0_396, %c16_397], %969 {strides = array<i32>} : memref<16x32xf32, #tpu.memory_space<vmem>>, vector<2x16xf32>,
    %971 = vector.extract_strided_slice %966 {offsets = [0, 0], sizes = [2, 16], strides = [1, 1]} : vector<2x32xf32> to vector<2x16xf32>
    %c6_398 = arith.constant 6 : index
    %c0_399 = arith.constant 0 : index
    %c0_400 = arith.constant 0 : index
    %972 = vector.load %arg15[%c6_398, %c0_399, %c0_400] : memref<8x2x16xf32, #tpu.memory_space<vmem>>, vector<1x2x16xf32>
    %973 = vector.shape_cast %972 : vector<1x2x16xf32> to vector<2x16xf32>
    %974 = vector.shape_cast %971 : vector<2x16xf32> to vector<1x2x16xf32>
    tpu.vector_store %arg15[%c6_398, %c0_399, %c0_400], %974 {strides = array<i32>} : memref<8x2x16xf32, #tpu.memory_space<vmem>>, vector<1x2x16xf32>,
    %975 = vector.extract_strided_slice %966 {offsets = [0, 16], sizes = [2, 16], strides = [1, 1]} : vector<2x32xf32> to vector<2x16xf32>
    %c7 = arith.constant 7 : index
    %c0_401 = arith.constant 0 : index
    %c0_402 = arith.constant 0 : index
    %976 = vector.load %arg15[%c7, %c0_401, %c0_402] : memref<8x2x16xf32, #tpu.memory_space<vmem>>, vector<1x2x16xf32>
    %977 = vector.shape_cast %976 : vector<1x2x16xf32> to vector<2x16xf32>
    %978 = vector.shape_cast %975 : vector<2x16xf32> to vector<1x2x16xf32>
    tpu.vector_store %arg15[%c7, %c0_401, %c0_402], %978 {strides = array<i32>} : memref<8x2x16xf32, #tpu.memory_space<vmem>>, vector<1x2x16xf32>,
    %979 = vector.extract_strided_slice %964 {offsets = [0, 0], sizes = [2, 16], strides = [1, 1]} : vector<2x32xf32> to vector<2x16xf32>
    %c6_403 = arith.constant 6 : index
    %c0_404 = arith.constant 0 : index
    %c0_405 = arith.constant 0 : index
    %980 = vector.load %arg16[%c6_403, %c0_404, %c0_405] : memref<8x2x16xf32, #tpu.memory_space<vmem>>, vector<1x2x16xf32>
    %981 = vector.shape_cast %980 : vector<1x2x16xf32> to vector<2x16xf32>
    %982 = vector.shape_cast %979 : vector<2x16xf32> to vector<1x2x16xf32>
    tpu.vector_store %arg16[%c6_403, %c0_404, %c0_405], %982 {strides = array<i32>} : memref<8x2x16xf32, #tpu.memory_space<vmem>>, vector<1x2x16xf32>,
    %983 = vector.extract_strided_slice %964 {offsets = [0, 16], sizes = [2, 16], strides = [1, 1]} : vector<2x32xf32> to vector<2x16xf32>
    %c7_406 = arith.constant 7 : index
    %c0_407 = arith.constant 0 : index
    %c0_408 = arith.constant 0 : index
    %984 = vector.load %arg16[%c7_406, %c0_407, %c0_408] : memref<8x2x16xf32, #tpu.memory_space<vmem>>, vector<1x2x16xf32>
    %985 = vector.shape_cast %984 : vector<1x2x16xf32> to vector<2x16xf32>
    %986 = vector.shape_cast %983 : vector<2x16xf32> to vector<1x2x16xf32>
    tpu.vector_store %arg16[%c7_406, %c0_407, %c0_408], %986 {strides = array<i32>} : memref<8x2x16xf32, #tpu.memory_space<vmem>>, vector<1x2x16xf32>,
    return
  }
  func.func @transform_0(%arg0: i32) -> (i32, i32) {
    %c0_i32 = arith.constant 0 : i32
    %c0_i32_0 = arith.constant 0 : i32
    %c0_i32_1 = arith.constant 0 : i32
    return %c0_i32, %c0_i32_0 : i32, i32
  }
  func.func @transform_1(%arg0: i32) -> (i32, i32) {
    %c0_i32 = arith.constant 0 : i32
    %c0_i32_0 = arith.constant 0 : i32
    %c0_i32_1 = arith.constant 0 : i32
    return %c0_i32, %c0_i32_0 : i32, i32
  }
  func.func @transform_2(%arg0: i32) -> (i32, i32) {
    %c0_i32 = arith.constant 0 : i32
    %c0_i32_0 = arith.constant 0 : i32
    %c0_i32_1 = arith.constant 0 : i32
    return %c0_i32, %c0_i32_0 : i32, i32
  }
  func.func @transform_3(%arg0: i32) -> (i32, i32) {
    %c0_i32 = arith.constant 0 : i32
    %c0_i32_0 = arith.constant 0 : i32
    %c0_i32_1 = arith.constant 0 : i32
    return %c0_i32, %c0_i32_0 : i32, i32
  }
  func.func @transform_4(%arg0: i32) -> (i32, i32) {
    %c0_i32 = arith.constant 0 : i32
    %c0_i32_0 = arith.constant 0 : i32
    %c0_i32_1 = arith.constant 0 : i32
    return %c0_i32, %c0_i32_0 : i32, i32
  }
  func.func @transform_5(%arg0: i32) -> (i32, i32) {
    %c0_i32 = arith.constant 0 : i32
    %c0_i32_0 = arith.constant 0 : i32
    %c0_i32_1 = arith.constant 0 : i32
    return %c0_i32, %c0_i32_0 : i32, i32
  }
  func.func @transform_6(%arg0: i32) -> (i32, i32) {
    %c0_i32 = arith.constant 0 : i32
    %c0_i32_0 = arith.constant 0 : i32
    %c0_i32_1 = arith.constant 0 : i32
    return %c0_i32, %c0_i32_0 : i32, i32
  }
  func.func @transform_7(%arg0: i32) -> (i32, i32) {
    %c0_i32 = arith.constant 0 : i32
    %c0_i32_0 = arith.constant 0 : i32
    %c0_i32_1 = arith.constant 0 : i32
    return %c0_i32, %c0_i32_0 : i32, i32
  }
  func.func @transform_8(%arg0: i32) -> (i32, i32) {
    %c0_i32 = arith.constant 0 : i32
    %c0_i32_0 = arith.constant 0 : i32
    %c0_i32_1 = arith.constant 0 : i32
    return %c0_i32, %c0_i32_0 : i32, i32
  }
  func.func @transform_9(%arg0: i32) -> (i32, i32) {
    %c0_i32 = arith.constant 0 : i32
    %c0_i32_0 = arith.constant 0 : i32
    %c0_i32_1 = arith.constant 0 : i32
    return %c0_i32, %c0_i32_0 : i32, i32
  }
  func.func @transform_10(%arg0: i32) -> (i32, i32) {
    %c0_i32 = arith.constant 0 : i32
    %c0_i32_0 = arith.constant 0 : i32
    %c0_i32_1 = arith.constant 0 : i32
    return %c0_i32, %c0_i32_0 : i32, i32
  }
  func.func @transform_11(%arg0: i32) -> (i32, i32) {
    %c0_i32 = arith.constant 0 : i32
    %c0_i32_0 = arith.constant 0 : i32
    %c0_i32_1 = arith.constant 0 : i32
    return %c0_i32, %c0_i32_0 : i32, i32
  }
  func.func @transform_12(%arg0: i32) -> (i32, i32) {
    %c0_i32 = arith.constant 0 : i32
    %c0_i32_0 = arith.constant 0 : i32
    %c0_i32_1 = arith.constant 0 : i32
    return %c0_i32, %c0_i32_0 : i32, i32
  }
  func.func @transform_13(%arg0: i32) -> (i32, i32) {
    %c0_i32 = arith.constant 0 : i32
    %c0_i32_0 = arith.constant 0 : i32
    %c0_i32_1 = arith.constant 0 : i32
    return %c0_i32, %c0_i32_0 : i32, i32
  }
  func.func @transform_14(%arg0: i32) -> (i32, i32, i32) {
    %c0_i32 = arith.constant 0 : i32
    %c0_i32_0 = arith.constant 0 : i32
    %c0_i32_1 = arith.constant 0 : i32
    %c0_i32_2 = arith.constant 0 : i32
    return %c0_i32, %c0_i32_0, %c0_i32_1 : i32, i32, i32
  }
  func.func @transform_15(%arg0: i32) -> (i32, i32, i32) {
    %c0_i32 = arith.constant 0 : i32
    %c0_i32_0 = arith.constant 0 : i32
    %c0_i32_1 = arith.constant 0 : i32
    %c0_i32_2 = arith.constant 0 : i32
    return %c0_i32, %c0_i32_0, %c0_i32_1 : i32, i32, i32
  }
}

</mosaic_0001>

<llo_original>
// kernel: tpu_custom_call.1
$region0: #{tpu_custom_call.1}
  #allocation0 [shape = 'u32[]', space=smem, size = 0x4, offset = 0x4, fixed_abs, tag = 'smem constant byte address 0x4 - core index']
  #allocation1 [shape = 'u32[144,128]{1,0:T(1,128)}', space=vmem, size = 0x12000, scoped, tag = 'internal scratch']
  #allocation2 [shape = 'f32[16,32]{1,0:T(8,128)}', space=vmem, size = 0x2000, scoped, tag = 'scratch operand']
  #allocation3 [shape = 'f32[16,32]{1,0:T(8,128)}', space=vmem, size = 0x2000, scoped, tag = 'scratch operand']
  #allocation4 [shape = 'f32[16,128]{1,0:T(8,128)}', space=vmem, size = 0x2000, scoped, tag = 'scratch operand']
  %s0 = inlined_call_operand.hbm [shape: f32[16,32], index: 0, kind: input, shape index: {}]
  %s1 = inlined_call_operand.hbm [shape: f32[32,128], index: 1, kind: input, shape index: {}]
  %s2 = inlined_call_operand.hbm [shape: f32[32,128], index: 2, kind: input, shape index: {}]
  %s3 = inlined_call_operand.vmem [shape: f32[1,128], index: 3, kind: input, shape index: {}]
  %s4 = inlined_call_operand.hbm [shape: f32[32,128], index: 4, kind: input, shape index: {}]
  %s5 = inlined_call_operand.hbm [shape: f32[32,128], index: 5, kind: input, shape index: {}]
  %s6 = inlined_call_operand.vmem [shape: f32[1,128], index: 6, kind: input, shape index: {}]
  %s7 = inlined_call_operand.hbm [shape: f32[32,128], index: 7, kind: input, shape index: {}]
  %s8 = inlined_call_operand.hbm [shape: f32[32,128], index: 8, kind: input, shape index: {}]
  %s9 = inlined_call_operand.vmem [shape: f32[1,128], index: 9, kind: input, shape index: {}]
  %s10 = inlined_call_operand.vmem [shape: f32[32,128], index: 10, kind: input, shape index: {}]
  %s11 = inlined_call_operand.hbm [shape: f32[32,128], index: 11, kind: input, shape index: {}]
  %s12 = inlined_call_operand.vmem [shape: f32[1,128], index: 12, kind: input, shape index: {}]
  %s13 = inlined_call_operand.hbm [shape: f32[16,32], index: 13, kind: output, shape index: {0}]
  %s14 = inlined_call_operand.hbm [shape: f32[8,2,16], index: 14, kind: output, shape index: {1}]
  %s15 = inlined_call_operand.hbm [shape: f32[8,2,16], index: 15, kind: output, shape index: {2}]
  %16 = xla_tuple %s13, %s14, %s15
  %s17 = sld [smem:[#allocation0]]
  $region110: #{tpu_custom_call.1} parent=0
    _
  %s19 = ssub.s32 1, %s17
  %s20 = scalar_select 0, %s19, %s17
  $region1: #{tpu_custom_call.1} parent=0
    #allocation5 [shape = 'u8[8192]{0}', space=vmem, size = 0x2000, scoped, tag = 'input window, operand 0, single buffered']
    #allocation6 [shape = 's32[1]{0}', space=sflag, size = 0x4, scoped, tag = 'scoped memory for tpu_custom_call.1']
    #allocation7 [shape = 's32[1]{0}', space=sflag, size = 0x4, scoped, tag = 'scoped memory for tpu_custom_call.1']
    #allocation8 [shape = 'u8[16384]{0}', space=vmem, size = 0x4000, scoped, tag = 'input window, operand 1, single buffered']
    #allocation9 [shape = 's32[1]{0}', space=sflag, size = 0x4, scoped, tag = 'scoped memory for tpu_custom_call.1']
    #allocation10 [shape = 'u8[16384]{0}', space=vmem, size = 0x4000, scoped, tag = 'input window, operand 2, single buffered']
    #allocation11 [shape = 'u8[16384]{0}', space=vmem, size = 0x4000, scoped, tag = 'input window, operand 4, single buffered']
    #allocation12 [shape = 's32[1]{0}', space=sflag, size = 0x4, scoped, tag = 'scoped memory for tpu_custom_call.1']
    #allocation13 [shape = 'u8[16384]{0}', space=vmem, size = 0x4000, scoped, tag = 'input window, operand 5, single buffered']
    #allocation14 [shape = 'u8[16384]{0}', space=vmem, size = 0x4000, scoped, tag = 'input window, operand 7, single buffered']
    #allocation15 [shape = 's32[1]{0}', space=sflag, size = 0x4, scoped, tag = 'scoped memory for tpu_custom_call.1']
    #allocation16 [shape = 'u8[16384]{0}', space=vmem, size = 0x4000, scoped, tag = 'input window, operand 8, single buffered']
    #allocation17 [shape = 'u8[16384]{0}', space=vmem, size = 0x4000, scoped, tag = 'input window, operand 11, single buffered']
    #allocation18 [shape = 's32[1]{0}', space=sflag, size = 0x4, scoped, tag = 'scoped memory for tpu_custom_call.1']
    #allocation19 [shape = 'u8[8192]{0}', space=vmem, size = 0x2000, scoped, tag = 'output window, operand 0, single buffered']
    #allocation20 [shape = 'u8[8192]{0}', space=vmem, size = 0x2000, scoped, tag = 'output window, operand 1, single buffered']
    #allocation21 [shape = 's32[1]{0}', space=sflag, size = 0x4, scoped, tag = 'scoped memory for tpu_custom_call.1']
    #allocation22 [shape = 'u8[8192]{0}', space=vmem, size = 0x2000, scoped, tag = 'output window, operand 2, single buffered']
    %21 = vsyncpa [#allocation6], 0
    %22 = vsyncpa [#allocation9], 0
    %23 = vsyncpa [#allocation12], 0
    %24 = vsyncpa [#allocation15], 0
    %25 = vsyncpa [#allocation18], 0
    %26 = vsyncpa [#allocation7], 0
    %27 = vsyncpa [#allocation21], 0
    // Predicated region
    $region2: #{tpu_custom_call.1} parent=1 // pred_check
      _
    $region3: #{tpu_custom_call.1} parent=1 // pred_check_branch
      %29 = sbr.rel (0) target = $region5
    $region4: #{tpu_custom_call.1} parent=1 // pred_region
      %s31 = ssub.s32 256, 256
      %32 = vsyncadd [#allocation6], %s31
      %s33 = sshll.u32 [#allocation5], 4
      %s34 = int_to_ptr.vmem [resolvable:$true] %s33
      %39 = dma.hbm_to_vmem [thread:$0]  %s0, 256, %s34, [#allocation6], 128, 128, 8
    $region5: #{tpu_custom_call.1} parent=1 // pred_fallthru
      _
    // Predicated region
    $region6: #{tpu_custom_call.1} parent=1 // pred_check
      _
    $region7: #{tpu_custom_call.1} parent=1 // pred_check_branch
      %41 = sbr.rel (0) target = $region9
    $region8: #{tpu_custom_call.1} parent=1 // pred_region
      %s43 = ssub.s32 512, 512
      %44 = vsyncadd [#allocation9], %s43
      %s45 = sshll.u32 [#allocation8], 4
      %s46 = int_to_ptr.vmem [resolvable:$true] %s45
      %51 = dma.hbm_to_vmem [thread:$0]  %s1, 512, %s46, [#allocation9], 128, 128, 8
    $region9: #{tpu_custom_call.1} parent=1 // pred_fallthru
      _
    // Predicated region
    $region10: #{tpu_custom_call.1} parent=1 // pred_check
      _
    $region11: #{tpu_custom_call.1} parent=1 // pred_check_branch
      %53 = sbr.rel (0) target = $region13
    $region12: #{tpu_custom_call.1} parent=1 // pred_region
      %s55 = ssub.s32 512, 512
      %56 = vsyncadd [#allocation9], %s55
      %s57 = sshll.u32 [#allocation10], 4
      %s58 = int_to_ptr.vmem [resolvable:$true] %s57
      %63 = dma.hbm_to_vmem [thread:$0]  %s2, 512, %s58, [#allocation9], 128, 128, 8
    $region13: #{tpu_custom_call.1} parent=1 // pred_fallthru
      _
    // Predicated region
    $region14: #{tpu_custom_call.1} parent=1 // pred_check
      _
    $region15: #{tpu_custom_call.1} parent=1 // pred_check_branch
      %65 = sbr.rel (0) target = $region17
    $region16: #{tpu_custom_call.1} parent=1 // pred_region
      _
    $region17: #{tpu_custom_call.1} parent=1 // pred_fallthru
      _
    // Predicated region
    $region18: #{tpu_custom_call.1} parent=1 // pred_check
      _
    $region19: #{tpu_custom_call.1} parent=1 // pred_check_branch
      %67 = sbr.rel (0) target = $region21
    $region20: #{tpu_custom_call.1} parent=1 // pred_region
      %s69 = ssub.s32 512, 512
      %70 = vsyncadd [#allocation12], %s69
      %s71 = sshll.u32 [#allocation11], 4
      %s72 = int_to_ptr.vmem [resolvable:$true] %s71
      %77 = dma.hbm_to_vmem [thread:$0]  %s4, 512, %s72, [#allocation12], 128, 128, 8
    $region21: #{tpu_custom_call.1} parent=1 // pred_fallthru
      _
    // Predicated region
    $region22: #{tpu_custom_call.1} parent=1 // pred_check
      _
    $region23: #{tpu_custom_call.1} parent=1 // pred_check_branch
      %79 = sbr.rel (0) target = $region25
    $region24: #{tpu_custom_call.1} parent=1 // pred_region
      %s81 = ssub.s32 512, 512
      %82 = vsyncadd [#allocation12], %s81
      %s83 = sshll.u32 [#allocation13], 4
      %s84 = int_to_ptr.vmem [resolvable:$true] %s83
      %89 = dma.hbm_to_vmem [thread:$0]  %s5, 512, %s84, [#allocation12], 128, 128, 8
    $region25: #{tpu_custom_call.1} parent=1 // pred_fallthru
      _
    // Predicated region
    $region26: #{tpu_custom_call.1} parent=1 // pred_check
      _
    $region27: #{tpu_custom_call.1} parent=1 // pred_check_branch
      %91 = sbr.rel (0) target = $region29
    $region28: #{tpu_custom_call.1} parent=1 // pred_region
      _
    $region29: #{tpu_custom_call.1} parent=1 // pred_fallthru
      _
    // Predicated region
    $region30: #{tpu_custom_call.1} parent=1 // pred_check
      _
    $region31: #{tpu_custom_call.1} parent=1 // pred_check_branch
      %93 = sbr.rel (0) target = $region33
    $region32: #{tpu_custom_call.1} parent=1 // pred_region
      %s95 = ssub.s32 512, 512
      %96 = vsyncadd [#allocation15], %s95
      %s97 = sshll.u32 [#allocation14], 4
      %s98 = int_to_ptr.vmem [resolvable:$true] %s97
      %103 = dma.hbm_to_vmem [thread:$0]  %s7, 512, %s98, [#allocation15], 128, 128, 8
    $region33: #{tpu_custom_call.1} parent=1 // pred_fallthru
      _
    // Predicated region
    $region34: #{tpu_custom_call.1} parent=1 // pred_check
      _
    $region35: #{tpu_custom_call.1} parent=1 // pred_check_branch
      %105 = sbr.rel (0) target = $region37
    $region36: #{tpu_custom_call.1} parent=1 // pred_region
      %s107 = ssub.s32 512, 512
      %108 = vsyncadd [#allocation15], %s107
      %s109 = sshll.u32 [#allocation16], 4
      %s110 = int_to_ptr.vmem [resolvable:$true] %s109
      %115 = dma.hbm_to_vmem [thread:$0]  %s8, 512, %s110, [#allocation15], 128, 128, 8
    $region37: #{tpu_custom_call.1} parent=1 // pred_fallthru
      _
    // Predicated region
    $region38: #{tpu_custom_call.1} parent=1 // pred_check
      _
    $region39: #{tpu_custom_call.1} parent=1 // pred_check_branch
      %117 = sbr.rel (0) target = $region41
    $region40: #{tpu_custom_call.1} parent=1 // pred_region
      _
    $region41: #{tpu_custom_call.1} parent=1 // pred_fallthru
      _
    // Predicated region
    $region42: #{tpu_custom_call.1} parent=1 // pred_check
      _
    $region43: #{tpu_custom_call.1} parent=1 // pred_check_branch
      %119 = sbr.rel (0) target = $region45
    $region44: #{tpu_custom_call.1} parent=1 // pred_region
      _
    $region45: #{tpu_custom_call.1} parent=1 // pred_fallthru
      _
    // Predicated region
    $region46: #{tpu_custom_call.1} parent=1 // pred_check
      _
    $region47: #{tpu_custom_call.1} parent=1 // pred_check_branch
      %121 = sbr.rel (0) target = $region49
    $region48: #{tpu_custom_call.1} parent=1 // pred_region
      %s123 = ssub.s32 512, 512
      %124 = vsyncadd [#allocation18], %s123
      %s125 = sshll.u32 [#allocation17], 4
      %s126 = int_to_ptr.vmem [resolvable:$true] %s125
      %131 = dma.hbm_to_vmem [thread:$0]  %s11, 512, %s126, [#allocation18], 128, 128, 8
    $region49: #{tpu_custom_call.1} parent=1 // pred_fallthru
      _
    // Predicated region
    $region50: #{tpu_custom_call.1} parent=1 // pred_check
      _
    $region51: #{tpu_custom_call.1} parent=1 // pred_check_branch
      %133 = sbr.rel (0) target = $region53
    $region52: #{tpu_custom_call.1} parent=1 // pred_region
      _
    $region53: #{tpu_custom_call.1} parent=1 // pred_fallthru
      _
    // Predicated region
    $region54: #{tpu_custom_call.1} parent=1 // pred_check
      _
    $region55: #{tpu_custom_call.1} parent=1 // pred_check_branch
      %135 = sbr.rel (0) target = $region57
    $region56: #{tpu_custom_call.1} parent=1 // pred_region
      %136 = dma.done [#allocation6], 256
    $region57: #{tpu_custom_call.1} parent=1 // pred_fallthru
      _
    // Predicated region
    $region58: #{tpu_custom_call.1} parent=1 // pred_check
      _
    $region59: #{tpu_custom_call.1} parent=1 // pred_check_branch
      %138 = sbr.rel (0) target = $region61
    $region60: #{tpu_custom_call.1} parent=1 // pred_region
      %139 = dma.done [#allocation9], 512
    $region61: #{tpu_custom_call.1} parent=1 // pred_fallthru
      _
    // Predicated region
    $region62: #{tpu_custom_call.1} parent=1 // pred_check
      _
    $region63: #{tpu_custom_call.1} parent=1 // pred_check_branch
      %141 = sbr.rel (0) target = $region65
    $region64: #{tpu_custom_call.1} parent=1 // pred_region
      %142 = dma.done [#allocation9], 512
    $region65: #{tpu_custom_call.1} parent=1 // pred_fallthru
      _
    // Predicated region
    $region66: #{tpu_custom_call.1} parent=1 // pred_check
      _
    $region67: #{tpu_custom_call.1} parent=1 // pred_check_branch
      %144 = sbr.rel (0) target = $region69
    $region68: #{tpu_custom_call.1} parent=1 // pred_region
      %145 = dma.done [#allocation12], 512
    $region69: #{tpu_custom_call.1} parent=1 // pred_fallthru
      _
    // Predicated region
    $region70: #{tpu_custom_call.1} parent=1 // pred_check
      _
    $region71: #{tpu_custom_call.1} parent=1 // pred_check_branch
      %147 = sbr.rel (0) target = $region73
    $region72: #{tpu_custom_call.1} parent=1 // pred_region
      %148 = dma.done [#allocation12], 512
    $region73: #{tpu_custom_call.1} parent=1 // pred_fallthru
      _
    // Predicated region
    $region74: #{tpu_custom_call.1} parent=1 // pred_check
      _
    $region75: #{tpu_custom_call.1} parent=1 // pred_check_branch
      %150 = sbr.rel (0) target = $region77
    $region76: #{tpu_custom_call.1} parent=1 // pred_region
      %151 = dma.done [#allocation15], 512
    $region77: #{tpu_custom_call.1} parent=1 // pred_fallthru
      _
    // Predicated region
    $region78: #{tpu_custom_call.1} parent=1 // pred_check
      _
    $region79: #{tpu_custom_call.1} parent=1 // pred_check_branch
      %153 = sbr.rel (0) target = $region81
    $region80: #{tpu_custom_call.1} parent=1 // pred_region
      %154 = dma.done [#allocation15], 512
    $region81: #{tpu_custom_call.1} parent=1 // pred_fallthru
      _
    // Predicated region
    $region82: #{tpu_custom_call.1} parent=1 // pred_check
      _
    $region83: #{tpu_custom_call.1} parent=1 // pred_check_branch
      %156 = sbr.rel (0) target = $region85
    $region84: #{tpu_custom_call.1} parent=1 // pred_region
      %157 = dma.done [#allocation18], 512
    $region85: #{tpu_custom_call.1} parent=1 // pred_fallthru
      _
    %v158 = vlaneseq
    %v159 = vand.u32 %v158, 127
    %vm160 = vcmp.lt.s32.totalorder %v159, 0
    %v161 = vsub.s32 0, %v159
    %v162 = vsel %vm160, %v161, %v159
    %v163 = vshrl.u32 %v162, 5
    %v164 = vand.u32 %v162, 31
    %v165 = vsub.s32 0, %v164
    %v166 = vsel %vm160, %v165, %v164
    %vm167 = vcmp.ne.s32.totalorder %v166, 0
    %vm168 = vcmp.lt.s32.totalorder %v166, 0
    %vm169 = vmand %vm168, %vm167
    %v170 = vadd.s32 %v166, 32
    %v171 = vsel %vm169, %v170, %v166
    %vm172 = vcmp.lt.s32.totalorder %v171, 16
    %v173 = vld [vmem:[#allocation5] sm:$0xff]
    %v174 = vld [vmem:[#allocation5 + $0x8] sm:$0xff]
    %v175 = vld [vmem:[#allocation8] sm:$0xff]
    %v176 = vld [vmem:[#allocation8 + $0x8] sm:$0xff]
    %v177 = vld [vmem:[#allocation8 + $0x10] sm:$0xff]
    %v178 = vld [vmem:[#allocation8 + $0x18] sm:$0xff]
    %v179 = vld [vmem:[%s3] sm:$0x1]
    %v181 = vlaneseq
    %v182 = vshrl.u32 %v181, 7
    %v183 = vsub.s32 0, %v182
    %v184 = vrot.slane %v179, %v183
    %vm186 = vcmask 261120
    %v188 = vsel %vm186, %v173, 0
    %v191 = vsel %vm186, %v174, 0
    %193 = vmatprep.subr.mxu0 0.0
    %194 = vmatpush1.msra.mxu0 %v175
    %195 = vmatprep.subr.mxu0 0.0
    %196 = vmatpush1.msra.mxu0 %v176
    %197 = vmatprep.subr.mxu0 0.0
    %198 = vmatpush1.msra.mxu0 %v177
    %199 = vmatprep.subr.mxu0 0.0
    %200 = vmatpush1.msra.mxu0 %v178
    %201 = vmatprep.subr.mxu0 0.0
    %202 = vmatpush1.msra.mxu0 0.0
    %203 = vmatprep.subr.mxu0 0.0
    %204 = vmatpush1.msra.mxu0 0.0
    %205 = vmatprep.subr.mxu0 0.0
    %206 = vmatpush1.msra.mxu0 0.0
    %207 = vmatprep.subr.mxu0 0.0
    %208 = vmatpush1.msra.mxu0 0.0
    %209 = vmatprep.subr.mxu0 0.0
    %210 = vmatpush1.msra.mxu0 0.0
    %211 = vmatprep.subr.mxu0 0.0
    %212 = vmatpush1.msra.mxu0 0.0
    %213 = vmatprep.subr.mxu0 0.0
    %214 = vmatpush1.msra.mxu0 0.0
    %215 = vmatprep.subr.mxu0 0.0
    %216 = vmatpush1.msra.mxu0 0.0
    %217 = vmatprep.subr.mxu0 0.0
    %218 = vmatpush1.msra.mxu0 0.0
    %219 = vmatprep.subr.mxu0 0.0
    %220 = vmatpush1.msra.mxu0 0.0
    %221 = vmatprep.subr.mxu0 0.0
    %222 = vmatpush1.msra.mxu0 0.0
    %223 = vmatprep.subr.mxu0 0.0
    %224 = vmatpush1.msra.mxu0 0.0
    %225 = vmatprep.subr.mxu0 0.0
    %226 = vmatpush1.msra.mxu0 0.0
    %227 = vmatprep.subr.mxu0 0.0
    %228 = vmatpush1.msra.mxu0 0.0
    %229 = vmatprep.subr.mxu0 0.0
    %230 = vmatpush1.msra.mxu0 0.0
    %231 = vmatprep.subr.mxu0 0.0
    %232 = vmatpush1.msra.mxu0 0.0
    %233 = vmatprep.subr.mxu0 0.0
    %234 = vmatpush1.msra.mxu0 0.0
    %235 = vmatprep.subr.mxu0 0.0
    %236 = vmatpush1.msra.mxu0 0.0
    %237 = vmatprep.subr.mxu0 0.0
    %238 = vmatpush1.msra.mxu0 0.0
    %239 = vmatprep.subr.mxu0 0.0
    %240 = vmatpush1.msra.mxu0 0.0
    %241 = vmatprep.subr.mxu0 0.0
    %242 = vmatpush1.msra.mxu0 0.0
    %243 = vmatprep.subr.mxu0 0.0
    %244 = vmatpush1.msra.mxu0 0.0
    %245 = vmatprep.subr.mxu0 0.0
    %246 = vmatpush1.msra.mxu0 0.0
    %247 = vmatprep.subr.mxu0 0.0
    %248 = vmatpush1.msra.mxu0 0.0
    %249 = vmatprep.subr.mxu0 0.0
    %250 = vmatpush1.msra.mxu0 0.0
    %251 = vmatprep.subr.mxu0 0.0
    %252 = vmatpush1.msra.mxu0 0.0
    %253 = vmatprep.subr.mxu0 0.0
    %254 = vmatpush1.msra.mxu0 0.0
    %255 = vmatprep.subr.mxu0 0.0
    %256 = vmatpush1.msra.mxu0 0.0
    %257 = vmatprep.mubr.f32.mxu0 0.0
    %258 = vmatmul.mubr.f32.gmra.mrb[0].mxu0 %v188
    %v259 = vpop.f32.mrb[0].mxu0
    %v260 = vadd.f32 %v184, %v259
    %v261 = vpop.f32.mrb[0].mxu0
    %262 = vmatprep.mubr.f32.mxu0 0.0
    %263 = vmatmul.mubr.f32.gmra.mrb[0].mxu0 %v191
    %v264 = vpop.f32.mrb[0].mxu0
    %v265 = vadd.f32 %v184, %v264
    %v266 = vpop.f32.mrb[0].mxu0
    %267 = vdwg.mxu0
    %268 = vst [vmem:[#allocation4] sm:$0xff] %v260
    %269 = vst [vmem:[#allocation4 + $0x8] sm:$0xff] %v265
    %v270 = vld [vmem:[#allocation10] sm:$0xff]
    %v271 = vld [vmem:[#allocation10 + $0x8] sm:$0xff]
    %v272 = vld [vmem:[#allocation10 + $0x10] sm:$0xff]
    %v273 = vld [vmem:[#allocation10 + $0x18] sm:$0xff]
    %v274 = vld [vmem:[#allocation4] sm:$0x3]
    %v275 = vld [vmem:[#allocation4 + $0xe] sm:$0x3]
    %v276 = vsel %vm172, 1, 0
    %vm277 = vcmp.eq.s32.totalorder %v276, 1
    %v278 = vsel %vm277, %v274, %v275
    %v280 = vsel %vm186, 0.0, 0
    %282 = vmatprep.subr.mxu0 0.0
    %283 = vmatpush1.msra.mxu0 %v270
    %284 = vmatprep.subr.mxu0 0.0
    %285 = vmatpush1.msra.mxu0 %v271
    %286 = vmatprep.subr.mxu0 0.0
    %287 = vmatpush1.msra.mxu0 %v272
    %288 = vmatprep.subr.mxu0 0.0
    %289 = vmatpush1.msra.mxu0 %v273
    %290 = vmatprep.subr.mxu0 0.0
    %291 = vmatpush1.msra.mxu0 0.0
    %292 = vmatprep.subr.mxu0 0.0
    %293 = vmatpush1.msra.mxu0 0.0
    %294 = vmatprep.subr.mxu0 0.0
    %295 = vmatpush1.msra.mxu0 0.0
    %296 = vmatprep.subr.mxu0 0.0
    %297 = vmatpush1.msra.mxu0 0.0
    %298 = vmatprep.subr.mxu0 0.0
    %299 = vmatpush1.msra.mxu0 0.0
    %300 = vmatprep.subr.mxu0 0.0
    %301 = vmatpush1.msra.mxu0 0.0
    %302 = vmatprep.subr.mxu0 0.0
    %303 = vmatpush1.msra.mxu0 0.0
    %304 = vmatprep.subr.mxu0 0.0
    %305 = vmatpush1.msra.mxu0 0.0
    %306 = vmatprep.subr.mxu0 0.0
    %307 = vmatpush1.msra.mxu0 0.0
    %308 = vmatprep.subr.mxu0 0.0
    %309 = vmatpush1.msra.mxu0 0.0
    %310 = vmatprep.subr.mxu0 0.0
    %311 = vmatpush1.msra.mxu0 0.0
    %312 = vmatprep.subr.mxu0 0.0
    %313 = vmatpush1.msra.mxu0 0.0
    %314 = vmatprep.subr.mxu0 0.0
    %315 = vmatpush1.msra.mxu0 0.0
    %316 = vmatprep.subr.mxu0 0.0
    %317 = vmatpush1.msra.mxu0 0.0
    %318 = vmatprep.subr.mxu0 0.0
    %319 = vmatpush1.msra.mxu0 0.0
    %320 = vmatprep.subr.mxu0 0.0
    %321 = vmatpush1.msra.mxu0 0.0
    %322 = vmatprep.subr.mxu0 0.0
    %323 = vmatpush1.msra.mxu0 0.0
    %324 = vmatprep.subr.mxu0 0.0
    %325 = vmatpush1.msra.mxu0 0.0
    %326 = vmatprep.subr.mxu0 0.0
    %327 = vmatpush1.msra.mxu0 0.0
    %328 = vmatprep.subr.mxu0 0.0
    %329 = vmatpush1.msra.mxu0 0.0
    %330 = vmatprep.subr.mxu0 0.0
    %331 = vmatpush1.msra.mxu0 0.0
    %332 = vmatprep.subr.mxu0 0.0
    %333 = vmatpush1.msra.mxu0 0.0
    %334 = vmatprep.subr.mxu0 0.0
    %335 = vmatpush1.msra.mxu0 0.0
    %336 = vmatprep.subr.mxu0 0.0
    %337 = vmatpush1.msra.mxu0 0.0
    %338 = vmatprep.subr.mxu0 0.0
    %339 = vmatpush1.msra.mxu0 0.0
    %340 = vmatprep.subr.mxu0 0.0
    %341 = vmatpush1.msra.mxu0 0.0
    %342 = vmatprep.subr.mxu0 0.0
    %343 = vmatpush1.msra.mxu0 0.0
    %344 = vmatprep.subr.mxu0 0.0
    %345 = vmatpush1.msra.mxu0 0.0
    %346 = vmatprep.mubr.f32.mxu0 0.0
    %347 = vmatmul.mubr.f32.gmra.mrb[0].mxu0 %v280
    %v348 = vpop.f32.mrb[0].mxu0
    %v349 = vadd.f32 0.0, %v348
    %v350 = vpop.f32.mrb[0].mxu0
    %351 = vdwg.mxu0
    %v352 = vadd.f32 %v278, %v349
    %v353 = vxor.u32 %v352, 2147483648
    %v354 = vmul.f32 %v353, 1.442695
    %v355 = vpow.pop %v354
    %v356 = vadd.f32 %v355, 1.0
    %v357 = vrcp.pop %v356
    %v358 = vmul.f32 1.0, %v357
    %v359 = vtanh.pop %v352
    %v360 = vmul.f32 %v358, 0.0
    %362 = vrot.lane.b32.xlu0 %v359, 32
    %v363 = vpop.permute.xlu0 %362
    %v365 = vmul.f32 %v358, %v363
    %367 = vrot.lane.b32.xlu0 %v365, 32
    %v368 = vpop.permute.xlu0 %367
    %v370 = vadd.f32 %v360, %v368
    %v371 = vtanh.pop %v370
    %373 = vrot.lane.b32.xlu0 %v371, 32
    %v374 = vpop.permute.xlu0 %373
    %v376 = vmul.f32 %v358, %v374
    %378 = vrot.lane.b32.xlu0 %v376, 64
    %v379 = vpop.permute.xlu0 %378
    %vm381 = vcmask 123904
    %382 = vst.msk [vmem:[#allocation2] sm:$0x3] %vm381, %v379
    %vm383 = vcmask 255104
    %384 = vst.msk [vmem:[#allocation2 + $0xe] sm:$0x3] %vm383, %v379
    %v385 = vld [vmem:[#allocation4 + $0x2] sm:$0x3]
    %v386 = vld [vmem:[#allocation4 + $0xc] sm:$0x3]
    %v387 = vsel %vm277, %v385, %v386
    %v388 = vsel %vm186, %v379, 0
    %390 = vmatprep.subr.mxu0 0.0
    %391 = vmatpush1.msra.mxu0 %v270
    %392 = vmatprep.subr.mxu0 0.0
    %393 = vmatpush1.msra.mxu0 %v271
    %394 = vmatprep.subr.mxu0 0.0
    %395 = vmatpush1.msra.mxu0 %v272
    %396 = vmatprep.subr.mxu0 0.0
    %397 = vmatpush1.msra.mxu0 %v273
    %398 = vmatprep.subr.mxu0 0.0
    %399 = vmatpush1.msra.mxu0 0.0
    %400 = vmatprep.subr.mxu0 0.0
    %401 = vmatpush1.msra.mxu0 0.0
    %402 = vmatprep.subr.mxu0 0.0
    %403 = vmatpush1.msra.mxu0 0.0
    %404 = vmatprep.subr.mxu0 0.0
    %405 = vmatpush1.msra.mxu0 0.0
    %406 = vmatprep.subr.mxu0 0.0
    %407 = vmatpush1.msra.mxu0 0.0
    %408 = vmatprep.subr.mxu0 0.0
    %409 = vmatpush1.msra.mxu0 0.0
    %410 = vmatprep.subr.mxu0 0.0
    %411 = vmatpush1.msra.mxu0 0.0
    %412 = vmatprep.subr.mxu0 0.0
    %413 = vmatpush1.msra.mxu0 0.0
    %414 = vmatprep.subr.mxu0 0.0
    %415 = vmatpush1.msra.mxu0 0.0
    %416 = vmatprep.subr.mxu0 0.0
    %417 = vmatpush1.msra.mxu0 0.0
    %418 = vmatprep.subr.mxu0 0.0
    %419 = vmatpush1.msra.mxu0 0.0
    %420 = vmatprep.subr.mxu0 0.0
    %421 = vmatpush1.msra.mxu0 0.0
    %422 = vmatprep.subr.mxu0 0.0
    %423 = vmatpush1.msra.mxu0 0.0
    %424 = vmatprep.subr.mxu0 0.0
    %425 = vmatpush1.msra.mxu0 0.0
    %426 = vmatprep.subr.mxu0 0.0
    %427 = vmatpush1.msra.mxu0 0.0
    %428 = vmatprep.subr.mxu0 0.0
    %429 = vmatpush1.msra.mxu0 0.0
    %430 = vmatprep.subr.mxu0 0.0
    %431 = vmatpush1.msra.mxu0 0.0
    %432 = vmatprep.subr.mxu0 0.0
    %433 = vmatpush1.msra.mxu0 0.0
    %434 = vmatprep.subr.mxu0 0.0
    %435 = vmatpush1.msra.mxu0 0.0
    %436 = vmatprep.subr.mxu0 0.0
    %437 = vmatpush1.msra.mxu0 0.0
    %438 = vmatprep.subr.mxu0 0.0
    %439 = vmatpush1.msra.mxu0 0.0
    %440 = vmatprep.subr.mxu0 0.0
    %441 = vmatpush1.msra.mxu0 0.0
    %442 = vmatprep.subr.mxu0 0.0
    %443 = vmatpush1.msra.mxu0 0.0
    %444 = vmatprep.subr.mxu0 0.0
    %445 = vmatpush1.msra.mxu0 0.0
    %446 = vmatprep.subr.mxu0 0.0
    %447 = vmatpush1.msra.mxu0 0.0
    %448 = vmatprep.subr.mxu0 0.0
    %449 = vmatpush1.msra.mxu0 0.0
    %450 = vmatprep.subr.mxu0 0.0
    %451 = vmatpush1.msra.mxu0 0.0
    %452 = vmatprep.subr.mxu0 0.0
    %453 = vmatpush1.msra.mxu0 0.0
    %454 = vmatprep.mubr.f32.mxu0 0.0
    %455 = vmatmul.mubr.f32.gmra.mrb[0].mxu0 %v388
    %v456 = vpop.f32.mrb[0].mxu0
    %v457 = vadd.f32 0.0, %v456
    %v458 = vpop.f32.mrb[0].mxu0
    %459 = vdwg.mxu0
    %v460 = vadd.f32 %v387, %v457
    %v461 = vxor.u32 %v460, 2147483648
    %v462 = vmul.f32 %v461, 1.442695
    %v463 = vpow.pop %v462
    %v464 = vadd.f32 %v463, 1.0
    %v465 = vrcp.pop %v464
    %v466 = vmul.f32 1.0, %v465
    %v467 = vtanh.pop %v460
    %v468 = vmul.f32 %v466, %v370
    %470 = vrot.lane.b32.xlu0 %v467, 32
    %v471 = vpop.permute.xlu0 %470
    %v473 = vmul.f32 %v466, %v471
    %475 = vrot.lane.b32.xlu0 %v473, 32
    %v476 = vpop.permute.xlu0 %475
    %v478 = vadd.f32 %v468, %v476
    %v479 = vtanh.pop %v478
    %481 = vrot.lane.b32.xlu0 %v479, 32
    %v482 = vpop.permute.xlu0 %481
    %v484 = vmul.f32 %v466, %v482
    %486 = vrot.lane.b32.xlu0 %v484, 64
    %v487 = vpop.permute.xlu0 %486
    %489 = vst.msk [vmem:[#allocation2 + $0x2] sm:$0x3] %vm381, %v487
    %490 = vst.msk [vmem:[#allocation2 + $0xc] sm:$0x3] %vm383, %v487
    %v491 = vld [vmem:[#allocation4 + $0x4] sm:$0x3]
    %v492 = vld [vmem:[#allocation4 + $0xa] sm:$0x3]
    %v493 = vsel %vm277, %v491, %v492
    %v494 = vsel %vm186, %v487, 0
    %496 = vmatprep.subr.mxu0 0.0
    %497 = vmatpush1.msra.mxu0 %v270
    %498 = vmatprep.subr.mxu0 0.0
    %499 = vmatpush1.msra.mxu0 %v271
    %500 = vmatprep.subr.mxu0 0.0
    %501 = vmatpush1.msra.mxu0 %v272
    %502 = vmatprep.subr.mxu0 0.0
    %503 = vmatpush1.msra.mxu0 %v273
    %504 = vmatprep.subr.mxu0 0.0
    %505 = vmatpush1.msra.mxu0 0.0
    %506 = vmatprep.subr.mxu0 0.0
    %507 = vmatpush1.msra.mxu0 0.0
    %508 = vmatprep.subr.mxu0 0.0
    %509 = vmatpush1.msra.mxu0 0.0
    %510 = vmatprep.subr.mxu0 0.0
    %511 = vmatpush1.msra.mxu0 0.0
    %512 = vmatprep.subr.mxu0 0.0
    %513 = vmatpush1.msra.mxu0 0.0
    %514 = vmatprep.subr.mxu0 0.0
    %515 = vmatpush1.msra.mxu0 0.0
    %516 = vmatprep.subr.mxu0 0.0
    %517 = vmatpush1.msra.mxu0 0.0
    %518 = vmatprep.subr.mxu0 0.0
    %519 = vmatpush1.msra.mxu0 0.0
    %520 = vmatprep.subr.mxu0 0.0
    %521 = vmatpush1.msra.mxu0 0.0
    %522 = vmatprep.subr.mxu0 0.0
    %523 = vmatpush1.msra.mxu0 0.0
    %524 = vmatprep.subr.mxu0 0.0
    %525 = vmatpush1.msra.mxu0 0.0
    %526 = vmatprep.subr.mxu0 0.0
    %527 = vmatpush1.msra.mxu0 0.0
    %528 = vmatprep.subr.mxu0 0.0
    %529 = vmatpush1.msra.mxu0 0.0
    %530 = vmatprep.subr.mxu0 0.0
    %531 = vmatpush1.msra.mxu0 0.0
    %532 = vmatprep.subr.mxu0 0.0
    %533 = vmatpush1.msra.mxu0 0.0
    %534 = vmatprep.subr.mxu0 0.0
    %535 = vmatpush1.msra.mxu0 0.0
    %536 = vmatprep.subr.mxu0 0.0
    %537 = vmatpush1.msra.mxu0 0.0
    %538 = vmatprep.subr.mxu0 0.0
    %539 = vmatpush1.msra.mxu0 0.0
    %540 = vmatprep.subr.mxu0 0.0
    %541 = vmatpush1.msra.mxu0 0.0
    %542 = vmatprep.subr.mxu0 0.0
    %543 = vmatpush1.msra.mxu0 0.0
    %544 = vmatprep.subr.mxu0 0.0
    %545 = vmatpush1.msra.mxu0 0.0
    %546 = vmatprep.subr.mxu0 0.0
    %547 = vmatpush1.msra.mxu0 0.0
    %548 = vmatprep.subr.mxu0 0.0
    %549 = vmatpush1.msra.mxu0 0.0
    %550 = vmatprep.subr.mxu0 0.0
    %551 = vmatpush1.msra.mxu0 0.0
    %552 = vmatprep.subr.mxu0 0.0
    %553 = vmatpush1.msra.mxu0 0.0
    %554 = vmatprep.subr.mxu0 0.0
    %555 = vmatpush1.msra.mxu0 0.0
    %556 = vmatprep.subr.mxu0 0.0
    %557 = vmatpush1.msra.mxu0 0.0
    %558 = vmatprep.subr.mxu0 0.0
    %559 = vmatpush1.msra.mxu0 0.0
    %560 = vmatprep.mubr.f32.mxu0 0.0
    %561 = vmatmul.mubr.f32.gmra.mrb[0].mxu0 %v494
    %v562 = vpop.f32.mrb[0].mxu0
    %v563 = vadd.f32 0.0, %v562
    %v564 = vpop.f32.mrb[0].mxu0
    %565 = vdwg.mxu0
    %v566 = vadd.f32 %v493, %v563
    %v567 = vxor.u32 %v566, 2147483648
    %v568 = vmul.f32 %v567, 1.442695
    %v569 = vpow.pop %v568
    %v570 = vadd.f32 %v569, 1.0
    %v571 = vrcp.pop %v570
    %v572 = vmul.f32 1.0, %v571
    %v573 = vtanh.pop %v566
    %v574 = vmul.f32 %v572, %v478
    %576 = vrot.lane.b32.xlu0 %v573, 32
    %v577 = vpop.permute.xlu0 %576
    %v579 = vmul.f32 %v572, %v577
    %581 = vrot.lane.b32.xlu0 %v579, 32
    %v582 = vpop.permute.xlu0 %581
    %v584 = vadd.f32 %v574, %v582
    %v585 = vtanh.pop %v584
    %587 = vrot.lane.b32.xlu0 %v585, 32
    %v588 = vpop.permute.xlu0 %587
    %v590 = vmul.f32 %v572, %v588
    %592 = vrot.lane.b32.xlu0 %v590, 64
    %v593 = vpop.permute.xlu0 %592
    %595 = vst.msk [vmem:[#allocation2 + $0x4] sm:$0x3] %vm381, %v593
    %596 = vst.msk [vmem:[#allocation2 + $0xa] sm:$0x3] %vm383, %v593
    %v597 = vld [vmem:[#allocation4 + $0x6] sm:$0x3]
    %v598 = vld [vmem:[#allocation4 + $0x8] sm:$0x3]
    %v599 = vsel %vm277, %v597, %v598
    %v600 = vsel %vm186, %v593, 0
    %602 = vmatprep.subr.mxu0 0.0
    %603 = vmatpush1.msra.mxu0 %v270
    %604 = vmatprep.subr.mxu0 0.0
    %605 = vmatpush1.msra.mxu0 %v271
    %606 = vmatprep.subr.mxu0 0.0
    %607 = vmatpush1.msra.mxu0 %v272
    %608 = vmatprep.subr.mxu0 0.0
    %609 = vmatpush1.msra.mxu0 %v273
    %610 = vmatprep.subr.mxu0 0.0
    %611 = vmatpush1.msra.mxu0 0.0
    %612 = vmatprep.subr.mxu0 0.0
    %613 = vmatpush1.msra.mxu0 0.0
    %614 = vmatprep.subr.mxu0 0.0
    %615 = vmatpush1.msra.mxu0 0.0
    %616 = vmatprep.subr.mxu0 0.0
    %617 = vmatpush1.msra.mxu0 0.0
    %618 = vmatprep.subr.mxu0 0.0
    %619 = vmatpush1.msra.mxu0 0.0
    %620 = vmatprep.subr.mxu0 0.0
    %621 = vmatpush1.msra.mxu0 0.0
    %622 = vmatprep.subr.mxu0 0.0
    %623 = vmatpush1.msra.mxu0 0.0
    %624 = vmatprep.subr.mxu0 0.0
    %625 = vmatpush1.msra.mxu0 0.0
    %626 = vmatprep.subr.mxu0 0.0
    %627 = vmatpush1.msra.mxu0 0.0
    %628 = vmatprep.subr.mxu0 0.0
    %629 = vmatpush1.msra.mxu0 0.0
    %630 = vmatprep.subr.mxu0 0.0
    %631 = vmatpush1.msra.mxu0 0.0
    %632 = vmatprep.subr.mxu0 0.0
    %633 = vmatpush1.msra.mxu0 0.0
    %634 = vmatprep.subr.mxu0 0.0
    %635 = vmatpush1.msra.mxu0 0.0
    %636 = vmatprep.subr.mxu0 0.0
    %637 = vmatpush1.msra.mxu0 0.0
    %638 = vmatprep.subr.mxu0 0.0
    %639 = vmatpush1.msra.mxu0 0.0
    %640 = vmatprep.subr.mxu0 0.0
    %641 = vmatpush1.msra.mxu0 0.0
    %642 = vmatprep.subr.mxu0 0.0
    %643 = vmatpush1.msra.mxu0 0.0
    %644 = vmatprep.subr.mxu0 0.0
    %645 = vmatpush1.msra.mxu0 0.0
    %646 = vmatprep.subr.mxu0 0.0
    %647 = vmatpush1.msra.mxu0 0.0
    %648 = vmatprep.subr.mxu0 0.0
    %649 = vmatpush1.msra.mxu0 0.0
    %650 = vmatprep.subr.mxu0 0.0
    %651 = vmatpush1.msra.mxu0 0.0
    %652 = vmatprep.subr.mxu0 0.0
    %653 = vmatpush1.msra.mxu0 0.0
    %654 = vmatprep.subr.mxu0 0.0
    %655 = vmatpush1.msra.mxu0 0.0
    %656 = vmatprep.subr.mxu0 0.0
    %657 = vmatpush1.msra.mxu0 0.0
    %658 = vmatprep.subr.mxu0 0.0
    %659 = vmatpush1.msra.mxu0 0.0
    %660 = vmatprep.subr.mxu0 0.0
    %661 = vmatpush1.msra.mxu0 0.0
    %662 = vmatprep.subr.mxu0 0.0
    %663 = vmatpush1.msra.mxu0 0.0
    %664 = vmatprep.subr.mxu0 0.0
    %665 = vmatpush1.msra.mxu0 0.0
    %666 = vmatprep.mubr.f32.mxu0 0.0
    %667 = vmatmul.mubr.f32.gmra.mrb[0].mxu0 %v600
    %v668 = vpop.f32.mrb[0].mxu0
    %v669 = vadd.f32 0.0, %v668
    %v670 = vpop.f32.mrb[0].mxu0
    %671 = vdwg.mxu0
    %v672 = vadd.f32 %v599, %v669
    %v673 = vxor.u32 %v672, 2147483648
    %v674 = vmul.f32 %v673, 1.442695
    %v675 = vpow.pop %v674
    %v676 = vadd.f32 %v675, 1.0
    %v677 = vrcp.pop %v676
    %v678 = vmul.f32 1.0, %v677
    %v679 = vtanh.pop %v672
    %v680 = vmul.f32 %v678, %v584
    %682 = vrot.lane.b32.xlu0 %v679, 32
    %v683 = vpop.permute.xlu0 %682
    %v685 = vmul.f32 %v678, %v683
    %687 = vrot.lane.b32.xlu0 %v685, 32
    %v688 = vpop.permute.xlu0 %687
    %v690 = vadd.f32 %v680, %v688
    %v691 = vtanh.pop %v690
    %693 = vrot.lane.b32.xlu0 %v691, 32
    %v694 = vpop.permute.xlu0 %693
    %v696 = vmul.f32 %v678, %v694
    %698 = vrot.lane.b32.xlu0 %v696, 64
    %v699 = vpop.permute.xlu0 %698
    %701 = vst.msk [vmem:[#allocation2 + $0x6] sm:$0x3] %vm381, %v699
    %702 = vst.msk [vmem:[#allocation2 + $0x8] sm:$0x3] %vm383, %v699
    %v703 = vld [vmem:[#allocation4 + $0x8] sm:$0x3]
    %v704 = vld [vmem:[#allocation4 + $0x6] sm:$0x3]
    %v705 = vsel %vm277, %v703, %v704
    %v706 = vsel %vm186, %v699, 0
    %708 = vmatprep.subr.mxu0 0.0
    %709 = vmatpush1.msra.mxu0 %v270
    %710 = vmatprep.subr.mxu0 0.0
    %711 = vmatpush1.msra.mxu0 %v271
    %712 = vmatprep.subr.mxu0 0.0
    %713 = vmatpush1.msra.mxu0 %v272
    %714 = vmatprep.subr.mxu0 0.0
    %715 = vmatpush1.msra.mxu0 %v273
    %716 = vmatprep.subr.mxu0 0.0
    %717 = vmatpush1.msra.mxu0 0.0
    %718 = vmatprep.subr.mxu0 0.0
    %719 = vmatpush1.msra.mxu0 0.0
    %720 = vmatprep.subr.mxu0 0.0
    %721 = vmatpush1.msra.mxu0 0.0
    %722 = vmatprep.subr.mxu0 0.0
    %723 = vmatpush1.msra.mxu0 0.0
    %724 = vmatprep.subr.mxu0 0.0
    %725 = vmatpush1.msra.mxu0 0.0
    %726 = vmatprep.subr.mxu0 0.0
    %727 = vmatpush1.msra.mxu0 0.0
    %728 = vmatprep.subr.mxu0 0.0
    %729 = vmatpush1.msra.mxu0 0.0
    %730 = vmatprep.subr.mxu0 0.0
    %731 = vmatpush1.msra.mxu0 0.0
    %732 = vmatprep.subr.mxu0 0.0
    %733 = vmatpush1.msra.mxu0 0.0
    %734 = vmatprep.subr.mxu0 0.0
    %735 = vmatpush1.msra.mxu0 0.0
    %736 = vmatprep.subr.mxu0 0.0
    %737 = vmatpush1.msra.mxu0 0.0
    %738 = vmatprep.subr.mxu0 0.0
    %739 = vmatpush1.msra.mxu0 0.0
    %740 = vmatprep.subr.mxu0 0.0
    %741 = vmatpush1.msra.mxu0 0.0
    %742 = vmatprep.subr.mxu0 0.0
    %743 = vmatpush1.msra.mxu0 0.0
    %744 = vmatprep.subr.mxu0 0.0
    %745 = vmatpush1.msra.mxu0 0.0
    %746 = vmatprep.subr.mxu0 0.0
    %747 = vmatpush1.msra.mxu0 0.0
    %748 = vmatprep.subr.mxu0 0.0
    %749 = vmatpush1.msra.mxu0 0.0
    %750 = vmatprep.subr.mxu0 0.0
    %751 = vmatpush1.msra.mxu0 0.0
    %752 = vmatprep.subr.mxu0 0.0
    %753 = vmatpush1.msra.mxu0 0.0
    %754 = vmatprep.subr.mxu0 0.0
    %755 = vmatpush1.msra.mxu0 0.0
    %756 = vmatprep.subr.mxu0 0.0
    %757 = vmatpush1.msra.mxu0 0.0
    %758 = vmatprep.subr.mxu0 0.0
    %759 = vmatpush1.msra.mxu0 0.0
    %760 = vmatprep.subr.mxu0 0.0
    %761 = vmatpush1.msra.mxu0 0.0
    %762 = vmatprep.subr.mxu0 0.0
    %763 = vmatpush1.msra.mxu0 0.0
    %764 = vmatprep.subr.mxu0 0.0
    %765 = vmatpush1.msra.mxu0 0.0
    %766 = vmatprep.subr.mxu0 0.0
    %767 = vmatpush1.msra.mxu0 0.0
    %768 = vmatprep.subr.mxu0 0.0
    %769 = vmatpush1.msra.mxu0 0.0
    %770 = vmatprep.subr.mxu0 0.0
    %771 = vmatpush1.msra.mxu0 0.0
    %772 = vmatprep.mubr.f32.mxu0 0.0
    %773 = vmatmul.mubr.f32.gmra.mrb[0].mxu0 %v706
    %v774 = vpop.f32.mrb[0].mxu0
    %v775 = vadd.f32 0.0, %v774
    %v776 = vpop.f32.mrb[0].mxu0
    %777 = vdwg.mxu0
    %v778 = vadd.f32 %v705, %v775
    %v779 = vxor.u32 %v778, 2147483648
    %v780 = vmul.f32 %v779, 1.442695
    %v781 = vpow.pop %v780
    %v782 = vadd.f32 %v781, 1.0
    %v783 = vrcp.pop %v782
    %v784 = vmul.f32 1.0, %v783
    %v785 = vtanh.pop %v778
    %v786 = vmul.f32 %v784, %v690
    %788 = vrot.lane.b32.xlu0 %v785, 32
    %v789 = vpop.permute.xlu0 %788
    %v791 = vmul.f32 %v784, %v789
    %793 = vrot.lane.b32.xlu0 %v791, 32
    %v794 = vpop.permute.xlu0 %793
    %v796 = vadd.f32 %v786, %v794
    %v797 = vtanh.pop %v796
    %799 = vrot.lane.b32.xlu0 %v797, 32
    %v800 = vpop.permute.xlu0 %799
    %v802 = vmul.f32 %v784, %v800
    %804 = vrot.lane.b32.xlu0 %v802, 64
    %v805 = vpop.permute.xlu0 %804
    %807 = vst.msk [vmem:[#allocation2 + $0x8] sm:$0x3] %vm381, %v805
    %808 = vst.msk [vmem:[#allocation2 + $0x6] sm:$0x3] %vm383, %v805
    %v809 = vld [vmem:[#allocation4 + $0xa] sm:$0x3]
    %v810 = vld [vmem:[#allocation4 + $0x4] sm:$0x3]
    %v811 = vsel %vm277, %v809, %v810
    %v812 = vsel %vm186, %v805, 0
    %814 = vmatprep.subr.mxu0 0.0
    %815 = vmatpush1.msra.mxu0 %v270
    %816 = vmatprep.subr.mxu0 0.0
    %817 = vmatpush1.msra.mxu0 %v271
    %818 = vmatprep.subr.mxu0 0.0
    %819 = vmatpush1.msra.mxu0 %v272
    %820 = vmatprep.subr.mxu0 0.0
    %821 = vmatpush1.msra.mxu0 %v273
    %822 = vmatprep.subr.mxu0 0.0
    %823 = vmatpush1.msra.mxu0 0.0
    %824 = vmatprep.subr.mxu0 0.0
    %825 = vmatpush1.msra.mxu0 0.0
    %826 = vmatprep.subr.mxu0 0.0
    %827 = vmatpush1.msra.mxu0 0.0
    %828 = vmatprep.subr.mxu0 0.0
    %829 = vmatpush1.msra.mxu0 0.0
    %830 = vmatprep.subr.mxu0 0.0
    %831 = vmatpush1.msra.mxu0 0.0
    %832 = vmatprep.subr.mxu0 0.0
    %833 = vmatpush1.msra.mxu0 0.0
    %834 = vmatprep.subr.mxu0 0.0
    %835 = vmatpush1.msra.mxu0 0.0
    %836 = vmatprep.subr.mxu0 0.0
    %837 = vmatpush1.msra.mxu0 0.0
    %838 = vmatprep.subr.mxu0 0.0
    %839 = vmatpush1.msra.mxu0 0.0
    %840 = vmatprep.subr.mxu0 0.0
    %841 = vmatpush1.msra.mxu0 0.0
    %842 = vmatprep.subr.mxu0 0.0
    %843 = vmatpush1.msra.mxu0 0.0
    %844 = vmatprep.subr.mxu0 0.0
    %845 = vmatpush1.msra.mxu0 0.0
    %846 = vmatprep.subr.mxu0 0.0
    %847 = vmatpush1.msra.mxu0 0.0
    %848 = vmatprep.subr.mxu0 0.0
    %849 = vmatpush1.msra.mxu0 0.0
    %850 = vmatprep.subr.mxu0 0.0
    %851 = vmatpush1.msra.mxu0 0.0
    %852 = vmatprep.subr.mxu0 0.0
    %853 = vmatpush1.msra.mxu0 0.0
    %854 = vmatprep.subr.mxu0 0.0
    %855 = vmatpush1.msra.mxu0 0.0
    %856 = vmatprep.subr.mxu0 0.0
    %857 = vmatpush1.msra.mxu0 0.0
    %858 = vmatprep.subr.mxu0 0.0
    %859 = vmatpush1.msra.mxu0 0.0
    %860 = vmatprep.subr.mxu0 0.0
    %861 = vmatpush1.msra.mxu0 0.0
    %862 = vmatprep.subr.mxu0 0.0
    %863 = vmatpush1.msra.mxu0 0.0
    %864 = vmatprep.subr.mxu0 0.0
    %865 = vmatpush1.msra.mxu0 0.0
    %866 = vmatprep.subr.mxu0 0.0
    %867 = vmatpush1.msra.mxu0 0.0
    %868 = vmatprep.subr.mxu0 0.0
    %869 = vmatpush1.msra.mxu0 0.0
    %870 = vmatprep.subr.mxu0 0.0
    %871 = vmatpush1.msra.mxu0 0.0
    %872 = vmatprep.subr.mxu0 0.0
    %873 = vmatpush1.msra.mxu0 0.0
    %874 = vmatprep.subr.mxu0 0.0
    %875 = vmatpush1.msra.mxu0 0.0
    %876 = vmatprep.subr.mxu0 0.0
    %877 = vmatpush1.msra.mxu0 0.0
    %878 = vmatprep.mubr.f32.mxu0 0.0
    %879 = vmatmul.mubr.f32.gmra.mrb[0].mxu0 %v812
    %v880 = vpop.f32.mrb[0].mxu0
    %v881 = vadd.f32 0.0, %v880
    %v882 = vpop.f32.mrb[0].mxu0
    %883 = vdwg.mxu0
    %v884 = vadd.f32 %v811, %v881
    %v885 = vxor.u32 %v884, 2147483648
    %v886 = vmul.f32 %v885, 1.442695
    %v887 = vpow.pop %v886
    %v888 = vadd.f32 %v887, 1.0
    %v889 = vrcp.pop %v888
    %v890 = vmul.f32 1.0, %v889
    %v891 = vtanh.pop %v884
    %v892 = vmul.f32 %v890, %v796
    %894 = vrot.lane.b32.xlu0 %v891, 32
    %v895 = vpop.permute.xlu0 %894
    %v897 = vmul.f32 %v890, %v895
    %899 = vrot.lane.b32.xlu0 %v897, 32
    %v900 = vpop.permute.xlu0 %899
    %v902 = vadd.f32 %v892, %v900
    %v903 = vtanh.pop %v902
    %905 = vrot.lane.b32.xlu0 %v903, 32
    %v906 = vpop.permute.xlu0 %905
    %v908 = vmul.f32 %v890, %v906
    %910 = vrot.lane.b32.xlu0 %v908, 64
    %v911 = vpop.permute.xlu0 %910
    %913 = vst.msk [vmem:[#allocation2 + $0xa] sm:$0x3] %vm381, %v911
    %914 = vst.msk [vmem:[#allocation2 + $0x4] sm:$0x3] %vm383, %v911
    %v915 = vld [vmem:[#allocation4 + $0xc] sm:$0x3]
    %v916 = vld [vmem:[#allocation4 + $0x2] sm:$0x3]
    %v917 = vsel %vm277, %v915, %v916
    %v918 = vsel %vm186, %v911, 0
    %920 = vmatprep.subr.mxu0 0.0
    %921 = vmatpush1.msra.mxu0 %v270
    %922 = vmatprep.subr.mxu0 0.0
    %923 = vmatpush1.msra.mxu0 %v271
    %924 = vmatprep.subr.mxu0 0.0
    %925 = vmatpush1.msra.mxu0 %v272
    %926 = vmatprep.subr.mxu0 0.0
    %927 = vmatpush1.msra.mxu0 %v273
    %928 = vmatprep.subr.mxu0 0.0
    %929 = vmatpush1.msra.mxu0 0.0
    %930 = vmatprep.subr.mxu0 0.0
    %931 = vmatpush1.msra.mxu0 0.0
    %932 = vmatprep.subr.mxu0 0.0
    %933 = vmatpush1.msra.mxu0 0.0
    %934 = vmatprep.subr.mxu0 0.0
    %935 = vmatpush1.msra.mxu0 0.0
    %936 = vmatprep.subr.mxu0 0.0
    %937 = vmatpush1.msra.mxu0 0.0
    %938 = vmatprep.subr.mxu0 0.0
    %939 = vmatpush1.msra.mxu0 0.0
    %940 = vmatprep.subr.mxu0 0.0
    %941 = vmatpush1.msra.mxu0 0.0
    %942 = vmatprep.subr.mxu0 0.0
    %943 = vmatpush1.msra.mxu0 0.0
    %944 = vmatprep.subr.mxu0 0.0
    %945 = vmatpush1.msra.mxu0 0.0
    %946 = vmatprep.subr.mxu0 0.0
    %947 = vmatpush1.msra.mxu0 0.0
    %948 = vmatprep.subr.mxu0 0.0
    %949 = vmatpush1.msra.mxu0 0.0
    %950 = vmatprep.subr.mxu0 0.0
    %951 = vmatpush1.msra.mxu0 0.0
    %952 = vmatprep.subr.mxu0 0.0
    %953 = vmatpush1.msra.mxu0 0.0
    %954 = vmatprep.subr.mxu0 0.0
    %955 = vmatpush1.msra.mxu0 0.0
    %956 = vmatprep.subr.mxu0 0.0
    %957 = vmatpush1.msra.mxu0 0.0
    %958 = vmatprep.subr.mxu0 0.0
    %959 = vmatpush1.msra.mxu0 0.0
    %960 = vmatprep.subr.mxu0 0.0
    %961 = vmatpush1.msra.mxu0 0.0
    %962 = vmatprep.subr.mxu0 0.0
    %963 = vmatpush1.msra.mxu0 0.0
    %964 = vmatprep.subr.mxu0 0.0
    %965 = vmatpush1.msra.mxu0 0.0
    %966 = vmatprep.subr.mxu0 0.0
    %967 = vmatpush1.msra.mxu0 0.0
    %968 = vmatprep.subr.mxu0 0.0
    %969 = vmatpush1.msra.mxu0 0.0
    %970 = vmatprep.subr.mxu0 0.0
    %971 = vmatpush1.msra.mxu0 0.0
    %972 = vmatprep.subr.mxu0 0.0
    %973 = vmatpush1.msra.mxu0 0.0
    %974 = vmatprep.subr.mxu0 0.0
    %975 = vmatpush1.msra.mxu0 0.0
    %976 = vmatprep.subr.mxu0 0.0
    %977 = vmatpush1.msra.mxu0 0.0
    %978 = vmatprep.subr.mxu0 0.0
    %979 = vmatpush1.msra.mxu0 0.0
    %980 = vmatprep.subr.mxu0 0.0
    %981 = vmatpush1.msra.mxu0 0.0
    %982 = vmatprep.subr.mxu0 0.0
    %983 = vmatpush1.msra.mxu0 0.0
    %984 = vmatprep.mubr.f32.mxu0 0.0
    %985 = vmatmul.mubr.f32.gmra.mrb[0].mxu0 %v918
    %v986 = vpop.f32.mrb[0].mxu0
    %v987 = vadd.f32 0.0, %v986
    %v988 = vpop.f32.mrb[0].mxu0
    %989 = vdwg.mxu0
    %v990 = vadd.f32 %v917, %v987
    %v991 = vxor.u32 %v990, 2147483648
    %v992 = vmul.f32 %v991, 1.442695
    %v993 = vpow.pop %v992
    %v994 = vadd.f32 %v993, 1.0
    %v995 = vrcp.pop %v994
    %v996 = vmul.f32 1.0, %v995
    %v997 = vtanh.pop %v990
    %v998 = vmul.f32 %v996, %v902
    %1000 = vrot.lane.b32.xlu0 %v997, 32
    %v1001 = vpop.permute.xlu0 %1000
    %v1003 = vmul.f32 %v996, %v1001
    %1005 = vrot.lane.b32.xlu0 %v1003, 32
    %v1006 = vpop.permute.xlu0 %1005
    %v1008 = vadd.f32 %v998, %v1006
    %v1009 = vtanh.pop %v1008
    %1011 = vrot.lane.b32.xlu0 %v1009, 32
    %v1012 = vpop.permute.xlu0 %1011
    %v1014 = vmul.f32 %v996, %v1012
    %1016 = vrot.lane.b32.xlu0 %v1014, 64
    %v1017 = vpop.permute.xlu0 %1016
    %1019 = vst.msk [vmem:[#allocation2 + $0xc] sm:$0x3] %vm381, %v1017
    %1020 = vst.msk [vmem:[#allocation2 + $0x2] sm:$0x3] %vm383, %v1017
    %v1021 = vld [vmem:[#allocation4 + $0xe] sm:$0x3]
    %v1022 = vld [vmem:[#allocation4] sm:$0x3]
    %v1023 = vsel %vm277, %v1021, %v1022
    %v1024 = vsel %vm186, %v1017, 0
    %1026 = vmatprep.subr.mxu0 0.0
    %1027 = vmatpush1.msra.mxu0 %v270
    %1028 = vmatprep.subr.mxu0 0.0
    %1029 = vmatpush1.msra.mxu0 %v271
    %1030 = vmatprep.subr.mxu0 0.0
    %1031 = vmatpush1.msra.mxu0 %v272
    %1032 = vmatprep.subr.mxu0 0.0
    %1033 = vmatpush1.msra.mxu0 %v273
    %1034 = vmatprep.subr.mxu0 0.0
    %1035 = vmatpush1.msra.mxu0 0.0
    %1036 = vmatprep.subr.mxu0 0.0
    %1037 = vmatpush1.msra.mxu0 0.0
    %1038 = vmatprep.subr.mxu0 0.0
    %1039 = vmatpush1.msra.mxu0 0.0
    %1040 = vmatprep.subr.mxu0 0.0
    %1041 = vmatpush1.msra.mxu0 0.0
    %1042 = vmatprep.subr.mxu0 0.0
    %1043 = vmatpush1.msra.mxu0 0.0
    %1044 = vmatprep.subr.mxu0 0.0
    %1045 = vmatpush1.msra.mxu0 0.0
    %1046 = vmatprep.subr.mxu0 0.0
    %1047 = vmatpush1.msra.mxu0 0.0
    %1048 = vmatprep.subr.mxu0 0.0
    %1049 = vmatpush1.msra.mxu0 0.0
    %1050 = vmatprep.subr.mxu0 0.0
    %1051 = vmatpush1.msra.mxu0 0.0
    %1052 = vmatprep.subr.mxu0 0.0
    %1053 = vmatpush1.msra.mxu0 0.0
    %1054 = vmatprep.subr.mxu0 0.0
    %1055 = vmatpush1.msra.mxu0 0.0
    %1056 = vmatprep.subr.mxu0 0.0
    %1057 = vmatpush1.msra.mxu0 0.0
    %1058 = vmatprep.subr.mxu0 0.0
    %1059 = vmatpush1.msra.mxu0 0.0
    %1060 = vmatprep.subr.mxu0 0.0
    %1061 = vmatpush1.msra.mxu0 0.0
    %1062 = vmatprep.subr.mxu0 0.0
    %1063 = vmatpush1.msra.mxu0 0.0
    %1064 = vmatprep.subr.mxu0 0.0
    %1065 = vmatpush1.msra.mxu0 0.0
    %1066 = vmatprep.subr.mxu0 0.0
    %1067 = vmatpush1.msra.mxu0 0.0
    %1068 = vmatprep.subr.mxu0 0.0
    %1069 = vmatpush1.msra.mxu0 0.0
    %1070 = vmatprep.subr.mxu0 0.0
    %1071 = vmatpush1.msra.mxu0 0.0
    %1072 = vmatprep.subr.mxu0 0.0
    %1073 = vmatpush1.msra.mxu0 0.0
    %1074 = vmatprep.subr.mxu0 0.0
    %1075 = vmatpush1.msra.mxu0 0.0
    %1076 = vmatprep.subr.mxu0 0.0
    %1077 = vmatpush1.msra.mxu0 0.0
    %1078 = vmatprep.subr.mxu0 0.0
    %1079 = vmatpush1.msra.mxu0 0.0
    %1080 = vmatprep.subr.mxu0 0.0
    %1081 = vmatpush1.msra.mxu0 0.0
    %1082 = vmatprep.subr.mxu0 0.0
    %1083 = vmatpush1.msra.mxu0 0.0
    %1084 = vmatprep.subr.mxu0 0.0
    %1085 = vmatpush1.msra.mxu0 0.0
    %1086 = vmatprep.subr.mxu0 0.0
    %1087 = vmatpush1.msra.mxu0 0.0
    %1088 = vmatprep.subr.mxu0 0.0
    %1089 = vmatpush1.msra.mxu0 0.0
    %1090 = vmatprep.mubr.f32.mxu0 0.0
    %1091 = vmatmul.mubr.f32.gmra.mrb[0].mxu0 %v1024
    %v1092 = vpop.f32.mrb[0].mxu0
    %v1093 = vadd.f32 0.0, %v1092
    %v1094 = vpop.f32.mrb[0].mxu0
    %1095 = vdwg.mxu0
    %v1096 = vadd.f32 %v1023, %v1093
    %v1097 = vxor.u32 %v1096, 2147483648
    %v1098 = vmul.f32 %v1097, 1.442695
    %v1099 = vpow.pop %v1098
    %v1100 = vadd.f32 %v1099, 1.0
    %v1101 = vrcp.pop %v1100
    %v1102 = vmul.f32 1.0, %v1101
    %v1103 = vtanh.pop %v1096
    %v1104 = vmul.f32 %v1102, %v1008
    %1106 = vrot.lane.b32.xlu0 %v1103, 32
    %v1107 = vpop.permute.xlu0 %1106
    %v1109 = vmul.f32 %v1102, %v1107
    %1111 = vrot.lane.b32.xlu0 %v1109, 32
    %v1112 = vpop.permute.xlu0 %1111
    %v1114 = vadd.f32 %v1104, %v1112
    %v1115 = vtanh.pop %v1114
    %1117 = vrot.lane.b32.xlu0 %v1115, 32
    %v1118 = vpop.permute.xlu0 %1117
    %v1120 = vmul.f32 %v1102, %v1118
    %1122 = vrot.lane.b32.xlu0 %v1120, 64
    %v1123 = vpop.permute.xlu0 %1122
    %1125 = vst.msk [vmem:[#allocation2 + $0xe] sm:$0x3] %vm381, %v1123
    %1126 = vst.msk [vmem:[#allocation2] sm:$0x3] %vm383, %v1123
    %1127 = vst.msk [vmem:[#allocation20] sm:$0x3] %vm381, %v1123
    %1128 = vrot.lane.b32.xlu0 %v1120, 48
    %v1129 = vpop.permute.xlu0 %1128
    %s1131 = scalar_lea.vmem [#allocation20], 2
    %1132 = vst.msk [vmem:[%s1131] sm:$0x3] %vm381, %v1129
    %1134 = vrot.lane.b32.xlu0 %v1114, 96
    %v1135 = vpop.permute.xlu0 %1134
    %1137 = vst.msk [vmem:[#allocation22] sm:$0x3] %vm381, %v1135
    %1138 = vrot.lane.b32.xlu0 %v1114, 80
    %v1139 = vpop.permute.xlu0 %1138
    %s1141 = scalar_lea.vmem [#allocation22], 2
    %1142 = vst.msk [vmem:[%s1141] sm:$0x3] %vm381, %v1139
    %v1143 = vld [vmem:[#allocation2] sm:$0xff]
    %v1144 = vld [vmem:[#allocation2 + $0x8] sm:$0xff]
    %v1145 = vld [vmem:[#allocation11] sm:$0xff]
    %v1146 = vld [vmem:[#allocation11 + $0x8] sm:$0xff]
    %v1147 = vld [vmem:[#allocation11 + $0x10] sm:$0xff]
    %v1148 = vld [vmem:[#allocation11 + $0x18] sm:$0xff]
    %v1149 = vld [vmem:[%s6] sm:$0x1]
    %v1151 = vlaneseq
    %v1152 = vshrl.u32 %v1151, 7
    %v1153 = vsub.s32 0, %v1152
    %v1154 = vrot.slane %v1149, %v1153
    %v1157 = vsel %vm186, %v1143, 0
    %v1160 = vsel %vm186, %v1144, 0
    %1162 = vmatprep.subr.mxu0 0.0
    %1163 = vmatpush1.msra.mxu0 %v1145
    %1164 = vmatprep.subr.mxu0 0.0
    %1165 = vmatpush1.msra.mxu0 %v1146
    %1166 = vmatprep.subr.mxu0 0.0
    %1167 = vmatpush1.msra.mxu0 %v1147
    %1168 = vmatprep.subr.mxu0 0.0
    %1169 = vmatpush1.msra.mxu0 %v1148
    %1170 = vmatprep.subr.mxu0 0.0
    %1171 = vmatpush1.msra.mxu0 0.0
    %1172 = vmatprep.subr.mxu0 0.0
    %1173 = vmatpush1.msra.mxu0 0.0
    %1174 = vmatprep.subr.mxu0 0.0
    %1175 = vmatpush1.msra.mxu0 0.0
    %1176 = vmatprep.subr.mxu0 0.0
    %1177 = vmatpush1.msra.mxu0 0.0
    %1178 = vmatprep.subr.mxu0 0.0
    %1179 = vmatpush1.msra.mxu0 0.0
    %1180 = vmatprep.subr.mxu0 0.0
    %1181 = vmatpush1.msra.mxu0 0.0
    %1182 = vmatprep.subr.mxu0 0.0
    %1183 = vmatpush1.msra.mxu0 0.0
    %1184 = vmatprep.subr.mxu0 0.0
    %1185 = vmatpush1.msra.mxu0 0.0
    %1186 = vmatprep.subr.mxu0 0.0
    %1187 = vmatpush1.msra.mxu0 0.0
    %1188 = vmatprep.subr.mxu0 0.0
    %1189 = vmatpush1.msra.mxu0 0.0
    %1190 = vmatprep.subr.mxu0 0.0
    %1191 = vmatpush1.msra.mxu0 0.0
    %1192 = vmatprep.subr.mxu0 0.0
    %1193 = vmatpush1.msra.mxu0 0.0
    %1194 = vmatprep.subr.mxu0 0.0
    %1195 = vmatpush1.msra.mxu0 0.0
    %1196 = vmatprep.subr.mxu0 0.0
    %1197 = vmatpush1.msra.mxu0 0.0
    %1198 = vmatprep.subr.mxu0 0.0
    %1199 = vmatpush1.msra.mxu0 0.0
    %1200 = vmatprep.subr.mxu0 0.0
    %1201 = vmatpush1.msra.mxu0 0.0
    %1202 = vmatprep.subr.mxu0 0.0
    %1203 = vmatpush1.msra.mxu0 0.0
    %1204 = vmatprep.subr.mxu0 0.0
    %1205 = vmatpush1.msra.mxu0 0.0
    %1206 = vmatprep.subr.mxu0 0.0
    %1207 = vmatpush1.msra.mxu0 0.0
    %1208 = vmatprep.subr.mxu0 0.0
    %1209 = vmatpush1.msra.mxu0 0.0
    %1210 = vmatprep.subr.mxu0 0.0
    %1211 = vmatpush1.msra.mxu0 0.0
    %1212 = vmatprep.subr.mxu0 0.0
    %1213 = vmatpush1.msra.mxu0 0.0
    %1214 = vmatprep.subr.mxu0 0.0
    %1215 = vmatpush1.msra.mxu0 0.0
    %1216 = vmatprep.subr.mxu0 0.0
    %1217 = vmatpush1.msra.mxu0 0.0
    %1218 = vmatprep.subr.mxu0 0.0
    %1219 = vmatpush1.msra.mxu0 0.0
    %1220 = vmatprep.subr.mxu0 0.0
    %1221 = vmatpush1.msra.mxu0 0.0
    %1222 = vmatprep.subr.mxu0 0.0
    %1223 = vmatpush1.msra.mxu0 0.0
    %1224 = vmatprep.subr.mxu0 0.0
    %1225 = vmatpush1.msra.mxu0 0.0
    %1226 = vmatprep.mubr.f32.mxu0 0.0
    %1227 = vmatmul.mubr.f32.gmra.mrb[0].mxu0 %v1157
    %v1228 = vpop.f32.mrb[0].mxu0
    %v1229 = vadd.f32 %v1154, %v1228
    %v1230 = vpop.f32.mrb[0].mxu0
    %1231 = vmatprep.mubr.f32.mxu0 0.0
    %1232 = vmatmul.mubr.f32.gmra.mrb[0].mxu0 %v1160
    %v1233 = vpop.f32.mrb[0].mxu0
    %v1234 = vadd.f32 %v1154, %v1233
    %v1235 = vpop.f32.mrb[0].mxu0
    %1236 = vdwg.mxu0
    %1237 = vst [vmem:[#allocation4] sm:$0xff] %v1229
    %1238 = vst [vmem:[#allocation4 + $0x8] sm:$0xff] %v1234
    %v1239 = vld [vmem:[#allocation13] sm:$0xff]
    %v1240 = vld [vmem:[#allocation13 + $0x8] sm:$0xff]
    %v1241 = vld [vmem:[#allocation13 + $0x10] sm:$0xff]
    %v1242 = vld [vmem:[#allocation13 + $0x18] sm:$0xff]
    %v1243 = vld [vmem:[#allocation4] sm:$0x3]
    %v1244 = vld [vmem:[#allocation4 + $0xe] sm:$0x3]
    %v1245 = vsel %vm277, %v1243, %v1244
    %1246 = vmatprep.subr.mxu0 0.0
    %1247 = vmatpush1.msra.mxu0 %v1239
    %1248 = vmatprep.subr.mxu0 0.0
    %1249 = vmatpush1.msra.mxu0 %v1240
    %1250 = vmatprep.subr.mxu0 0.0
    %1251 = vmatpush1.msra.mxu0 %v1241
    %1252 = vmatprep.subr.mxu0 0.0
    %1253 = vmatpush1.msra.mxu0 %v1242
    %1254 = vmatprep.subr.mxu0 0.0
    %1255 = vmatpush1.msra.mxu0 0.0
    %1256 = vmatprep.subr.mxu0 0.0
    %1257 = vmatpush1.msra.mxu0 0.0
    %1258 = vmatprep.subr.mxu0 0.0
    %1259 = vmatpush1.msra.mxu0 0.0
    %1260 = vmatprep.subr.mxu0 0.0
    %1261 = vmatpush1.msra.mxu0 0.0
    %1262 = vmatprep.subr.mxu0 0.0
    %1263 = vmatpush1.msra.mxu0 0.0
    %1264 = vmatprep.subr.mxu0 0.0
    %1265 = vmatpush1.msra.mxu0 0.0
    %1266 = vmatprep.subr.mxu0 0.0
    %1267 = vmatpush1.msra.mxu0 0.0
    %1268 = vmatprep.subr.mxu0 0.0
    %1269 = vmatpush1.msra.mxu0 0.0
    %1270 = vmatprep.subr.mxu0 0.0
    %1271 = vmatpush1.msra.mxu0 0.0
    %1272 = vmatprep.subr.mxu0 0.0
    %1273 = vmatpush1.msra.mxu0 0.0
    %1274 = vmatprep.subr.mxu0 0.0
    %1275 = vmatpush1.msra.mxu0 0.0
    %1276 = vmatprep.subr.mxu0 0.0
    %1277 = vmatpush1.msra.mxu0 0.0
    %1278 = vmatprep.subr.mxu0 0.0
    %1279 = vmatpush1.msra.mxu0 0.0
    %1280 = vmatprep.subr.mxu0 0.0
    %1281 = vmatpush1.msra.mxu0 0.0
    %1282 = vmatprep.subr.mxu0 0.0
    %1283 = vmatpush1.msra.mxu0 0.0
    %1284 = vmatprep.subr.mxu0 0.0
    %1285 = vmatpush1.msra.mxu0 0.0
    %1286 = vmatprep.subr.mxu0 0.0
    %1287 = vmatpush1.msra.mxu0 0.0
    %1288 = vmatprep.subr.mxu0 0.0
    %1289 = vmatpush1.msra.mxu0 0.0
    %1290 = vmatprep.subr.mxu0 0.0
    %1291 = vmatpush1.msra.mxu0 0.0
    %1292 = vmatprep.subr.mxu0 0.0
    %1293 = vmatpush1.msra.mxu0 0.0
    %1294 = vmatprep.subr.mxu0 0.0
    %1295 = vmatpush1.msra.mxu0 0.0
    %1296 = vmatprep.subr.mxu0 0.0
    %1297 = vmatpush1.msra.mxu0 0.0
    %1298 = vmatprep.subr.mxu0 0.0
    %1299 = vmatpush1.msra.mxu0 0.0
    %1300 = vmatprep.subr.mxu0 0.0
    %1301 = vmatpush1.msra.mxu0 0.0
    %1302 = vmatprep.subr.mxu0 0.0
    %1303 = vmatpush1.msra.mxu0 0.0
    %1304 = vmatprep.subr.mxu0 0.0
    %1305 = vmatpush1.msra.mxu0 0.0
    %1306 = vmatprep.subr.mxu0 0.0
    %1307 = vmatpush1.msra.mxu0 0.0
    %1308 = vmatprep.subr.mxu0 0.0
    %1309 = vmatpush1.msra.mxu0 0.0
    %1310 = vmatprep.mubr.f32.mxu0 0.0
    %1311 = vmatmul.mubr.f32.gmra.mrb[0].mxu0 %v280
    %v1312 = vpop.f32.mrb[0].mxu0
    %v1313 = vadd.f32 0.0, %v1312
    %v1314 = vpop.f32.mrb[0].mxu0
    %1315 = vdwg.mxu0
    %v1316 = vadd.f32 %v1245, %v1313
    %v1317 = vxor.u32 %v1316, 2147483648
    %v1318 = vmul.f32 %v1317, 1.442695
    %v1319 = vpow.pop %v1318
    %v1320 = vadd.f32 %v1319, 1.0
    %v1321 = vrcp.pop %v1320
    %v1322 = vmul.f32 1.0, %v1321
    %v1323 = vtanh.pop %v1316
    %v1324 = vmul.f32 %v1322, 0.0
    %1326 = vrot.lane.b32.xlu0 %v1323, 32
    %v1327 = vpop.permute.xlu0 %1326
    %v1329 = vmul.f32 %v1322, %v1327
    %1331 = vrot.lane.b32.xlu0 %v1329, 32
    %v1332 = vpop.permute.xlu0 %1331
    %v1334 = vadd.f32 %v1324, %v1332
    %v1335 = vtanh.pop %v1334
    %1337 = vrot.lane.b32.xlu0 %v1335, 32
    %v1338 = vpop.permute.xlu0 %1337
    %v1340 = vmul.f32 %v1322, %v1338
    %1342 = vrot.lane.b32.xlu0 %v1340, 64
    %v1343 = vpop.permute.xlu0 %1342
    %1345 = vst.msk [vmem:[#allocation3] sm:$0x3] %vm381, %v1343
    %1346 = vst.msk [vmem:[#allocation3 + $0xe] sm:$0x3] %vm383, %v1343
    %v1347 = vld [vmem:[#allocation4 + $0x2] sm:$0x3]
    %v1348 = vld [vmem:[#allocation4 + $0xc] sm:$0x3]
    %v1349 = vsel %vm277, %v1347, %v1348
    %v1350 = vsel %vm186, %v1343, 0
    %1352 = vmatprep.subr.mxu0 0.0
    %1353 = vmatpush1.msra.mxu0 %v1239
    %1354 = vmatprep.subr.mxu0 0.0
    %1355 = vmatpush1.msra.mxu0 %v1240
    %1356 = vmatprep.subr.mxu0 0.0
    %1357 = vmatpush1.msra.mxu0 %v1241
    %1358 = vmatprep.subr.mxu0 0.0
    %1359 = vmatpush1.msra.mxu0 %v1242
    %1360 = vmatprep.subr.mxu0 0.0
    %1361 = vmatpush1.msra.mxu0 0.0
    %1362 = vmatprep.subr.mxu0 0.0
    %1363 = vmatpush1.msra.mxu0 0.0
    %1364 = vmatprep.subr.mxu0 0.0
    %1365 = vmatpush1.msra.mxu0 0.0
    %1366 = vmatprep.subr.mxu0 0.0
    %1367 = vmatpush1.msra.mxu0 0.0
    %1368 = vmatprep.subr.mxu0 0.0
    %1369 = vmatpush1.msra.mxu0 0.0
    %1370 = vmatprep.subr.mxu0 0.0
    %1371 = vmatpush1.msra.mxu0 0.0
    %1372 = vmatprep.subr.mxu0 0.0
    %1373 = vmatpush1.msra.mxu0 0.0
    %1374 = vmatprep.subr.mxu0 0.0
    %1375 = vmatpush1.msra.mxu0 0.0
    %1376 = vmatprep.subr.mxu0 0.0
    %1377 = vmatpush1.msra.mxu0 0.0
    %1378 = vmatprep.subr.mxu0 0.0
    %1379 = vmatpush1.msra.mxu0 0.0
    %1380 = vmatprep.subr.mxu0 0.0
    %1381 = vmatpush1.msra.mxu0 0.0
    %1382 = vmatprep.subr.mxu0 0.0
    %1383 = vmatpush1.msra.mxu0 0.0
    %1384 = vmatprep.subr.mxu0 0.0
    %1385 = vmatpush1.msra.mxu0 0.0
    %1386 = vmatprep.subr.mxu0 0.0
    %1387 = vmatpush1.msra.mxu0 0.0
    %1388 = vmatprep.subr.mxu0 0.0
    %1389 = vmatpush1.msra.mxu0 0.0
    %1390 = vmatprep.subr.mxu0 0.0
    %1391 = vmatpush1.msra.mxu0 0.0
    %1392 = vmatprep.subr.mxu0 0.0
    %1393 = vmatpush1.msra.mxu0 0.0
    %1394 = vmatprep.subr.mxu0 0.0
    %1395 = vmatpush1.msra.mxu0 0.0
    %1396 = vmatprep.subr.mxu0 0.0
    %1397 = vmatpush1.msra.mxu0 0.0
    %1398 = vmatprep.subr.mxu0 0.0
    %1399 = vmatpush1.msra.mxu0 0.0
    %1400 = vmatprep.subr.mxu0 0.0
    %1401 = vmatpush1.msra.mxu0 0.0
    %1402 = vmatprep.subr.mxu0 0.0
    %1403 = vmatpush1.msra.mxu0 0.0
    %1404 = vmatprep.subr.mxu0 0.0
    %1405 = vmatpush1.msra.mxu0 0.0
    %1406 = vmatprep.subr.mxu0 0.0
    %1407 = vmatpush1.msra.mxu0 0.0
    %1408 = vmatprep.subr.mxu0 0.0
    %1409 = vmatpush1.msra.mxu0 0.0
    %1410 = vmatprep.subr.mxu0 0.0
    %1411 = vmatpush1.msra.mxu0 0.0
    %1412 = vmatprep.subr.mxu0 0.0
    %1413 = vmatpush1.msra.mxu0 0.0
    %1414 = vmatprep.subr.mxu0 0.0
    %1415 = vmatpush1.msra.mxu0 0.0
    %1416 = vmatprep.mubr.f32.mxu0 0.0
    %1417 = vmatmul.mubr.f32.gmra.mrb[0].mxu0 %v1350
    %v1418 = vpop.f32.mrb[0].mxu0
    %v1419 = vadd.f32 0.0, %v1418
    %v1420 = vpop.f32.mrb[0].mxu0
    %1421 = vdwg.mxu0
    %v1422 = vadd.f32 %v1349, %v1419
    %v1423 = vxor.u32 %v1422, 2147483648
    %v1424 = vmul.f32 %v1423, 1.442695
    %v1425 = vpow.pop %v1424
    %v1426 = vadd.f32 %v1425, 1.0
    %v1427 = vrcp.pop %v1426
    %v1428 = vmul.f32 1.0, %v1427
    %v1429 = vtanh.pop %v1422
    %v1430 = vmul.f32 %v1428, %v1334
    %1432 = vrot.lane.b32.xlu0 %v1429, 32
    %v1433 = vpop.permute.xlu0 %1432
    %v1435 = vmul.f32 %v1428, %v1433
    %1437 = vrot.lane.b32.xlu0 %v1435, 32
    %v1438 = vpop.permute.xlu0 %1437
    %v1440 = vadd.f32 %v1430, %v1438
    %v1441 = vtanh.pop %v1440
    %1443 = vrot.lane.b32.xlu0 %v1441, 32
    %v1444 = vpop.permute.xlu0 %1443
    %v1446 = vmul.f32 %v1428, %v1444
    %1448 = vrot.lane.b32.xlu0 %v1446, 64
    %v1449 = vpop.permute.xlu0 %1448
    %1451 = vst.msk [vmem:[#allocation3 + $0x2] sm:$0x3] %vm381, %v1449
    %1452 = vst.msk [vmem:[#allocation3 + $0xc] sm:$0x3] %vm383, %v1449
    %v1453 = vld [vmem:[#allocation4 + $0x4] sm:$0x3]
    %v1454 = vld [vmem:[#allocation4 + $0xa] sm:$0x3]
    %v1455 = vsel %vm277, %v1453, %v1454
    %v1456 = vsel %vm186, %v1449, 0
    %1458 = vmatprep.subr.mxu0 0.0
    %1459 = vmatpush1.msra.mxu0 %v1239
    %1460 = vmatprep.subr.mxu0 0.0
    %1461 = vmatpush1.msra.mxu0 %v1240
    %1462 = vmatprep.subr.mxu0 0.0
    %1463 = vmatpush1.msra.mxu0 %v1241
    %1464 = vmatprep.subr.mxu0 0.0
    %1465 = vmatpush1.msra.mxu0 %v1242
    %1466 = vmatprep.subr.mxu0 0.0
    %1467 = vmatpush1.msra.mxu0 0.0
    %1468 = vmatprep.subr.mxu0 0.0
    %1469 = vmatpush1.msra.mxu0 0.0
    %1470 = vmatprep.subr.mxu0 0.0
    %1471 = vmatpush1.msra.mxu0 0.0
    %1472 = vmatprep.subr.mxu0 0.0
    %1473 = vmatpush1.msra.mxu0 0.0
    %1474 = vmatprep.subr.mxu0 0.0
    %1475 = vmatpush1.msra.mxu0 0.0
    %1476 = vmatprep.subr.mxu0 0.0
    %1477 = vmatpush1.msra.mxu0 0.0
    %1478 = vmatprep.subr.mxu0 0.0
    %1479 = vmatpush1.msra.mxu0 0.0
    %1480 = vmatprep.subr.mxu0 0.0
    %1481 = vmatpush1.msra.mxu0 0.0
    %1482 = vmatprep.subr.mxu0 0.0
    %1483 = vmatpush1.msra.mxu0 0.0
    %1484 = vmatprep.subr.mxu0 0.0
    %1485 = vmatpush1.msra.mxu0 0.0
    %1486 = vmatprep.subr.mxu0 0.0
    %1487 = vmatpush1.msra.mxu0 0.0
    %1488 = vmatprep.subr.mxu0 0.0
    %1489 = vmatpush1.msra.mxu0 0.0
    %1490 = vmatprep.subr.mxu0 0.0
    %1491 = vmatpush1.msra.mxu0 0.0
    %1492 = vmatprep.subr.mxu0 0.0
    %1493 = vmatpush1.msra.mxu0 0.0
    %1494 = vmatprep.subr.mxu0 0.0
    %1495 = vmatpush1.msra.mxu0 0.0
    %1496 = vmatprep.subr.mxu0 0.0
    %1497 = vmatpush1.msra.mxu0 0.0
    %1498 = vmatprep.subr.mxu0 0.0
    %1499 = vmatpush1.msra.mxu0 0.0
    %1500 = vmatprep.subr.mxu0 0.0
    %1501 = vmatpush1.msra.mxu0 0.0
    %1502 = vmatprep.subr.mxu0 0.0
    %1503 = vmatpush1.msra.mxu0 0.0
    %1504 = vmatprep.subr.mxu0 0.0
    %1505 = vmatpush1.msra.mxu0 0.0
    %1506 = vmatprep.subr.mxu0 0.0
    %1507 = vmatpush1.msra.mxu0 0.0
    %1508 = vmatprep.subr.mxu0 0.0
    %1509 = vmatpush1.msra.mxu0 0.0
    %1510 = vmatprep.subr.mxu0 0.0
    %1511 = vmatpush1.msra.mxu0 0.0
    %1512 = vmatprep.subr.mxu0 0.0
    %1513 = vmatpush1.msra.mxu0 0.0
    %1514 = vmatprep.subr.mxu0 0.0
    %1515 = vmatpush1.msra.mxu0 0.0
    %1516 = vmatprep.subr.mxu0 0.0
    %1517 = vmatpush1.msra.mxu0 0.0
    %1518 = vmatprep.subr.mxu0 0.0
    %1519 = vmatpush1.msra.mxu0 0.0
    %1520 = vmatprep.subr.mxu0 0.0
    %1521 = vmatpush1.msra.mxu0 0.0
    %1522 = vmatprep.mubr.f32.mxu0 0.0
    %1523 = vmatmul.mubr.f32.gmra.mrb[0].mxu0 %v1456
    %v1524 = vpop.f32.mrb[0].mxu0
    %v1525 = vadd.f32 0.0, %v1524
    %v1526 = vpop.f32.mrb[0].mxu0
    %1527 = vdwg.mxu0
    %v1528 = vadd.f32 %v1455, %v1525
    %v1529 = vxor.u32 %v1528, 2147483648
    %v1530 = vmul.f32 %v1529, 1.442695
    %v1531 = vpow.pop %v1530
    %v1532 = vadd.f32 %v1531, 1.0
    %v1533 = vrcp.pop %v1532
    %v1534 = vmul.f32 1.0, %v1533
    %v1535 = vtanh.pop %v1528
    %v1536 = vmul.f32 %v1534, %v1440
    %1538 = vrot.lane.b32.xlu0 %v1535, 32
    %v1539 = vpop.permute.xlu0 %1538
    %v1541 = vmul.f32 %v1534, %v1539
    %1543 = vrot.lane.b32.xlu0 %v1541, 32
    %v1544 = vpop.permute.xlu0 %1543
    %v1546 = vadd.f32 %v1536, %v1544
    %v1547 = vtanh.pop %v1546
    %1549 = vrot.lane.b32.xlu0 %v1547, 32
    %v1550 = vpop.permute.xlu0 %1549
    %v1552 = vmul.f32 %v1534, %v1550
    %1554 = vrot.lane.b32.xlu0 %v1552, 64
    %v1555 = vpop.permute.xlu0 %1554
    %1557 = vst.msk [vmem:[#allocation3 + $0x4] sm:$0x3] %vm381, %v1555
    %1558 = vst.msk [vmem:[#allocation3 + $0xa] sm:$0x3] %vm383, %v1555
    %v1559 = vld [vmem:[#allocation4 + $0x6] sm:$0x3]
    %v1560 = vld [vmem:[#allocation4 + $0x8] sm:$0x3]
    %v1561 = vsel %vm277, %v1559, %v1560
    %v1562 = vsel %vm186, %v1555, 0
    %1564 = vmatprep.subr.mxu0 0.0
    %1565 = vmatpush1.msra.mxu0 %v1239
    %1566 = vmatprep.subr.mxu0 0.0
    %1567 = vmatpush1.msra.mxu0 %v1240
    %1568 = vmatprep.subr.mxu0 0.0
    %1569 = vmatpush1.msra.mxu0 %v1241
    %1570 = vmatprep.subr.mxu0 0.0
    %1571 = vmatpush1.msra.mxu0 %v1242
    %1572 = vmatprep.subr.mxu0 0.0
    %1573 = vmatpush1.msra.mxu0 0.0
    %1574 = vmatprep.subr.mxu0 0.0
    %1575 = vmatpush1.msra.mxu0 0.0
    %1576 = vmatprep.subr.mxu0 0.0
    %1577 = vmatpush1.msra.mxu0 0.0
    %1578 = vmatprep.subr.mxu0 0.0
    %1579 = vmatpush1.msra.mxu0 0.0
    %1580 = vmatprep.subr.mxu0 0.0
    %1581 = vmatpush1.msra.mxu0 0.0
    %1582 = vmatprep.subr.mxu0 0.0
    %1583 = vmatpush1.msra.mxu0 0.0
    %1584 = vmatprep.subr.mxu0 0.0
    %1585 = vmatpush1.msra.mxu0 0.0
    %1586 = vmatprep.subr.mxu0 0.0
    %1587 = vmatpush1.msra.mxu0 0.0
    %1588 = vmatprep.subr.mxu0 0.0
    %1589 = vmatpush1.msra.mxu0 0.0
    %1590 = vmatprep.subr.mxu0 0.0
    %1591 = vmatpush1.msra.mxu0 0.0
    %1592 = vmatprep.subr.mxu0 0.0
    %1593 = vmatpush1.msra.mxu0 0.0
    %1594 = vmatprep.subr.mxu0 0.0
    %1595 = vmatpush1.msra.mxu0 0.0
    %1596 = vmatprep.subr.mxu0 0.0
    %1597 = vmatpush1.msra.mxu0 0.0
    %1598 = vmatprep.subr.mxu0 0.0
    %1599 = vmatpush1.msra.mxu0 0.0
    %1600 = vmatprep.subr.mxu0 0.0
    %1601 = vmatpush1.msra.mxu0 0.0
    %1602 = vmatprep.subr.mxu0 0.0
    %1603 = vmatpush1.msra.mxu0 0.0
    %1604 = vmatprep.subr.mxu0 0.0
    %1605 = vmatpush1.msra.mxu0 0.0
    %1606 = vmatprep.subr.mxu0 0.0
    %1607 = vmatpush1.msra.mxu0 0.0
    %1608 = vmatprep.subr.mxu0 0.0
    %1609 = vmatpush1.msra.mxu0 0.0
    %1610 = vmatprep.subr.mxu0 0.0
    %1611 = vmatpush1.msra.mxu0 0.0
    %1612 = vmatprep.subr.mxu0 0.0
    %1613 = vmatpush1.msra.mxu0 0.0
    %1614 = vmatprep.subr.mxu0 0.0
    %1615 = vmatpush1.msra.mxu0 0.0
    %1616 = vmatprep.subr.mxu0 0.0
    %1617 = vmatpush1.msra.mxu0 0.0
    %1618 = vmatprep.subr.mxu0 0.0
    %1619 = vmatpush1.msra.mxu0 0.0
    %1620 = vmatprep.subr.mxu0 0.0
    %1621 = vmatpush1.msra.mxu0 0.0
    %1622 = vmatprep.subr.mxu0 0.0
    %1623 = vmatpush1.msra.mxu0 0.0
    %1624 = vmatprep.subr.mxu0 0.0
    %1625 = vmatpush1.msra.mxu0 0.0
    %1626 = vmatprep.subr.mxu0 0.0
    %1627 = vmatpush1.msra.mxu0 0.0
    %1628 = vmatprep.mubr.f32.mxu0 0.0
    %1629 = vmatmul.mubr.f32.gmra.mrb[0].mxu0 %v1562
    %v1630 = vpop.f32.mrb[0].mxu0
    %v1631 = vadd.f32 0.0, %v1630
    %v1632 = vpop.f32.mrb[0].mxu0
    %1633 = vdwg.mxu0
    %v1634 = vadd.f32 %v1561, %v1631
    %v1635 = vxor.u32 %v1634, 2147483648
    %v1636 = vmul.f32 %v1635, 1.442695
    %v1637 = vpow.pop %v1636
    %v1638 = vadd.f32 %v1637, 1.0
    %v1639 = vrcp.pop %v1638
    %v1640 = vmul.f32 1.0, %v1639
    %v1641 = vtanh.pop %v1634
    %v1642 = vmul.f32 %v1640, %v1546
    %1644 = vrot.lane.b32.xlu0 %v1641, 32
    %v1645 = vpop.permute.xlu0 %1644
    %v1647 = vmul.f32 %v1640, %v1645
    %1649 = vrot.lane.b32.xlu0 %v1647, 32
    %v1650 = vpop.permute.xlu0 %1649
    %v1652 = vadd.f32 %v1642, %v1650
    %v1653 = vtanh.pop %v1652
    %1655 = vrot.lane.b32.xlu0 %v1653, 32
    %v1656 = vpop.permute.xlu0 %1655
    %v1658 = vmul.f32 %v1640, %v1656
    %1660 = vrot.lane.b32.xlu0 %v1658, 64
    %v1661 = vpop.permute.xlu0 %1660
    %1663 = vst.msk [vmem:[#allocation3 + $0x6] sm:$0x3] %vm381, %v1661
    %1664 = vst.msk [vmem:[#allocation3 + $0x8] sm:$0x3] %vm383, %v1661
    %v1665 = vld [vmem:[#allocation4 + $0x8] sm:$0x3]
    %v1666 = vld [vmem:[#allocation4 + $0x6] sm:$0x3]
    %v1667 = vsel %vm277, %v1665, %v1666
    %v1668 = vsel %vm186, %v1661, 0
    %1670 = vmatprep.subr.mxu0 0.0
    %1671 = vmatpush1.msra.mxu0 %v1239
    %1672 = vmatprep.subr.mxu0 0.0
    %1673 = vmatpush1.msra.mxu0 %v1240
    %1674 = vmatprep.subr.mxu0 0.0
    %1675 = vmatpush1.msra.mxu0 %v1241
    %1676 = vmatprep.subr.mxu0 0.0
    %1677 = vmatpush1.msra.mxu0 %v1242
    %1678 = vmatprep.subr.mxu0 0.0
    %1679 = vmatpush1.msra.mxu0 0.0
    %1680 = vmatprep.subr.mxu0 0.0
    %1681 = vmatpush1.msra.mxu0 0.0
    %1682 = vmatprep.subr.mxu0 0.0
    %1683 = vmatpush1.msra.mxu0 0.0
    %1684 = vmatprep.subr.mxu0 0.0
    %1685 = vmatpush1.msra.mxu0 0.0
    %1686 = vmatprep.subr.mxu0 0.0
    %1687 = vmatpush1.msra.mxu0 0.0
    %1688 = vmatprep.subr.mxu0 0.0
    %1689 = vmatpush1.msra.mxu0 0.0
    %1690 = vmatprep.subr.mxu0 0.0
    %1691 = vmatpush1.msra.mxu0 0.0
    %1692 = vmatprep.subr.mxu0 0.0
    %1693 = vmatpush1.msra.mxu0 0.0
    %1694 = vmatprep.subr.mxu0 0.0
    %1695 = vmatpush1.msra.mxu0 0.0
    %1696 = vmatprep.subr.mxu0 0.0
    %1697 = vmatpush1.msra.mxu0 0.0
    %1698 = vmatprep.subr.mxu0 0.0
    %1699 = vmatpush1.msra.mxu0 0.0
    %1700 = vmatprep.subr.mxu0 0.0
    %1701 = vmatpush1.msra.mxu0 0.0
    %1702 = vmatprep.subr.mxu0 0.0
    %1703 = vmatpush1.msra.mxu0 0.0
    %1704 = vmatprep.subr.mxu0 0.0
    %1705 = vmatpush1.msra.mxu0 0.0
    %1706 = vmatprep.subr.mxu0 0.0
    %1707 = vmatpush1.msra.mxu0 0.0
    %1708 = vmatprep.subr.mxu0 0.0
    %1709 = vmatpush1.msra.mxu0 0.0
    %1710 = vmatprep.subr.mxu0 0.0
    %1711 = vmatpush1.msra.mxu0 0.0
    %1712 = vmatprep.subr.mxu0 0.0
    %1713 = vmatpush1.msra.mxu0 0.0
    %1714 = vmatprep.subr.mxu0 0.0
    %1715 = vmatpush1.msra.mxu0 0.0
    %1716 = vmatprep.subr.mxu0 0.0
    %1717 = vmatpush1.msra.mxu0 0.0
    %1718 = vmatprep.subr.mxu0 0.0
    %1719 = vmatpush1.msra.mxu0 0.0
    %1720 = vmatprep.subr.mxu0 0.0
    %1721 = vmatpush1.msra.mxu0 0.0
    %1722 = vmatprep.subr.mxu0 0.0
    %1723 = vmatpush1.msra.mxu0 0.0
    %1724 = vmatprep.subr.mxu0 0.0
    %1725 = vmatpush1.msra.mxu0 0.0
    %1726 = vmatprep.subr.mxu0 0.0
    %1727 = vmatpush1.msra.mxu0 0.0
    %1728 = vmatprep.subr.mxu0 0.0
    %1729 = vmatpush1.msra.mxu0 0.0
    %1730 = vmatprep.subr.mxu0 0.0
    %1731 = vmatpush1.msra.mxu0 0.0
    %1732 = vmatprep.subr.mxu0 0.0
    %1733 = vmatpush1.msra.mxu0 0.0
    %1734 = vmatprep.mubr.f32.mxu0 0.0
    %1735 = vmatmul.mubr.f32.gmra.mrb[0].mxu0 %v1668
    %v1736 = vpop.f32.mrb[0].mxu0
    %v1737 = vadd.f32 0.0, %v1736
    %v1738 = vpop.f32.mrb[0].mxu0
    %1739 = vdwg.mxu0
    %v1740 = vadd.f32 %v1667, %v1737
    %v1741 = vxor.u32 %v1740, 2147483648
    %v1742 = vmul.f32 %v1741, 1.442695
    %v1743 = vpow.pop %v1742
    %v1744 = vadd.f32 %v1743, 1.0
    %v1745 = vrcp.pop %v1744
    %v1746 = vmul.f32 1.0, %v1745
    %v1747 = vtanh.pop %v1740
    %v1748 = vmul.f32 %v1746, %v1652
    %1750 = vrot.lane.b32.xlu0 %v1747, 32
    %v1751 = vpop.permute.xlu0 %1750
    %v1753 = vmul.f32 %v1746, %v1751
    %1755 = vrot.lane.b32.xlu0 %v1753, 32
    %v1756 = vpop.permute.xlu0 %1755
    %v1758 = vadd.f32 %v1748, %v1756
    %v1759 = vtanh.pop %v1758
    %1761 = vrot.lane.b32.xlu0 %v1759, 32
    %v1762 = vpop.permute.xlu0 %1761
    %v1764 = vmul.f32 %v1746, %v1762
    %1766 = vrot.lane.b32.xlu0 %v1764, 64
    %v1767 = vpop.permute.xlu0 %1766
    %1769 = vst.msk [vmem:[#allocation3 + $0x8] sm:$0x3] %vm381, %v1767
    %1770 = vst.msk [vmem:[#allocation3 + $0x6] sm:$0x3] %vm383, %v1767
    %v1771 = vld [vmem:[#allocation4 + $0xa] sm:$0x3]
    %v1772 = vld [vmem:[#allocation4 + $0x4] sm:$0x3]
    %v1773 = vsel %vm277, %v1771, %v1772
    %v1774 = vsel %vm186, %v1767, 0
    %1776 = vmatprep.subr.mxu0 0.0
    %1777 = vmatpush1.msra.mxu0 %v1239
    %1778 = vmatprep.subr.mxu0 0.0
    %1779 = vmatpush1.msra.mxu0 %v1240
    %1780 = vmatprep.subr.mxu0 0.0
    %1781 = vmatpush1.msra.mxu0 %v1241
    %1782 = vmatprep.subr.mxu0 0.0
    %1783 = vmatpush1.msra.mxu0 %v1242
    %1784 = vmatprep.subr.mxu0 0.0
    %1785 = vmatpush1.msra.mxu0 0.0
    %1786 = vmatprep.subr.mxu0 0.0
    %1787 = vmatpush1.msra.mxu0 0.0
    %1788 = vmatprep.subr.mxu0 0.0
    %1789 = vmatpush1.msra.mxu0 0.0
    %1790 = vmatprep.subr.mxu0 0.0
    %1791 = vmatpush1.msra.mxu0 0.0
    %1792 = vmatprep.subr.mxu0 0.0
    %1793 = vmatpush1.msra.mxu0 0.0
    %1794 = vmatprep.subr.mxu0 0.0
    %1795 = vmatpush1.msra.mxu0 0.0
    %1796 = vmatprep.subr.mxu0 0.0
    %1797 = vmatpush1.msra.mxu0 0.0
    %1798 = vmatprep.subr.mxu0 0.0
    %1799 = vmatpush1.msra.mxu0 0.0
    %1800 = vmatprep.subr.mxu0 0.0
    %1801 = vmatpush1.msra.mxu0 0.0
    %1802 = vmatprep.subr.mxu0 0.0
    %1803 = vmatpush1.msra.mxu0 0.0
    %1804 = vmatprep.subr.mxu0 0.0
    %1805 = vmatpush1.msra.mxu0 0.0
    %1806 = vmatprep.subr.mxu0 0.0
    %1807 = vmatpush1.msra.mxu0 0.0
    %1808 = vmatprep.subr.mxu0 0.0
    %1809 = vmatpush1.msra.mxu0 0.0
    %1810 = vmatprep.subr.mxu0 0.0
    %1811 = vmatpush1.msra.mxu0 0.0
    %1812 = vmatprep.subr.mxu0 0.0
    %1813 = vmatpush1.msra.mxu0 0.0
    %1814 = vmatprep.subr.mxu0 0.0
    %1815 = vmatpush1.msra.mxu0 0.0
    %1816 = vmatprep.subr.mxu0 0.0
    %1817 = vmatpush1.msra.mxu0 0.0
    %1818 = vmatprep.subr.mxu0 0.0
    %1819 = vmatpush1.msra.mxu0 0.0
    %1820 = vmatprep.subr.mxu0 0.0
    %1821 = vmatpush1.msra.mxu0 0.0
    %1822 = vmatprep.subr.mxu0 0.0
    %1823 = vmatpush1.msra.mxu0 0.0
    %1824 = vmatprep.subr.mxu0 0.0
    %1825 = vmatpush1.msra.mxu0 0.0
    %1826 = vmatprep.subr.mxu0 0.0
    %1827 = vmatpush1.msra.mxu0 0.0
    %1828 = vmatprep.subr.mxu0 0.0
    %1829 = vmatpush1.msra.mxu0 0.0
    %1830 = vmatprep.subr.mxu0 0.0
    %1831 = vmatpush1.msra.mxu0 0.0
    %1832 = vmatprep.subr.mxu0 0.0
    %1833 = vmatpush1.msra.mxu0 0.0
    %1834 = vmatprep.subr.mxu0 0.0
    %1835 = vmatpush1.msra.mxu0 0.0
    %1836 = vmatprep.subr.mxu0 0.0
    %1837 = vmatpush1.msra.mxu0 0.0
    %1838 = vmatprep.subr.mxu0 0.0
    %1839 = vmatpush1.msra.mxu0 0.0
    %1840 = vmatprep.mubr.f32.mxu0 0.0
    %1841 = vmatmul.mubr.f32.gmra.mrb[0].mxu0 %v1774
    %v1842 = vpop.f32.mrb[0].mxu0
    %v1843 = vadd.f32 0.0, %v1842
    %v1844 = vpop.f32.mrb[0].mxu0
    %1845 = vdwg.mxu0
    %v1846 = vadd.f32 %v1773, %v1843
    %v1847 = vxor.u32 %v1846, 2147483648
    %v1848 = vmul.f32 %v1847, 1.442695
    %v1849 = vpow.pop %v1848
    %v1850 = vadd.f32 %v1849, 1.0
    %v1851 = vrcp.pop %v1850
    %v1852 = vmul.f32 1.0, %v1851
    %v1853 = vtanh.pop %v1846
    %v1854 = vmul.f32 %v1852, %v1758
    %1856 = vrot.lane.b32.xlu0 %v1853, 32
    %v1857 = vpop.permute.xlu0 %1856
    %v1859 = vmul.f32 %v1852, %v1857
    %1861 = vrot.lane.b32.xlu0 %v1859, 32
    %v1862 = vpop.permute.xlu0 %1861
    %v1864 = vadd.f32 %v1854, %v1862
    %v1865 = vtanh.pop %v1864
    %1867 = vrot.lane.b32.xlu0 %v1865, 32
    %v1868 = vpop.permute.xlu0 %1867
    %v1870 = vmul.f32 %v1852, %v1868
    %1872 = vrot.lane.b32.xlu0 %v1870, 64
    %v1873 = vpop.permute.xlu0 %1872
    %1875 = vst.msk [vmem:[#allocation3 + $0xa] sm:$0x3] %vm381, %v1873
    %1876 = vst.msk [vmem:[#allocation3 + $0x4] sm:$0x3] %vm383, %v1873
    %v1877 = vld [vmem:[#allocation4 + $0xc] sm:$0x3]
    %v1878 = vld [vmem:[#allocation4 + $0x2] sm:$0x3]
    %v1879 = vsel %vm277, %v1877, %v1878
    %v1880 = vsel %vm186, %v1873, 0
    %1882 = vmatprep.subr.mxu0 0.0
    %1883 = vmatpush1.msra.mxu0 %v1239
    %1884 = vmatprep.subr.mxu0 0.0
    %1885 = vmatpush1.msra.mxu0 %v1240
    %1886 = vmatprep.subr.mxu0 0.0
    %1887 = vmatpush1.msra.mxu0 %v1241
    %1888 = vmatprep.subr.mxu0 0.0
    %1889 = vmatpush1.msra.mxu0 %v1242
    %1890 = vmatprep.subr.mxu0 0.0
    %1891 = vmatpush1.msra.mxu0 0.0
    %1892 = vmatprep.subr.mxu0 0.0
    %1893 = vmatpush1.msra.mxu0 0.0
    %1894 = vmatprep.subr.mxu0 0.0
    %1895 = vmatpush1.msra.mxu0 0.0
    %1896 = vmatprep.subr.mxu0 0.0
    %1897 = vmatpush1.msra.mxu0 0.0
    %1898 = vmatprep.subr.mxu0 0.0
    %1899 = vmatpush1.msra.mxu0 0.0
    %1900 = vmatprep.subr.mxu0 0.0
    %1901 = vmatpush1.msra.mxu0 0.0
    %1902 = vmatprep.subr.mxu0 0.0
    %1903 = vmatpush1.msra.mxu0 0.0
    %1904 = vmatprep.subr.mxu0 0.0
    %1905 = vmatpush1.msra.mxu0 0.0
    %1906 = vmatprep.subr.mxu0 0.0
    %1907 = vmatpush1.msra.mxu0 0.0
    %1908 = vmatprep.subr.mxu0 0.0
    %1909 = vmatpush1.msra.mxu0 0.0
    %1910 = vmatprep.subr.mxu0 0.0
    %1911 = vmatpush1.msra.mxu0 0.0
    %1912 = vmatprep.subr.mxu0 0.0
    %1913 = vmatpush1.msra.mxu0 0.0
    %1914 = vmatprep.subr.mxu0 0.0
    %1915 = vmatpush1.msra.mxu0 0.0
    %1916 = vmatprep.subr.mxu0 0.0
    %1917 = vmatpush1.msra.mxu0 0.0
    %1918 = vmatprep.subr.mxu0 0.0
    %1919 = vmatpush1.msra.mxu0 0.0
    %1920 = vmatprep.subr.mxu0 0.0
    %1921 = vmatpush1.msra.mxu0 0.0
    %1922 = vmatprep.subr.mxu0 0.0
    %1923 = vmatpush1.msra.mxu0 0.0
    %1924 = vmatprep.subr.mxu0 0.0
    %1925 = vmatpush1.msra.mxu0 0.0
    %1926 = vmatprep.subr.mxu0 0.0
    %1927 = vmatpush1.msra.mxu0 0.0
    %1928 = vmatprep.subr.mxu0 0.0
    %1929 = vmatpush1.msra.mxu0 0.0
    %1930 = vmatprep.subr.mxu0 0.0
    %1931 = vmatpush1.msra.mxu0 0.0
    %1932 = vmatprep.subr.mxu0 0.0
    %1933 = vmatpush1.msra.mxu0 0.0
    %1934 = vmatprep.subr.mxu0 0.0
    %1935 = vmatpush1.msra.mxu0 0.0
    %1936 = vmatprep.subr.mxu0 0.0
    %1937 = vmatpush1.msra.mxu0 0.0
    %1938 = vmatprep.subr.mxu0 0.0
    %1939 = vmatpush1.msra.mxu0 0.0
    %1940 = vmatprep.subr.mxu0 0.0
    %1941 = vmatpush1.msra.mxu0 0.0
    %1942 = vmatprep.subr.mxu0 0.0
    %1943 = vmatpush1.msra.mxu0 0.0
    %1944 = vmatprep.subr.mxu0 0.0
    %1945 = vmatpush1.msra.mxu0 0.0
    %1946 = vmatprep.mubr.f32.mxu0 0.0
    %1947 = vmatmul.mubr.f32.gmra.mrb[0].mxu0 %v1880
    %v1948 = vpop.f32.mrb[0].mxu0
    %v1949 = vadd.f32 0.0, %v1948
    %v1950 = vpop.f32.mrb[0].mxu0
    %1951 = vdwg.mxu0
    %v1952 = vadd.f32 %v1879, %v1949
    %v1953 = vxor.u32 %v1952, 2147483648
    %v1954 = vmul.f32 %v1953, 1.442695
    %v1955 = vpow.pop %v1954
    %v1956 = vadd.f32 %v1955, 1.0
    %v1957 = vrcp.pop %v1956
    %v1958 = vmul.f32 1.0, %v1957
    %v1959 = vtanh.pop %v1952
    %v1960 = vmul.f32 %v1958, %v1864
    %1962 = vrot.lane.b32.xlu0 %v1959, 32
    %v1963 = vpop.permute.xlu0 %1962
    %v1965 = vmul.f32 %v1958, %v1963
    %1967 = vrot.lane.b32.xlu0 %v1965, 32
    %v1968 = vpop.permute.xlu0 %1967
    %v1970 = vadd.f32 %v1960, %v1968
    %v1971 = vtanh.pop %v1970
    %1973 = vrot.lane.b32.xlu0 %v1971, 32
    %v1974 = vpop.permute.xlu0 %1973
    %v1976 = vmul.f32 %v1958, %v1974
    %1978 = vrot.lane.b32.xlu0 %v1976, 64
    %v1979 = vpop.permute.xlu0 %1978
    %1981 = vst.msk [vmem:[#allocation3 + $0xc] sm:$0x3] %vm381, %v1979
    %1982 = vst.msk [vmem:[#allocation3 + $0x2] sm:$0x3] %vm383, %v1979
    %v1983 = vld [vmem:[#allocation4 + $0xe] sm:$0x3]
    %v1984 = vld [vmem:[#allocation4] sm:$0x3]
    %v1985 = vsel %vm277, %v1983, %v1984
    %v1986 = vsel %vm186, %v1979, 0
    %1988 = vmatprep.subr.mxu0 0.0
    %1989 = vmatpush1.msra.mxu0 %v1239
    %1990 = vmatprep.subr.mxu0 0.0
    %1991 = vmatpush1.msra.mxu0 %v1240
    %1992 = vmatprep.subr.mxu0 0.0
    %1993 = vmatpush1.msra.mxu0 %v1241
    %1994 = vmatprep.subr.mxu0 0.0
    %1995 = vmatpush1.msra.mxu0 %v1242
    %1996 = vmatprep.subr.mxu0 0.0
    %1997 = vmatpush1.msra.mxu0 0.0
    %1998 = vmatprep.subr.mxu0 0.0
    %1999 = vmatpush1.msra.mxu0 0.0
    %2000 = vmatprep.subr.mxu0 0.0
    %2001 = vmatpush1.msra.mxu0 0.0
    %2002 = vmatprep.subr.mxu0 0.0
    %2003 = vmatpush1.msra.mxu0 0.0
    %2004 = vmatprep.subr.mxu0 0.0
    %2005 = vmatpush1.msra.mxu0 0.0
    %2006 = vmatprep.subr.mxu0 0.0
    %2007 = vmatpush1.msra.mxu0 0.0
    %2008 = vmatprep.subr.mxu0 0.0
    %2009 = vmatpush1.msra.mxu0 0.0
    %2010 = vmatprep.subr.mxu0 0.0
    %2011 = vmatpush1.msra.mxu0 0.0
    %2012 = vmatprep.subr.mxu0 0.0
    %2013 = vmatpush1.msra.mxu0 0.0
    %2014 = vmatprep.subr.mxu0 0.0
    %2015 = vmatpush1.msra.mxu0 0.0
    %2016 = vmatprep.subr.mxu0 0.0
    %2017 = vmatpush1.msra.mxu0 0.0
    %2018 = vmatprep.subr.mxu0 0.0
    %2019 = vmatpush1.msra.mxu0 0.0
    %2020 = vmatprep.subr.mxu0 0.0
    %2021 = vmatpush1.msra.mxu0 0.0
    %2022 = vmatprep.subr.mxu0 0.0
    %2023 = vmatpush1.msra.mxu0 0.0
    %2024 = vmatprep.subr.mxu0 0.0
    %2025 = vmatpush1.msra.mxu0 0.0
    %2026 = vmatprep.subr.mxu0 0.0
    %2027 = vmatpush1.msra.mxu0 0.0
    %2028 = vmatprep.subr.mxu0 0.0
    %2029 = vmatpush1.msra.mxu0 0.0
    %2030 = vmatprep.subr.mxu0 0.0
    %2031 = vmatpush1.msra.mxu0 0.0
    %2032 = vmatprep.subr.mxu0 0.0
    %2033 = vmatpush1.msra.mxu0 0.0
    %2034 = vmatprep.subr.mxu0 0.0
    %2035 = vmatpush1.msra.mxu0 0.0
    %2036 = vmatprep.subr.mxu0 0.0
    %2037 = vmatpush1.msra.mxu0 0.0
    %2038 = vmatprep.subr.mxu0 0.0
    %2039 = vmatpush1.msra.mxu0 0.0
    %2040 = vmatprep.subr.mxu0 0.0
    %2041 = vmatpush1.msra.mxu0 0.0
    %2042 = vmatprep.subr.mxu0 0.0
    %2043 = vmatpush1.msra.mxu0 0.0
    %2044 = vmatprep.subr.mxu0 0.0
    %2045 = vmatpush1.msra.mxu0 0.0
    %2046 = vmatprep.subr.mxu0 0.0
    %2047 = vmatpush1.msra.mxu0 0.0
    %2048 = vmatprep.subr.mxu0 0.0
    %2049 = vmatpush1.msra.mxu0 0.0
    %2050 = vmatprep.subr.mxu0 0.0
    %2051 = vmatpush1.msra.mxu0 0.0
    %2052 = vmatprep.mubr.f32.mxu0 0.0
    %2053 = vmatmul.mubr.f32.gmra.mrb[0].mxu0 %v1986
    %v2054 = vpop.f32.mrb[0].mxu0
    %v2055 = vadd.f32 0.0, %v2054
    %v2056 = vpop.f32.mrb[0].mxu0
    %2057 = vdwg.mxu0
    %v2058 = vadd.f32 %v1985, %v2055
    %v2059 = vxor.u32 %v2058, 2147483648
    %v2060 = vmul.f32 %v2059, 1.442695
    %v2061 = vpow.pop %v2060
    %v2062 = vadd.f32 %v2061, 1.0
    %v2063 = vrcp.pop %v2062
    %v2064 = vmul.f32 1.0, %v2063
    %v2065 = vtanh.pop %v2058
    %v2066 = vmul.f32 %v2064, %v1970
    %2068 = vrot.lane.b32.xlu0 %v2065, 32
    %v2069 = vpop.permute.xlu0 %2068
    %v2071 = vmul.f32 %v2064, %v2069
    %2073 = vrot.lane.b32.xlu0 %v2071, 32
    %v2074 = vpop.permute.xlu0 %2073
    %v2076 = vadd.f32 %v2066, %v2074
    %v2077 = vtanh.pop %v2076
    %2079 = vrot.lane.b32.xlu0 %v2077, 32
    %v2080 = vpop.permute.xlu0 %2079
    %v2082 = vmul.f32 %v2064, %v2080
    %2084 = vrot.lane.b32.xlu0 %v2082, 64
    %v2085 = vpop.permute.xlu0 %2084
    %2087 = vst.msk [vmem:[#allocation3 + $0xe] sm:$0x3] %vm381, %v2085
    %2088 = vst.msk [vmem:[#allocation3] sm:$0x3] %vm383, %v2085
    %s2089 = scalar_lea.vmem [#allocation20], 4
    %2090 = vst.msk [vmem:[%s2089] sm:$0x3] %vm381, %v2085
    %2091 = vrot.lane.b32.xlu0 %v2082, 48
    %v2092 = vpop.permute.xlu0 %2091
    %s2094 = scalar_lea.vmem [#allocation20], 6
    %2095 = vst.msk [vmem:[%s2094] sm:$0x3] %vm381, %v2092
    %2097 = vrot.lane.b32.xlu0 %v2076, 96
    %v2098 = vpop.permute.xlu0 %2097
    %s2100 = scalar_lea.vmem [#allocation22], 4
    %2101 = vst.msk [vmem:[%s2100] sm:$0x3] %vm381, %v2098
    %2102 = vrot.lane.b32.xlu0 %v2076, 80
    %v2103 = vpop.permute.xlu0 %2102
    %s2105 = scalar_lea.vmem [#allocation22], 6
    %2106 = vst.msk [vmem:[%s2105] sm:$0x3] %vm381, %v2103
    %v2107 = vld [vmem:[#allocation3] sm:$0xff]
    %v2108 = vld [vmem:[#allocation3 + $0x8] sm:$0xff]
    %v2109 = vld [vmem:[#allocation14] sm:$0xff]
    %v2110 = vld [vmem:[#allocation14 + $0x8] sm:$0xff]
    %v2111 = vld [vmem:[#allocation14 + $0x10] sm:$0xff]
    %v2112 = vld [vmem:[#allocation14 + $0x18] sm:$0xff]
    %v2113 = vld [vmem:[%s9] sm:$0x1]
    %v2115 = vlaneseq
    %v2116 = vshrl.u32 %v2115, 7
    %v2117 = vsub.s32 0, %v2116
    %v2118 = vrot.slane %v2113, %v2117
    %v2121 = vsel %vm186, %v2107, 0
    %v2124 = vsel %vm186, %v2108, 0
    %2126 = vmatprep.subr.mxu0 0.0
    %2127 = vmatpush1.msra.mxu0 %v2109
    %2128 = vmatprep.subr.mxu0 0.0
    %2129 = vmatpush1.msra.mxu0 %v2110
    %2130 = vmatprep.subr.mxu0 0.0
    %2131 = vmatpush1.msra.mxu0 %v2111
    %2132 = vmatprep.subr.mxu0 0.0
    %2133 = vmatpush1.msra.mxu0 %v2112
    %2134 = vmatprep.subr.mxu0 0.0
    %2135 = vmatpush1.msra.mxu0 0.0
    %2136 = vmatprep.subr.mxu0 0.0
    %2137 = vmatpush1.msra.mxu0 0.0
    %2138 = vmatprep.subr.mxu0 0.0
    %2139 = vmatpush1.msra.mxu0 0.0
    %2140 = vmatprep.subr.mxu0 0.0
    %2141 = vmatpush1.msra.mxu0 0.0
    %2142 = vmatprep.subr.mxu0 0.0
    %2143 = vmatpush1.msra.mxu0 0.0
    %2144 = vmatprep.subr.mxu0 0.0
    %2145 = vmatpush1.msra.mxu0 0.0
    %2146 = vmatprep.subr.mxu0 0.0
    %2147 = vmatpush1.msra.mxu0 0.0
    %2148 = vmatprep.subr.mxu0 0.0
    %2149 = vmatpush1.msra.mxu0 0.0
    %2150 = vmatprep.subr.mxu0 0.0
    %2151 = vmatpush1.msra.mxu0 0.0
    %2152 = vmatprep.subr.mxu0 0.0
    %2153 = vmatpush1.msra.mxu0 0.0
    %2154 = vmatprep.subr.mxu0 0.0
    %2155 = vmatpush1.msra.mxu0 0.0
    %2156 = vmatprep.subr.mxu0 0.0
    %2157 = vmatpush1.msra.mxu0 0.0
    %2158 = vmatprep.subr.mxu0 0.0
    %2159 = vmatpush1.msra.mxu0 0.0
    %2160 = vmatprep.subr.mxu0 0.0
    %2161 = vmatpush1.msra.mxu0 0.0
    %2162 = vmatprep.subr.mxu0 0.0
    %2163 = vmatpush1.msra.mxu0 0.0
    %2164 = vmatprep.subr.mxu0 0.0
    %2165 = vmatpush1.msra.mxu0 0.0
    %2166 = vmatprep.subr.mxu0 0.0
    %2167 = vmatpush1.msra.mxu0 0.0
    %2168 = vmatprep.subr.mxu0 0.0
    %2169 = vmatpush1.msra.mxu0 0.0
    %2170 = vmatprep.subr.mxu0 0.0
    %2171 = vmatpush1.msra.mxu0 0.0
    %2172 = vmatprep.subr.mxu0 0.0
    %2173 = vmatpush1.msra.mxu0 0.0
    %2174 = vmatprep.subr.mxu0 0.0
    %2175 = vmatpush1.msra.mxu0 0.0
    %2176 = vmatprep.subr.mxu0 0.0
    %2177 = vmatpush1.msra.mxu0 0.0
    %2178 = vmatprep.subr.mxu0 0.0
    %2179 = vmatpush1.msra.mxu0 0.0
    %2180 = vmatprep.subr.mxu0 0.0
    %2181 = vmatpush1.msra.mxu0 0.0
    %2182 = vmatprep.subr.mxu0 0.0
    %2183 = vmatpush1.msra.mxu0 0.0
    %2184 = vmatprep.subr.mxu0 0.0
    %2185 = vmatpush1.msra.mxu0 0.0
    %2186 = vmatprep.subr.mxu0 0.0
    %2187 = vmatpush1.msra.mxu0 0.0
    %2188 = vmatprep.subr.mxu0 0.0
    %2189 = vmatpush1.msra.mxu0 0.0
    %2190 = vmatprep.mubr.f32.mxu0 0.0
    %2191 = vmatmul.mubr.f32.gmra.mrb[0].mxu0 %v2121
    %v2192 = vpop.f32.mrb[0].mxu0
    %v2193 = vadd.f32 %v2118, %v2192
    %v2194 = vpop.f32.mrb[0].mxu0
    %2195 = vmatprep.mubr.f32.mxu0 0.0
    %2196 = vmatmul.mubr.f32.gmra.mrb[0].mxu0 %v2124
    %v2197 = vpop.f32.mrb[0].mxu0
    %v2198 = vadd.f32 %v2118, %v2197
    %v2199 = vpop.f32.mrb[0].mxu0
    %2200 = vdwg.mxu0
    %2201 = vst [vmem:[#allocation4] sm:$0xff] %v2193
    %2202 = vst [vmem:[#allocation4 + $0x8] sm:$0xff] %v2198
    %v2203 = vld [vmem:[#allocation16] sm:$0xff]
    %v2204 = vld [vmem:[#allocation16 + $0x8] sm:$0xff]
    %v2205 = vld [vmem:[#allocation16 + $0x10] sm:$0xff]
    %v2206 = vld [vmem:[#allocation16 + $0x18] sm:$0xff]
    %v2207 = vld [vmem:[#allocation4] sm:$0x3]
    %v2208 = vld [vmem:[#allocation4 + $0xe] sm:$0x3]
    %v2209 = vsel %vm277, %v2207, %v2208
    %2210 = vmatprep.subr.mxu0 0.0
    %2211 = vmatpush1.msra.mxu0 %v2203
    %2212 = vmatprep.subr.mxu0 0.0
    %2213 = vmatpush1.msra.mxu0 %v2204
    %2214 = vmatprep.subr.mxu0 0.0
    %2215 = vmatpush1.msra.mxu0 %v2205
    %2216 = vmatprep.subr.mxu0 0.0
    %2217 = vmatpush1.msra.mxu0 %v2206
    %2218 = vmatprep.subr.mxu0 0.0
    %2219 = vmatpush1.msra.mxu0 0.0
    %2220 = vmatprep.subr.mxu0 0.0
    %2221 = vmatpush1.msra.mxu0 0.0
    %2222 = vmatprep.subr.mxu0 0.0
    %2223 = vmatpush1.msra.mxu0 0.0
    %2224 = vmatprep.subr.mxu0 0.0
    %2225 = vmatpush1.msra.mxu0 0.0
    %2226 = vmatprep.subr.mxu0 0.0
    %2227 = vmatpush1.msra.mxu0 0.0
    %2228 = vmatprep.subr.mxu0 0.0
    %2229 = vmatpush1.msra.mxu0 0.0
    %2230 = vmatprep.subr.mxu0 0.0
    %2231 = vmatpush1.msra.mxu0 0.0
    %2232 = vmatprep.subr.mxu0 0.0
    %2233 = vmatpush1.msra.mxu0 0.0
    %2234 = vmatprep.subr.mxu0 0.0
    %2235 = vmatpush1.msra.mxu0 0.0
    %2236 = vmatprep.subr.mxu0 0.0
    %2237 = vmatpush1.msra.mxu0 0.0
    %2238 = vmatprep.subr.mxu0 0.0
    %2239 = vmatpush1.msra.mxu0 0.0
    %2240 = vmatprep.subr.mxu0 0.0
    %2241 = vmatpush1.msra.mxu0 0.0
    %2242 = vmatprep.subr.mxu0 0.0
    %2243 = vmatpush1.msra.mxu0 0.0
    %2244 = vmatprep.subr.mxu0 0.0
    %2245 = vmatpush1.msra.mxu0 0.0
    %2246 = vmatprep.subr.mxu0 0.0
    %2247 = vmatpush1.msra.mxu0 0.0
    %2248 = vmatprep.subr.mxu0 0.0
    %2249 = vmatpush1.msra.mxu0 0.0
    %2250 = vmatprep.subr.mxu0 0.0
    %2251 = vmatpush1.msra.mxu0 0.0
    %2252 = vmatprep.subr.mxu0 0.0
    %2253 = vmatpush1.msra.mxu0 0.0
    %2254 = vmatprep.subr.mxu0 0.0
    %2255 = vmatpush1.msra.mxu0 0.0
    %2256 = vmatprep.subr.mxu0 0.0
    %2257 = vmatpush1.msra.mxu0 0.0
    %2258 = vmatprep.subr.mxu0 0.0
    %2259 = vmatpush1.msra.mxu0 0.0
    %2260 = vmatprep.subr.mxu0 0.0
    %2261 = vmatpush1.msra.mxu0 0.0
    %2262 = vmatprep.subr.mxu0 0.0
    %2263 = vmatpush1.msra.mxu0 0.0
    %2264 = vmatprep.subr.mxu0 0.0
    %2265 = vmatpush1.msra.mxu0 0.0
    %2266 = vmatprep.subr.mxu0 0.0
    %2267 = vmatpush1.msra.mxu0 0.0
    %2268 = vmatprep.subr.mxu0 0.0
    %2269 = vmatpush1.msra.mxu0 0.0
    %2270 = vmatprep.subr.mxu0 0.0
    %2271 = vmatpush1.msra.mxu0 0.0
    %2272 = vmatprep.subr.mxu0 0.0
    %2273 = vmatpush1.msra.mxu0 0.0
    %2274 = vmatprep.mubr.f32.mxu0 0.0
    %2275 = vmatmul.mubr.f32.gmra.mrb[0].mxu0 %v280
    %v2276 = vpop.f32.mrb[0].mxu0
    %v2277 = vadd.f32 0.0, %v2276
    %v2278 = vpop.f32.mrb[0].mxu0
    %2279 = vdwg.mxu0
    %v2280 = vadd.f32 %v2209, %v2277
    %v2281 = vxor.u32 %v2280, 2147483648
    %v2282 = vmul.f32 %v2281, 1.442695
    %v2283 = vpow.pop %v2282
    %v2284 = vadd.f32 %v2283, 1.0
    %v2285 = vrcp.pop %v2284
    %v2286 = vmul.f32 1.0, %v2285
    %v2287 = vtanh.pop %v2280
    %v2288 = vmul.f32 %v2286, 0.0
    %2290 = vrot.lane.b32.xlu0 %v2287, 32
    %v2291 = vpop.permute.xlu0 %2290
    %v2293 = vmul.f32 %v2286, %v2291
    %2295 = vrot.lane.b32.xlu0 %v2293, 32
    %v2296 = vpop.permute.xlu0 %2295
    %v2298 = vadd.f32 %v2288, %v2296
    %v2299 = vtanh.pop %v2298
    %2301 = vrot.lane.b32.xlu0 %v2299, 32
    %v2302 = vpop.permute.xlu0 %2301
    %v2304 = vmul.f32 %v2286, %v2302
    %2306 = vrot.lane.b32.xlu0 %v2304, 64
    %v2307 = vpop.permute.xlu0 %2306
    %2309 = vst.msk [vmem:[#allocation2] sm:$0x3] %vm381, %v2307
    %2310 = vst.msk [vmem:[#allocation2 + $0xe] sm:$0x3] %vm383, %v2307
    %v2311 = vld [vmem:[#allocation4 + $0x2] sm:$0x3]
    %v2312 = vld [vmem:[#allocation4 + $0xc] sm:$0x3]
    %v2313 = vsel %vm277, %v2311, %v2312
    %v2314 = vsel %vm186, %v2307, 0
    %2316 = vmatprep.subr.mxu0 0.0
    %2317 = vmatpush1.msra.mxu0 %v2203
    %2318 = vmatprep.subr.mxu0 0.0
    %2319 = vmatpush1.msra.mxu0 %v2204
    %2320 = vmatprep.subr.mxu0 0.0
    %2321 = vmatpush1.msra.mxu0 %v2205
    %2322 = vmatprep.subr.mxu0 0.0
    %2323 = vmatpush1.msra.mxu0 %v2206
    %2324 = vmatprep.subr.mxu0 0.0
    %2325 = vmatpush1.msra.mxu0 0.0
    %2326 = vmatprep.subr.mxu0 0.0
    %2327 = vmatpush1.msra.mxu0 0.0
    %2328 = vmatprep.subr.mxu0 0.0
    %2329 = vmatpush1.msra.mxu0 0.0
    %2330 = vmatprep.subr.mxu0 0.0
    %2331 = vmatpush1.msra.mxu0 0.0
    %2332 = vmatprep.subr.mxu0 0.0
    %2333 = vmatpush1.msra.mxu0 0.0
    %2334 = vmatprep.subr.mxu0 0.0
    %2335 = vmatpush1.msra.mxu0 0.0
    %2336 = vmatprep.subr.mxu0 0.0
    %2337 = vmatpush1.msra.mxu0 0.0
    %2338 = vmatprep.subr.mxu0 0.0
    %2339 = vmatpush1.msra.mxu0 0.0
    %2340 = vmatprep.subr.mxu0 0.0
    %2341 = vmatpush1.msra.mxu0 0.0
    %2342 = vmatprep.subr.mxu0 0.0
    %2343 = vmatpush1.msra.mxu0 0.0
    %2344 = vmatprep.subr.mxu0 0.0
    %2345 = vmatpush1.msra.mxu0 0.0
    %2346 = vmatprep.subr.mxu0 0.0
    %2347 = vmatpush1.msra.mxu0 0.0
    %2348 = vmatprep.subr.mxu0 0.0
    %2349 = vmatpush1.msra.mxu0 0.0
    %2350 = vmatprep.subr.mxu0 0.0
    %2351 = vmatpush1.msra.mxu0 0.0
    %2352 = vmatprep.subr.mxu0 0.0
    %2353 = vmatpush1.msra.mxu0 0.0
    %2354 = vmatprep.subr.mxu0 0.0
    %2355 = vmatpush1.msra.mxu0 0.0
    %2356 = vmatprep.subr.mxu0 0.0
    %2357 = vmatpush1.msra.mxu0 0.0
    %2358 = vmatprep.subr.mxu0 0.0
    %2359 = vmatpush1.msra.mxu0 0.0
    %2360 = vmatprep.subr.mxu0 0.0
    %2361 = vmatpush1.msra.mxu0 0.0
    %2362 = vmatprep.subr.mxu0 0.0
    %2363 = vmatpush1.msra.mxu0 0.0
    %2364 = vmatprep.subr.mxu0 0.0
    %2365 = vmatpush1.msra.mxu0 0.0
    %2366 = vmatprep.subr.mxu0 0.0
    %2367 = vmatpush1.msra.mxu0 0.0
    %2368 = vmatprep.subr.mxu0 0.0
    %2369 = vmatpush1.msra.mxu0 0.0
    %2370 = vmatprep.subr.mxu0 0.0
    %2371 = vmatpush1.msra.mxu0 0.0
    %2372 = vmatprep.subr.mxu0 0.0
    %2373 = vmatpush1.msra.mxu0 0.0
    %2374 = vmatprep.subr.mxu0 0.0
    %2375 = vmatpush1.msra.mxu0 0.0
    %2376 = vmatprep.subr.mxu0 0.0
    %2377 = vmatpush1.msra.mxu0 0.0
    %2378 = vmatprep.subr.mxu0 0.0
    %2379 = vmatpush1.msra.mxu0 0.0
    %2380 = vmatprep.mubr.f32.mxu0 0.0
    %2381 = vmatmul.mubr.f32.gmra.mrb[0].mxu0 %v2314
    %v2382 = vpop.f32.mrb[0].mxu0
    %v2383 = vadd.f32 0.0, %v2382
    %v2384 = vpop.f32.mrb[0].mxu0
    %2385 = vdwg.mxu0
    %v2386 = vadd.f32 %v2313, %v2383
    %v2387 = vxor.u32 %v2386, 2147483648
    %v2388 = vmul.f32 %v2387, 1.442695
    %v2389 = vpow.pop %v2388
    %v2390 = vadd.f32 %v2389, 1.0
    %v2391 = vrcp.pop %v2390
    %v2392 = vmul.f32 1.0, %v2391
    %v2393 = vtanh.pop %v2386
    %v2394 = vmul.f32 %v2392, %v2298
    %2396 = vrot.lane.b32.xlu0 %v2393, 32
    %v2397 = vpop.permute.xlu0 %2396
    %v2399 = vmul.f32 %v2392, %v2397
    %2401 = vrot.lane.b32.xlu0 %v2399, 32
    %v2402 = vpop.permute.xlu0 %2401
    %v2404 = vadd.f32 %v2394, %v2402
    %v2405 = vtanh.pop %v2404
    %2407 = vrot.lane.b32.xlu0 %v2405, 32
    %v2408 = vpop.permute.xlu0 %2407
    %v2410 = vmul.f32 %v2392, %v2408
    %2412 = vrot.lane.b32.xlu0 %v2410, 64
    %v2413 = vpop.permute.xlu0 %2412
    %2415 = vst.msk [vmem:[#allocation2 + $0x2] sm:$0x3] %vm381, %v2413
    %2416 = vst.msk [vmem:[#allocation2 + $0xc] sm:$0x3] %vm383, %v2413
    %v2417 = vld [vmem:[#allocation4 + $0x4] sm:$0x3]
    %v2418 = vld [vmem:[#allocation4 + $0xa] sm:$0x3]
    %v2419 = vsel %vm277, %v2417, %v2418
    %v2420 = vsel %vm186, %v2413, 0
    %2422 = vmatprep.subr.mxu0 0.0
    %2423 = vmatpush1.msra.mxu0 %v2203
    %2424 = vmatprep.subr.mxu0 0.0
    %2425 = vmatpush1.msra.mxu0 %v2204
    %2426 = vmatprep.subr.mxu0 0.0
    %2427 = vmatpush1.msra.mxu0 %v2205
    %2428 = vmatprep.subr.mxu0 0.0
    %2429 = vmatpush1.msra.mxu0 %v2206
    %2430 = vmatprep.subr.mxu0 0.0
    %2431 = vmatpush1.msra.mxu0 0.0
    %2432 = vmatprep.subr.mxu0 0.0
    %2433 = vmatpush1.msra.mxu0 0.0
    %2434 = vmatprep.subr.mxu0 0.0
    %2435 = vmatpush1.msra.mxu0 0.0
    %2436 = vmatprep.subr.mxu0 0.0
    %2437 = vmatpush1.msra.mxu0 0.0
    %2438 = vmatprep.subr.mxu0 0.0
    %2439 = vmatpush1.msra.mxu0 0.0
    %2440 = vmatprep.subr.mxu0 0.0
    %2441 = vmatpush1.msra.mxu0 0.0
    %2442 = vmatprep.subr.mxu0 0.0
    %2443 = vmatpush1.msra.mxu0 0.0
    %2444 = vmatprep.subr.mxu0 0.0
    %2445 = vmatpush1.msra.mxu0 0.0
    %2446 = vmatprep.subr.mxu0 0.0
    %2447 = vmatpush1.msra.mxu0 0.0
    %2448 = vmatprep.subr.mxu0 0.0
    %2449 = vmatpush1.msra.mxu0 0.0
    %2450 = vmatprep.subr.mxu0 0.0
    %2451 = vmatpush1.msra.mxu0 0.0
    %2452 = vmatprep.subr.mxu0 0.0
    %2453 = vmatpush1.msra.mxu0 0.0
    %2454 = vmatprep.subr.mxu0 0.0
    %2455 = vmatpush1.msra.mxu0 0.0
    %2456 = vmatprep.subr.mxu0 0.0
    %2457 = vmatpush1.msra.mxu0 0.0
    %2458 = vmatprep.subr.mxu0 0.0
    %2459 = vmatpush1.msra.mxu0 0.0
    %2460 = vmatprep.subr.mxu0 0.0
    %2461 = vmatpush1.msra.mxu0 0.0
    %2462 = vmatprep.subr.mxu0 0.0
    %2463 = vmatpush1.msra.mxu0 0.0
    %2464 = vmatprep.subr.mxu0 0.0
    %2465 = vmatpush1.msra.mxu0 0.0
    %2466 = vmatprep.subr.mxu0 0.0
    %2467 = vmatpush1.msra.mxu0 0.0
    %2468 = vmatprep.subr.mxu0 0.0
    %2469 = vmatpush1.msra.mxu0 0.0
    %2470 = vmatprep.subr.mxu0 0.0
    %2471 = vmatpush1.msra.mxu0 0.0
    %2472 = vmatprep.subr.mxu0 0.0
    %2473 = vmatpush1.msra.mxu0 0.0
    %2474 = vmatprep.subr.mxu0 0.0
    %2475 = vmatpush1.msra.mxu0 0.0
    %2476 = vmatprep.subr.mxu0 0.0
    %2477 = vmatpush1.msra.mxu0 0.0
    %2478 = vmatprep.subr.mxu0 0.0
    %2479 = vmatpush1.msra.mxu0 0.0
    %2480 = vmatprep.subr.mxu0 0.0
    %2481 = vmatpush1.msra.mxu0 0.0
    %2482 = vmatprep.subr.mxu0 0.0
    %2483 = vmatpush1.msra.mxu0 0.0
    %2484 = vmatprep.subr.mxu0 0.0
    %2485 = vmatpush1.msra.mxu0 0.0
    %2486 = vmatprep.mubr.f32.mxu0 0.0
    %2487 = vmatmul.mubr.f32.gmra.mrb[0].mxu0 %v2420
    %v2488 = vpop.f32.mrb[0].mxu0
    %v2489 = vadd.f32 0.0, %v2488
    %v2490 = vpop.f32.mrb[0].mxu0
    %2491 = vdwg.mxu0
    %v2492 = vadd.f32 %v2419, %v2489
    %v2493 = vxor.u32 %v2492, 2147483648
    %v2494 = vmul.f32 %v2493, 1.442695
    %v2495 = vpow.pop %v2494
    %v2496 = vadd.f32 %v2495, 1.0
    %v2497 = vrcp.pop %v2496
    %v2498 = vmul.f32 1.0, %v2497
    %v2499 = vtanh.pop %v2492
    %v2500 = vmul.f32 %v2498, %v2404
    %2502 = vrot.lane.b32.xlu0 %v2499, 32
    %v2503 = vpop.permute.xlu0 %2502
    %v2505 = vmul.f32 %v2498, %v2503
    %2507 = vrot.lane.b32.xlu0 %v2505, 32
    %v2508 = vpop.permute.xlu0 %2507
    %v2510 = vadd.f32 %v2500, %v2508
    %v2511 = vtanh.pop %v2510
    %2513 = vrot.lane.b32.xlu0 %v2511, 32
    %v2514 = vpop.permute.xlu0 %2513
    %v2516 = vmul.f32 %v2498, %v2514
    %2518 = vrot.lane.b32.xlu0 %v2516, 64
    %v2519 = vpop.permute.xlu0 %2518
    %2521 = vst.msk [vmem:[#allocation2 + $0x4] sm:$0x3] %vm381, %v2519
    %2522 = vst.msk [vmem:[#allocation2 + $0xa] sm:$0x3] %vm383, %v2519
    %v2523 = vld [vmem:[#allocation4 + $0x6] sm:$0x3]
    %v2524 = vld [vmem:[#allocation4 + $0x8] sm:$0x3]
    %v2525 = vsel %vm277, %v2523, %v2524
    %v2526 = vsel %vm186, %v2519, 0
    %2528 = vmatprep.subr.mxu0 0.0
    %2529 = vmatpush1.msra.mxu0 %v2203
    %2530 = vmatprep.subr.mxu0 0.0
    %2531 = vmatpush1.msra.mxu0 %v2204
    %2532 = vmatprep.subr.mxu0 0.0
    %2533 = vmatpush1.msra.mxu0 %v2205
    %2534 = vmatprep.subr.mxu0 0.0
    %2535 = vmatpush1.msra.mxu0 %v2206
    %2536 = vmatprep.subr.mxu0 0.0
    %2537 = vmatpush1.msra.mxu0 0.0
    %2538 = vmatprep.subr.mxu0 0.0
    %2539 = vmatpush1.msra.mxu0 0.0
    %2540 = vmatprep.subr.mxu0 0.0
    %2541 = vmatpush1.msra.mxu0 0.0
    %2542 = vmatprep.subr.mxu0 0.0
    %2543 = vmatpush1.msra.mxu0 0.0
    %2544 = vmatprep.subr.mxu0 0.0
    %2545 = vmatpush1.msra.mxu0 0.0
    %2546 = vmatprep.subr.mxu0 0.0
    %2547 = vmatpush1.msra.mxu0 0.0
    %2548 = vmatprep.subr.mxu0 0.0
    %2549 = vmatpush1.msra.mxu0 0.0
    %2550 = vmatprep.subr.mxu0 0.0
    %2551 = vmatpush1.msra.mxu0 0.0
    %2552 = vmatprep.subr.mxu0 0.0
    %2553 = vmatpush1.msra.mxu0 0.0
    %2554 = vmatprep.subr.mxu0 0.0
    %2555 = vmatpush1.msra.mxu0 0.0
    %2556 = vmatprep.subr.mxu0 0.0
    %2557 = vmatpush1.msra.mxu0 0.0
    %2558 = vmatprep.subr.mxu0 0.0
    %2559 = vmatpush1.msra.mxu0 0.0
    %2560 = vmatprep.subr.mxu0 0.0
    %2561 = vmatpush1.msra.mxu0 0.0
    %2562 = vmatprep.subr.mxu0 0.0
    %2563 = vmatpush1.msra.mxu0 0.0
    %2564 = vmatprep.subr.mxu0 0.0
    %2565 = vmatpush1.msra.mxu0 0.0
    %2566 = vmatprep.subr.mxu0 0.0
    %2567 = vmatpush1.msra.mxu0 0.0
    %2568 = vmatprep.subr.mxu0 0.0
    %2569 = vmatpush1.msra.mxu0 0.0
    %2570 = vmatprep.subr.mxu0 0.0
    %2571 = vmatpush1.msra.mxu0 0.0
    %2572 = vmatprep.subr.mxu0 0.0
    %2573 = vmatpush1.msra.mxu0 0.0
    %2574 = vmatprep.subr.mxu0 0.0
    %2575 = vmatpush1.msra.mxu0 0.0
    %2576 = vmatprep.subr.mxu0 0.0
    %2577 = vmatpush1.msra.mxu0 0.0
    %2578 = vmatprep.subr.mxu0 0.0
    %2579 = vmatpush1.msra.mxu0 0.0
    %2580 = vmatprep.subr.mxu0 0.0
    %2581 = vmatpush1.msra.mxu0 0.0
    %2582 = vmatprep.subr.mxu0 0.0
    %2583 = vmatpush1.msra.mxu0 0.0
    %2584 = vmatprep.subr.mxu0 0.0
    %2585 = vmatpush1.msra.mxu0 0.0
    %2586 = vmatprep.subr.mxu0 0.0
    %2587 = vmatpush1.msra.mxu0 0.0
    %2588 = vmatprep.subr.mxu0 0.0
    %2589 = vmatpush1.msra.mxu0 0.0
    %2590 = vmatprep.subr.mxu0 0.0
    %2591 = vmatpush1.msra.mxu0 0.0
    %2592 = vmatprep.mubr.f32.mxu0 0.0
    %2593 = vmatmul.mubr.f32.gmra.mrb[0].mxu0 %v2526
    %v2594 = vpop.f32.mrb[0].mxu0
    %v2595 = vadd.f32 0.0, %v2594
    %v2596 = vpop.f32.mrb[0].mxu0
    %2597 = vdwg.mxu0
    %v2598 = vadd.f32 %v2525, %v2595
    %v2599 = vxor.u32 %v2598, 2147483648
    %v2600 = vmul.f32 %v2599, 1.442695
    %v2601 = vpow.pop %v2600
    %v2602 = vadd.f32 %v2601, 1.0
    %v2603 = vrcp.pop %v2602
    %v2604 = vmul.f32 1.0, %v2603
    %v2605 = vtanh.pop %v2598
    %v2606 = vmul.f32 %v2604, %v2510
    %2608 = vrot.lane.b32.xlu0 %v2605, 32
    %v2609 = vpop.permute.xlu0 %2608
    %v2611 = vmul.f32 %v2604, %v2609
    %2613 = vrot.lane.b32.xlu0 %v2611, 32
    %v2614 = vpop.permute.xlu0 %2613
    %v2616 = vadd.f32 %v2606, %v2614
    %v2617 = vtanh.pop %v2616
    %2619 = vrot.lane.b32.xlu0 %v2617, 32
    %v2620 = vpop.permute.xlu0 %2619
    %v2622 = vmul.f32 %v2604, %v2620
    %2624 = vrot.lane.b32.xlu0 %v2622, 64
    %v2625 = vpop.permute.xlu0 %2624
    %2627 = vst.msk [vmem:[#allocation2 + $0x6] sm:$0x3] %vm381, %v2625
    %2628 = vst.msk [vmem:[#allocation2 + $0x8] sm:$0x3] %vm383, %v2625
    %v2629 = vld [vmem:[#allocation4 + $0x8] sm:$0x3]
    %v2630 = vld [vmem:[#allocation4 + $0x6] sm:$0x3]
    %v2631 = vsel %vm277, %v2629, %v2630
    %v2632 = vsel %vm186, %v2625, 0
    %2634 = vmatprep.subr.mxu0 0.0
    %2635 = vmatpush1.msra.mxu0 %v2203
    %2636 = vmatprep.subr.mxu0 0.0
    %2637 = vmatpush1.msra.mxu0 %v2204
    %2638 = vmatprep.subr.mxu0 0.0
    %2639 = vmatpush1.msra.mxu0 %v2205
    %2640 = vmatprep.subr.mxu0 0.0
    %2641 = vmatpush1.msra.mxu0 %v2206
    %2642 = vmatprep.subr.mxu0 0.0
    %2643 = vmatpush1.msra.mxu0 0.0
    %2644 = vmatprep.subr.mxu0 0.0
    %2645 = vmatpush1.msra.mxu0 0.0
    %2646 = vmatprep.subr.mxu0 0.0
    %2647 = vmatpush1.msra.mxu0 0.0
    %2648 = vmatprep.subr.mxu0 0.0
    %2649 = vmatpush1.msra.mxu0 0.0
    %2650 = vmatprep.subr.mxu0 0.0
    %2651 = vmatpush1.msra.mxu0 0.0
    %2652 = vmatprep.subr.mxu0 0.0
    %2653 = vmatpush1.msra.mxu0 0.0
    %2654 = vmatprep.subr.mxu0 0.0
    %2655 = vmatpush1.msra.mxu0 0.0
    %2656 = vmatprep.subr.mxu0 0.0
    %2657 = vmatpush1.msra.mxu0 0.0
    %2658 = vmatprep.subr.mxu0 0.0
    %2659 = vmatpush1.msra.mxu0 0.0
    %2660 = vmatprep.subr.mxu0 0.0
    %2661 = vmatpush1.msra.mxu0 0.0
    %2662 = vmatprep.subr.mxu0 0.0
    %2663 = vmatpush1.msra.mxu0 0.0
    %2664 = vmatprep.subr.mxu0 0.0
    %2665 = vmatpush1.msra.mxu0 0.0
    %2666 = vmatprep.subr.mxu0 0.0
    %2667 = vmatpush1.msra.mxu0 0.0
    %2668 = vmatprep.subr.mxu0 0.0
    %2669 = vmatpush1.msra.mxu0 0.0
    %2670 = vmatprep.subr.mxu0 0.0
    %2671 = vmatpush1.msra.mxu0 0.0
    %2672 = vmatprep.subr.mxu0 0.0
    %2673 = vmatpush1.msra.mxu0 0.0
    %2674 = vmatprep.subr.mxu0 0.0
    %2675 = vmatpush1.msra.mxu0 0.0
    %2676 = vmatprep.subr.mxu0 0.0
    %2677 = vmatpush1.msra.mxu0 0.0
    %2678 = vmatprep.subr.mxu0 0.0
    %2679 = vmatpush1.msra.mxu0 0.0
    %2680 = vmatprep.subr.mxu0 0.0
    %2681 = vmatpush1.msra.mxu0 0.0
    %2682 = vmatprep.subr.mxu0 0.0
    %2683 = vmatpush1.msra.mxu0 0.0
    %2684 = vmatprep.subr.mxu0 0.0
    %2685 = vmatpush1.msra.mxu0 0.0
    %2686 = vmatprep.subr.mxu0 0.0
    %2687 = vmatpush1.msra.mxu0 0.0
    %2688 = vmatprep.subr.mxu0 0.0
    %2689 = vmatpush1.msra.mxu0 0.0
    %2690 = vmatprep.subr.mxu0 0.0
    %2691 = vmatpush1.msra.mxu0 0.0
    %2692 = vmatprep.subr.mxu0 0.0
    %2693 = vmatpush1.msra.mxu0 0.0
    %2694 = vmatprep.subr.mxu0 0.0
    %2695 = vmatpush1.msra.mxu0 0.0
    %2696 = vmatprep.subr.mxu0 0.0
    %2697 = vmatpush1.msra.mxu0 0.0
    %2698 = vmatprep.mubr.f32.mxu0 0.0
    %2699 = vmatmul.mubr.f32.gmra.mrb[0].mxu0 %v2632
    %v2700 = vpop.f32.mrb[0].mxu0
    %v2701 = vadd.f32 0.0, %v2700
    %v2702 = vpop.f32.mrb[0].mxu0
    %2703 = vdwg.mxu0
    %v2704 = vadd.f32 %v2631, %v2701
    %v2705 = vxor.u32 %v2704, 2147483648
    %v2706 = vmul.f32 %v2705, 1.442695
    %v2707 = vpow.pop %v2706
    %v2708 = vadd.f32 %v2707, 1.0
    %v2709 = vrcp.pop %v2708
    %v2710 = vmul.f32 1.0, %v2709
    %v2711 = vtanh.pop %v2704
    %v2712 = vmul.f32 %v2710, %v2616
    %2714 = vrot.lane.b32.xlu0 %v2711, 32
    %v2715 = vpop.permute.xlu0 %2714
    %v2717 = vmul.f32 %v2710, %v2715
    %2719 = vrot.lane.b32.xlu0 %v2717, 32
    %v2720 = vpop.permute.xlu0 %2719
    %v2722 = vadd.f32 %v2712, %v2720
    %v2723 = vtanh.pop %v2722
    %2725 = vrot.lane.b32.xlu0 %v2723, 32
    %v2726 = vpop.permute.xlu0 %2725
    %v2728 = vmul.f32 %v2710, %v2726
    %2730 = vrot.lane.b32.xlu0 %v2728, 64
    %v2731 = vpop.permute.xlu0 %2730
    %2733 = vst.msk [vmem:[#allocation2 + $0x8] sm:$0x3] %vm381, %v2731
    %2734 = vst.msk [vmem:[#allocation2 + $0x6] sm:$0x3] %vm383, %v2731
    %v2735 = vld [vmem:[#allocation4 + $0xa] sm:$0x3]
    %v2736 = vld [vmem:[#allocation4 + $0x4] sm:$0x3]
    %v2737 = vsel %vm277, %v2735, %v2736
    %v2738 = vsel %vm186, %v2731, 0
    %2740 = vmatprep.subr.mxu0 0.0
    %2741 = vmatpush1.msra.mxu0 %v2203
    %2742 = vmatprep.subr.mxu0 0.0
    %2743 = vmatpush1.msra.mxu0 %v2204
    %2744 = vmatprep.subr.mxu0 0.0
    %2745 = vmatpush1.msra.mxu0 %v2205
    %2746 = vmatprep.subr.mxu0 0.0
    %2747 = vmatpush1.msra.mxu0 %v2206
    %2748 = vmatprep.subr.mxu0 0.0
    %2749 = vmatpush1.msra.mxu0 0.0
    %2750 = vmatprep.subr.mxu0 0.0
    %2751 = vmatpush1.msra.mxu0 0.0
    %2752 = vmatprep.subr.mxu0 0.0
    %2753 = vmatpush1.msra.mxu0 0.0
    %2754 = vmatprep.subr.mxu0 0.0
    %2755 = vmatpush1.msra.mxu0 0.0
    %2756 = vmatprep.subr.mxu0 0.0
    %2757 = vmatpush1.msra.mxu0 0.0
    %2758 = vmatprep.subr.mxu0 0.0
    %2759 = vmatpush1.msra.mxu0 0.0
    %2760 = vmatprep.subr.mxu0 0.0
    %2761 = vmatpush1.msra.mxu0 0.0
    %2762 = vmatprep.subr.mxu0 0.0
    %2763 = vmatpush1.msra.mxu0 0.0
    %2764 = vmatprep.subr.mxu0 0.0
    %2765 = vmatpush1.msra.mxu0 0.0
    %2766 = vmatprep.subr.mxu0 0.0
    %2767 = vmatpush1.msra.mxu0 0.0
    %2768 = vmatprep.subr.mxu0 0.0
    %2769 = vmatpush1.msra.mxu0 0.0
    %2770 = vmatprep.subr.mxu0 0.0
    %2771 = vmatpush1.msra.mxu0 0.0
    %2772 = vmatprep.subr.mxu0 0.0
    %2773 = vmatpush1.msra.mxu0 0.0
    %2774 = vmatprep.subr.mxu0 0.0
    %2775 = vmatpush1.msra.mxu0 0.0
    %2776 = vmatprep.subr.mxu0 0.0
    %2777 = vmatpush1.msra.mxu0 0.0
    %2778 = vmatprep.subr.mxu0 0.0
    %2779 = vmatpush1.msra.mxu0 0.0
    %2780 = vmatprep.subr.mxu0 0.0
    %2781 = vmatpush1.msra.mxu0 0.0
    %2782 = vmatprep.subr.mxu0 0.0
    %2783 = vmatpush1.msra.mxu0 0.0
    %2784 = vmatprep.subr.mxu0 0.0
    %2785 = vmatpush1.msra.mxu0 0.0
    %2786 = vmatprep.subr.mxu0 0.0
    %2787 = vmatpush1.msra.mxu0 0.0
    %2788 = vmatprep.subr.mxu0 0.0
    %2789 = vmatpush1.msra.mxu0 0.0
    %2790 = vmatprep.subr.mxu0 0.0
    %2791 = vmatpush1.msra.mxu0 0.0
    %2792 = vmatprep.subr.mxu0 0.0
    %2793 = vmatpush1.msra.mxu0 0.0
    %2794 = vmatprep.subr.mxu0 0.0
    %2795 = vmatpush1.msra.mxu0 0.0
    %2796 = vmatprep.subr.mxu0 0.0
    %2797 = vmatpush1.msra.mxu0 0.0
    %2798 = vmatprep.subr.mxu0 0.0
    %2799 = vmatpush1.msra.mxu0 0.0
    %2800 = vmatprep.subr.mxu0 0.0
    %2801 = vmatpush1.msra.mxu0 0.0
    %2802 = vmatprep.subr.mxu0 0.0
    %2803 = vmatpush1.msra.mxu0 0.0
    %2804 = vmatprep.mubr.f32.mxu0 0.0
    %2805 = vmatmul.mubr.f32.gmra.mrb[0].mxu0 %v2738
    %v2806 = vpop.f32.mrb[0].mxu0
    %v2807 = vadd.f32 0.0, %v2806
    %v2808 = vpop.f32.mrb[0].mxu0
    %2809 = vdwg.mxu0
    %v2810 = vadd.f32 %v2737, %v2807
    %v2811 = vxor.u32 %v2810, 2147483648
    %v2812 = vmul.f32 %v2811, 1.442695
    %v2813 = vpow.pop %v2812
    %v2814 = vadd.f32 %v2813, 1.0
    %v2815 = vrcp.pop %v2814
    %v2816 = vmul.f32 1.0, %v2815
    %v2817 = vtanh.pop %v2810
    %v2818 = vmul.f32 %v2816, %v2722
    %2820 = vrot.lane.b32.xlu0 %v2817, 32
    %v2821 = vpop.permute.xlu0 %2820
    %v2823 = vmul.f32 %v2816, %v2821
    %2825 = vrot.lane.b32.xlu0 %v2823, 32
    %v2826 = vpop.permute.xlu0 %2825
    %v2828 = vadd.f32 %v2818, %v2826
    %v2829 = vtanh.pop %v2828
    %2831 = vrot.lane.b32.xlu0 %v2829, 32
    %v2832 = vpop.permute.xlu0 %2831
    %v2834 = vmul.f32 %v2816, %v2832
    %2836 = vrot.lane.b32.xlu0 %v2834, 64
    %v2837 = vpop.permute.xlu0 %2836
    %2839 = vst.msk [vmem:[#allocation2 + $0xa] sm:$0x3] %vm381, %v2837
    %2840 = vst.msk [vmem:[#allocation2 + $0x4] sm:$0x3] %vm383, %v2837
    %v2841 = vld [vmem:[#allocation4 + $0xc] sm:$0x3]
    %v2842 = vld [vmem:[#allocation4 + $0x2] sm:$0x3]
    %v2843 = vsel %vm277, %v2841, %v2842
    %v2844 = vsel %vm186, %v2837, 0
    %2846 = vmatprep.subr.mxu0 0.0
    %2847 = vmatpush1.msra.mxu0 %v2203
    %2848 = vmatprep.subr.mxu0 0.0
    %2849 = vmatpush1.msra.mxu0 %v2204
    %2850 = vmatprep.subr.mxu0 0.0
    %2851 = vmatpush1.msra.mxu0 %v2205
    %2852 = vmatprep.subr.mxu0 0.0
    %2853 = vmatpush1.msra.mxu0 %v2206
    %2854 = vmatprep.subr.mxu0 0.0
    %2855 = vmatpush1.msra.mxu0 0.0
    %2856 = vmatprep.subr.mxu0 0.0
    %2857 = vmatpush1.msra.mxu0 0.0
    %2858 = vmatprep.subr.mxu0 0.0
    %2859 = vmatpush1.msra.mxu0 0.0
    %2860 = vmatprep.subr.mxu0 0.0
    %2861 = vmatpush1.msra.mxu0 0.0
    %2862 = vmatprep.subr.mxu0 0.0
    %2863 = vmatpush1.msra.mxu0 0.0
    %2864 = vmatprep.subr.mxu0 0.0
    %2865 = vmatpush1.msra.mxu0 0.0
    %2866 = vmatprep.subr.mxu0 0.0
    %2867 = vmatpush1.msra.mxu0 0.0
    %2868 = vmatprep.subr.mxu0 0.0
    %2869 = vmatpush1.msra.mxu0 0.0
    %2870 = vmatprep.subr.mxu0 0.0
    %2871 = vmatpush1.msra.mxu0 0.0
    %2872 = vmatprep.subr.mxu0 0.0
    %2873 = vmatpush1.msra.mxu0 0.0
    %2874 = vmatprep.subr.mxu0 0.0
    %2875 = vmatpush1.msra.mxu0 0.0
    %2876 = vmatprep.subr.mxu0 0.0
    %2877 = vmatpush1.msra.mxu0 0.0
    %2878 = vmatprep.subr.mxu0 0.0
    %2879 = vmatpush1.msra.mxu0 0.0
    %2880 = vmatprep.subr.mxu0 0.0
    %2881 = vmatpush1.msra.mxu0 0.0
    %2882 = vmatprep.subr.mxu0 0.0
    %2883 = vmatpush1.msra.mxu0 0.0
    %2884 = vmatprep.subr.mxu0 0.0
    %2885 = vmatpush1.msra.mxu0 0.0
    %2886 = vmatprep.subr.mxu0 0.0
    %2887 = vmatpush1.msra.mxu0 0.0
    %2888 = vmatprep.subr.mxu0 0.0
    %2889 = vmatpush1.msra.mxu0 0.0
    %2890 = vmatprep.subr.mxu0 0.0
    %2891 = vmatpush1.msra.mxu0 0.0
    %2892 = vmatprep.subr.mxu0 0.0
    %2893 = vmatpush1.msra.mxu0 0.0
    %2894 = vmatprep.subr.mxu0 0.0
    %2895 = vmatpush1.msra.mxu0 0.0
    %2896 = vmatprep.subr.mxu0 0.0
    %2897 = vmatpush1.msra.mxu0 0.0
    %2898 = vmatprep.subr.mxu0 0.0
    %2899 = vmatpush1.msra.mxu0 0.0
    %2900 = vmatprep.subr.mxu0 0.0
    %2901 = vmatpush1.msra.mxu0 0.0
    %2902 = vmatprep.subr.mxu0 0.0
    %2903 = vmatpush1.msra.mxu0 0.0
    %2904 = vmatprep.subr.mxu0 0.0
    %2905 = vmatpush1.msra.mxu0 0.0
    %2906 = vmatprep.subr.mxu0 0.0
    %2907 = vmatpush1.msra.mxu0 0.0
    %2908 = vmatprep.subr.mxu0 0.0
    %2909 = vmatpush1.msra.mxu0 0.0
    %2910 = vmatprep.mubr.f32.mxu0 0.0
    %2911 = vmatmul.mubr.f32.gmra.mrb[0].mxu0 %v2844
    %v2912 = vpop.f32.mrb[0].mxu0
    %v2913 = vadd.f32 0.0, %v2912
    %v2914 = vpop.f32.mrb[0].mxu0
    %2915 = vdwg.mxu0
    %v2916 = vadd.f32 %v2843, %v2913
    %v2917 = vxor.u32 %v2916, 2147483648
    %v2918 = vmul.f32 %v2917, 1.442695
    %v2919 = vpow.pop %v2918
    %v2920 = vadd.f32 %v2919, 1.0
    %v2921 = vrcp.pop %v2920
    %v2922 = vmul.f32 1.0, %v2921
    %v2923 = vtanh.pop %v2916
    %v2924 = vmul.f32 %v2922, %v2828
    %2926 = vrot.lane.b32.xlu0 %v2923, 32
    %v2927 = vpop.permute.xlu0 %2926
    %v2929 = vmul.f32 %v2922, %v2927
    %2931 = vrot.lane.b32.xlu0 %v2929, 32
    %v2932 = vpop.permute.xlu0 %2931
    %v2934 = vadd.f32 %v2924, %v2932
    %v2935 = vtanh.pop %v2934
    %2937 = vrot.lane.b32.xlu0 %v2935, 32
    %v2938 = vpop.permute.xlu0 %2937
    %v2940 = vmul.f32 %v2922, %v2938
    %2942 = vrot.lane.b32.xlu0 %v2940, 64
    %v2943 = vpop.permute.xlu0 %2942
    %2945 = vst.msk [vmem:[#allocation2 + $0xc] sm:$0x3] %vm381, %v2943
    %2946 = vst.msk [vmem:[#allocation2 + $0x2] sm:$0x3] %vm383, %v2943
    %v2947 = vld [vmem:[#allocation4 + $0xe] sm:$0x3]
    %v2948 = vld [vmem:[#allocation4] sm:$0x3]
    %v2949 = vsel %vm277, %v2947, %v2948
    %v2950 = vsel %vm186, %v2943, 0
    %2952 = vmatprep.subr.mxu0 0.0
    %2953 = vmatpush1.msra.mxu0 %v2203
    %2954 = vmatprep.subr.mxu0 0.0
    %2955 = vmatpush1.msra.mxu0 %v2204
    %2956 = vmatprep.subr.mxu0 0.0
    %2957 = vmatpush1.msra.mxu0 %v2205
    %2958 = vmatprep.subr.mxu0 0.0
    %2959 = vmatpush1.msra.mxu0 %v2206
    %2960 = vmatprep.subr.mxu0 0.0
    %2961 = vmatpush1.msra.mxu0 0.0
    %2962 = vmatprep.subr.mxu0 0.0
    %2963 = vmatpush1.msra.mxu0 0.0
    %2964 = vmatprep.subr.mxu0 0.0
    %2965 = vmatpush1.msra.mxu0 0.0
    %2966 = vmatprep.subr.mxu0 0.0
    %2967 = vmatpush1.msra.mxu0 0.0
    %2968 = vmatprep.subr.mxu0 0.0
    %2969 = vmatpush1.msra.mxu0 0.0
    %2970 = vmatprep.subr.mxu0 0.0
    %2971 = vmatpush1.msra.mxu0 0.0
    %2972 = vmatprep.subr.mxu0 0.0
    %2973 = vmatpush1.msra.mxu0 0.0
    %2974 = vmatprep.subr.mxu0 0.0
    %2975 = vmatpush1.msra.mxu0 0.0
    %2976 = vmatprep.subr.mxu0 0.0
    %2977 = vmatpush1.msra.mxu0 0.0
    %2978 = vmatprep.subr.mxu0 0.0
    %2979 = vmatpush1.msra.mxu0 0.0
    %2980 = vmatprep.subr.mxu0 0.0
    %2981 = vmatpush1.msra.mxu0 0.0
    %2982 = vmatprep.subr.mxu0 0.0
    %2983 = vmatpush1.msra.mxu0 0.0
    %2984 = vmatprep.subr.mxu0 0.0
    %2985 = vmatpush1.msra.mxu0 0.0
    %2986 = vmatprep.subr.mxu0 0.0
    %2987 = vmatpush1.msra.mxu0 0.0
    %2988 = vmatprep.subr.mxu0 0.0
    %2989 = vmatpush1.msra.mxu0 0.0
    %2990 = vmatprep.subr.mxu0 0.0
    %2991 = vmatpush1.msra.mxu0 0.0
    %2992 = vmatprep.subr.mxu0 0.0
    %2993 = vmatpush1.msra.mxu0 0.0
    %2994 = vmatprep.subr.mxu0 0.0
    %2995 = vmatpush1.msra.mxu0 0.0
    %2996 = vmatprep.subr.mxu0 0.0
    %2997 = vmatpush1.msra.mxu0 0.0
    %2998 = vmatprep.subr.mxu0 0.0
    %2999 = vmatpush1.msra.mxu0 0.0
    %3000 = vmatprep.subr.mxu0 0.0
    %3001 = vmatpush1.msra.mxu0 0.0
    %3002 = vmatprep.subr.mxu0 0.0
    %3003 = vmatpush1.msra.mxu0 0.0
    %3004 = vmatprep.subr.mxu0 0.0
    %3005 = vmatpush1.msra.mxu0 0.0
    %3006 = vmatprep.subr.mxu0 0.0
    %3007 = vmatpush1.msra.mxu0 0.0
    %3008 = vmatprep.subr.mxu0 0.0
    %3009 = vmatpush1.msra.mxu0 0.0
    %3010 = vmatprep.subr.mxu0 0.0
    %3011 = vmatpush1.msra.mxu0 0.0
    %3012 = vmatprep.subr.mxu0 0.0
    %3013 = vmatpush1.msra.mxu0 0.0
    %3014 = vmatprep.subr.mxu0 0.0
    %3015 = vmatpush1.msra.mxu0 0.0
    %3016 = vmatprep.mubr.f32.mxu0 0.0
    %3017 = vmatmul.mubr.f32.gmra.mrb[0].mxu0 %v2950
    %v3018 = vpop.f32.mrb[0].mxu0
    %v3019 = vadd.f32 0.0, %v3018
    %v3020 = vpop.f32.mrb[0].mxu0
    %3021 = vdwg.mxu0
    %v3022 = vadd.f32 %v2949, %v3019
    %v3023 = vxor.u32 %v3022, 2147483648
    %v3024 = vmul.f32 %v3023, 1.442695
    %v3025 = vpow.pop %v3024
    %v3026 = vadd.f32 %v3025, 1.0
    %v3027 = vrcp.pop %v3026
    %v3028 = vmul.f32 1.0, %v3027
    %v3029 = vtanh.pop %v3022
    %v3030 = vmul.f32 %v3028, %v2934
    %3032 = vrot.lane.b32.xlu0 %v3029, 32
    %v3033 = vpop.permute.xlu0 %3032
    %v3035 = vmul.f32 %v3028, %v3033
    %3037 = vrot.lane.b32.xlu0 %v3035, 32
    %v3038 = vpop.permute.xlu0 %3037
    %v3040 = vadd.f32 %v3030, %v3038
    %v3041 = vtanh.pop %v3040
    %3043 = vrot.lane.b32.xlu0 %v3041, 32
    %v3044 = vpop.permute.xlu0 %3043
    %v3046 = vmul.f32 %v3028, %v3044
    %3048 = vrot.lane.b32.xlu0 %v3046, 64
    %v3049 = vpop.permute.xlu0 %3048
    %3051 = vst.msk [vmem:[#allocation2 + $0xe] sm:$0x3] %vm381, %v3049
    %3052 = vst.msk [vmem:[#allocation2] sm:$0x3] %vm383, %v3049
    %s3053 = scalar_lea.vmem [#allocation20], 8
    %3054 = vst.msk [vmem:[%s3053] sm:$0x3] %vm381, %v3049
    %3055 = vrot.lane.b32.xlu0 %v3046, 48
    %v3056 = vpop.permute.xlu0 %3055
    %s3058 = scalar_lea.vmem [#allocation20], 10
    %3059 = vst.msk [vmem:[%s3058] sm:$0x3] %vm381, %v3056
    %3061 = vrot.lane.b32.xlu0 %v3040, 96
    %v3062 = vpop.permute.xlu0 %3061
    %s3064 = scalar_lea.vmem [#allocation22], 8
    %3065 = vst.msk [vmem:[%s3064] sm:$0x3] %vm381, %v3062
    %3066 = vrot.lane.b32.xlu0 %v3040, 80
    %v3067 = vpop.permute.xlu0 %3066
    %s3069 = scalar_lea.vmem [#allocation22], 10
    %3070 = vst.msk [vmem:[%s3069] sm:$0x3] %vm381, %v3067
    %v3071 = vld [vmem:[#allocation2] sm:$0xff]
    %v3072 = vld [vmem:[#allocation2 + $0x8] sm:$0xff]
    %v3073 = vld [vmem:[%s10] sm:$0xff]
    %v3074 = vld [vmem:[%s10 + $0x8] sm:$0xff]
    %v3075 = vld [vmem:[%s10 + $0x10] sm:$0xff]
    %v3076 = vld [vmem:[%s10 + $0x18] sm:$0xff]
    %v3077 = vld [vmem:[%s12] sm:$0x1]
    %v3079 = vlaneseq
    %v3080 = vshrl.u32 %v3079, 7
    %v3081 = vsub.s32 0, %v3080
    %v3082 = vrot.slane %v3077, %v3081
    %v3085 = vsel %vm186, %v3071, 0
    %v3088 = vsel %vm186, %v3072, 0
    %3090 = vmatprep.subr.mxu0 0.0
    %3091 = vmatpush1.msra.mxu0 %v3073
    %3092 = vmatprep.subr.mxu0 0.0
    %3093 = vmatpush1.msra.mxu0 %v3074
    %3094 = vmatprep.subr.mxu0 0.0
    %3095 = vmatpush1.msra.mxu0 %v3075
    %3096 = vmatprep.subr.mxu0 0.0
    %3097 = vmatpush1.msra.mxu0 %v3076
    %3098 = vmatprep.subr.mxu0 0.0
    %3099 = vmatpush1.msra.mxu0 0.0
    %3100 = vmatprep.subr.mxu0 0.0
    %3101 = vmatpush1.msra.mxu0 0.0
    %3102 = vmatprep.subr.mxu0 0.0
    %3103 = vmatpush1.msra.mxu0 0.0
    %3104 = vmatprep.subr.mxu0 0.0
    %3105 = vmatpush1.msra.mxu0 0.0
    %3106 = vmatprep.subr.mxu0 0.0
    %3107 = vmatpush1.msra.mxu0 0.0
    %3108 = vmatprep.subr.mxu0 0.0
    %3109 = vmatpush1.msra.mxu0 0.0
    %3110 = vmatprep.subr.mxu0 0.0
    %3111 = vmatpush1.msra.mxu0 0.0
    %3112 = vmatprep.subr.mxu0 0.0
    %3113 = vmatpush1.msra.mxu0 0.0
    %3114 = vmatprep.subr.mxu0 0.0
    %3115 = vmatpush1.msra.mxu0 0.0
    %3116 = vmatprep.subr.mxu0 0.0
    %3117 = vmatpush1.msra.mxu0 0.0
    %3118 = vmatprep.subr.mxu0 0.0
    %3119 = vmatpush1.msra.mxu0 0.0
    %3120 = vmatprep.subr.mxu0 0.0
    %3121 = vmatpush1.msra.mxu0 0.0
    %3122 = vmatprep.subr.mxu0 0.0
    %3123 = vmatpush1.msra.mxu0 0.0
    %3124 = vmatprep.subr.mxu0 0.0
    %3125 = vmatpush1.msra.mxu0 0.0
    %3126 = vmatprep.subr.mxu0 0.0
    %3127 = vmatpush1.msra.mxu0 0.0
    %3128 = vmatprep.subr.mxu0 0.0
    %3129 = vmatpush1.msra.mxu0 0.0
    %3130 = vmatprep.subr.mxu0 0.0
    %3131 = vmatpush1.msra.mxu0 0.0
    %3132 = vmatprep.subr.mxu0 0.0
    %3133 = vmatpush1.msra.mxu0 0.0
    %3134 = vmatprep.subr.mxu0 0.0
    %3135 = vmatpush1.msra.mxu0 0.0
    %3136 = vmatprep.subr.mxu0 0.0
    %3137 = vmatpush1.msra.mxu0 0.0
    %3138 = vmatprep.subr.mxu0 0.0
    %3139 = vmatpush1.msra.mxu0 0.0
    %3140 = vmatprep.subr.mxu0 0.0
    %3141 = vmatpush1.msra.mxu0 0.0
    %3142 = vmatprep.subr.mxu0 0.0
    %3143 = vmatpush1.msra.mxu0 0.0
    %3144 = vmatprep.subr.mxu0 0.0
    %3145 = vmatpush1.msra.mxu0 0.0
    %3146 = vmatprep.subr.mxu0 0.0
    %3147 = vmatpush1.msra.mxu0 0.0
    %3148 = vmatprep.subr.mxu0 0.0
    %3149 = vmatpush1.msra.mxu0 0.0
    %3150 = vmatprep.subr.mxu0 0.0
    %3151 = vmatpush1.msra.mxu0 0.0
    %3152 = vmatprep.subr.mxu0 0.0
    %3153 = vmatpush1.msra.mxu0 0.0
    %3154 = vmatprep.mubr.f32.mxu0 0.0
    %3155 = vmatmul.mubr.f32.gmra.mrb[0].mxu0 %v3085
    %v3156 = vpop.f32.mrb[0].mxu0
    %v3157 = vadd.f32 %v3082, %v3156
    %v3158 = vpop.f32.mrb[0].mxu0
    %3159 = vmatprep.mubr.f32.mxu0 0.0
    %3160 = vmatmul.mubr.f32.gmra.mrb[0].mxu0 %v3088
    %v3161 = vpop.f32.mrb[0].mxu0
    %v3162 = vadd.f32 %v3082, %v3161
    %v3163 = vpop.f32.mrb[0].mxu0
    %3164 = vdwg.mxu0
    %3165 = vst [vmem:[#allocation4] sm:$0xff] %v3157
    %3166 = vst [vmem:[#allocation4 + $0x8] sm:$0xff] %v3162
    %v3167 = vld [vmem:[#allocation17] sm:$0xff]
    %v3168 = vld [vmem:[#allocation17 + $0x8] sm:$0xff]
    %v3169 = vld [vmem:[#allocation17 + $0x10] sm:$0xff]
    %v3170 = vld [vmem:[#allocation17 + $0x18] sm:$0xff]
    %v3171 = vld [vmem:[#allocation4] sm:$0x3]
    %v3172 = vld [vmem:[#allocation4 + $0xe] sm:$0x3]
    %v3173 = vsel %vm277, %v3171, %v3172
    %3174 = vmatprep.subr.mxu0 0.0
    %3175 = vmatpush1.msra.mxu0 %v3167
    %3176 = vmatprep.subr.mxu0 0.0
    %3177 = vmatpush1.msra.mxu0 %v3168
    %3178 = vmatprep.subr.mxu0 0.0
    %3179 = vmatpush1.msra.mxu0 %v3169
    %3180 = vmatprep.subr.mxu0 0.0
    %3181 = vmatpush1.msra.mxu0 %v3170
    %3182 = vmatprep.subr.mxu0 0.0
    %3183 = vmatpush1.msra.mxu0 0.0
    %3184 = vmatprep.subr.mxu0 0.0
    %3185 = vmatpush1.msra.mxu0 0.0
    %3186 = vmatprep.subr.mxu0 0.0
    %3187 = vmatpush1.msra.mxu0 0.0
    %3188 = vmatprep.subr.mxu0 0.0
    %3189 = vmatpush1.msra.mxu0 0.0
    %3190 = vmatprep.subr.mxu0 0.0
    %3191 = vmatpush1.msra.mxu0 0.0
    %3192 = vmatprep.subr.mxu0 0.0
    %3193 = vmatpush1.msra.mxu0 0.0
    %3194 = vmatprep.subr.mxu0 0.0
    %3195 = vmatpush1.msra.mxu0 0.0
    %3196 = vmatprep.subr.mxu0 0.0
    %3197 = vmatpush1.msra.mxu0 0.0
    %3198 = vmatprep.subr.mxu0 0.0
    %3199 = vmatpush1.msra.mxu0 0.0
    %3200 = vmatprep.subr.mxu0 0.0
    %3201 = vmatpush1.msra.mxu0 0.0
    %3202 = vmatprep.subr.mxu0 0.0
    %3203 = vmatpush1.msra.mxu0 0.0
    %3204 = vmatprep.subr.mxu0 0.0
    %3205 = vmatpush1.msra.mxu0 0.0
    %3206 = vmatprep.subr.mxu0 0.0
    %3207 = vmatpush1.msra.mxu0 0.0
    %3208 = vmatprep.subr.mxu0 0.0
    %3209 = vmatpush1.msra.mxu0 0.0
    %3210 = vmatprep.subr.mxu0 0.0
    %3211 = vmatpush1.msra.mxu0 0.0
    %3212 = vmatprep.subr.mxu0 0.0
    %3213 = vmatpush1.msra.mxu0 0.0
    %3214 = vmatprep.subr.mxu0 0.0
    %3215 = vmatpush1.msra.mxu0 0.0
    %3216 = vmatprep.subr.mxu0 0.0
    %3217 = vmatpush1.msra.mxu0 0.0
    %3218 = vmatprep.subr.mxu0 0.0
    %3219 = vmatpush1.msra.mxu0 0.0
    %3220 = vmatprep.subr.mxu0 0.0
    %3221 = vmatpush1.msra.mxu0 0.0
    %3222 = vmatprep.subr.mxu0 0.0
    %3223 = vmatpush1.msra.mxu0 0.0
    %3224 = vmatprep.subr.mxu0 0.0
    %3225 = vmatpush1.msra.mxu0 0.0
    %3226 = vmatprep.subr.mxu0 0.0
    %3227 = vmatpush1.msra.mxu0 0.0
    %3228 = vmatprep.subr.mxu0 0.0
    %3229 = vmatpush1.msra.mxu0 0.0
    %3230 = vmatprep.subr.mxu0 0.0
    %3231 = vmatpush1.msra.mxu0 0.0
    %3232 = vmatprep.subr.mxu0 0.0
    %3233 = vmatpush1.msra.mxu0 0.0
    %3234 = vmatprep.subr.mxu0 0.0
    %3235 = vmatpush1.msra.mxu0 0.0
    %3236 = vmatprep.subr.mxu0 0.0
    %3237 = vmatpush1.msra.mxu0 0.0
    %3238 = vmatprep.mubr.f32.mxu0 0.0
    %3239 = vmatmul.mubr.f32.gmra.mrb[0].mxu0 %v280
    %v3240 = vpop.f32.mrb[0].mxu0
    %v3241 = vadd.f32 0.0, %v3240
    %v3242 = vpop.f32.mrb[0].mxu0
    %3243 = vdwg.mxu0
    %v3244 = vadd.f32 %v3173, %v3241
    %v3245 = vxor.u32 %v3244, 2147483648
    %v3246 = vmul.f32 %v3245, 1.442695
    %v3247 = vpow.pop %v3246
    %v3248 = vadd.f32 %v3247, 1.0
    %v3249 = vrcp.pop %v3248
    %v3250 = vmul.f32 1.0, %v3249
    %v3251 = vtanh.pop %v3244
    %v3252 = vmul.f32 %v3250, 0.0
    %3254 = vrot.lane.b32.xlu0 %v3251, 32
    %v3255 = vpop.permute.xlu0 %3254
    %v3257 = vmul.f32 %v3250, %v3255
    %3259 = vrot.lane.b32.xlu0 %v3257, 32
    %v3260 = vpop.permute.xlu0 %3259
    %v3262 = vadd.f32 %v3252, %v3260
    %v3263 = vtanh.pop %v3262
    %3265 = vrot.lane.b32.xlu0 %v3263, 32
    %v3266 = vpop.permute.xlu0 %3265
    %v3268 = vmul.f32 %v3250, %v3266
    %3270 = vrot.lane.b32.xlu0 %v3268, 64
    %v3271 = vpop.permute.xlu0 %3270
    %3273 = vst.msk [vmem:[#allocation19] sm:$0x3] %vm381, %v3271
    %3274 = vst.msk [vmem:[#allocation19 + $0xe] sm:$0x3] %vm383, %v3271
    %v3275 = vld [vmem:[#allocation4 + $0x2] sm:$0x3]
    %v3276 = vld [vmem:[#allocation4 + $0xc] sm:$0x3]
    %v3277 = vsel %vm277, %v3275, %v3276
    %v3278 = vsel %vm186, %v3271, 0
    %3280 = vmatprep.subr.mxu0 0.0
    %3281 = vmatpush1.msra.mxu0 %v3167
    %3282 = vmatprep.subr.mxu0 0.0
    %3283 = vmatpush1.msra.mxu0 %v3168
    %3284 = vmatprep.subr.mxu0 0.0
    %3285 = vmatpush1.msra.mxu0 %v3169
    %3286 = vmatprep.subr.mxu0 0.0
    %3287 = vmatpush1.msra.mxu0 %v3170
    %3288 = vmatprep.subr.mxu0 0.0
    %3289 = vmatpush1.msra.mxu0 0.0
    %3290 = vmatprep.subr.mxu0 0.0
    %3291 = vmatpush1.msra.mxu0 0.0
    %3292 = vmatprep.subr.mxu0 0.0
    %3293 = vmatpush1.msra.mxu0 0.0
    %3294 = vmatprep.subr.mxu0 0.0
    %3295 = vmatpush1.msra.mxu0 0.0
    %3296 = vmatprep.subr.mxu0 0.0
    %3297 = vmatpush1.msra.mxu0 0.0
    %3298 = vmatprep.subr.mxu0 0.0
    %3299 = vmatpush1.msra.mxu0 0.0
    %3300 = vmatprep.subr.mxu0 0.0
    %3301 = vmatpush1.msra.mxu0 0.0
    %3302 = vmatprep.subr.mxu0 0.0
    %3303 = vmatpush1.msra.mxu0 0.0
    %3304 = vmatprep.subr.mxu0 0.0
    %3305 = vmatpush1.msra.mxu0 0.0
    %3306 = vmatprep.subr.mxu0 0.0
    %3307 = vmatpush1.msra.mxu0 0.0
    %3308 = vmatprep.subr.mxu0 0.0
    %3309 = vmatpush1.msra.mxu0 0.0
    %3310 = vmatprep.subr.mxu0 0.0
    %3311 = vmatpush1.msra.mxu0 0.0
    %3312 = vmatprep.subr.mxu0 0.0
    %3313 = vmatpush1.msra.mxu0 0.0
    %3314 = vmatprep.subr.mxu0 0.0
    %3315 = vmatpush1.msra.mxu0 0.0
    %3316 = vmatprep.subr.mxu0 0.0
    %3317 = vmatpush1.msra.mxu0 0.0
    %3318 = vmatprep.subr.mxu0 0.0
    %3319 = vmatpush1.msra.mxu0 0.0
    %3320 = vmatprep.subr.mxu0 0.0
    %3321 = vmatpush1.msra.mxu0 0.0
    %3322 = vmatprep.subr.mxu0 0.0
    %3323 = vmatpush1.msra.mxu0 0.0
    %3324 = vmatprep.subr.mxu0 0.0
    %3325 = vmatpush1.msra.mxu0 0.0
    %3326 = vmatprep.subr.mxu0 0.0
    %3327 = vmatpush1.msra.mxu0 0.0
    %3328 = vmatprep.subr.mxu0 0.0
    %3329 = vmatpush1.msra.mxu0 0.0
    %3330 = vmatprep.subr.mxu0 0.0
    %3331 = vmatpush1.msra.mxu0 0.0
    %3332 = vmatprep.subr.mxu0 0.0
    %3333 = vmatpush1.msra.mxu0 0.0
    %3334 = vmatprep.subr.mxu0 0.0
    %3335 = vmatpush1.msra.mxu0 0.0
    %3336 = vmatprep.subr.mxu0 0.0
    %3337 = vmatpush1.msra.mxu0 0.0
    %3338 = vmatprep.subr.mxu0 0.0
    %3339 = vmatpush1.msra.mxu0 0.0
    %3340 = vmatprep.subr.mxu0 0.0
    %3341 = vmatpush1.msra.mxu0 0.0
    %3342 = vmatprep.subr.mxu0 0.0
    %3343 = vmatpush1.msra.mxu0 0.0
    %3344 = vmatprep.mubr.f32.mxu0 0.0
    %3345 = vmatmul.mubr.f32.gmra.mrb[0].mxu0 %v3278
    %v3346 = vpop.f32.mrb[0].mxu0
    %v3347 = vadd.f32 0.0, %v3346
    %v3348 = vpop.f32.mrb[0].mxu0
    %3349 = vdwg.mxu0
    %v3350 = vadd.f32 %v3277, %v3347
    %v3351 = vxor.u32 %v3350, 2147483648
    %v3352 = vmul.f32 %v3351, 1.442695
    %v3353 = vpow.pop %v3352
    %v3354 = vadd.f32 %v3353, 1.0
    %v3355 = vrcp.pop %v3354
    %v3356 = vmul.f32 1.0, %v3355
    %v3357 = vtanh.pop %v3350
    %v3358 = vmul.f32 %v3356, %v3262
    %3360 = vrot.lane.b32.xlu0 %v3357, 32
    %v3361 = vpop.permute.xlu0 %3360
    %v3363 = vmul.f32 %v3356, %v3361
    %3365 = vrot.lane.b32.xlu0 %v3363, 32
    %v3366 = vpop.permute.xlu0 %3365
    %v3368 = vadd.f32 %v3358, %v3366
    %v3369 = vtanh.pop %v3368
    %3371 = vrot.lane.b32.xlu0 %v3369, 32
    %v3372 = vpop.permute.xlu0 %3371
    %v3374 = vmul.f32 %v3356, %v3372
    %3376 = vrot.lane.b32.xlu0 %v3374, 64
    %v3377 = vpop.permute.xlu0 %3376
    %3379 = vst.msk [vmem:[#allocation19 + $0x2] sm:$0x3] %vm381, %v3377
    %3380 = vst.msk [vmem:[#allocation19 + $0xc] sm:$0x3] %vm383, %v3377
    %v3381 = vld [vmem:[#allocation4 + $0x4] sm:$0x3]
    %v3382 = vld [vmem:[#allocation4 + $0xa] sm:$0x3]
    %v3383 = vsel %vm277, %v3381, %v3382
    %v3384 = vsel %vm186, %v3377, 0
    %3386 = vmatprep.subr.mxu0 0.0
    %3387 = vmatpush1.msra.mxu0 %v3167
    %3388 = vmatprep.subr.mxu0 0.0
    %3389 = vmatpush1.msra.mxu0 %v3168
    %3390 = vmatprep.subr.mxu0 0.0
    %3391 = vmatpush1.msra.mxu0 %v3169
    %3392 = vmatprep.subr.mxu0 0.0
    %3393 = vmatpush1.msra.mxu0 %v3170
    %3394 = vmatprep.subr.mxu0 0.0
    %3395 = vmatpush1.msra.mxu0 0.0
    %3396 = vmatprep.subr.mxu0 0.0
    %3397 = vmatpush1.msra.mxu0 0.0
    %3398 = vmatprep.subr.mxu0 0.0
    %3399 = vmatpush1.msra.mxu0 0.0
    %3400 = vmatprep.subr.mxu0 0.0
    %3401 = vmatpush1.msra.mxu0 0.0
    %3402 = vmatprep.subr.mxu0 0.0
    %3403 = vmatpush1.msra.mxu0 0.0
    %3404 = vmatprep.subr.mxu0 0.0
    %3405 = vmatpush1.msra.mxu0 0.0
    %3406 = vmatprep.subr.mxu0 0.0
    %3407 = vmatpush1.msra.mxu0 0.0
    %3408 = vmatprep.subr.mxu0 0.0
    %3409 = vmatpush1.msra.mxu0 0.0
    %3410 = vmatprep.subr.mxu0 0.0
    %3411 = vmatpush1.msra.mxu0 0.0
    %3412 = vmatprep.subr.mxu0 0.0
    %3413 = vmatpush1.msra.mxu0 0.0
    %3414 = vmatprep.subr.mxu0 0.0
    %3415 = vmatpush1.msra.mxu0 0.0
    %3416 = vmatprep.subr.mxu0 0.0
    %3417 = vmatpush1.msra.mxu0 0.0
    %3418 = vmatprep.subr.mxu0 0.0
    %3419 = vmatpush1.msra.mxu0 0.0
    %3420 = vmatprep.subr.mxu0 0.0
    %3421 = vmatpush1.msra.mxu0 0.0
    %3422 = vmatprep.subr.mxu0 0.0
    %3423 = vmatpush1.msra.mxu0 0.0
    %3424 = vmatprep.subr.mxu0 0.0
    %3425 = vmatpush1.msra.mxu0 0.0
    %3426 = vmatprep.subr.mxu0 0.0
    %3427 = vmatpush1.msra.mxu0 0.0
    %3428 = vmatprep.subr.mxu0 0.0
    %3429 = vmatpush1.msra.mxu0 0.0
    %3430 = vmatprep.subr.mxu0 0.0
    %3431 = vmatpush1.msra.mxu0 0.0
    %3432 = vmatprep.subr.mxu0 0.0
    %3433 = vmatpush1.msra.mxu0 0.0
    %3434 = vmatprep.subr.mxu0 0.0
    %3435 = vmatpush1.msra.mxu0 0.0
    %3436 = vmatprep.subr.mxu0 0.0
    %3437 = vmatpush1.msra.mxu0 0.0
    %3438 = vmatprep.subr.mxu0 0.0
    %3439 = vmatpush1.msra.mxu0 0.0
    %3440 = vmatprep.subr.mxu0 0.0
    %3441 = vmatpush1.msra.mxu0 0.0
    %3442 = vmatprep.subr.mxu0 0.0
    %3443 = vmatpush1.msra.mxu0 0.0
    %3444 = vmatprep.subr.mxu0 0.0
    %3445 = vmatpush1.msra.mxu0 0.0
    %3446 = vmatprep.subr.mxu0 0.0
    %3447 = vmatpush1.msra.mxu0 0.0
    %3448 = vmatprep.subr.mxu0 0.0
    %3449 = vmatpush1.msra.mxu0 0.0
    %3450 = vmatprep.mubr.f32.mxu0 0.0
    %3451 = vmatmul.mubr.f32.gmra.mrb[0].mxu0 %v3384
    %v3452 = vpop.f32.mrb[0].mxu0
    %v3453 = vadd.f32 0.0, %v3452
    %v3454 = vpop.f32.mrb[0].mxu0
    %3455 = vdwg.mxu0
    %v3456 = vadd.f32 %v3383, %v3453
    %v3457 = vxor.u32 %v3456, 2147483648
    %v3458 = vmul.f32 %v3457, 1.442695
    %v3459 = vpow.pop %v3458
    %v3460 = vadd.f32 %v3459, 1.0
    %v3461 = vrcp.pop %v3460
    %v3462 = vmul.f32 1.0, %v3461
    %v3463 = vtanh.pop %v3456
    %v3464 = vmul.f32 %v3462, %v3368
    %3466 = vrot.lane.b32.xlu0 %v3463, 32
    %v3467 = vpop.permute.xlu0 %3466
    %v3469 = vmul.f32 %v3462, %v3467
    %3471 = vrot.lane.b32.xlu0 %v3469, 32
    %v3472 = vpop.permute.xlu0 %3471
    %v3474 = vadd.f32 %v3464, %v3472
    %v3475 = vtanh.pop %v3474
    %3477 = vrot.lane.b32.xlu0 %v3475, 32
    %v3478 = vpop.permute.xlu0 %3477
    %v3480 = vmul.f32 %v3462, %v3478
    %3482 = vrot.lane.b32.xlu0 %v3480, 64
    %v3483 = vpop.permute.xlu0 %3482
    %3485 = vst.msk [vmem:[#allocation19 + $0x4] sm:$0x3] %vm381, %v3483
    %3486 = vst.msk [vmem:[#allocation19 + $0xa] sm:$0x3] %vm383, %v3483
    %v3487 = vld [vmem:[#allocation4 + $0x6] sm:$0x3]
    %v3488 = vld [vmem:[#allocation4 + $0x8] sm:$0x3]
    %v3489 = vsel %vm277, %v3487, %v3488
    %v3490 = vsel %vm186, %v3483, 0
    %3492 = vmatprep.subr.mxu0 0.0
    %3493 = vmatpush1.msra.mxu0 %v3167
    %3494 = vmatprep.subr.mxu0 0.0
    %3495 = vmatpush1.msra.mxu0 %v3168
    %3496 = vmatprep.subr.mxu0 0.0
    %3497 = vmatpush1.msra.mxu0 %v3169
    %3498 = vmatprep.subr.mxu0 0.0
    %3499 = vmatpush1.msra.mxu0 %v3170
    %3500 = vmatprep.subr.mxu0 0.0
    %3501 = vmatpush1.msra.mxu0 0.0
    %3502 = vmatprep.subr.mxu0 0.0
    %3503 = vmatpush1.msra.mxu0 0.0
    %3504 = vmatprep.subr.mxu0 0.0
    %3505 = vmatpush1.msra.mxu0 0.0
    %3506 = vmatprep.subr.mxu0 0.0
    %3507 = vmatpush1.msra.mxu0 0.0
    %3508 = vmatprep.subr.mxu0 0.0
    %3509 = vmatpush1.msra.mxu0 0.0
    %3510 = vmatprep.subr.mxu0 0.0
    %3511 = vmatpush1.msra.mxu0 0.0
    %3512 = vmatprep.subr.mxu0 0.0
    %3513 = vmatpush1.msra.mxu0 0.0
    %3514 = vmatprep.subr.mxu0 0.0
    %3515 = vmatpush1.msra.mxu0 0.0
    %3516 = vmatprep.subr.mxu0 0.0
    %3517 = vmatpush1.msra.mxu0 0.0
    %3518 = vmatprep.subr.mxu0 0.0
    %3519 = vmatpush1.msra.mxu0 0.0
    %3520 = vmatprep.subr.mxu0 0.0
    %3521 = vmatpush1.msra.mxu0 0.0
    %3522 = vmatprep.subr.mxu0 0.0
    %3523 = vmatpush1.msra.mxu0 0.0
    %3524 = vmatprep.subr.mxu0 0.0
    %3525 = vmatpush1.msra.mxu0 0.0
    %3526 = vmatprep.subr.mxu0 0.0
    %3527 = vmatpush1.msra.mxu0 0.0
    %3528 = vmatprep.subr.mxu0 0.0
    %3529 = vmatpush1.msra.mxu0 0.0
    %3530 = vmatprep.subr.mxu0 0.0
    %3531 = vmatpush1.msra.mxu0 0.0
    %3532 = vmatprep.subr.mxu0 0.0
    %3533 = vmatpush1.msra.mxu0 0.0
    %3534 = vmatprep.subr.mxu0 0.0
    %3535 = vmatpush1.msra.mxu0 0.0
    %3536 = vmatprep.subr.mxu0 0.0
    %3537 = vmatpush1.msra.mxu0 0.0
    %3538 = vmatprep.subr.mxu0 0.0
    %3539 = vmatpush1.msra.mxu0 0.0
    %3540 = vmatprep.subr.mxu0 0.0
    %3541 = vmatpush1.msra.mxu0 0.0
    %3542 = vmatprep.subr.mxu0 0.0
    %3543 = vmatpush1.msra.mxu0 0.0
    %3544 = vmatprep.subr.mxu0 0.0
    %3545 = vmatpush1.msra.mxu0 0.0
    %3546 = vmatprep.subr.mxu0 0.0
    %3547 = vmatpush1.msra.mxu0 0.0
    %3548 = vmatprep.subr.mxu0 0.0
    %3549 = vmatpush1.msra.mxu0 0.0
    %3550 = vmatprep.subr.mxu0 0.0
    %3551 = vmatpush1.msra.mxu0 0.0
    %3552 = vmatprep.subr.mxu0 0.0
    %3553 = vmatpush1.msra.mxu0 0.0
    %3554 = vmatprep.subr.mxu0 0.0
    %3555 = vmatpush1.msra.mxu0 0.0
    %3556 = vmatprep.mubr.f32.mxu0 0.0
    %3557 = vmatmul.mubr.f32.gmra.mrb[0].mxu0 %v3490
    %v3558 = vpop.f32.mrb[0].mxu0
    %v3559 = vadd.f32 0.0, %v3558
    %v3560 = vpop.f32.mrb[0].mxu0
    %3561 = vdwg.mxu0
    %v3562 = vadd.f32 %v3489, %v3559
    %v3563 = vxor.u32 %v3562, 2147483648
    %v3564 = vmul.f32 %v3563, 1.442695
    %v3565 = vpow.pop %v3564
    %v3566 = vadd.f32 %v3565, 1.0
    %v3567 = vrcp.pop %v3566
    %v3568 = vmul.f32 1.0, %v3567
    %v3569 = vtanh.pop %v3562
    %v3570 = vmul.f32 %v3568, %v3474
    %3572 = vrot.lane.b32.xlu0 %v3569, 32
    %v3573 = vpop.permute.xlu0 %3572
    %v3575 = vmul.f32 %v3568, %v3573
    %3577 = vrot.lane.b32.xlu0 %v3575, 32
    %v3578 = vpop.permute.xlu0 %3577
    %v3580 = vadd.f32 %v3570, %v3578
    %v3581 = vtanh.pop %v3580
    %3583 = vrot.lane.b32.xlu0 %v3581, 32
    %v3584 = vpop.permute.xlu0 %3583
    %v3586 = vmul.f32 %v3568, %v3584
    %3588 = vrot.lane.b32.xlu0 %v3586, 64
    %v3589 = vpop.permute.xlu0 %3588
    %3591 = vst.msk [vmem:[#allocation19 + $0x6] sm:$0x3] %vm381, %v3589
    %3592 = vst.msk [vmem:[#allocation19 + $0x8] sm:$0x3] %vm383, %v3589
    %v3593 = vld [vmem:[#allocation4 + $0x8] sm:$0x3]
    %v3594 = vld [vmem:[#allocation4 + $0x6] sm:$0x3]
    %v3595 = vsel %vm277, %v3593, %v3594
    %v3596 = vsel %vm186, %v3589, 0
    %3598 = vmatprep.subr.mxu0 0.0
    %3599 = vmatpush1.msra.mxu0 %v3167
    %3600 = vmatprep.subr.mxu0 0.0
    %3601 = vmatpush1.msra.mxu0 %v3168
    %3602 = vmatprep.subr.mxu0 0.0
    %3603 = vmatpush1.msra.mxu0 %v3169
    %3604 = vmatprep.subr.mxu0 0.0
    %3605 = vmatpush1.msra.mxu0 %v3170
    %3606 = vmatprep.subr.mxu0 0.0
    %3607 = vmatpush1.msra.mxu0 0.0
    %3608 = vmatprep.subr.mxu0 0.0
    %3609 = vmatpush1.msra.mxu0 0.0
    %3610 = vmatprep.subr.mxu0 0.0
    %3611 = vmatpush1.msra.mxu0 0.0
    %3612 = vmatprep.subr.mxu0 0.0
    %3613 = vmatpush1.msra.mxu0 0.0
    %3614 = vmatprep.subr.mxu0 0.0
    %3615 = vmatpush1.msra.mxu0 0.0
    %3616 = vmatprep.subr.mxu0 0.0
    %3617 = vmatpush1.msra.mxu0 0.0
    %3618 = vmatprep.subr.mxu0 0.0
    %3619 = vmatpush1.msra.mxu0 0.0
    %3620 = vmatprep.subr.mxu0 0.0
    %3621 = vmatpush1.msra.mxu0 0.0
    %3622 = vmatprep.subr.mxu0 0.0
    %3623 = vmatpush1.msra.mxu0 0.0
    %3624 = vmatprep.subr.mxu0 0.0
    %3625 = vmatpush1.msra.mxu0 0.0
    %3626 = vmatprep.subr.mxu0 0.0
    %3627 = vmatpush1.msra.mxu0 0.0
    %3628 = vmatprep.subr.mxu0 0.0
    %3629 = vmatpush1.msra.mxu0 0.0
    %3630 = vmatprep.subr.mxu0 0.0
    %3631 = vmatpush1.msra.mxu0 0.0
    %3632 = vmatprep.subr.mxu0 0.0
    %3633 = vmatpush1.msra.mxu0 0.0
    %3634 = vmatprep.subr.mxu0 0.0
    %3635 = vmatpush1.msra.mxu0 0.0
    %3636 = vmatprep.subr.mxu0 0.0
    %3637 = vmatpush1.msra.mxu0 0.0
    %3638 = vmatprep.subr.mxu0 0.0
    %3639 = vmatpush1.msra.mxu0 0.0
    %3640 = vmatprep.subr.mxu0 0.0
    %3641 = vmatpush1.msra.mxu0 0.0
    %3642 = vmatprep.subr.mxu0 0.0
    %3643 = vmatpush1.msra.mxu0 0.0
    %3644 = vmatprep.subr.mxu0 0.0
    %3645 = vmatpush1.msra.mxu0 0.0
    %3646 = vmatprep.subr.mxu0 0.0
    %3647 = vmatpush1.msra.mxu0 0.0
    %3648 = vmatprep.subr.mxu0 0.0
    %3649 = vmatpush1.msra.mxu0 0.0
    %3650 = vmatprep.subr.mxu0 0.0
    %3651 = vmatpush1.msra.mxu0 0.0
    %3652 = vmatprep.subr.mxu0 0.0
    %3653 = vmatpush1.msra.mxu0 0.0
    %3654 = vmatprep.subr.mxu0 0.0
    %3655 = vmatpush1.msra.mxu0 0.0
    %3656 = vmatprep.subr.mxu0 0.0
    %3657 = vmatpush1.msra.mxu0 0.0
    %3658 = vmatprep.subr.mxu0 0.0
    %3659 = vmatpush1.msra.mxu0 0.0
    %3660 = vmatprep.subr.mxu0 0.0
    %3661 = vmatpush1.msra.mxu0 0.0
    %3662 = vmatprep.mubr.f32.mxu0 0.0
    %3663 = vmatmul.mubr.f32.gmra.mrb[0].mxu0 %v3596
    %v3664 = vpop.f32.mrb[0].mxu0
    %v3665 = vadd.f32 0.0, %v3664
    %v3666 = vpop.f32.mrb[0].mxu0
    %3667 = vdwg.mxu0
    %v3668 = vadd.f32 %v3595, %v3665
    %v3669 = vxor.u32 %v3668, 2147483648
    %v3670 = vmul.f32 %v3669, 1.442695
    %v3671 = vpow.pop %v3670
    %v3672 = vadd.f32 %v3671, 1.0
    %v3673 = vrcp.pop %v3672
    %v3674 = vmul.f32 1.0, %v3673
    %v3675 = vtanh.pop %v3668
    %v3676 = vmul.f32 %v3674, %v3580
    %3678 = vrot.lane.b32.xlu0 %v3675, 32
    %v3679 = vpop.permute.xlu0 %3678
    %v3681 = vmul.f32 %v3674, %v3679
    %3683 = vrot.lane.b32.xlu0 %v3681, 32
    %v3684 = vpop.permute.xlu0 %3683
    %v3686 = vadd.f32 %v3676, %v3684
    %v3687 = vtanh.pop %v3686
    %3689 = vrot.lane.b32.xlu0 %v3687, 32
    %v3690 = vpop.permute.xlu0 %3689
    %v3692 = vmul.f32 %v3674, %v3690
    %3694 = vrot.lane.b32.xlu0 %v3692, 64
    %v3695 = vpop.permute.xlu0 %3694
    %3697 = vst.msk [vmem:[#allocation19 + $0x8] sm:$0x3] %vm381, %v3695
    %3698 = vst.msk [vmem:[#allocation19 + $0x6] sm:$0x3] %vm383, %v3695
    %v3699 = vld [vmem:[#allocation4 + $0xa] sm:$0x3]
    %v3700 = vld [vmem:[#allocation4 + $0x4] sm:$0x3]
    %v3701 = vsel %vm277, %v3699, %v3700
    %v3702 = vsel %vm186, %v3695, 0
    %3704 = vmatprep.subr.mxu0 0.0
    %3705 = vmatpush1.msra.mxu0 %v3167
    %3706 = vmatprep.subr.mxu0 0.0
    %3707 = vmatpush1.msra.mxu0 %v3168
    %3708 = vmatprep.subr.mxu0 0.0
    %3709 = vmatpush1.msra.mxu0 %v3169
    %3710 = vmatprep.subr.mxu0 0.0
    %3711 = vmatpush1.msra.mxu0 %v3170
    %3712 = vmatprep.subr.mxu0 0.0
    %3713 = vmatpush1.msra.mxu0 0.0
    %3714 = vmatprep.subr.mxu0 0.0
    %3715 = vmatpush1.msra.mxu0 0.0
    %3716 = vmatprep.subr.mxu0 0.0
    %3717 = vmatpush1.msra.mxu0 0.0
    %3718 = vmatprep.subr.mxu0 0.0
    %3719 = vmatpush1.msra.mxu0 0.0
    %3720 = vmatprep.subr.mxu0 0.0
    %3721 = vmatpush1.msra.mxu0 0.0
    %3722 = vmatprep.subr.mxu0 0.0
    %3723 = vmatpush1.msra.mxu0 0.0
    %3724 = vmatprep.subr.mxu0 0.0
    %3725 = vmatpush1.msra.mxu0 0.0
    %3726 = vmatprep.subr.mxu0 0.0
    %3727 = vmatpush1.msra.mxu0 0.0
    %3728 = vmatprep.subr.mxu0 0.0
    %3729 = vmatpush1.msra.mxu0 0.0
    %3730 = vmatprep.subr.mxu0 0.0
    %3731 = vmatpush1.msra.mxu0 0.0
    %3732 = vmatprep.subr.mxu0 0.0
    %3733 = vmatpush1.msra.mxu0 0.0
    %3734 = vmatprep.subr.mxu0 0.0
    %3735 = vmatpush1.msra.mxu0 0.0
    %3736 = vmatprep.subr.mxu0 0.0
    %3737 = vmatpush1.msra.mxu0 0.0
    %3738 = vmatprep.subr.mxu0 0.0
    %3739 = vmatpush1.msra.mxu0 0.0
    %3740 = vmatprep.subr.mxu0 0.0
    %3741 = vmatpush1.msra.mxu0 0.0
    %3742 = vmatprep.subr.mxu0 0.0
    %3743 = vmatpush1.msra.mxu0 0.0
    %3744 = vmatprep.subr.mxu0 0.0
    %3745 = vmatpush1.msra.mxu0 0.0
    %3746 = vmatprep.subr.mxu0 0.0
    %3747 = vmatpush1.msra.mxu0 0.0
    %3748 = vmatprep.subr.mxu0 0.0
    %3749 = vmatpush1.msra.mxu0 0.0
    %3750 = vmatprep.subr.mxu0 0.0
    %3751 = vmatpush1.msra.mxu0 0.0
    %3752 = vmatprep.subr.mxu0 0.0
    %3753 = vmatpush1.msra.mxu0 0.0
    %3754 = vmatprep.subr.mxu0 0.0
    %3755 = vmatpush1.msra.mxu0 0.0
    %3756 = vmatprep.subr.mxu0 0.0
    %3757 = vmatpush1.msra.mxu0 0.0
    %3758 = vmatprep.subr.mxu0 0.0
    %3759 = vmatpush1.msra.mxu0 0.0
    %3760 = vmatprep.subr.mxu0 0.0
    %3761 = vmatpush1.msra.mxu0 0.0
    %3762 = vmatprep.subr.mxu0 0.0
    %3763 = vmatpush1.msra.mxu0 0.0
    %3764 = vmatprep.subr.mxu0 0.0
    %3765 = vmatpush1.msra.mxu0 0.0
    %3766 = vmatprep.subr.mxu0 0.0
    %3767 = vmatpush1.msra.mxu0 0.0
    %3768 = vmatprep.mubr.f32.mxu0 0.0
    %3769 = vmatmul.mubr.f32.gmra.mrb[0].mxu0 %v3702
    %v3770 = vpop.f32.mrb[0].mxu0
    %v3771 = vadd.f32 0.0, %v3770
    %v3772 = vpop.f32.mrb[0].mxu0
    %3773 = vdwg.mxu0
    %v3774 = vadd.f32 %v3701, %v3771
    %v3775 = vxor.u32 %v3774, 2147483648
    %v3776 = vmul.f32 %v3775, 1.442695
    %v3777 = vpow.pop %v3776
    %v3778 = vadd.f32 %v3777, 1.0
    %v3779 = vrcp.pop %v3778
    %v3780 = vmul.f32 1.0, %v3779
    %v3781 = vtanh.pop %v3774
    %v3782 = vmul.f32 %v3780, %v3686
    %3784 = vrot.lane.b32.xlu0 %v3781, 32
    %v3785 = vpop.permute.xlu0 %3784
    %v3787 = vmul.f32 %v3780, %v3785
    %3789 = vrot.lane.b32.xlu0 %v3787, 32
    %v3790 = vpop.permute.xlu0 %3789
    %v3792 = vadd.f32 %v3782, %v3790
    %v3793 = vtanh.pop %v3792
    %3795 = vrot.lane.b32.xlu0 %v3793, 32
    %v3796 = vpop.permute.xlu0 %3795
    %v3798 = vmul.f32 %v3780, %v3796
    %3800 = vrot.lane.b32.xlu0 %v3798, 64
    %v3801 = vpop.permute.xlu0 %3800
    %3803 = vst.msk [vmem:[#allocation19 + $0xa] sm:$0x3] %vm381, %v3801
    %3804 = vst.msk [vmem:[#allocation19 + $0x4] sm:$0x3] %vm383, %v3801
    %v3805 = vld [vmem:[#allocation4 + $0xc] sm:$0x3]
    %v3806 = vld [vmem:[#allocation4 + $0x2] sm:$0x3]
    %v3807 = vsel %vm277, %v3805, %v3806
    %v3808 = vsel %vm186, %v3801, 0
    %3810 = vmatprep.subr.mxu0 0.0
    %3811 = vmatpush1.msra.mxu0 %v3167
    %3812 = vmatprep.subr.mxu0 0.0
    %3813 = vmatpush1.msra.mxu0 %v3168
    %3814 = vmatprep.subr.mxu0 0.0
    %3815 = vmatpush1.msra.mxu0 %v3169
    %3816 = vmatprep.subr.mxu0 0.0
    %3817 = vmatpush1.msra.mxu0 %v3170
    %3818 = vmatprep.subr.mxu0 0.0
    %3819 = vmatpush1.msra.mxu0 0.0
    %3820 = vmatprep.subr.mxu0 0.0
    %3821 = vmatpush1.msra.mxu0 0.0
    %3822 = vmatprep.subr.mxu0 0.0
    %3823 = vmatpush1.msra.mxu0 0.0
    %3824 = vmatprep.subr.mxu0 0.0
    %3825 = vmatpush1.msra.mxu0 0.0
    %3826 = vmatprep.subr.mxu0 0.0
    %3827 = vmatpush1.msra.mxu0 0.0
    %3828 = vmatprep.subr.mxu0 0.0
    %3829 = vmatpush1.msra.mxu0 0.0
    %3830 = vmatprep.subr.mxu0 0.0
    %3831 = vmatpush1.msra.mxu0 0.0
    %3832 = vmatprep.subr.mxu0 0.0
    %3833 = vmatpush1.msra.mxu0 0.0
    %3834 = vmatprep.subr.mxu0 0.0
    %3835 = vmatpush1.msra.mxu0 0.0
    %3836 = vmatprep.subr.mxu0 0.0
    %3837 = vmatpush1.msra.mxu0 0.0
    %3838 = vmatprep.subr.mxu0 0.0
    %3839 = vmatpush1.msra.mxu0 0.0
    %3840 = vmatprep.subr.mxu0 0.0
    %3841 = vmatpush1.msra.mxu0 0.0
    %3842 = vmatprep.subr.mxu0 0.0
    %3843 = vmatpush1.msra.mxu0 0.0
    %3844 = vmatprep.subr.mxu0 0.0
    %3845 = vmatpush1.msra.mxu0 0.0
    %3846 = vmatprep.subr.mxu0 0.0
    %3847 = vmatpush1.msra.mxu0 0.0
    %3848 = vmatprep.subr.mxu0 0.0
    %3849 = vmatpush1.msra.mxu0 0.0
    %3850 = vmatprep.subr.mxu0 0.0
    %3851 = vmatpush1.msra.mxu0 0.0
    %3852 = vmatprep.subr.mxu0 0.0
    %3853 = vmatpush1.msra.mxu0 0.0
    %3854 = vmatprep.subr.mxu0 0.0
    %3855 = vmatpush1.msra.mxu0 0.0
    %3856 = vmatprep.subr.mxu0 0.0
    %3857 = vmatpush1.msra.mxu0 0.0
    %3858 = vmatprep.subr.mxu0 0.0
    %3859 = vmatpush1.msra.mxu0 0.0
    %3860 = vmatprep.subr.mxu0 0.0
    %3861 = vmatpush1.msra.mxu0 0.0
    %3862 = vmatprep.subr.mxu0 0.0
    %3863 = vmatpush1.msra.mxu0 0.0
    %3864 = vmatprep.subr.mxu0 0.0
    %3865 = vmatpush1.msra.mxu0 0.0
    %3866 = vmatprep.subr.mxu0 0.0
    %3867 = vmatpush1.msra.mxu0 0.0
    %3868 = vmatprep.subr.mxu0 0.0
    %3869 = vmatpush1.msra.mxu0 0.0
    %3870 = vmatprep.subr.mxu0 0.0
    %3871 = vmatpush1.msra.mxu0 0.0
    %3872 = vmatprep.subr.mxu0 0.0
    %3873 = vmatpush1.msra.mxu0 0.0
    %3874 = vmatprep.mubr.f32.mxu0 0.0
    %3875 = vmatmul.mubr.f32.gmra.mrb[0].mxu0 %v3808
    %v3876 = vpop.f32.mrb[0].mxu0
    %v3877 = vadd.f32 0.0, %v3876
    %v3878 = vpop.f32.mrb[0].mxu0
    %3879 = vdwg.mxu0
    %v3880 = vadd.f32 %v3807, %v3877
    %v3881 = vxor.u32 %v3880, 2147483648
    %v3882 = vmul.f32 %v3881, 1.442695
    %v3883 = vpow.pop %v3882
    %v3884 = vadd.f32 %v3883, 1.0
    %v3885 = vrcp.pop %v3884
    %v3886 = vmul.f32 1.0, %v3885
    %v3887 = vtanh.pop %v3880
    %v3888 = vmul.f32 %v3886, %v3792
    %3890 = vrot.lane.b32.xlu0 %v3887, 32
    %v3891 = vpop.permute.xlu0 %3890
    %v3893 = vmul.f32 %v3886, %v3891
    %3895 = vrot.lane.b32.xlu0 %v3893, 32
    %v3896 = vpop.permute.xlu0 %3895
    %v3898 = vadd.f32 %v3888, %v3896
    %v3899 = vtanh.pop %v3898
    %3901 = vrot.lane.b32.xlu0 %v3899, 32
    %v3902 = vpop.permute.xlu0 %3901
    %v3904 = vmul.f32 %v3886, %v3902
    %3906 = vrot.lane.b32.xlu0 %v3904, 64
    %v3907 = vpop.permute.xlu0 %3906
    %3909 = vst.msk [vmem:[#allocation19 + $0xc] sm:$0x3] %vm381, %v3907
    %3910 = vst.msk [vmem:[#allocation19 + $0x2] sm:$0x3] %vm383, %v3907
    %v3911 = vld [vmem:[#allocation4 + $0xe] sm:$0x3]
    %v3912 = vld [vmem:[#allocation4] sm:$0x3]
    %v3913 = vsel %vm277, %v3911, %v3912
    %v3914 = vsel %vm186, %v3907, 0
    %3916 = vmatprep.subr.mxu0 0.0
    %3917 = vmatpush1.msra.mxu0 %v3167
    %3918 = vmatprep.subr.mxu0 0.0
    %3919 = vmatpush1.msra.mxu0 %v3168
    %3920 = vmatprep.subr.mxu0 0.0
    %3921 = vmatpush1.msra.mxu0 %v3169
    %3922 = vmatprep.subr.mxu0 0.0
    %3923 = vmatpush1.msra.mxu0 %v3170
    %3924 = vmatprep.subr.mxu0 0.0
    %3925 = vmatpush1.msra.mxu0 0.0
    %3926 = vmatprep.subr.mxu0 0.0
    %3927 = vmatpush1.msra.mxu0 0.0
    %3928 = vmatprep.subr.mxu0 0.0
    %3929 = vmatpush1.msra.mxu0 0.0
    %3930 = vmatprep.subr.mxu0 0.0
    %3931 = vmatpush1.msra.mxu0 0.0
    %3932 = vmatprep.subr.mxu0 0.0
    %3933 = vmatpush1.msra.mxu0 0.0
    %3934 = vmatprep.subr.mxu0 0.0
    %3935 = vmatpush1.msra.mxu0 0.0
    %3936 = vmatprep.subr.mxu0 0.0
    %3937 = vmatpush1.msra.mxu0 0.0
    %3938 = vmatprep.subr.mxu0 0.0
    %3939 = vmatpush1.msra.mxu0 0.0
    %3940 = vmatprep.subr.mxu0 0.0
    %3941 = vmatpush1.msra.mxu0 0.0
    %3942 = vmatprep.subr.mxu0 0.0
    %3943 = vmatpush1.msra.mxu0 0.0
    %3944 = vmatprep.subr.mxu0 0.0
    %3945 = vmatpush1.msra.mxu0 0.0
    %3946 = vmatprep.subr.mxu0 0.0
    %3947 = vmatpush1.msra.mxu0 0.0
    %3948 = vmatprep.subr.mxu0 0.0
    %3949 = vmatpush1.msra.mxu0 0.0
    %3950 = vmatprep.subr.mxu0 0.0
    %3951 = vmatpush1.msra.mxu0 0.0
    %3952 = vmatprep.subr.mxu0 0.0
    %3953 = vmatpush1.msra.mxu0 0.0
    %3954 = vmatprep.subr.mxu0 0.0
    %3955 = vmatpush1.msra.mxu0 0.0
    %3956 = vmatprep.subr.mxu0 0.0
    %3957 = vmatpush1.msra.mxu0 0.0
    %3958 = vmatprep.subr.mxu0 0.0
    %3959 = vmatpush1.msra.mxu0 0.0
    %3960 = vmatprep.subr.mxu0 0.0
    %3961 = vmatpush1.msra.mxu0 0.0
    %3962 = vmatprep.subr.mxu0 0.0
    %3963 = vmatpush1.msra.mxu0 0.0
    %3964 = vmatprep.subr.mxu0 0.0
    %3965 = vmatpush1.msra.mxu0 0.0
    %3966 = vmatprep.subr.mxu0 0.0
    %3967 = vmatpush1.msra.mxu0 0.0
    %3968 = vmatprep.subr.mxu0 0.0
    %3969 = vmatpush1.msra.mxu0 0.0
    %3970 = vmatprep.subr.mxu0 0.0
    %3971 = vmatpush1.msra.mxu0 0.0
    %3972 = vmatprep.subr.mxu0 0.0
    %3973 = vmatpush1.msra.mxu0 0.0
    %3974 = vmatprep.subr.mxu0 0.0
    %3975 = vmatpush1.msra.mxu0 0.0
    %3976 = vmatprep.subr.mxu0 0.0
    %3977 = vmatpush1.msra.mxu0 0.0
    %3978 = vmatprep.subr.mxu0 0.0
    %3979 = vmatpush1.msra.mxu0 0.0
    %3980 = vmatprep.mubr.f32.mxu0 0.0
    %3981 = vmatmul.mubr.f32.gmra.mrb[0].mxu0 %v3914
    %v3982 = vpop.f32.mrb[0].mxu0
    %v3983 = vadd.f32 0.0, %v3982
    %v3984 = vpop.f32.mrb[0].mxu0
    %3985 = vdwg.mxu0
    %v3986 = vadd.f32 %v3913, %v3983
    %v3987 = vxor.u32 %v3986, 2147483648
    %v3988 = vmul.f32 %v3987, 1.442695
    %v3989 = vpow.pop %v3988
    %v3990 = vadd.f32 %v3989, 1.0
    %v3991 = vrcp.pop %v3990
    %v3992 = vmul.f32 1.0, %v3991
    %v3993 = vtanh.pop %v3986
    %v3994 = vmul.f32 %v3992, %v3898
    %3996 = vrot.lane.b32.xlu0 %v3993, 32
    %v3997 = vpop.permute.xlu0 %3996
    %v3999 = vmul.f32 %v3992, %v3997
    %4001 = vrot.lane.b32.xlu0 %v3999, 32
    %v4002 = vpop.permute.xlu0 %4001
    %v4004 = vadd.f32 %v3994, %v4002
    %v4005 = vtanh.pop %v4004
    %4007 = vrot.lane.b32.xlu0 %v4005, 32
    %v4008 = vpop.permute.xlu0 %4007
    %v4010 = vmul.f32 %v3992, %v4008
    %4012 = vrot.lane.b32.xlu0 %v4010, 64
    %v4013 = vpop.permute.xlu0 %4012
    %4015 = vst.msk [vmem:[#allocation19 + $0xe] sm:$0x3] %vm381, %v4013
    %4016 = vst.msk [vmem:[#allocation19] sm:$0x3] %vm383, %v4013
    %s4017 = scalar_lea.vmem [#allocation20], 12
    %4018 = vst.msk [vmem:[%s4017] sm:$0x3] %vm381, %v4013
    %4019 = vrot.lane.b32.xlu0 %v4010, 48
    %v4020 = vpop.permute.xlu0 %4019
    %s4022 = scalar_lea.vmem [#allocation20], 14
    %4023 = vst.msk [vmem:[%s4022] sm:$0x3] %vm381, %v4020
    %4025 = vrot.lane.b32.xlu0 %v4004, 96
    %v4026 = vpop.permute.xlu0 %4025
    %s4028 = scalar_lea.vmem [#allocation22], 12
    %4029 = vst.msk [vmem:[%s4028] sm:$0x3] %vm381, %v4026
    %4030 = vrot.lane.b32.xlu0 %v4004, 80
    %v4031 = vpop.permute.xlu0 %4030
    %s4033 = scalar_lea.vmem [#allocation22], 14
    %4034 = vst.msk [vmem:[%s4033] sm:$0x3] %vm381, %v4031
    // Predicated region
    $region86: #{tpu_custom_call.1} parent=1 // pred_check
      _
    $region87: #{tpu_custom_call.1} parent=1 // pred_check_branch
      %4036 = sbr.rel (0) target = $region89
    $region88: #{tpu_custom_call.1} parent=1 // pred_region
      %s4038 = ssub.s32 256, 256
      %4039 = vsyncadd [#allocation7], %s4038
      %s4040 = sshll.u32 [#allocation19], 4
      %s4041 = int_to_ptr.vmem [resolvable:$true] %s4040
      %4046 = dma.vmem_to_hbm [thread:$0]  %s4041, 256, %s13, [#allocation7], 128, 128, 8
    $region89: #{tpu_custom_call.1} parent=1 // pred_fallthru
      _
    // Predicated region
    $region90: #{tpu_custom_call.1} parent=1 // pred_check
      _
    $region91: #{tpu_custom_call.1} parent=1 // pred_check_branch
      %4048 = sbr.rel (0) target = $region93
    $region92: #{tpu_custom_call.1} parent=1 // pred_region
      %s4050 = ssub.s32 256, 256
      %4051 = vsyncadd [#allocation21], %s4050
      %s4052 = sshll.u32 [#allocation20], 4
      %s4053 = int_to_ptr.vmem [resolvable:$true] %s4052
      %4058 = dma.vmem_to_hbm [thread:$0]  %s4053, 256, %s14, [#allocation21], 32, 32, 2
    $region93: #{tpu_custom_call.1} parent=1 // pred_fallthru
      _
    // Predicated region
    $region94: #{tpu_custom_call.1} parent=1 // pred_check
      _
    $region95: #{tpu_custom_call.1} parent=1 // pred_check_branch
      %4060 = sbr.rel (0) target = $region97
    $region96: #{tpu_custom_call.1} parent=1 // pred_region
      %s4062 = ssub.s32 256, 256
      %4063 = vsyncadd [#allocation21], %s4062
      %s4064 = sshll.u32 [#allocation22], 4
      %s4065 = int_to_ptr.vmem [resolvable:$true] %s4064
      %4070 = dma.vmem_to_hbm [thread:$0]  %s4065, 256, %s15, [#allocation21], 32, 32, 2
    $region97: #{tpu_custom_call.1} parent=1 // pred_fallthru
      _
    // Predicated region
    $region98: #{tpu_custom_call.1} parent=1 // pred_check
      _
    $region99: #{tpu_custom_call.1} parent=1 // pred_check_branch
      %4072 = sbr.rel (0) target = $region101
    $region100: #{tpu_custom_call.1} parent=1 // pred_region
      %4073 = dma.done [#allocation7], 256
    $region101: #{tpu_custom_call.1} parent=1 // pred_fallthru
      _
    // Predicated region
    $region102: #{tpu_custom_call.1} parent=1 // pred_check
      _
    $region103: #{tpu_custom_call.1} parent=1 // pred_check_branch
      %4075 = sbr.rel (0) target = $region105
    $region104: #{tpu_custom_call.1} parent=1 // pred_region
      %4076 = dma.done [#allocation21], 256
    $region105: #{tpu_custom_call.1} parent=1 // pred_fallthru
      _
    // Predicated region
    $region106: #{tpu_custom_call.1} parent=1 // pred_check
      _
    $region107: #{tpu_custom_call.1} parent=1 // pred_check_branch
      %4078 = sbr.rel (0) target = $region109
    $region108: #{tpu_custom_call.1} parent=1 // pred_region
      %4079 = dma.done [#allocation21], 256
    $region109: #{tpu_custom_call.1} parent=1 // pred_fallthru
      _
    %4080 = vsyncpa [#allocation6], 1
    %4081 = vsyncpa [#allocation9], 1
    %4082 = vsyncpa [#allocation12], 1
    %4083 = vsyncpa [#allocation15], 1
    %4084 = vsyncpa [#allocation18], 1
    %4085 = vsyncpa [#allocation7], 1
    %4086 = vsyncpa [#allocation21], 1

</llo_original>
